<compile_context>
chip_gen: v6e
topology: v6e:2x2x1
jax: 0.10.0
libtpu: 0.0.40
codegen_flags: <defaults>
</compile_context>

<pallas_src>
import functools

import jax
import jax.numpy as jnp
from jax import lax
from jax.experimental import pallas as pl
from jax.experimental.pallas import tpu as pltpu  # noqa: F401  (TPU backend)


CFG = dict(vocab=128, max_pos=64, type_vocab=2, hidden=32, heads=4,
           head_dim=8, inter=64, layers=2, num_tags=8)

LANE = 128  # TPU lane width: classifier output is padded to this (lane-dense)


# ----------------------------- Pallas kernels ------------------------------

def _layernorm(x, g, b):
    mu = jnp.mean(x, axis=-1, keepdims=True)
    var = jnp.mean((x - mu) ** 2, axis=-1, keepdims=True)
    return (x - mu) * lax.rsqrt(var + 1e-12) * g + b


def _gelu(x):
    # tanh-approx GELU.  TODO(synk): HF BERT default is exact erf-GELU; the
    # tanh approximation differs by <1e-3 and keeps the Mosaic lowering simple.
    return 0.5 * x * (1.0 + jnp.tanh(
        0.7978845608028654 * (x + 0.044715 * x * x * x)))


def _encoder_kernel(emb_ref, bias_ref, eg_ref, eb_ref,
                    wqkv_ref, bqkv_ref, wo_ref, bo_ref,
                    l1g_ref, l1b_ref, wi_ref, bi_ref, wf_ref, bf_ref,
                    l2g_ref, l2b_ref, clw_ref, clb_ref,
                    out_ref, *, B, S, H, nH, Dh, L):
    """Fused: embedding-LN + L transformer layers + padded classifier head."""
    x = _layernorm(emb_ref[...], eg_ref[...], eb_ref[...])   # (B*S, H)
    bias = bias_ref[...]                                     # (B*S, B*S)
    scale = 1.0 / (Dh ** 0.5)

    for l in range(L):                                       # static unroll
        attn = jnp.zeros_like(x)
        for h in range(nH):                                  # static unroll
            qh = jnp.dot(x, wqkv_ref[l, 0, h],
                         preferred_element_type=jnp.float32) + bqkv_ref[l, 0, h]
            kh = jnp.dot(x, wqkv_ref[l, 1, h],
                         preferred_element_type=jnp.float32) + bqkv_ref[l, 1, h]
            vh = jnp.dot(x, wqkv_ref[l, 2, h],
                         preferred_element_type=jnp.float32) + bqkv_ref[l, 2, h]
            # flat attention with block-diagonal bias: cross-sequence / padded
            # keys sit at -10000 and underflow to exactly 0 after softmax,
            # matching the per-sequence HF additive-mask behaviour in f32.
            s = jnp.dot(qh, kh.T, preferred_element_type=jnp.float32) * scale + bias
            m = jnp.max(s, axis=-1, keepdims=True)
            p = jnp.exp(s - m)
            p = p * pl.reciprocal(jnp.sum(p, axis=-1, keepdims=True), approx=True)
            ch = jnp.dot(p, vh, preferred_element_type=jnp.float32)   # (B*S, Dh)
            # fold this head's slice of the output projection in directly
            attn = attn + jnp.dot(ch, wo_ref[l, h],
                                  preferred_element_type=jnp.float32)
        x = _layernorm(attn + bo_ref[l] + x, l1g_ref[l], l1b_ref[l])
        inter = _gelu(jnp.dot(x, wi_ref[l],
                              preferred_element_type=jnp.float32) + bi_ref[l])
        ffn = jnp.dot(inter, wf_ref[l],
                      preferred_element_type=jnp.float32) + bf_ref[l]
        x = _layernorm(ffn + x, l2g_ref[l], l2b_ref[l])

    # dropout(p=0.1) on sequence_output is identity in eval mode.
    # classifier written as a lane-dense 128-wide slab (logits in cols [:T]).
    out_ref[...] = jnp.dot(x, clw_ref[...],
                           preferred_element_type=jnp.float32) + clb_ref[...]


def _crf_loss_kernel(em_ref, oh_ref, mask_ref, last_ref,
                     start_ref, end_ref, trans_ref, o_ref, *, B, S, T):
    """CRF negative log-likelihood, reduction='mean' over the batch.

    em_ref:   (S, B, T) emissions (logits), time-major
    oh_ref:   (S, B, T) one-hot gold tags (labels==-100 already mapped to 0)
    mask_ref: (S, B, 1) float attention mask
    last_ref: (S, B, 1) indicator of the last valid timestep per sequence
    start/end: (1, T), trans: (T, T);  output: (1, 1) mean NLL
    """
    start = start_ref[...]
    end = end_ref[...]
    trans = trans_ref[...]

    # ---- gold-path score (numerator): independent of the forward recursion,
    #      hoisted out of it and statically unrolled over time ----
    oh0 = oh_ref[0]
    num = jnp.sum(oh0 * (start + em_ref[0]), axis=-1, keepdims=True)     # (B,1)
    num = num + last_ref[0] * jnp.sum(oh0 * end, axis=-1, keepdims=True)
    for t in range(1, S):
        oh_t = oh_ref[t]
        gold = (jnp.sum(jnp.dot(oh_ref[t - 1], trans,
                                preferred_element_type=jnp.float32) * oh_t,
                        axis=-1, keepdims=True)
                + jnp.sum(em_ref[t] * oh_t, axis=-1, keepdims=True))
        num = num + mask_ref[t] * gold
        num = num + last_ref[t] * jnp.sum(oh_t * end, axis=-1, keepdims=True)

    # ---- log-partition (forward algorithm): inherently serial; statically
    #      unrolled so the scheduler sees the whole dependence chain ----
    alpha = start + em_ref[0]                                            # (B,T)
    for t in range(1, S):
        scores = alpha[:, :, None] + trans[None, :, :] + em_ref[t][:, None, :]
        mmax = jnp.max(scores, axis=1, keepdims=True)
        lse = jnp.log(jnp.sum(jnp.exp(scores - mmax), axis=1)) + mmax[:, 0, :]
        alpha = jnp.where(mask_ref[t] > 0.5, lse, alpha)
    alpha = alpha + end              # torchcrf adds end_transitions here
    amax = jnp.max(alpha, axis=-1, keepdims=True)
    denom = jnp.log(jnp.sum(jnp.exp(alpha - amax), axis=-1, keepdims=True)) + amax

    # loss = mean_b( -llh ) = mean_b( denom - num )
    o_ref[...] = jnp.sum(denom - num, axis=0, keepdims=True) * (1.0 / B)


# --------------------------- pallas_call wrappers ---------------------------

def _fullspec(shape):
    n = len(shape)
    return pl.BlockSpec(shape, lambda i, n=n: (0,) * n)


def _pcall(kernel, out_sds, *inputs):
    return pl.pallas_call(
        kernel,
        out_shape=out_sds,
        grid=(1,),
        in_specs=[_fullspec(x.shape) for x in inputs],
        out_specs=_fullspec(out_sds.shape),
    )(*inputs)


# ------------------------------- model glue ---------------------------------

def init_params(key, cfg=CFG):
    keys = iter(jax.random.split(key, 64))

    def nrm(shape):
        return (0.02 * jax.random.normal(next(keys), shape)).astype(jnp.float32)

    H, I, T = cfg['hidden'], cfg['inter'], cfg['num_tags']
    L, nH, Dh = cfg['layers'], cfg['heads'], cfg['head_dim']
    return dict(
        word_emb=nrm((cfg['vocab'], H)),
        pos_emb=nrm((cfg['max_pos'], H)),
        type_emb=nrm((cfg['type_vocab'], H)),
        emb_ln_g=jnp.ones((1, H), jnp.float32),
        emb_ln_b=jnp.zeros((1, H), jnp.float32),
        # attention weights stored per (q/k/v, head) so the fused kernel only
        # indexes leading dims (no lane slicing): [l, 0/1/2, h] = Wq/Wk/Wv head h
        wqkv=nrm((L, 3, nH, H, Dh)),
        bqkv=jnp.zeros((L, 3, nH, 1, Dh), jnp.float32),
        wo=nrm((L, nH, Dh, H)),            # output projection, split per head
        bo=jnp.zeros((L, 1, H), jnp.float32),
        ln1_g=jnp.ones((L, 1, H), jnp.float32),
        ln1_b=jnp.zeros((L, 1, H), jnp.float32),
        wi=nrm((L, H, I)),
        bi=jnp.zeros((L, 1, I), jnp.float32),
        wf=nrm((L, I, H)),
        bf=jnp.zeros((L, 1, H), jnp.float32),
        ln2_g=jnp.ones((L, 1, H), jnp.float32),
        ln2_b=jnp.zeros((L, 1, H), jnp.float32),
        cls_w=nrm((H, T)),
        cls_b=jnp.zeros((1, T), jnp.float32),
        crf_start=nrm((1, T)),
        crf_end=nrm((1, T)),
        crf_trans=nrm((T, T)),
    )


def bert_ner_crf_forward(params, input_ids, attention_mask, token_type_ids,
                         labels=None, cfg=CFG):
    B, S = input_ids.shape
    H, nH, Dh = cfg['hidden'], cfg['heads'], cfg['head_dim']
    T, L = cfg['num_tags'], cfg['layers']

    # --- embeddings (table gathers are plain-JAX glue) ---
    pos_ids = jnp.arange(S)
    emb = (params['word_emb'][input_ids]
           + params['pos_emb'][pos_ids][None, :, :]
           + params['type_emb'][token_type_ids]).reshape(B * S, H)

    # flat block-diagonal additive attention bias (HF-style -10000 mask)
    tok_seq = jnp.repeat(jnp.arange(B), S)                    # (B*S,)
    key_ok = attention_mask.reshape(B * S) > 0
    attn_bias = jnp.where((tok_seq[:, None] == tok_seq[None, :]) & key_ok[None, :],
                          0.0, -10000.0).astype(jnp.float32)  # (B*S, B*S)

    # lane-dense classifier weights (pad num_tags -> 128 columns)
    clw = jnp.pad(params['cls_w'], ((0, 0), (0, LANE - T)))
    clb = jnp.pad(params['cls_b'], ((0, 0), (0, LANE - T)))

    enc = functools.partial(_encoder_kernel, B=B, S=S, H=H, nH=nH, Dh=Dh, L=L)
    out_pad = _pcall(enc, jax.ShapeDtypeStruct((B * S, LANE), jnp.float32),
                     emb, attn_bias,
                     params['emb_ln_g'], params['emb_ln_b'],
                     params['wqkv'], params['bqkv'], params['wo'], params['bo'],
                     params['ln1_g'], params['ln1_b'],
                     params['wi'], params['bi'], params['wf'], params['bf'],
                     params['ln2_g'], params['ln2_b'], clw, clb)
    logits = out_pad[:, :T].reshape(B, S, T)

    if labels is None:
        return logits, None

    # --- CRF negative log-likelihood (reduction='mean' over the batch) ---
    mask_f = attention_mask.astype(jnp.float32)
    temp_labels = jnp.where(labels == -100, 0, labels)
    oh = jax.nn.one_hot(temp_labels, T, dtype=jnp.float32)          # (B, S, T)
    seq_ends = jnp.sum(mask_f, axis=1).astype(jnp.int32) - 1        # (B,)
    last_ind = (jnp.arange(S)[None, :] == seq_ends[:, None]).astype(jnp.float32)

    em_t = jnp.transpose(logits, (1, 0, 2))                         # (S, B, T)
    oh_t = jnp.transpose(oh, (1, 0, 2))
    mask_t = jnp.transpose(mask_f, (1, 0))[:, :, None]              # (S, B, 1)
    last_t = jnp.transpose(last_ind, (1, 0))[:, :, None]

    crf = functools.partial(_crf_loss_kernel, B=B, S=S, T=T)
    loss = _pcall(crf, jax.ShapeDtypeStruct((1, 1), jnp.float32),
                  em_t, oh_t, mask_t, last_t,
                  params['crf_start'], params['crf_end'],
                  params['crf_trans'])[0, 0]
    return logits, loss


# ---------------------------------- main -------------------------------------

if __name__ == "__main__":
    key = jax.random.PRNGKey(0)
    pkey, k1, k2 = jax.random.split(key, 3)
    params = init_params(pkey)

    B, S, T = 2, 8, CFG['num_tags']
    input_ids = jax.random.randint(k1, (B, S), 0, CFG['vocab'], dtype=jnp.int32)
    token_type_ids = jnp.zeros((B, S), dtype=jnp.int32)
    lengths = jnp.array([8, 5], dtype=jnp.int32)
    attention_mask = (jnp.arange(S)[None, :] < lengths[:, None]).astype(jnp.int32)
    labels = jax.random.randint(k2, (B, S), 0, T, dtype=jnp.int32)
    labels = jnp.where(attention_mask == 1, labels, -100)

    logits, loss = bert_ner_crf_forward(params, input_ids, attention_mask,
                                        token_type_ids, labels)
    jax.block_until_ready((logits, loss))
    assert logits.shape == (B, S, T)
    assert bool(jnp.isfinite(loss))
    print("KERNEL_OK")
</pallas_src>

<mosaic_0001>
module attributes {stable_mosaic.version = 11 : i64} {
  func.func @_encoder_kernel(%arg0: i32, %arg1: memref<16x32xf32, #tpu.memory_space<vmem>>, %arg2: memref<16x16xf32, #tpu.memory_space<vmem>>, %arg3: memref<1x32xf32, #tpu.memory_space<vmem>>, %arg4: memref<1x32xf32, #tpu.memory_space<vmem>>, %arg5: memref<2x3x4x32x8xf32, #tpu.memory_space<vmem>>, %arg6: memref<2x3x4x1x8xf32, #tpu.memory_space<vmem>>, %arg7: memref<2x4x8x32xf32, #tpu.memory_space<vmem>>, %arg8: memref<2x1x32xf32, #tpu.memory_space<vmem>>, %arg9: memref<2x1x32xf32, #tpu.memory_space<vmem>>, %arg10: memref<2x1x32xf32, #tpu.memory_space<vmem>>, %arg11: memref<2x32x64xf32, #tpu.memory_space<vmem>>, %arg12: memref<2x1x64xf32, #tpu.memory_space<vmem>>, %arg13: memref<2x64x32xf32, #tpu.memory_space<vmem>>, %arg14: memref<2x1x32xf32, #tpu.memory_space<vmem>>, %arg15: memref<2x1x32xf32, #tpu.memory_space<vmem>>, %arg16: memref<2x1x32xf32, #tpu.memory_space<vmem>>, %arg17: memref<32x128xf32, #tpu.memory_space<vmem>>, %arg18: memref<1x128xf32, #tpu.memory_space<vmem>>, %arg19: memref<16x128xf32, #tpu.memory_space<vmem>>) attributes {dimension_semantics = [#tpu.dimension_semantics<arbitrary>], iteration_bounds = array<i64: 1>, scalar_prefetch = 0 : i64, scratch_operands = 0 : i64, tpu.core_type = #tpu.core_type<tc>, window_params = [{pipeline_mode = #tpu.pipeline_mode<synchronous>, transform_indices = @transform_0, window_bounds = array<i64: 16, 32>}, {pipeline_mode = #tpu.pipeline_mode<synchronous>, transform_indices = @transform_1, window_bounds = array<i64: 16, 16>}, {pipeline_mode = #tpu.pipeline_mode<synchronous>, transform_indices = @transform_2, window_bounds = array<i64: 1, 32>}, {pipeline_mode = #tpu.pipeline_mode<synchronous>, transform_indices = @transform_3, window_bounds = array<i64: 1, 32>}, {pipeline_mode = #tpu.pipeline_mode<synchronous>, transform_indices = @transform_4, window_bounds = array<i64: 2, 3, 4, 32, 8>}, {pipeline_mode = #tpu.pipeline_mode<synchronous>, transform_indices = @transform_5, window_bounds = array<i64: 2, 3, 4, 1, 8>}, {pipeline_mode = #tpu.pipeline_mode<synchronous>, transform_indices = @transform_6, window_bounds = array<i64: 2, 4, 8, 32>}, {pipeline_mode = #tpu.pipeline_mode<synchronous>, transform_indices = @transform_7, window_bounds = array<i64: 2, 1, 32>}, {pipeline_mode = #tpu.pipeline_mode<synchronous>, transform_indices = @transform_8, window_bounds = array<i64: 2, 1, 32>}, {pipeline_mode = #tpu.pipeline_mode<synchronous>, transform_indices = @transform_9, window_bounds = array<i64: 2, 1, 32>}, {pipeline_mode = #tpu.pipeline_mode<synchronous>, transform_indices = @transform_10, window_bounds = array<i64: 2, 32, 64>}, {pipeline_mode = #tpu.pipeline_mode<synchronous>, transform_indices = @transform_11, window_bounds = array<i64: 2, 1, 64>}, {pipeline_mode = #tpu.pipeline_mode<synchronous>, transform_indices = @transform_12, window_bounds = array<i64: 2, 64, 32>}, {pipeline_mode = #tpu.pipeline_mode<synchronous>, transform_indices = @transform_13, window_bounds = array<i64: 2, 1, 32>}, {pipeline_mode = #tpu.pipeline_mode<synchronous>, transform_indices = @transform_14, window_bounds = array<i64: 2, 1, 32>}, {pipeline_mode = #tpu.pipeline_mode<synchronous>, transform_indices = @transform_15, window_bounds = array<i64: 2, 1, 32>}, {pipeline_mode = #tpu.pipeline_mode<synchronous>, transform_indices = @transform_16, window_bounds = array<i64: 32, 128>}, {pipeline_mode = #tpu.pipeline_mode<synchronous>, transform_indices = @transform_17, window_bounds = array<i64: 1, 128>}, {pipeline_mode = #tpu.pipeline_mode<synchronous>, transform_indices = @transform_18, window_bounds = array<i64: 16, 128>}]} {
    %c0 = arith.constant 0 : index
    %c0_0 = arith.constant 0 : index
    %0 = vector.load %arg1[%c0, %c0_0] : memref<16x32xf32, #tpu.memory_space<vmem>>, vector<16x32xf32>
    %c0_1 = arith.constant 0 : index
    %c0_2 = arith.constant 0 : index
    %1 = vector.load %arg3[%c0_1, %c0_2] : memref<1x32xf32, #tpu.memory_space<vmem>>, vector<1x32xf32>
    %c0_3 = arith.constant 0 : index
    %c0_4 = arith.constant 0 : index
    %2 = vector.load %arg4[%c0_3, %c0_4] : memref<1x32xf32, #tpu.memory_space<vmem>>, vector<1x32xf32>
    %cst = arith.constant dense<0.000000e+00> : vector<16xf32>
    %3 = vector.multi_reduction <add>, %0, %cst [1] : vector<16x32xf32> to vector<16xf32>
    %4 = vector.shape_cast %3 : vector<16xf32> to vector<16x1xf32>
    %cst_5 = arith.constant 3.200000e+01 : f32
    %5 = vector.broadcast %cst_5 : f32 to vector<16x1xf32>
    %6 = arith.divf %4, %5 : vector<16x1xf32>
    %7 = vector.broadcast %6 : vector<16x1xf32> to vector<16x32xf32>
    %8 = arith.subf %0, %7 : vector<16x32xf32>
    %9 = arith.mulf %8, %8 : vector<16x32xf32>
    %cst_6 = arith.constant dense<0.000000e+00> : vector<16xf32>
    %10 = vector.multi_reduction <add>, %9, %cst_6 [1] : vector<16x32xf32> to vector<16xf32>
    %11 = vector.shape_cast %10 : vector<16xf32> to vector<16x1xf32>
    %cst_7 = arith.constant 3.200000e+01 : f32
    %12 = vector.broadcast %cst_7 : f32 to vector<16x1xf32>
    %13 = arith.divf %11, %12 : vector<16x1xf32>
    %14 = vector.broadcast %6 : vector<16x1xf32> to vector<16x32xf32>
    %15 = arith.subf %0, %14 : vector<16x32xf32>
    %cst_8 = arith.constant 9.99999996E-13 : f32
    %16 = vector.broadcast %cst_8 : f32 to vector<16x1xf32>
    %17 = arith.addf %13, %16 : vector<16x1xf32>
    %18 = math.rsqrt %17 : vector<16x1xf32>
    %19 = vector.broadcast %18 : vector<16x1xf32> to vector<16x32xf32>
    %20 = arith.mulf %15, %19 : vector<16x32xf32>
    %21 = vector.broadcast %1 : vector<1x32xf32> to vector<16x32xf32>
    %22 = arith.mulf %20, %21 : vector<16x32xf32>
    %23 = vector.broadcast %2 : vector<1x32xf32> to vector<16x32xf32>
    %24 = arith.addf %22, %23 : vector<16x32xf32>
    %c0_9 = arith.constant 0 : index
    %c0_10 = arith.constant 0 : index
    %25 = vector.load %arg2[%c0_9, %c0_10] : memref<16x16xf32, #tpu.memory_space<vmem>>, vector<16x16xf32>
    %cst_11 = arith.constant 0.000000e+00 : f32
    %26 = vector.broadcast %cst_11 : f32 to vector<16x32xf32>
    %c0_12 = arith.constant 0 : index
    %c0_13 = arith.constant 0 : index
    %c0_14 = arith.constant 0 : index
    %c0_15 = arith.constant 0 : index
    %c0_16 = arith.constant 0 : index
    %27 = vector.load %arg5[%c0_12, %c0_13, %c0_14, %c0_15, %c0_16] : memref<2x3x4x32x8xf32, #tpu.memory_space<vmem>>, vector<1x1x1x32x8xf32>
    %28 = vector.shape_cast %27 : vector<1x1x1x32x8xf32> to vector<32x8xf32>
    %cst_17 = arith.constant dense<0.000000e+00> : vector<16x8xf32>
    %29 = tpu.matmul %24, %28, %cst_17 {dimension_numbers = #tpu.dot_dimension_numbers<[1], [0], [0], [1], [0, 0, 1, 1], [], []>} : vector<16x32xf32>, vector<32x8xf32>, vector<16x8xf32> -> vector<16x8xf32>
    %c0_18 = arith.constant 0 : index
    %c0_19 = arith.constant 0 : index
    %c0_20 = arith.constant 0 : index
    %c0_21 = arith.constant 0 : index
    %c0_22 = arith.constant 0 : index
    %30 = vector.load %arg6[%c0_18, %c0_19, %c0_20, %c0_21, %c0_22] : memref<2x3x4x1x8xf32, #tpu.memory_space<vmem>>, vector<1x1x1x1x8xf32>
    %31 = vector.shape_cast %30 : vector<1x1x1x1x8xf32> to vector<1x8xf32>
    %32 = vector.broadcast %31 : vector<1x8xf32> to vector<16x8xf32>
    %33 = arith.addf %29, %32 : vector<16x8xf32>
    %c0_23 = arith.constant 0 : index
    %c1 = arith.constant 1 : index
    %c0_24 = arith.constant 0 : index
    %c0_25 = arith.constant 0 : index
    %c0_26 = arith.constant 0 : index
    %34 = vector.load %arg5[%c0_23, %c1, %c0_24, %c0_25, %c0_26] : memref<2x3x4x32x8xf32, #tpu.memory_space<vmem>>, vector<1x1x1x32x8xf32>
    %35 = vector.shape_cast %34 : vector<1x1x1x32x8xf32> to vector<32x8xf32>
    %cst_27 = arith.constant dense<0.000000e+00> : vector<16x8xf32>
    %36 = tpu.matmul %24, %35, %cst_27 {dimension_numbers = #tpu.dot_dimension_numbers<[1], [0], [0], [1], [0, 0, 1, 1], [], []>} : vector<16x32xf32>, vector<32x8xf32>, vector<16x8xf32> -> vector<16x8xf32>
    %c0_28 = arith.constant 0 : index
    %c1_29 = arith.constant 1 : index
    %c0_30 = arith.constant 0 : index
    %c0_31 = arith.constant 0 : index
    %c0_32 = arith.constant 0 : index
    %37 = vector.load %arg6[%c0_28, %c1_29, %c0_30, %c0_31, %c0_32] : memref<2x3x4x1x8xf32, #tpu.memory_space<vmem>>, vector<1x1x1x1x8xf32>
    %38 = vector.shape_cast %37 : vector<1x1x1x1x8xf32> to vector<1x8xf32>
    %39 = vector.broadcast %38 : vector<1x8xf32> to vector<16x8xf32>
    %40 = arith.addf %36, %39 : vector<16x8xf32>
    %c0_33 = arith.constant 0 : index
    %c2 = arith.constant 2 : index
    %c0_34 = arith.constant 0 : index
    %c0_35 = arith.constant 0 : index
    %c0_36 = arith.constant 0 : index
    %41 = vector.load %arg5[%c0_33, %c2, %c0_34, %c0_35, %c0_36] : memref<2x3x4x32x8xf32, #tpu.memory_space<vmem>>, vector<1x1x1x32x8xf32>
    %42 = vector.shape_cast %41 : vector<1x1x1x32x8xf32> to vector<32x8xf32>
    %cst_37 = arith.constant dense<0.000000e+00> : vector<16x8xf32>
    %43 = tpu.matmul %24, %42, %cst_37 {dimension_numbers = #tpu.dot_dimension_numbers<[1], [0], [0], [1], [0, 0, 1, 1], [], []>} : vector<16x32xf32>, vector<32x8xf32>, vector<16x8xf32> -> vector<16x8xf32>
    %c0_38 = arith.constant 0 : index
    %c2_39 = arith.constant 2 : index
    %c0_40 = arith.constant 0 : index
    %c0_41 = arith.constant 0 : index
    %c0_42 = arith.constant 0 : index
    %44 = vector.load %arg6[%c0_38, %c2_39, %c0_40, %c0_41, %c0_42] : memref<2x3x4x1x8xf32, #tpu.memory_space<vmem>>, vector<1x1x1x1x8xf32>
    %45 = vector.shape_cast %44 : vector<1x1x1x1x8xf32> to vector<1x8xf32>
    %46 = vector.broadcast %45 : vector<1x8xf32> to vector<16x8xf32>
    %47 = arith.addf %43, %46 : vector<16x8xf32>
    %48 = tpu.transpose %40, [1, 0] : vector<16x8xf32> -> vector<8x16xf32>
    %cst_43 = arith.constant dense<0.000000e+00> : vector<16x16xf32>
    %49 = tpu.matmul %33, %48, %cst_43 {dimension_numbers = #tpu.dot_dimension_numbers<[1], [0], [0], [1], [0, 0, 1, 1], [], []>} : vector<16x8xf32>, vector<8x16xf32>, vector<16x16xf32> -> vector<16x16xf32>
    %cst_44 = arith.constant 0.353553385 : f32
    %50 = vector.broadcast %cst_44 : f32 to vector<16x16xf32>
    %51 = arith.mulf %49, %50 : vector<16x16xf32>
    %52 = arith.addf %51, %25 : vector<16x16xf32>
    %cst_45 = arith.constant dense<0xFF800000> : vector<16xf32>
    %53 = vector.multi_reduction <maximumf>, %52, %cst_45 [1] : vector<16x16xf32> to vector<16xf32>
    %54 = vector.shape_cast %53 : vector<16xf32> to vector<16x1xf32>
    %55 = vector.broadcast %54 : vector<16x1xf32> to vector<16x16xf32>
    %56 = arith.subf %52, %55 : vector<16x16xf32>
    %57 = math.exp %56 : vector<16x16xf32>
    %cst_46 = arith.constant dense<0.000000e+00> : vector<16xf32>
    %58 = vector.multi_reduction <add>, %57, %cst_46 [1] : vector<16x16xf32> to vector<16xf32>
    %59 = vector.shape_cast %58 : vector<16xf32> to vector<16x1xf32>
    %60 = tpu.reciprocal %59 {approx = true} : vector<16x1xf32> -> vector<16x1xf32>
    %61 = vector.broadcast %60 : vector<16x1xf32> to vector<16x16xf32>
    %62 = arith.mulf %57, %61 : vector<16x16xf32>
    %cst_47 = arith.constant dense<0.000000e+00> : vector<16x8xf32>
    %63 = tpu.matmul %62, %47, %cst_47 {dimension_numbers = #tpu.dot_dimension_numbers<[1], [0], [0], [1], [0, 0, 1, 1], [], []>} : vector<16x16xf32>, vector<16x8xf32>, vector<16x8xf32> -> vector<16x8xf32>
    %c0_48 = arith.constant 0 : index
    %c0_49 = arith.constant 0 : index
    %c0_50 = arith.constant 0 : index
    %c0_51 = arith.constant 0 : index
    %64 = vector.load %arg7[%c0_48, %c0_49, %c0_50, %c0_51] : memref<2x4x8x32xf32, #tpu.memory_space<vmem>>, vector<1x1x8x32xf32>
    %65 = vector.shape_cast %64 : vector<1x1x8x32xf32> to vector<8x32xf32>
    %cst_52 = arith.constant dense<0.000000e+00> : vector<16x32xf32>
    %66 = tpu.matmul %63, %65, %cst_52 {dimension_numbers = #tpu.dot_dimension_numbers<[1], [0], [0], [1], [0, 0, 1, 1], [], []>} : vector<16x8xf32>, vector<8x32xf32>, vector<16x32xf32> -> vector<16x32xf32>
    %67 = arith.addf %26, %66 : vector<16x32xf32>
    %c0_53 = arith.constant 0 : index
    %c0_54 = arith.constant 0 : index
    %c1_55 = arith.constant 1 : index
    %c0_56 = arith.constant 0 : index
    %c0_57 = arith.constant 0 : index
    %68 = vector.load %arg5[%c0_53, %c0_54, %c1_55, %c0_56, %c0_57] : memref<2x3x4x32x8xf32, #tpu.memory_space<vmem>>, vector<1x1x1x32x8xf32>
    %69 = vector.shape_cast %68 : vector<1x1x1x32x8xf32> to vector<32x8xf32>
    %cst_58 = arith.constant dense<0.000000e+00> : vector<16x8xf32>
    %70 = tpu.matmul %24, %69, %cst_58 {dimension_numbers = #tpu.dot_dimension_numbers<[1], [0], [0], [1], [0, 0, 1, 1], [], []>} : vector<16x32xf32>, vector<32x8xf32>, vector<16x8xf32> -> vector<16x8xf32>
    %c0_59 = arith.constant 0 : index
    %c0_60 = arith.constant 0 : index
    %c1_61 = arith.constant 1 : index
    %c0_62 = arith.constant 0 : index
    %c0_63 = arith.constant 0 : index
    %71 = vector.load %arg6[%c0_59, %c0_60, %c1_61, %c0_62, %c0_63] : memref<2x3x4x1x8xf32, #tpu.memory_space<vmem>>, vector<1x1x1x1x8xf32>
    %72 = vector.shape_cast %71 : vector<1x1x1x1x8xf32> to vector<1x8xf32>
    %73 = vector.broadcast %72 : vector<1x8xf32> to vector<16x8xf32>
    %74 = arith.addf %70, %73 : vector<16x8xf32>
    %c0_64 = arith.constant 0 : index
    %c1_65 = arith.constant 1 : index
    %c1_66 = arith.constant 1 : index
    %c0_67 = arith.constant 0 : index
    %c0_68 = arith.constant 0 : index
    %75 = vector.load %arg5[%c0_64, %c1_65, %c1_66, %c0_67, %c0_68] : memref<2x3x4x32x8xf32, #tpu.memory_space<vmem>>, vector<1x1x1x32x8xf32>
    %76 = vector.shape_cast %75 : vector<1x1x1x32x8xf32> to vector<32x8xf32>
    %cst_69 = arith.constant dense<0.000000e+00> : vector<16x8xf32>
    %77 = tpu.matmul %24, %76, %cst_69 {dimension_numbers = #tpu.dot_dimension_numbers<[1], [0], [0], [1], [0, 0, 1, 1], [], []>} : vector<16x32xf32>, vector<32x8xf32>, vector<16x8xf32> -> vector<16x8xf32>
    %c0_70 = arith.constant 0 : index
    %c1_71 = arith.constant 1 : index
    %c1_72 = arith.constant 1 : index
    %c0_73 = arith.constant 0 : index
    %c0_74 = arith.constant 0 : index
    %78 = vector.load %arg6[%c0_70, %c1_71, %c1_72, %c0_73, %c0_74] : memref<2x3x4x1x8xf32, #tpu.memory_space<vmem>>, vector<1x1x1x1x8xf32>
    %79 = vector.shape_cast %78 : vector<1x1x1x1x8xf32> to vector<1x8xf32>
    %80 = vector.broadcast %79 : vector<1x8xf32> to vector<16x8xf32>
    %81 = arith.addf %77, %80 : vector<16x8xf32>
    %c0_75 = arith.constant 0 : index
    %c2_76 = arith.constant 2 : index
    %c1_77 = arith.constant 1 : index
    %c0_78 = arith.constant 0 : index
    %c0_79 = arith.constant 0 : index
    %82 = vector.load %arg5[%c0_75, %c2_76, %c1_77, %c0_78, %c0_79] : memref<2x3x4x32x8xf32, #tpu.memory_space<vmem>>, vector<1x1x1x32x8xf32>
    %83 = vector.shape_cast %82 : vector<1x1x1x32x8xf32> to vector<32x8xf32>
    %cst_80 = arith.constant dense<0.000000e+00> : vector<16x8xf32>
    %84 = tpu.matmul %24, %83, %cst_80 {dimension_numbers = #tpu.dot_dimension_numbers<[1], [0], [0], [1], [0, 0, 1, 1], [], []>} : vector<16x32xf32>, vector<32x8xf32>, vector<16x8xf32> -> vector<16x8xf32>
    %c0_81 = arith.constant 0 : index
    %c2_82 = arith.constant 2 : index
    %c1_83 = arith.constant 1 : index
    %c0_84 = arith.constant 0 : index
    %c0_85 = arith.constant 0 : index
    %85 = vector.load %arg6[%c0_81, %c2_82, %c1_83, %c0_84, %c0_85] : memref<2x3x4x1x8xf32, #tpu.memory_space<vmem>>, vector<1x1x1x1x8xf32>
    %86 = vector.shape_cast %85 : vector<1x1x1x1x8xf32> to vector<1x8xf32>
    %87 = vector.broadcast %86 : vector<1x8xf32> to vector<16x8xf32>
    %88 = arith.addf %84, %87 : vector<16x8xf32>
    %89 = tpu.transpose %81, [1, 0] : vector<16x8xf32> -> vector<8x16xf32>
    %cst_86 = arith.constant dense<0.000000e+00> : vector<16x16xf32>
    %90 = tpu.matmul %74, %89, %cst_86 {dimension_numbers = #tpu.dot_dimension_numbers<[1], [0], [0], [1], [0, 0, 1, 1], [], []>} : vector<16x8xf32>, vector<8x16xf32>, vector<16x16xf32> -> vector<16x16xf32>
    %cst_87 = arith.constant 0.353553385 : f32
    %91 = vector.broadcast %cst_87 : f32 to vector<16x16xf32>
    %92 = arith.mulf %90, %91 : vector<16x16xf32>
    %93 = arith.addf %92, %25 : vector<16x16xf32>
    %cst_88 = arith.constant dense<0xFF800000> : vector<16xf32>
    %94 = vector.multi_reduction <maximumf>, %93, %cst_88 [1] : vector<16x16xf32> to vector<16xf32>
    %95 = vector.shape_cast %94 : vector<16xf32> to vector<16x1xf32>
    %96 = vector.broadcast %95 : vector<16x1xf32> to vector<16x16xf32>
    %97 = arith.subf %93, %96 : vector<16x16xf32>
    %98 = math.exp %97 : vector<16x16xf32>
    %cst_89 = arith.constant dense<0.000000e+00> : vector<16xf32>
    %99 = vector.multi_reduction <add>, %98, %cst_89 [1] : vector<16x16xf32> to vector<16xf32>
    %100 = vector.shape_cast %99 : vector<16xf32> to vector<16x1xf32>
    %101 = tpu.reciprocal %100 {approx = true} : vector<16x1xf32> -> vector<16x1xf32>
    %102 = vector.broadcast %101 : vector<16x1xf32> to vector<16x16xf32>
    %103 = arith.mulf %98, %102 : vector<16x16xf32>
    %cst_90 = arith.constant dense<0.000000e+00> : vector<16x8xf32>
    %104 = tpu.matmul %103, %88, %cst_90 {dimension_numbers = #tpu.dot_dimension_numbers<[1], [0], [0], [1], [0, 0, 1, 1], [], []>} : vector<16x16xf32>, vector<16x8xf32>, vector<16x8xf32> -> vector<16x8xf32>
    %c0_91 = arith.constant 0 : index
    %c1_92 = arith.constant 1 : index
    %c0_93 = arith.constant 0 : index
    %c0_94 = arith.constant 0 : index
    %105 = vector.load %arg7[%c0_91, %c1_92, %c0_93, %c0_94] : memref<2x4x8x32xf32, #tpu.memory_space<vmem>>, vector<1x1x8x32xf32>
    %106 = vector.shape_cast %105 : vector<1x1x8x32xf32> to vector<8x32xf32>
    %cst_95 = arith.constant dense<0.000000e+00> : vector<16x32xf32>
    %107 = tpu.matmul %104, %106, %cst_95 {dimension_numbers = #tpu.dot_dimension_numbers<[1], [0], [0], [1], [0, 0, 1, 1], [], []>} : vector<16x8xf32>, vector<8x32xf32>, vector<16x32xf32> -> vector<16x32xf32>
    %108 = arith.addf %67, %107 : vector<16x32xf32>
    %c0_96 = arith.constant 0 : index
    %c0_97 = arith.constant 0 : index
    %c2_98 = arith.constant 2 : index
    %c0_99 = arith.constant 0 : index
    %c0_100 = arith.constant 0 : index
    %109 = vector.load %arg5[%c0_96, %c0_97, %c2_98, %c0_99, %c0_100] : memref<2x3x4x32x8xf32, #tpu.memory_space<vmem>>, vector<1x1x1x32x8xf32>
    %110 = vector.shape_cast %109 : vector<1x1x1x32x8xf32> to vector<32x8xf32>
    %cst_101 = arith.constant dense<0.000000e+00> : vector<16x8xf32>
    %111 = tpu.matmul %24, %110, %cst_101 {dimension_numbers = #tpu.dot_dimension_numbers<[1], [0], [0], [1], [0, 0, 1, 1], [], []>} : vector<16x32xf32>, vector<32x8xf32>, vector<16x8xf32> -> vector<16x8xf32>
    %c0_102 = arith.constant 0 : index
    %c0_103 = arith.constant 0 : index
    %c2_104 = arith.constant 2 : index
    %c0_105 = arith.constant 0 : index
    %c0_106 = arith.constant 0 : index
    %112 = vector.load %arg6[%c0_102, %c0_103, %c2_104, %c0_105, %c0_106] : memref<2x3x4x1x8xf32, #tpu.memory_space<vmem>>, vector<1x1x1x1x8xf32>
    %113 = vector.shape_cast %112 : vector<1x1x1x1x8xf32> to vector<1x8xf32>
    %114 = vector.broadcast %113 : vector<1x8xf32> to vector<16x8xf32>
    %115 = arith.addf %111, %114 : vector<16x8xf32>
    %c0_107 = arith.constant 0 : index
    %c1_108 = arith.constant 1 : index
    %c2_109 = arith.constant 2 : index
    %c0_110 = arith.constant 0 : index
    %c0_111 = arith.constant 0 : index
    %116 = vector.load %arg5[%c0_107, %c1_108, %c2_109, %c0_110, %c0_111] : memref<2x3x4x32x8xf32, #tpu.memory_space<vmem>>, vector<1x1x1x32x8xf32>
    %117 = vector.shape_cast %116 : vector<1x1x1x32x8xf32> to vector<32x8xf32>
    %cst_112 = arith.constant dense<0.000000e+00> : vector<16x8xf32>
    %118 = tpu.matmul %24, %117, %cst_112 {dimension_numbers = #tpu.dot_dimension_numbers<[1], [0], [0], [1], [0, 0, 1, 1], [], []>} : vector<16x32xf32>, vector<32x8xf32>, vector<16x8xf32> -> vector<16x8xf32>
    %c0_113 = arith.constant 0 : index
    %c1_114 = arith.constant 1 : index
    %c2_115 = arith.constant 2 : index
    %c0_116 = arith.constant 0 : index
    %c0_117 = arith.constant 0 : index
    %119 = vector.load %arg6[%c0_113, %c1_114, %c2_115, %c0_116, %c0_117] : memref<2x3x4x1x8xf32, #tpu.memory_space<vmem>>, vector<1x1x1x1x8xf32>
    %120 = vector.shape_cast %119 : vector<1x1x1x1x8xf32> to vector<1x8xf32>
    %121 = vector.broadcast %120 : vector<1x8xf32> to vector<16x8xf32>
    %122 = arith.addf %118, %121 : vector<16x8xf32>
    %c0_118 = arith.constant 0 : index
    %c2_119 = arith.constant 2 : index
    %c2_120 = arith.constant 2 : index
    %c0_121 = arith.constant 0 : index
    %c0_122 = arith.constant 0 : index
    %123 = vector.load %arg5[%c0_118, %c2_119, %c2_120, %c0_121, %c0_122] : memref<2x3x4x32x8xf32, #tpu.memory_space<vmem>>, vector<1x1x1x32x8xf32>
    %124 = vector.shape_cast %123 : vector<1x1x1x32x8xf32> to vector<32x8xf32>
    %cst_123 = arith.constant dense<0.000000e+00> : vector<16x8xf32>
    %125 = tpu.matmul %24, %124, %cst_123 {dimension_numbers = #tpu.dot_dimension_numbers<[1], [0], [0], [1], [0, 0, 1, 1], [], []>} : vector<16x32xf32>, vector<32x8xf32>, vector<16x8xf32> -> vector<16x8xf32>
    %c0_124 = arith.constant 0 : index
    %c2_125 = arith.constant 2 : index
    %c2_126 = arith.constant 2 : index
    %c0_127 = arith.constant 0 : index
    %c0_128 = arith.constant 0 : index
    %126 = vector.load %arg6[%c0_124, %c2_125, %c2_126, %c0_127, %c0_128] : memref<2x3x4x1x8xf32, #tpu.memory_space<vmem>>, vector<1x1x1x1x8xf32>
    %127 = vector.shape_cast %126 : vector<1x1x1x1x8xf32> to vector<1x8xf32>
    %128 = vector.broadcast %127 : vector<1x8xf32> to vector<16x8xf32>
    %129 = arith.addf %125, %128 : vector<16x8xf32>
    %130 = tpu.transpose %122, [1, 0] : vector<16x8xf32> -> vector<8x16xf32>
    %cst_129 = arith.constant dense<0.000000e+00> : vector<16x16xf32>
    %131 = tpu.matmul %115, %130, %cst_129 {dimension_numbers = #tpu.dot_dimension_numbers<[1], [0], [0], [1], [0, 0, 1, 1], [], []>} : vector<16x8xf32>, vector<8x16xf32>, vector<16x16xf32> -> vector<16x16xf32>
    %cst_130 = arith.constant 0.353553385 : f32
    %132 = vector.broadcast %cst_130 : f32 to vector<16x16xf32>
    %133 = arith.mulf %131, %132 : vector<16x16xf32>
    %134 = arith.addf %133, %25 : vector<16x16xf32>
    %cst_131 = arith.constant dense<0xFF800000> : vector<16xf32>
    %135 = vector.multi_reduction <maximumf>, %134, %cst_131 [1] : vector<16x16xf32> to vector<16xf32>
    %136 = vector.shape_cast %135 : vector<16xf32> to vector<16x1xf32>
    %137 = vector.broadcast %136 : vector<16x1xf32> to vector<16x16xf32>
    %138 = arith.subf %134, %137 : vector<16x16xf32>
    %139 = math.exp %138 : vector<16x16xf32>
    %cst_132 = arith.constant dense<0.000000e+00> : vector<16xf32>
    %140 = vector.multi_reduction <add>, %139, %cst_132 [1] : vector<16x16xf32> to vector<16xf32>
    %141 = vector.shape_cast %140 : vector<16xf32> to vector<16x1xf32>
    %142 = tpu.reciprocal %141 {approx = true} : vector<16x1xf32> -> vector<16x1xf32>
    %143 = vector.broadcast %142 : vector<16x1xf32> to vector<16x16xf32>
    %144 = arith.mulf %139, %143 : vector<16x16xf32>
    %cst_133 = arith.constant dense<0.000000e+00> : vector<16x8xf32>
    %145 = tpu.matmul %144, %129, %cst_133 {dimension_numbers = #tpu.dot_dimension_numbers<[1], [0], [0], [1], [0, 0, 1, 1], [], []>} : vector<16x16xf32>, vector<16x8xf32>, vector<16x8xf32> -> vector<16x8xf32>
    %c0_134 = arith.constant 0 : index
    %c2_135 = arith.constant 2 : index
    %c0_136 = arith.constant 0 : index
    %c0_137 = arith.constant 0 : index
    %146 = vector.load %arg7[%c0_134, %c2_135, %c0_136, %c0_137] : memref<2x4x8x32xf32, #tpu.memory_space<vmem>>, vector<1x1x8x32xf32>
    %147 = vector.shape_cast %146 : vector<1x1x8x32xf32> to vector<8x32xf32>
    %cst_138 = arith.constant dense<0.000000e+00> : vector<16x32xf32>
    %148 = tpu.matmul %145, %147, %cst_138 {dimension_numbers = #tpu.dot_dimension_numbers<[1], [0], [0], [1], [0, 0, 1, 1], [], []>} : vector<16x8xf32>, vector<8x32xf32>, vector<16x32xf32> -> vector<16x32xf32>
    %149 = arith.addf %108, %148 : vector<16x32xf32>
    %c0_139 = arith.constant 0 : index
    %c0_140 = arith.constant 0 : index
    %c3 = arith.constant 3 : index
    %c0_141 = arith.constant 0 : index
    %c0_142 = arith.constant 0 : index
    %150 = vector.load %arg5[%c0_139, %c0_140, %c3, %c0_141, %c0_142] : memref<2x3x4x32x8xf32, #tpu.memory_space<vmem>>, vector<1x1x1x32x8xf32>
    %151 = vector.shape_cast %150 : vector<1x1x1x32x8xf32> to vector<32x8xf32>
    %cst_143 = arith.constant dense<0.000000e+00> : vector<16x8xf32>
    %152 = tpu.matmul %24, %151, %cst_143 {dimension_numbers = #tpu.dot_dimension_numbers<[1], [0], [0], [1], [0, 0, 1, 1], [], []>} : vector<16x32xf32>, vector<32x8xf32>, vector<16x8xf32> -> vector<16x8xf32>
    %c0_144 = arith.constant 0 : index
    %c0_145 = arith.constant 0 : index
    %c3_146 = arith.constant 3 : index
    %c0_147 = arith.constant 0 : index
    %c0_148 = arith.constant 0 : index
    %153 = vector.load %arg6[%c0_144, %c0_145, %c3_146, %c0_147, %c0_148] : memref<2x3x4x1x8xf32, #tpu.memory_space<vmem>>, vector<1x1x1x1x8xf32>
    %154 = vector.shape_cast %153 : vector<1x1x1x1x8xf32> to vector<1x8xf32>
    %155 = vector.broadcast %154 : vector<1x8xf32> to vector<16x8xf32>
    %156 = arith.addf %152, %155 : vector<16x8xf32>
    %c0_149 = arith.constant 0 : index
    %c1_150 = arith.constant 1 : index
    %c3_151 = arith.constant 3 : index
    %c0_152 = arith.constant 0 : index
    %c0_153 = arith.constant 0 : index
    %157 = vector.load %arg5[%c0_149, %c1_150, %c3_151, %c0_152, %c0_153] : memref<2x3x4x32x8xf32, #tpu.memory_space<vmem>>, vector<1x1x1x32x8xf32>
    %158 = vector.shape_cast %157 : vector<1x1x1x32x8xf32> to vector<32x8xf32>
    %cst_154 = arith.constant dense<0.000000e+00> : vector<16x8xf32>
    %159 = tpu.matmul %24, %158, %cst_154 {dimension_numbers = #tpu.dot_dimension_numbers<[1], [0], [0], [1], [0, 0, 1, 1], [], []>} : vector<16x32xf32>, vector<32x8xf32>, vector<16x8xf32> -> vector<16x8xf32>
    %c0_155 = arith.constant 0 : index
    %c1_156 = arith.constant 1 : index
    %c3_157 = arith.constant 3 : index
    %c0_158 = arith.constant 0 : index
    %c0_159 = arith.constant 0 : index
    %160 = vector.load %arg6[%c0_155, %c1_156, %c3_157, %c0_158, %c0_159] : memref<2x3x4x1x8xf32, #tpu.memory_space<vmem>>, vector<1x1x1x1x8xf32>
    %161 = vector.shape_cast %160 : vector<1x1x1x1x8xf32> to vector<1x8xf32>
    %162 = vector.broadcast %161 : vector<1x8xf32> to vector<16x8xf32>
    %163 = arith.addf %159, %162 : vector<16x8xf32>
    %c0_160 = arith.constant 0 : index
    %c2_161 = arith.constant 2 : index
    %c3_162 = arith.constant 3 : index
    %c0_163 = arith.constant 0 : index
    %c0_164 = arith.constant 0 : index
    %164 = vector.load %arg5[%c0_160, %c2_161, %c3_162, %c0_163, %c0_164] : memref<2x3x4x32x8xf32, #tpu.memory_space<vmem>>, vector<1x1x1x32x8xf32>
    %165 = vector.shape_cast %164 : vector<1x1x1x32x8xf32> to vector<32x8xf32>
    %cst_165 = arith.constant dense<0.000000e+00> : vector<16x8xf32>
    %166 = tpu.matmul %24, %165, %cst_165 {dimension_numbers = #tpu.dot_dimension_numbers<[1], [0], [0], [1], [0, 0, 1, 1], [], []>} : vector<16x32xf32>, vector<32x8xf32>, vector<16x8xf32> -> vector<16x8xf32>
    %c0_166 = arith.constant 0 : index
    %c2_167 = arith.constant 2 : index
    %c3_168 = arith.constant 3 : index
    %c0_169 = arith.constant 0 : index
    %c0_170 = arith.constant 0 : index
    %167 = vector.load %arg6[%c0_166, %c2_167, %c3_168, %c0_169, %c0_170] : memref<2x3x4x1x8xf32, #tpu.memory_space<vmem>>, vector<1x1x1x1x8xf32>
    %168 = vector.shape_cast %167 : vector<1x1x1x1x8xf32> to vector<1x8xf32>
    %169 = vector.broadcast %168 : vector<1x8xf32> to vector<16x8xf32>
    %170 = arith.addf %166, %169 : vector<16x8xf32>
    %171 = tpu.transpose %163, [1, 0] : vector<16x8xf32> -> vector<8x16xf32>
    %cst_171 = arith.constant dense<0.000000e+00> : vector<16x16xf32>
    %172 = tpu.matmul %156, %171, %cst_171 {dimension_numbers = #tpu.dot_dimension_numbers<[1], [0], [0], [1], [0, 0, 1, 1], [], []>} : vector<16x8xf32>, vector<8x16xf32>, vector<16x16xf32> -> vector<16x16xf32>
    %cst_172 = arith.constant 0.353553385 : f32
    %173 = vector.broadcast %cst_172 : f32 to vector<16x16xf32>
    %174 = arith.mulf %172, %173 : vector<16x16xf32>
    %175 = arith.addf %174, %25 : vector<16x16xf32>
    %cst_173 = arith.constant dense<0xFF800000> : vector<16xf32>
    %176 = vector.multi_reduction <maximumf>, %175, %cst_173 [1] : vector<16x16xf32> to vector<16xf32>
    %177 = vector.shape_cast %176 : vector<16xf32> to vector<16x1xf32>
    %178 = vector.broadcast %177 : vector<16x1xf32> to vector<16x16xf32>
    %179 = arith.subf %175, %178 : vector<16x16xf32>
    %180 = math.exp %179 : vector<16x16xf32>
    %cst_174 = arith.constant dense<0.000000e+00> : vector<16xf32>
    %181 = vector.multi_reduction <add>, %180, %cst_174 [1] : vector<16x16xf32> to vector<16xf32>
    %182 = vector.shape_cast %181 : vector<16xf32> to vector<16x1xf32>
    %183 = tpu.reciprocal %182 {approx = true} : vector<16x1xf32> -> vector<16x1xf32>
    %184 = vector.broadcast %183 : vector<16x1xf32> to vector<16x16xf32>
    %185 = arith.mulf %180, %184 : vector<16x16xf32>
    %cst_175 = arith.constant dense<0.000000e+00> : vector<16x8xf32>
    %186 = tpu.matmul %185, %170, %cst_175 {dimension_numbers = #tpu.dot_dimension_numbers<[1], [0], [0], [1], [0, 0, 1, 1], [], []>} : vector<16x16xf32>, vector<16x8xf32>, vector<16x8xf32> -> vector<16x8xf32>
    %c0_176 = arith.constant 0 : index
    %c3_177 = arith.constant 3 : index
    %c0_178 = arith.constant 0 : index
    %c0_179 = arith.constant 0 : index
    %187 = vector.load %arg7[%c0_176, %c3_177, %c0_178, %c0_179] : memref<2x4x8x32xf32, #tpu.memory_space<vmem>>, vector<1x1x8x32xf32>
    %188 = vector.shape_cast %187 : vector<1x1x8x32xf32> to vector<8x32xf32>
    %cst_180 = arith.constant dense<0.000000e+00> : vector<16x32xf32>
    %189 = tpu.matmul %186, %188, %cst_180 {dimension_numbers = #tpu.dot_dimension_numbers<[1], [0], [0], [1], [0, 0, 1, 1], [], []>} : vector<16x8xf32>, vector<8x32xf32>, vector<16x32xf32> -> vector<16x32xf32>
    %190 = arith.addf %149, %189 : vector<16x32xf32>
    %c0_181 = arith.constant 0 : index
    %c0_182 = arith.constant 0 : index
    %c0_183 = arith.constant 0 : index
    %191 = vector.load %arg8[%c0_181, %c0_182, %c0_183] : memref<2x1x32xf32, #tpu.memory_space<vmem>>, vector<1x1x32xf32>
    %192 = vector.shape_cast %191 : vector<1x1x32xf32> to vector<1x32xf32>
    %193 = vector.broadcast %192 : vector<1x32xf32> to vector<16x32xf32>
    %194 = arith.addf %190, %193 : vector<16x32xf32>
    %195 = arith.addf %194, %24 : vector<16x32xf32>
    %c0_184 = arith.constant 0 : index
    %c0_185 = arith.constant 0 : index
    %c0_186 = arith.constant 0 : index
    %196 = vector.load %arg9[%c0_184, %c0_185, %c0_186] : memref<2x1x32xf32, #tpu.memory_space<vmem>>, vector<1x1x32xf32>
    %197 = vector.shape_cast %196 : vector<1x1x32xf32> to vector<1x32xf32>
    %c0_187 = arith.constant 0 : index
    %c0_188 = arith.constant 0 : index
    %c0_189 = arith.constant 0 : index
    %198 = vector.load %arg10[%c0_187, %c0_188, %c0_189] : memref<2x1x32xf32, #tpu.memory_space<vmem>>, vector<1x1x32xf32>
    %199 = vector.shape_cast %198 : vector<1x1x32xf32> to vector<1x32xf32>
    %cst_190 = arith.constant dense<0.000000e+00> : vector<16xf32>
    %200 = vector.multi_reduction <add>, %195, %cst_190 [1] : vector<16x32xf32> to vector<16xf32>
    %201 = vector.shape_cast %200 : vector<16xf32> to vector<16x1xf32>
    %cst_191 = arith.constant 3.200000e+01 : f32
    %202 = vector.broadcast %cst_191 : f32 to vector<16x1xf32>
    %203 = arith.divf %201, %202 : vector<16x1xf32>
    %204 = vector.broadcast %203 : vector<16x1xf32> to vector<16x32xf32>
    %205 = arith.subf %195, %204 : vector<16x32xf32>
    %206 = arith.mulf %205, %205 : vector<16x32xf32>
    %cst_192 = arith.constant dense<0.000000e+00> : vector<16xf32>
    %207 = vector.multi_reduction <add>, %206, %cst_192 [1] : vector<16x32xf32> to vector<16xf32>
    %208 = vector.shape_cast %207 : vector<16xf32> to vector<16x1xf32>
    %cst_193 = arith.constant 3.200000e+01 : f32
    %209 = vector.broadcast %cst_193 : f32 to vector<16x1xf32>
    %210 = arith.divf %208, %209 : vector<16x1xf32>
    %211 = vector.broadcast %203 : vector<16x1xf32> to vector<16x32xf32>
    %212 = arith.subf %195, %211 : vector<16x32xf32>
    %cst_194 = arith.constant 9.99999996E-13 : f32
    %213 = vector.broadcast %cst_194 : f32 to vector<16x1xf32>
    %214 = arith.addf %210, %213 : vector<16x1xf32>
    %215 = math.rsqrt %214 : vector<16x1xf32>
    %216 = vector.broadcast %215 : vector<16x1xf32> to vector<16x32xf32>
    %217 = arith.mulf %212, %216 : vector<16x32xf32>
    %218 = vector.broadcast %197 : vector<1x32xf32> to vector<16x32xf32>
    %219 = arith.mulf %217, %218 : vector<16x32xf32>
    %220 = vector.broadcast %199 : vector<1x32xf32> to vector<16x32xf32>
    %221 = arith.addf %219, %220 : vector<16x32xf32>
    %c0_195 = arith.constant 0 : index
    %c0_196 = arith.constant 0 : index
    %c0_197 = arith.constant 0 : index
    %222 = vector.load %arg11[%c0_195, %c0_196, %c0_197] : memref<2x32x64xf32, #tpu.memory_space<vmem>>, vector<1x32x64xf32>
    %223 = vector.shape_cast %222 : vector<1x32x64xf32> to vector<32x64xf32>
    %cst_198 = arith.constant dense<0.000000e+00> : vector<16x64xf32>
    %224 = tpu.matmul %221, %223, %cst_198 {dimension_numbers = #tpu.dot_dimension_numbers<[1], [0], [0], [1], [0, 0, 1, 1], [], []>} : vector<16x32xf32>, vector<32x64xf32>, vector<16x64xf32> -> vector<16x64xf32>
    %c0_199 = arith.constant 0 : index
    %c0_200 = arith.constant 0 : index
    %c0_201 = arith.constant 0 : index
    %225 = vector.load %arg12[%c0_199, %c0_200, %c0_201] : memref<2x1x64xf32, #tpu.memory_space<vmem>>, vector<1x1x64xf32>
    %226 = vector.shape_cast %225 : vector<1x1x64xf32> to vector<1x64xf32>
    %227 = vector.broadcast %226 : vector<1x64xf32> to vector<16x64xf32>
    %228 = arith.addf %224, %227 : vector<16x64xf32>
    %cst_202 = arith.constant 5.000000e-01 : f32
    %229 = vector.broadcast %cst_202 : f32 to vector<16x64xf32>
    %230 = arith.mulf %229, %228 : vector<16x64xf32>
    %cst_203 = arith.constant 4.471500e-02 : f32
    %231 = vector.broadcast %cst_203 : f32 to vector<16x64xf32>
    %232 = arith.mulf %231, %228 : vector<16x64xf32>
    %233 = arith.mulf %232, %228 : vector<16x64xf32>
    %234 = arith.mulf %233, %228 : vector<16x64xf32>
    %235 = arith.addf %228, %234 : vector<16x64xf32>
    %cst_204 = arith.constant 0.797884583 : f32
    %236 = vector.broadcast %cst_204 : f32 to vector<16x64xf32>
    %237 = arith.mulf %236, %235 : vector<16x64xf32>
    %238 = math.tanh %237 : vector<16x64xf32>
    %cst_205 = arith.constant 1.000000e+00 : f32
    %239 = vector.broadcast %cst_205 : f32 to vector<16x64xf32>
    %240 = arith.addf %239, %238 : vector<16x64xf32>
    %241 = arith.mulf %230, %240 : vector<16x64xf32>
    %c0_206 = arith.constant 0 : index
    %c0_207 = arith.constant 0 : index
    %c0_208 = arith.constant 0 : index
    %242 = vector.load %arg13[%c0_206, %c0_207, %c0_208] : memref<2x64x32xf32, #tpu.memory_space<vmem>>, vector<1x64x32xf32>
    %243 = vector.shape_cast %242 : vector<1x64x32xf32> to vector<64x32xf32>
    %cst_209 = arith.constant dense<0.000000e+00> : vector<16x32xf32>
    %244 = tpu.matmul %241, %243, %cst_209 {dimension_numbers = #tpu.dot_dimension_numbers<[1], [0], [0], [1], [0, 0, 1, 1], [], []>} : vector<16x64xf32>, vector<64x32xf32>, vector<16x32xf32> -> vector<16x32xf32>
    %c0_210 = arith.constant 0 : index
    %c0_211 = arith.constant 0 : index
    %c0_212 = arith.constant 0 : index
    %245 = vector.load %arg14[%c0_210, %c0_211, %c0_212] : memref<2x1x32xf32, #tpu.memory_space<vmem>>, vector<1x1x32xf32>
    %246 = vector.shape_cast %245 : vector<1x1x32xf32> to vector<1x32xf32>
    %247 = vector.broadcast %246 : vector<1x32xf32> to vector<16x32xf32>
    %248 = arith.addf %244, %247 : vector<16x32xf32>
    %249 = arith.addf %248, %221 : vector<16x32xf32>
    %c0_213 = arith.constant 0 : index
    %c0_214 = arith.constant 0 : index
    %c0_215 = arith.constant 0 : index
    %250 = vector.load %arg15[%c0_213, %c0_214, %c0_215] : memref<2x1x32xf32, #tpu.memory_space<vmem>>, vector<1x1x32xf32>
    %251 = vector.shape_cast %250 : vector<1x1x32xf32> to vector<1x32xf32>
    %c0_216 = arith.constant 0 : index
    %c0_217 = arith.constant 0 : index
    %c0_218 = arith.constant 0 : index
    %252 = vector.load %arg16[%c0_216, %c0_217, %c0_218] : memref<2x1x32xf32, #tpu.memory_space<vmem>>, vector<1x1x32xf32>
    %253 = vector.shape_cast %252 : vector<1x1x32xf32> to vector<1x32xf32>
    %cst_219 = arith.constant dense<0.000000e+00> : vector<16xf32>
    %254 = vector.multi_reduction <add>, %249, %cst_219 [1] : vector<16x32xf32> to vector<16xf32>
    %255 = vector.shape_cast %254 : vector<16xf32> to vector<16x1xf32>
    %cst_220 = arith.constant 3.200000e+01 : f32
    %256 = vector.broadcast %cst_220 : f32 to vector<16x1xf32>
    %257 = arith.divf %255, %256 : vector<16x1xf32>
    %258 = vector.broadcast %257 : vector<16x1xf32> to vector<16x32xf32>
    %259 = arith.subf %249, %258 : vector<16x32xf32>
    %260 = arith.mulf %259, %259 : vector<16x32xf32>
    %cst_221 = arith.constant dense<0.000000e+00> : vector<16xf32>
    %261 = vector.multi_reduction <add>, %260, %cst_221 [1] : vector<16x32xf32> to vector<16xf32>
    %262 = vector.shape_cast %261 : vector<16xf32> to vector<16x1xf32>
    %cst_222 = arith.constant 3.200000e+01 : f32
    %263 = vector.broadcast %cst_222 : f32 to vector<16x1xf32>
    %264 = arith.divf %262, %263 : vector<16x1xf32>
    %265 = vector.broadcast %257 : vector<16x1xf32> to vector<16x32xf32>
    %266 = arith.subf %249, %265 : vector<16x32xf32>
    %cst_223 = arith.constant 9.99999996E-13 : f32
    %267 = vector.broadcast %cst_223 : f32 to vector<16x1xf32>
    %268 = arith.addf %264, %267 : vector<16x1xf32>
    %269 = math.rsqrt %268 : vector<16x1xf32>
    %270 = vector.broadcast %269 : vector<16x1xf32> to vector<16x32xf32>
    %271 = arith.mulf %266, %270 : vector<16x32xf32>
    %272 = vector.broadcast %251 : vector<1x32xf32> to vector<16x32xf32>
    %273 = arith.mulf %271, %272 : vector<16x32xf32>
    %274 = vector.broadcast %253 : vector<1x32xf32> to vector<16x32xf32>
    %275 = arith.addf %273, %274 : vector<16x32xf32>
    %cst_224 = arith.constant 0.000000e+00 : f32
    %276 = vector.broadcast %cst_224 : f32 to vector<16x32xf32>
    %c1_225 = arith.constant 1 : index
    %c0_226 = arith.constant 0 : index
    %c0_227 = arith.constant 0 : index
    %c0_228 = arith.constant 0 : index
    %c0_229 = arith.constant 0 : index
    %277 = vector.load %arg5[%c1_225, %c0_226, %c0_227, %c0_228, %c0_229] : memref<2x3x4x32x8xf32, #tpu.memory_space<vmem>>, vector<1x1x1x32x8xf32>
    %278 = vector.shape_cast %277 : vector<1x1x1x32x8xf32> to vector<32x8xf32>
    %cst_230 = arith.constant dense<0.000000e+00> : vector<16x8xf32>
    %279 = tpu.matmul %275, %278, %cst_230 {dimension_numbers = #tpu.dot_dimension_numbers<[1], [0], [0], [1], [0, 0, 1, 1], [], []>} : vector<16x32xf32>, vector<32x8xf32>, vector<16x8xf32> -> vector<16x8xf32>
    %c1_231 = arith.constant 1 : index
    %c0_232 = arith.constant 0 : index
    %c0_233 = arith.constant 0 : index
    %c0_234 = arith.constant 0 : index
    %c0_235 = arith.constant 0 : index
    %280 = vector.load %arg6[%c1_231, %c0_232, %c0_233, %c0_234, %c0_235] : memref<2x3x4x1x8xf32, #tpu.memory_space<vmem>>, vector<1x1x1x1x8xf32>
    %281 = vector.shape_cast %280 : vector<1x1x1x1x8xf32> to vector<1x8xf32>
    %282 = vector.broadcast %281 : vector<1x8xf32> to vector<16x8xf32>
    %283 = arith.addf %279, %282 : vector<16x8xf32>
    %c1_236 = arith.constant 1 : index
    %c1_237 = arith.constant 1 : index
    %c0_238 = arith.constant 0 : index
    %c0_239 = arith.constant 0 : index
    %c0_240 = arith.constant 0 : index
    %284 = vector.load %arg5[%c1_236, %c1_237, %c0_238, %c0_239, %c0_240] : memref<2x3x4x32x8xf32, #tpu.memory_space<vmem>>, vector<1x1x1x32x8xf32>
    %285 = vector.shape_cast %284 : vector<1x1x1x32x8xf32> to vector<32x8xf32>
    %cst_241 = arith.constant dense<0.000000e+00> : vector<16x8xf32>
    %286 = tpu.matmul %275, %285, %cst_241 {dimension_numbers = #tpu.dot_dimension_numbers<[1], [0], [0], [1], [0, 0, 1, 1], [], []>} : vector<16x32xf32>, vector<32x8xf32>, vector<16x8xf32> -> vector<16x8xf32>
    %c1_242 = arith.constant 1 : index
    %c1_243 = arith.constant 1 : index
    %c0_244 = arith.constant 0 : index
    %c0_245 = arith.constant 0 : index
    %c0_246 = arith.constant 0 : index
    %287 = vector.load %arg6[%c1_242, %c1_243, %c0_244, %c0_245, %c0_246] : memref<2x3x4x1x8xf32, #tpu.memory_space<vmem>>, vector<1x1x1x1x8xf32>
    %288 = vector.shape_cast %287 : vector<1x1x1x1x8xf32> to vector<1x8xf32>
    %289 = vector.broadcast %288 : vector<1x8xf32> to vector<16x8xf32>
    %290 = arith.addf %286, %289 : vector<16x8xf32>
    %c1_247 = arith.constant 1 : index
    %c2_248 = arith.constant 2 : index
    %c0_249 = arith.constant 0 : index
    %c0_250 = arith.constant 0 : index
    %c0_251 = arith.constant 0 : index
    %291 = vector.load %arg5[%c1_247, %c2_248, %c0_249, %c0_250, %c0_251] : memref<2x3x4x32x8xf32, #tpu.memory_space<vmem>>, vector<1x1x1x32x8xf32>
    %292 = vector.shape_cast %291 : vector<1x1x1x32x8xf32> to vector<32x8xf32>
    %cst_252 = arith.constant dense<0.000000e+00> : vector<16x8xf32>
    %293 = tpu.matmul %275, %292, %cst_252 {dimension_numbers = #tpu.dot_dimension_numbers<[1], [0], [0], [1], [0, 0, 1, 1], [], []>} : vector<16x32xf32>, vector<32x8xf32>, vector<16x8xf32> -> vector<16x8xf32>
    %c1_253 = arith.constant 1 : index
    %c2_254 = arith.constant 2 : index
    %c0_255 = arith.constant 0 : index
    %c0_256 = arith.constant 0 : index
    %c0_257 = arith.constant 0 : index
    %294 = vector.load %arg6[%c1_253, %c2_254, %c0_255, %c0_256, %c0_257] : memref<2x3x4x1x8xf32, #tpu.memory_space<vmem>>, vector<1x1x1x1x8xf32>
    %295 = vector.shape_cast %294 : vector<1x1x1x1x8xf32> to vector<1x8xf32>
    %296 = vector.broadcast %295 : vector<1x8xf32> to vector<16x8xf32>
    %297 = arith.addf %293, %296 : vector<16x8xf32>
    %298 = tpu.transpose %290, [1, 0] : vector<16x8xf32> -> vector<8x16xf32>
    %cst_258 = arith.constant dense<0.000000e+00> : vector<16x16xf32>
    %299 = tpu.matmul %283, %298, %cst_258 {dimension_numbers = #tpu.dot_dimension_numbers<[1], [0], [0], [1], [0, 0, 1, 1], [], []>} : vector<16x8xf32>, vector<8x16xf32>, vector<16x16xf32> -> vector<16x16xf32>
    %cst_259 = arith.constant 0.353553385 : f32
    %300 = vector.broadcast %cst_259 : f32 to vector<16x16xf32>
    %301 = arith.mulf %299, %300 : vector<16x16xf32>
    %302 = arith.addf %301, %25 : vector<16x16xf32>
    %cst_260 = arith.constant dense<0xFF800000> : vector<16xf32>
    %303 = vector.multi_reduction <maximumf>, %302, %cst_260 [1] : vector<16x16xf32> to vector<16xf32>
    %304 = vector.shape_cast %303 : vector<16xf32> to vector<16x1xf32>
    %305 = vector.broadcast %304 : vector<16x1xf32> to vector<16x16xf32>
    %306 = arith.subf %302, %305 : vector<16x16xf32>
    %307 = math.exp %306 : vector<16x16xf32>
    %cst_261 = arith.constant dense<0.000000e+00> : vector<16xf32>
    %308 = vector.multi_reduction <add>, %307, %cst_261 [1] : vector<16x16xf32> to vector<16xf32>
    %309 = vector.shape_cast %308 : vector<16xf32> to vector<16x1xf32>
    %310 = tpu.reciprocal %309 {approx = true} : vector<16x1xf32> -> vector<16x1xf32>
    %311 = vector.broadcast %310 : vector<16x1xf32> to vector<16x16xf32>
    %312 = arith.mulf %307, %311 : vector<16x16xf32>
    %cst_262 = arith.constant dense<0.000000e+00> : vector<16x8xf32>
    %313 = tpu.matmul %312, %297, %cst_262 {dimension_numbers = #tpu.dot_dimension_numbers<[1], [0], [0], [1], [0, 0, 1, 1], [], []>} : vector<16x16xf32>, vector<16x8xf32>, vector<16x8xf32> -> vector<16x8xf32>
    %c1_263 = arith.constant 1 : index
    %c0_264 = arith.constant 0 : index
    %c0_265 = arith.constant 0 : index
    %c0_266 = arith.constant 0 : index
    %314 = vector.load %arg7[%c1_263, %c0_264, %c0_265, %c0_266] : memref<2x4x8x32xf32, #tpu.memory_space<vmem>>, vector<1x1x8x32xf32>
    %315 = vector.shape_cast %314 : vector<1x1x8x32xf32> to vector<8x32xf32>
    %cst_267 = arith.constant dense<0.000000e+00> : vector<16x32xf32>
    %316 = tpu.matmul %313, %315, %cst_267 {dimension_numbers = #tpu.dot_dimension_numbers<[1], [0], [0], [1], [0, 0, 1, 1], [], []>} : vector<16x8xf32>, vector<8x32xf32>, vector<16x32xf32> -> vector<16x32xf32>
    %317 = arith.addf %276, %316 : vector<16x32xf32>
    %c1_268 = arith.constant 1 : index
    %c0_269 = arith.constant 0 : index
    %c1_270 = arith.constant 1 : index
    %c0_271 = arith.constant 0 : index
    %c0_272 = arith.constant 0 : index
    %318 = vector.load %arg5[%c1_268, %c0_269, %c1_270, %c0_271, %c0_272] : memref<2x3x4x32x8xf32, #tpu.memory_space<vmem>>, vector<1x1x1x32x8xf32>
    %319 = vector.shape_cast %318 : vector<1x1x1x32x8xf32> to vector<32x8xf32>
    %cst_273 = arith.constant dense<0.000000e+00> : vector<16x8xf32>
    %320 = tpu.matmul %275, %319, %cst_273 {dimension_numbers = #tpu.dot_dimension_numbers<[1], [0], [0], [1], [0, 0, 1, 1], [], []>} : vector<16x32xf32>, vector<32x8xf32>, vector<16x8xf32> -> vector<16x8xf32>
    %c1_274 = arith.constant 1 : index
    %c0_275 = arith.constant 0 : index
    %c1_276 = arith.constant 1 : index
    %c0_277 = arith.constant 0 : index
    %c0_278 = arith.constant 0 : index
    %321 = vector.load %arg6[%c1_274, %c0_275, %c1_276, %c0_277, %c0_278] : memref<2x3x4x1x8xf32, #tpu.memory_space<vmem>>, vector<1x1x1x1x8xf32>
    %322 = vector.shape_cast %321 : vector<1x1x1x1x8xf32> to vector<1x8xf32>
    %323 = vector.broadcast %322 : vector<1x8xf32> to vector<16x8xf32>
    %324 = arith.addf %320, %323 : vector<16x8xf32>
    %c1_279 = arith.constant 1 : index
    %c1_280 = arith.constant 1 : index
    %c1_281 = arith.constant 1 : index
    %c0_282 = arith.constant 0 : index
    %c0_283 = arith.constant 0 : index
    %325 = vector.load %arg5[%c1_279, %c1_280, %c1_281, %c0_282, %c0_283] : memref<2x3x4x32x8xf32, #tpu.memory_space<vmem>>, vector<1x1x1x32x8xf32>
    %326 = vector.shape_cast %325 : vector<1x1x1x32x8xf32> to vector<32x8xf32>
    %cst_284 = arith.constant dense<0.000000e+00> : vector<16x8xf32>
    %327 = tpu.matmul %275, %326, %cst_284 {dimension_numbers = #tpu.dot_dimension_numbers<[1], [0], [0], [1], [0, 0, 1, 1], [], []>} : vector<16x32xf32>, vector<32x8xf32>, vector<16x8xf32> -> vector<16x8xf32>
    %c1_285 = arith.constant 1 : index
    %c1_286 = arith.constant 1 : index
    %c1_287 = arith.constant 1 : index
    %c0_288 = arith.constant 0 : index
    %c0_289 = arith.constant 0 : index
    %328 = vector.load %arg6[%c1_285, %c1_286, %c1_287, %c0_288, %c0_289] : memref<2x3x4x1x8xf32, #tpu.memory_space<vmem>>, vector<1x1x1x1x8xf32>
    %329 = vector.shape_cast %328 : vector<1x1x1x1x8xf32> to vector<1x8xf32>
    %330 = vector.broadcast %329 : vector<1x8xf32> to vector<16x8xf32>
    %331 = arith.addf %327, %330 : vector<16x8xf32>
    %c1_290 = arith.constant 1 : index
    %c2_291 = arith.constant 2 : index
    %c1_292 = arith.constant 1 : index
    %c0_293 = arith.constant 0 : index
    %c0_294 = arith.constant 0 : index
    %332 = vector.load %arg5[%c1_290, %c2_291, %c1_292, %c0_293, %c0_294] : memref<2x3x4x32x8xf32, #tpu.memory_space<vmem>>, vector<1x1x1x32x8xf32>
    %333 = vector.shape_cast %332 : vector<1x1x1x32x8xf32> to vector<32x8xf32>
    %cst_295 = arith.constant dense<0.000000e+00> : vector<16x8xf32>
    %334 = tpu.matmul %275, %333, %cst_295 {dimension_numbers = #tpu.dot_dimension_numbers<[1], [0], [0], [1], [0, 0, 1, 1], [], []>} : vector<16x32xf32>, vector<32x8xf32>, vector<16x8xf32> -> vector<16x8xf32>
    %c1_296 = arith.constant 1 : index
    %c2_297 = arith.constant 2 : index
    %c1_298 = arith.constant 1 : index
    %c0_299 = arith.constant 0 : index
    %c0_300 = arith.constant 0 : index
    %335 = vector.load %arg6[%c1_296, %c2_297, %c1_298, %c0_299, %c0_300] : memref<2x3x4x1x8xf32, #tpu.memory_space<vmem>>, vector<1x1x1x1x8xf32>
    %336 = vector.shape_cast %335 : vector<1x1x1x1x8xf32> to vector<1x8xf32>
    %337 = vector.broadcast %336 : vector<1x8xf32> to vector<16x8xf32>
    %338 = arith.addf %334, %337 : vector<16x8xf32>
    %339 = tpu.transpose %331, [1, 0] : vector<16x8xf32> -> vector<8x16xf32>
    %cst_301 = arith.constant dense<0.000000e+00> : vector<16x16xf32>
    %340 = tpu.matmul %324, %339, %cst_301 {dimension_numbers = #tpu.dot_dimension_numbers<[1], [0], [0], [1], [0, 0, 1, 1], [], []>} : vector<16x8xf32>, vector<8x16xf32>, vector<16x16xf32> -> vector<16x16xf32>
    %cst_302 = arith.constant 0.353553385 : f32
    %341 = vector.broadcast %cst_302 : f32 to vector<16x16xf32>
    %342 = arith.mulf %340, %341 : vector<16x16xf32>
    %343 = arith.addf %342, %25 : vector<16x16xf32>
    %cst_303 = arith.constant dense<0xFF800000> : vector<16xf32>
    %344 = vector.multi_reduction <maximumf>, %343, %cst_303 [1] : vector<16x16xf32> to vector<16xf32>
    %345 = vector.shape_cast %344 : vector<16xf32> to vector<16x1xf32>
    %346 = vector.broadcast %345 : vector<16x1xf32> to vector<16x16xf32>
    %347 = arith.subf %343, %346 : vector<16x16xf32>
    %348 = math.exp %347 : vector<16x16xf32>
    %cst_304 = arith.constant dense<0.000000e+00> : vector<16xf32>
    %349 = vector.multi_reduction <add>, %348, %cst_304 [1] : vector<16x16xf32> to vector<16xf32>
    %350 = vector.shape_cast %349 : vector<16xf32> to vector<16x1xf32>
    %351 = tpu.reciprocal %350 {approx = true} : vector<16x1xf32> -> vector<16x1xf32>
    %352 = vector.broadcast %351 : vector<16x1xf32> to vector<16x16xf32>
    %353 = arith.mulf %348, %352 : vector<16x16xf32>
    %cst_305 = arith.constant dense<0.000000e+00> : vector<16x8xf32>
    %354 = tpu.matmul %353, %338, %cst_305 {dimension_numbers = #tpu.dot_dimension_numbers<[1], [0], [0], [1], [0, 0, 1, 1], [], []>} : vector<16x16xf32>, vector<16x8xf32>, vector<16x8xf32> -> vector<16x8xf32>
    %c1_306 = arith.constant 1 : index
    %c1_307 = arith.constant 1 : index
    %c0_308 = arith.constant 0 : index
    %c0_309 = arith.constant 0 : index
    %355 = vector.load %arg7[%c1_306, %c1_307, %c0_308, %c0_309] : memref<2x4x8x32xf32, #tpu.memory_space<vmem>>, vector<1x1x8x32xf32>
    %356 = vector.shape_cast %355 : vector<1x1x8x32xf32> to vector<8x32xf32>
    %cst_310 = arith.constant dense<0.000000e+00> : vector<16x32xf32>
    %357 = tpu.matmul %354, %356, %cst_310 {dimension_numbers = #tpu.dot_dimension_numbers<[1], [0], [0], [1], [0, 0, 1, 1], [], []>} : vector<16x8xf32>, vector<8x32xf32>, vector<16x32xf32> -> vector<16x32xf32>
    %358 = arith.addf %317, %357 : vector<16x32xf32>
    %c1_311 = arith.constant 1 : index
    %c0_312 = arith.constant 0 : index
    %c2_313 = arith.constant 2 : index
    %c0_314 = arith.constant 0 : index
    %c0_315 = arith.constant 0 : index
    %359 = vector.load %arg5[%c1_311, %c0_312, %c2_313, %c0_314, %c0_315] : memref<2x3x4x32x8xf32, #tpu.memory_space<vmem>>, vector<1x1x1x32x8xf32>
    %360 = vector.shape_cast %359 : vector<1x1x1x32x8xf32> to vector<32x8xf32>
    %cst_316 = arith.constant dense<0.000000e+00> : vector<16x8xf32>
    %361 = tpu.matmul %275, %360, %cst_316 {dimension_numbers = #tpu.dot_dimension_numbers<[1], [0], [0], [1], [0, 0, 1, 1], [], []>} : vector<16x32xf32>, vector<32x8xf32>, vector<16x8xf32> -> vector<16x8xf32>
    %c1_317 = arith.constant 1 : index
    %c0_318 = arith.constant 0 : index
    %c2_319 = arith.constant 2 : index
    %c0_320 = arith.constant 0 : index
    %c0_321 = arith.constant 0 : index
    %362 = vector.load %arg6[%c1_317, %c0_318, %c2_319, %c0_320, %c0_321] : memref<2x3x4x1x8xf32, #tpu.memory_space<vmem>>, vector<1x1x1x1x8xf32>
    %363 = vector.shape_cast %362 : vector<1x1x1x1x8xf32> to vector<1x8xf32>
    %364 = vector.broadcast %363 : vector<1x8xf32> to vector<16x8xf32>
    %365 = arith.addf %361, %364 : vector<16x8xf32>
    %c1_322 = arith.constant 1 : index
    %c1_323 = arith.constant 1 : index
    %c2_324 = arith.constant 2 : index
    %c0_325 = arith.constant 0 : index
    %c0_326 = arith.constant 0 : index
    %366 = vector.load %arg5[%c1_322, %c1_323, %c2_324, %c0_325, %c0_326] : memref<2x3x4x32x8xf32, #tpu.memory_space<vmem>>, vector<1x1x1x32x8xf32>
    %367 = vector.shape_cast %366 : vector<1x1x1x32x8xf32> to vector<32x8xf32>
    %cst_327 = arith.constant dense<0.000000e+00> : vector<16x8xf32>
    %368 = tpu.matmul %275, %367, %cst_327 {dimension_numbers = #tpu.dot_dimension_numbers<[1], [0], [0], [1], [0, 0, 1, 1], [], []>} : vector<16x32xf32>, vector<32x8xf32>, vector<16x8xf32> -> vector<16x8xf32>
    %c1_328 = arith.constant 1 : index
    %c1_329 = arith.constant 1 : index
    %c2_330 = arith.constant 2 : index
    %c0_331 = arith.constant 0 : index
    %c0_332 = arith.constant 0 : index
    %369 = vector.load %arg6[%c1_328, %c1_329, %c2_330, %c0_331, %c0_332] : memref<2x3x4x1x8xf32, #tpu.memory_space<vmem>>, vector<1x1x1x1x8xf32>
    %370 = vector.shape_cast %369 : vector<1x1x1x1x8xf32> to vector<1x8xf32>
    %371 = vector.broadcast %370 : vector<1x8xf32> to vector<16x8xf32>
    %372 = arith.addf %368, %371 : vector<16x8xf32>
    %c1_333 = arith.constant 1 : index
    %c2_334 = arith.constant 2 : index
    %c2_335 = arith.constant 2 : index
    %c0_336 = arith.constant 0 : index
    %c0_337 = arith.constant 0 : index
    %373 = vector.load %arg5[%c1_333, %c2_334, %c2_335, %c0_336, %c0_337] : memref<2x3x4x32x8xf32, #tpu.memory_space<vmem>>, vector<1x1x1x32x8xf32>
    %374 = vector.shape_cast %373 : vector<1x1x1x32x8xf32> to vector<32x8xf32>
    %cst_338 = arith.constant dense<0.000000e+00> : vector<16x8xf32>
    %375 = tpu.matmul %275, %374, %cst_338 {dimension_numbers = #tpu.dot_dimension_numbers<[1], [0], [0], [1], [0, 0, 1, 1], [], []>} : vector<16x32xf32>, vector<32x8xf32>, vector<16x8xf32> -> vector<16x8xf32>
    %c1_339 = arith.constant 1 : index
    %c2_340 = arith.constant 2 : index
    %c2_341 = arith.constant 2 : index
    %c0_342 = arith.constant 0 : index
    %c0_343 = arith.constant 0 : index
    %376 = vector.load %arg6[%c1_339, %c2_340, %c2_341, %c0_342, %c0_343] : memref<2x3x4x1x8xf32, #tpu.memory_space<vmem>>, vector<1x1x1x1x8xf32>
    %377 = vector.shape_cast %376 : vector<1x1x1x1x8xf32> to vector<1x8xf32>
    %378 = vector.broadcast %377 : vector<1x8xf32> to vector<16x8xf32>
    %379 = arith.addf %375, %378 : vector<16x8xf32>
    %380 = tpu.transpose %372, [1, 0] : vector<16x8xf32> -> vector<8x16xf32>
    %cst_344 = arith.constant dense<0.000000e+00> : vector<16x16xf32>
    %381 = tpu.matmul %365, %380, %cst_344 {dimension_numbers = #tpu.dot_dimension_numbers<[1], [0], [0], [1], [0, 0, 1, 1], [], []>} : vector<16x8xf32>, vector<8x16xf32>, vector<16x16xf32> -> vector<16x16xf32>
    %cst_345 = arith.constant 0.353553385 : f32
    %382 = vector.broadcast %cst_345 : f32 to vector<16x16xf32>
    %383 = arith.mulf %381, %382 : vector<16x16xf32>
    %384 = arith.addf %383, %25 : vector<16x16xf32>
    %cst_346 = arith.constant dense<0xFF800000> : vector<16xf32>
    %385 = vector.multi_reduction <maximumf>, %384, %cst_346 [1] : vector<16x16xf32> to vector<16xf32>
    %386 = vector.shape_cast %385 : vector<16xf32> to vector<16x1xf32>
    %387 = vector.broadcast %386 : vector<16x1xf32> to vector<16x16xf32>
    %388 = arith.subf %384, %387 : vector<16x16xf32>
    %389 = math.exp %388 : vector<16x16xf32>
    %cst_347 = arith.constant dense<0.000000e+00> : vector<16xf32>
    %390 = vector.multi_reduction <add>, %389, %cst_347 [1] : vector<16x16xf32> to vector<16xf32>
    %391 = vector.shape_cast %390 : vector<16xf32> to vector<16x1xf32>
    %392 = tpu.reciprocal %391 {approx = true} : vector<16x1xf32> -> vector<16x1xf32>
    %393 = vector.broadcast %392 : vector<16x1xf32> to vector<16x16xf32>
    %394 = arith.mulf %389, %393 : vector<16x16xf32>
    %cst_348 = arith.constant dense<0.000000e+00> : vector<16x8xf32>
    %395 = tpu.matmul %394, %379, %cst_348 {dimension_numbers = #tpu.dot_dimension_numbers<[1], [0], [0], [1], [0, 0, 1, 1], [], []>} : vector<16x16xf32>, vector<16x8xf32>, vector<16x8xf32> -> vector<16x8xf32>
    %c1_349 = arith.constant 1 : index
    %c2_350 = arith.constant 2 : index
    %c0_351 = arith.constant 0 : index
    %c0_352 = arith.constant 0 : index
    %396 = vector.load %arg7[%c1_349, %c2_350, %c0_351, %c0_352] : memref<2x4x8x32xf32, #tpu.memory_space<vmem>>, vector<1x1x8x32xf32>
    %397 = vector.shape_cast %396 : vector<1x1x8x32xf32> to vector<8x32xf32>
    %cst_353 = arith.constant dense<0.000000e+00> : vector<16x32xf32>
    %398 = tpu.matmul %395, %397, %cst_353 {dimension_numbers = #tpu.dot_dimension_numbers<[1], [0], [0], [1], [0, 0, 1, 1], [], []>} : vector<16x8xf32>, vector<8x32xf32>, vector<16x32xf32> -> vector<16x32xf32>
    %399 = arith.addf %358, %398 : vector<16x32xf32>
    %c1_354 = arith.constant 1 : index
    %c0_355 = arith.constant 0 : index
    %c3_356 = arith.constant 3 : index
    %c0_357 = arith.constant 0 : index
    %c0_358 = arith.constant 0 : index
    %400 = vector.load %arg5[%c1_354, %c0_355, %c3_356, %c0_357, %c0_358] : memref<2x3x4x32x8xf32, #tpu.memory_space<vmem>>, vector<1x1x1x32x8xf32>
    %401 = vector.shape_cast %400 : vector<1x1x1x32x8xf32> to vector<32x8xf32>
    %cst_359 = arith.constant dense<0.000000e+00> : vector<16x8xf32>
    %402 = tpu.matmul %275, %401, %cst_359 {dimension_numbers = #tpu.dot_dimension_numbers<[1], [0], [0], [1], [0, 0, 1, 1], [], []>} : vector<16x32xf32>, vector<32x8xf32>, vector<16x8xf32> -> vector<16x8xf32>
    %c1_360 = arith.constant 1 : index
    %c0_361 = arith.constant 0 : index
    %c3_362 = arith.constant 3 : index
    %c0_363 = arith.constant 0 : index
    %c0_364 = arith.constant 0 : index
    %403 = vector.load %arg6[%c1_360, %c0_361, %c3_362, %c0_363, %c0_364] : memref<2x3x4x1x8xf32, #tpu.memory_space<vmem>>, vector<1x1x1x1x8xf32>
    %404 = vector.shape_cast %403 : vector<1x1x1x1x8xf32> to vector<1x8xf32>
    %405 = vector.broadcast %404 : vector<1x8xf32> to vector<16x8xf32>
    %406 = arith.addf %402, %405 : vector<16x8xf32>
    %c1_365 = arith.constant 1 : index
    %c1_366 = arith.constant 1 : index
    %c3_367 = arith.constant 3 : index
    %c0_368 = arith.constant 0 : index
    %c0_369 = arith.constant 0 : index
    %407 = vector.load %arg5[%c1_365, %c1_366, %c3_367, %c0_368, %c0_369] : memref<2x3x4x32x8xf32, #tpu.memory_space<vmem>>, vector<1x1x1x32x8xf32>
    %408 = vector.shape_cast %407 : vector<1x1x1x32x8xf32> to vector<32x8xf32>
    %cst_370 = arith.constant dense<0.000000e+00> : vector<16x8xf32>
    %409 = tpu.matmul %275, %408, %cst_370 {dimension_numbers = #tpu.dot_dimension_numbers<[1], [0], [0], [1], [0, 0, 1, 1], [], []>} : vector<16x32xf32>, vector<32x8xf32>, vector<16x8xf32> -> vector<16x8xf32>
    %c1_371 = arith.constant 1 : index
    %c1_372 = arith.constant 1 : index
    %c3_373 = arith.constant 3 : index
    %c0_374 = arith.constant 0 : index
    %c0_375 = arith.constant 0 : index
    %410 = vector.load %arg6[%c1_371, %c1_372, %c3_373, %c0_374, %c0_375] : memref<2x3x4x1x8xf32, #tpu.memory_space<vmem>>, vector<1x1x1x1x8xf32>
    %411 = vector.shape_cast %410 : vector<1x1x1x1x8xf32> to vector<1x8xf32>
    %412 = vector.broadcast %411 : vector<1x8xf32> to vector<16x8xf32>
    %413 = arith.addf %409, %412 : vector<16x8xf32>
    %c1_376 = arith.constant 1 : index
    %c2_377 = arith.constant 2 : index
    %c3_378 = arith.constant 3 : index
    %c0_379 = arith.constant 0 : index
    %c0_380 = arith.constant 0 : index
    %414 = vector.load %arg5[%c1_376, %c2_377, %c3_378, %c0_379, %c0_380] : memref<2x3x4x32x8xf32, #tpu.memory_space<vmem>>, vector<1x1x1x32x8xf32>
    %415 = vector.shape_cast %414 : vector<1x1x1x32x8xf32> to vector<32x8xf32>
    %cst_381 = arith.constant dense<0.000000e+00> : vector<16x8xf32>
    %416 = tpu.matmul %275, %415, %cst_381 {dimension_numbers = #tpu.dot_dimension_numbers<[1], [0], [0], [1], [0, 0, 1, 1], [], []>} : vector<16x32xf32>, vector<32x8xf32>, vector<16x8xf32> -> vector<16x8xf32>
    %c1_382 = arith.constant 1 : index
    %c2_383 = arith.constant 2 : index
    %c3_384 = arith.constant 3 : index
    %c0_385 = arith.constant 0 : index
    %c0_386 = arith.constant 0 : index
    %417 = vector.load %arg6[%c1_382, %c2_383, %c3_384, %c0_385, %c0_386] : memref<2x3x4x1x8xf32, #tpu.memory_space<vmem>>, vector<1x1x1x1x8xf32>
    %418 = vector.shape_cast %417 : vector<1x1x1x1x8xf32> to vector<1x8xf32>
    %419 = vector.broadcast %418 : vector<1x8xf32> to vector<16x8xf32>
    %420 = arith.addf %416, %419 : vector<16x8xf32>
    %421 = tpu.transpose %413, [1, 0] : vector<16x8xf32> -> vector<8x16xf32>
    %cst_387 = arith.constant dense<0.000000e+00> : vector<16x16xf32>
    %422 = tpu.matmul %406, %421, %cst_387 {dimension_numbers = #tpu.dot_dimension_numbers<[1], [0], [0], [1], [0, 0, 1, 1], [], []>} : vector<16x8xf32>, vector<8x16xf32>, vector<16x16xf32> -> vector<16x16xf32>
    %cst_388 = arith.constant 0.353553385 : f32
    %423 = vector.broadcast %cst_388 : f32 to vector<16x16xf32>
    %424 = arith.mulf %422, %423 : vector<16x16xf32>
    %425 = arith.addf %424, %25 : vector<16x16xf32>
    %cst_389 = arith.constant dense<0xFF800000> : vector<16xf32>
    %426 = vector.multi_reduction <maximumf>, %425, %cst_389 [1] : vector<16x16xf32> to vector<16xf32>
    %427 = vector.shape_cast %426 : vector<16xf32> to vector<16x1xf32>
    %428 = vector.broadcast %427 : vector<16x1xf32> to vector<16x16xf32>
    %429 = arith.subf %425, %428 : vector<16x16xf32>
    %430 = math.exp %429 : vector<16x16xf32>
    %cst_390 = arith.constant dense<0.000000e+00> : vector<16xf32>
    %431 = vector.multi_reduction <add>, %430, %cst_390 [1] : vector<16x16xf32> to vector<16xf32>
    %432 = vector.shape_cast %431 : vector<16xf32> to vector<16x1xf32>
    %433 = tpu.reciprocal %432 {approx = true} : vector<16x1xf32> -> vector<16x1xf32>
    %434 = vector.broadcast %433 : vector<16x1xf32> to vector<16x16xf32>
    %435 = arith.mulf %430, %434 : vector<16x16xf32>
    %cst_391 = arith.constant dense<0.000000e+00> : vector<16x8xf32>
    %436 = tpu.matmul %435, %420, %cst_391 {dimension_numbers = #tpu.dot_dimension_numbers<[1], [0], [0], [1], [0, 0, 1, 1], [], []>} : vector<16x16xf32>, vector<16x8xf32>, vector<16x8xf32> -> vector<16x8xf32>
    %c1_392 = arith.constant 1 : index
    %c3_393 = arith.constant 3 : index
    %c0_394 = arith.constant 0 : index
    %c0_395 = arith.constant 0 : index
    %437 = vector.load %arg7[%c1_392, %c3_393, %c0_394, %c0_395] : memref<2x4x8x32xf32, #tpu.memory_space<vmem>>, vector<1x1x8x32xf32>
    %438 = vector.shape_cast %437 : vector<1x1x8x32xf32> to vector<8x32xf32>
    %cst_396 = arith.constant dense<0.000000e+00> : vector<16x32xf32>
    %439 = tpu.matmul %436, %438, %cst_396 {dimension_numbers = #tpu.dot_dimension_numbers<[1], [0], [0], [1], [0, 0, 1, 1], [], []>} : vector<16x8xf32>, vector<8x32xf32>, vector<16x32xf32> -> vector<16x32xf32>
    %440 = arith.addf %399, %439 : vector<16x32xf32>
    %c1_397 = arith.constant 1 : index
    %c0_398 = arith.constant 0 : index
    %c0_399 = arith.constant 0 : index
    %441 = vector.load %arg8[%c1_397, %c0_398, %c0_399] : memref<2x1x32xf32, #tpu.memory_space<vmem>>, vector<1x1x32xf32>
    %442 = vector.shape_cast %441 : vector<1x1x32xf32> to vector<1x32xf32>
    %443 = vector.broadcast %442 : vector<1x32xf32> to vector<16x32xf32>
    %444 = arith.addf %440, %443 : vector<16x32xf32>
    %445 = arith.addf %444, %275 : vector<16x32xf32>
    %c1_400 = arith.constant 1 : index
    %c0_401 = arith.constant 0 : index
    %c0_402 = arith.constant 0 : index
    %446 = vector.load %arg9[%c1_400, %c0_401, %c0_402] : memref<2x1x32xf32, #tpu.memory_space<vmem>>, vector<1x1x32xf32>
    %447 = vector.shape_cast %446 : vector<1x1x32xf32> to vector<1x32xf32>
    %c1_403 = arith.constant 1 : index
    %c0_404 = arith.constant 0 : index
    %c0_405 = arith.constant 0 : index
    %448 = vector.load %arg10[%c1_403, %c0_404, %c0_405] : memref<2x1x32xf32, #tpu.memory_space<vmem>>, vector<1x1x32xf32>
    %449 = vector.shape_cast %448 : vector<1x1x32xf32> to vector<1x32xf32>
    %cst_406 = arith.constant dense<0.000000e+00> : vector<16xf32>
    %450 = vector.multi_reduction <add>, %445, %cst_406 [1] : vector<16x32xf32> to vector<16xf32>
    %451 = vector.shape_cast %450 : vector<16xf32> to vector<16x1xf32>
    %cst_407 = arith.constant 3.200000e+01 : f32
    %452 = vector.broadcast %cst_407 : f32 to vector<16x1xf32>
    %453 = arith.divf %451, %452 : vector<16x1xf32>
    %454 = vector.broadcast %453 : vector<16x1xf32> to vector<16x32xf32>
    %455 = arith.subf %445, %454 : vector<16x32xf32>
    %456 = arith.mulf %455, %455 : vector<16x32xf32>
    %cst_408 = arith.constant dense<0.000000e+00> : vector<16xf32>
    %457 = vector.multi_reduction <add>, %456, %cst_408 [1] : vector<16x32xf32> to vector<16xf32>
    %458 = vector.shape_cast %457 : vector<16xf32> to vector<16x1xf32>
    %cst_409 = arith.constant 3.200000e+01 : f32
    %459 = vector.broadcast %cst_409 : f32 to vector<16x1xf32>
    %460 = arith.divf %458, %459 : vector<16x1xf32>
    %461 = vector.broadcast %453 : vector<16x1xf32> to vector<16x32xf32>
    %462 = arith.subf %445, %461 : vector<16x32xf32>
    %cst_410 = arith.constant 9.99999996E-13 : f32
    %463 = vector.broadcast %cst_410 : f32 to vector<16x1xf32>
    %464 = arith.addf %460, %463 : vector<16x1xf32>
    %465 = math.rsqrt %464 : vector<16x1xf32>
    %466 = vector.broadcast %465 : vector<16x1xf32> to vector<16x32xf32>
    %467 = arith.mulf %462, %466 : vector<16x32xf32>
    %468 = vector.broadcast %447 : vector<1x32xf32> to vector<16x32xf32>
    %469 = arith.mulf %467, %468 : vector<16x32xf32>
    %470 = vector.broadcast %449 : vector<1x32xf32> to vector<16x32xf32>
    %471 = arith.addf %469, %470 : vector<16x32xf32>
    %c1_411 = arith.constant 1 : index
    %c0_412 = arith.constant 0 : index
    %c0_413 = arith.constant 0 : index
    %472 = vector.load %arg11[%c1_411, %c0_412, %c0_413] : memref<2x32x64xf32, #tpu.memory_space<vmem>>, vector<1x32x64xf32>
    %473 = vector.shape_cast %472 : vector<1x32x64xf32> to vector<32x64xf32>
    %cst_414 = arith.constant dense<0.000000e+00> : vector<16x64xf32>
    %474 = tpu.matmul %471, %473, %cst_414 {dimension_numbers = #tpu.dot_dimension_numbers<[1], [0], [0], [1], [0, 0, 1, 1], [], []>} : vector<16x32xf32>, vector<32x64xf32>, vector<16x64xf32> -> vector<16x64xf32>
    %c1_415 = arith.constant 1 : index
    %c0_416 = arith.constant 0 : index
    %c0_417 = arith.constant 0 : index
    %475 = vector.load %arg12[%c1_415, %c0_416, %c0_417] : memref<2x1x64xf32, #tpu.memory_space<vmem>>, vector<1x1x64xf32>
    %476 = vector.shape_cast %475 : vector<1x1x64xf32> to vector<1x64xf32>
    %477 = vector.broadcast %476 : vector<1x64xf32> to vector<16x64xf32>
    %478 = arith.addf %474, %477 : vector<16x64xf32>
    %cst_418 = arith.constant 5.000000e-01 : f32
    %479 = vector.broadcast %cst_418 : f32 to vector<16x64xf32>
    %480 = arith.mulf %479, %478 : vector<16x64xf32>
    %cst_419 = arith.constant 4.471500e-02 : f32
    %481 = vector.broadcast %cst_419 : f32 to vector<16x64xf32>
    %482 = arith.mulf %481, %478 : vector<16x64xf32>
    %483 = arith.mulf %482, %478 : vector<16x64xf32>
    %484 = arith.mulf %483, %478 : vector<16x64xf32>
    %485 = arith.addf %478, %484 : vector<16x64xf32>
    %cst_420 = arith.constant 0.797884583 : f32
    %486 = vector.broadcast %cst_420 : f32 to vector<16x64xf32>
    %487 = arith.mulf %486, %485 : vector<16x64xf32>
    %488 = math.tanh %487 : vector<16x64xf32>
    %cst_421 = arith.constant 1.000000e+00 : f32
    %489 = vector.broadcast %cst_421 : f32 to vector<16x64xf32>
    %490 = arith.addf %489, %488 : vector<16x64xf32>
    %491 = arith.mulf %480, %490 : vector<16x64xf32>
    %c1_422 = arith.constant 1 : index
    %c0_423 = arith.constant 0 : index
    %c0_424 = arith.constant 0 : index
    %492 = vector.load %arg13[%c1_422, %c0_423, %c0_424] : memref<2x64x32xf32, #tpu.memory_space<vmem>>, vector<1x64x32xf32>
    %493 = vector.shape_cast %492 : vector<1x64x32xf32> to vector<64x32xf32>
    %cst_425 = arith.constant dense<0.000000e+00> : vector<16x32xf32>
    %494 = tpu.matmul %491, %493, %cst_425 {dimension_numbers = #tpu.dot_dimension_numbers<[1], [0], [0], [1], [0, 0, 1, 1], [], []>} : vector<16x64xf32>, vector<64x32xf32>, vector<16x32xf32> -> vector<16x32xf32>
    %c1_426 = arith.constant 1 : index
    %c0_427 = arith.constant 0 : index
    %c0_428 = arith.constant 0 : index
    %495 = vector.load %arg14[%c1_426, %c0_427, %c0_428] : memref<2x1x32xf32, #tpu.memory_space<vmem>>, vector<1x1x32xf32>
    %496 = vector.shape_cast %495 : vector<1x1x32xf32> to vector<1x32xf32>
    %497 = vector.broadcast %496 : vector<1x32xf32> to vector<16x32xf32>
    %498 = arith.addf %494, %497 : vector<16x32xf32>
    %499 = arith.addf %498, %471 : vector<16x32xf32>
    %c1_429 = arith.constant 1 : index
    %c0_430 = arith.constant 0 : index
    %c0_431 = arith.constant 0 : index
    %500 = vector.load %arg15[%c1_429, %c0_430, %c0_431] : memref<2x1x32xf32, #tpu.memory_space<vmem>>, vector<1x1x32xf32>
    %501 = vector.shape_cast %500 : vector<1x1x32xf32> to vector<1x32xf32>
    %c1_432 = arith.constant 1 : index
    %c0_433 = arith.constant 0 : index
    %c0_434 = arith.constant 0 : index
    %502 = vector.load %arg16[%c1_432, %c0_433, %c0_434] : memref<2x1x32xf32, #tpu.memory_space<vmem>>, vector<1x1x32xf32>
    %503 = vector.shape_cast %502 : vector<1x1x32xf32> to vector<1x32xf32>
    %cst_435 = arith.constant dense<0.000000e+00> : vector<16xf32>
    %504 = vector.multi_reduction <add>, %499, %cst_435 [1] : vector<16x32xf32> to vector<16xf32>
    %505 = vector.shape_cast %504 : vector<16xf32> to vector<16x1xf32>
    %cst_436 = arith.constant 3.200000e+01 : f32
    %506 = vector.broadcast %cst_436 : f32 to vector<16x1xf32>
    %507 = arith.divf %505, %506 : vector<16x1xf32>
    %508 = vector.broadcast %507 : vector<16x1xf32> to vector<16x32xf32>
    %509 = arith.subf %499, %508 : vector<16x32xf32>
    %510 = arith.mulf %509, %509 : vector<16x32xf32>
    %cst_437 = arith.constant dense<0.000000e+00> : vector<16xf32>
    %511 = vector.multi_reduction <add>, %510, %cst_437 [1] : vector<16x32xf32> to vector<16xf32>
    %512 = vector.shape_cast %511 : vector<16xf32> to vector<16x1xf32>
    %cst_438 = arith.constant 3.200000e+01 : f32
    %513 = vector.broadcast %cst_438 : f32 to vector<16x1xf32>
    %514 = arith.divf %512, %513 : vector<16x1xf32>
    %515 = vector.broadcast %507 : vector<16x1xf32> to vector<16x32xf32>
    %516 = arith.subf %499, %515 : vector<16x32xf32>
    %cst_439 = arith.constant 9.99999996E-13 : f32
    %517 = vector.broadcast %cst_439 : f32 to vector<16x1xf32>
    %518 = arith.addf %514, %517 : vector<16x1xf32>
    %519 = math.rsqrt %518 : vector<16x1xf32>
    %520 = vector.broadcast %519 : vector<16x1xf32> to vector<16x32xf32>
    %521 = arith.mulf %516, %520 : vector<16x32xf32>
    %522 = vector.broadcast %501 : vector<1x32xf32> to vector<16x32xf32>
    %523 = arith.mulf %521, %522 : vector<16x32xf32>
    %524 = vector.broadcast %503 : vector<1x32xf32> to vector<16x32xf32>
    %525 = arith.addf %523, %524 : vector<16x32xf32>
    %c0_440 = arith.constant 0 : index
    %c0_441 = arith.constant 0 : index
    %526 = vector.load %arg17[%c0_440, %c0_441] : memref<32x128xf32, #tpu.memory_space<vmem>>, vector<32x128xf32>
    %cst_442 = arith.constant dense<0.000000e+00> : vector<16x128xf32>
    %527 = tpu.matmul %525, %526, %cst_442 {dimension_numbers = #tpu.dot_dimension_numbers<[1], [0], [0], [1], [0, 0, 1, 1], [], []>} : vector<16x32xf32>, vector<32x128xf32>, vector<16x128xf32> -> vector<16x128xf32>
    %c0_443 = arith.constant 0 : index
    %c0_444 = arith.constant 0 : index
    %528 = vector.load %arg18[%c0_443, %c0_444] : memref<1x128xf32, #tpu.memory_space<vmem>>, vector<1x128xf32>
    %529 = vector.broadcast %528 : vector<1x128xf32> to vector<16x128xf32>
    %530 = arith.addf %527, %529 : vector<16x128xf32>
    %c0_445 = arith.constant 0 : index
    %c0_446 = arith.constant 0 : index
    %531 = vector.load %arg19[%c0_445, %c0_446] : memref<16x128xf32, #tpu.memory_space<vmem>>, vector<16x128xf32>
    tpu.vector_store %arg19[%c0_445, %c0_446], %530 {strides = array<i32>} : memref<16x128xf32, #tpu.memory_space<vmem>>, vector<16x128xf32>,
    return
  }
  func.func @transform_0(%arg0: i32) -> (i32, i32) {
    %c0_i32 = arith.constant 0 : i32
    %c0_i32_0 = arith.constant 0 : i32
    %c0_i32_1 = arith.constant 0 : i32
    return %c0_i32, %c0_i32_0 : i32, i32
  }
  func.func @transform_1(%arg0: i32) -> (i32, i32) {
    %c0_i32 = arith.constant 0 : i32
    %c0_i32_0 = arith.constant 0 : i32
    %c0_i32_1 = arith.constant 0 : i32
    return %c0_i32, %c0_i32_0 : i32, i32
  }
  func.func @transform_2(%arg0: i32) -> (i32, i32) {
    %c0_i32 = arith.constant 0 : i32
    %c0_i32_0 = arith.constant 0 : i32
    %c0_i32_1 = arith.constant 0 : i32
    return %c0_i32, %c0_i32_0 : i32, i32
  }
  func.func @transform_3(%arg0: i32) -> (i32, i32) {
    %c0_i32 = arith.constant 0 : i32
    %c0_i32_0 = arith.constant 0 : i32
    %c0_i32_1 = arith.constant 0 : i32
    return %c0_i32, %c0_i32_0 : i32, i32
  }
  func.func @transform_4(%arg0: i32) -> (i32, i32, i32, i32, i32) {
    %c0_i32 = arith.constant 0 : i32
    %c0_i32_0 = arith.constant 0 : i32
    %c0_i32_1 = arith.constant 0 : i32
    %c0_i32_2 = arith.constant 0 : i32
    %c0_i32_3 = arith.constant 0 : i32
    %c0_i32_4 = arith.constant 0 : i32
    return %c0_i32, %c0_i32_0, %c0_i32_1, %c0_i32_2, %c0_i32_3 : i32, i32, i32, i32, i32
  }
  func.func @transform_5(%arg0: i32) -> (i32, i32, i32, i32, i32) {
    %c0_i32 = arith.constant 0 : i32
    %c0_i32_0 = arith.constant 0 : i32
    %c0_i32_1 = arith.constant 0 : i32
    %c0_i32_2 = arith.constant 0 : i32
    %c0_i32_3 = arith.constant 0 : i32
    %c0_i32_4 = arith.constant 0 : i32
    return %c0_i32, %c0_i32_0, %c0_i32_1, %c0_i32_2, %c0_i32_3 : i32, i32, i32, i32, i32
  }
  func.func @transform_6(%arg0: i32) -> (i32, i32, i32, i32) {
    %c0_i32 = arith.constant 0 : i32
    %c0_i32_0 = arith.constant 0 : i32
    %c0_i32_1 = arith.constant 0 : i32
    %c0_i32_2 = arith.constant 0 : i32
    %c0_i32_3 = arith.constant 0 : i32
    return %c0_i32, %c0_i32_0, %c0_i32_1, %c0_i32_2 : i32, i32, i32, i32
  }
  func.func @transform_7(%arg0: i32) -> (i32, i32, i32) {
    %c0_i32 = arith.constant 0 : i32
    %c0_i32_0 = arith.constant 0 : i32
    %c0_i32_1 = arith.constant 0 : i32
    %c0_i32_2 = arith.constant 0 : i32
    return %c0_i32, %c0_i32_0, %c0_i32_1 : i32, i32, i32
  }
  func.func @transform_8(%arg0: i32) -> (i32, i32, i32) {
    %c0_i32 = arith.constant 0 : i32
    %c0_i32_0 = arith.constant 0 : i32
    %c0_i32_1 = arith.constant 0 : i32
    %c0_i32_2 = arith.constant 0 : i32
    return %c0_i32, %c0_i32_0, %c0_i32_1 : i32, i32, i32
  }
  func.func @transform_9(%arg0: i32) -> (i32, i32, i32) {
    %c0_i32 = arith.constant 0 : i32
    %c0_i32_0 = arith.constant 0 : i32
    %c0_i32_1 = arith.constant 0 : i32
    %c0_i32_2 = arith.constant 0 : i32
    return %c0_i32, %c0_i32_0, %c0_i32_1 : i32, i32, i32
  }
  func.func @transform_10(%arg0: i32) -> (i32, i32, i32) {
    %c0_i32 = arith.constant 0 : i32
    %c0_i32_0 = arith.constant 0 : i32
    %c0_i32_1 = arith.constant 0 : i32
    %c0_i32_2 = arith.constant 0 : i32
    return %c0_i32, %c0_i32_0, %c0_i32_1 : i32, i32, i32
  }
  func.func @transform_11(%arg0: i32) -> (i32, i32, i32) {
    %c0_i32 = arith.constant 0 : i32
    %c0_i32_0 = arith.constant 0 : i32
    %c0_i32_1 = arith.constant 0 : i32
    %c0_i32_2 = arith.constant 0 : i32
    return %c0_i32, %c0_i32_0, %c0_i32_1 : i32, i32, i32
  }
  func.func @transform_12(%arg0: i32) -> (i32, i32, i32) {
    %c0_i32 = arith.constant 0 : i32
    %c0_i32_0 = arith.constant 0 : i32
    %c0_i32_1 = arith.constant 0 : i32
    %c0_i32_2 = arith.constant 0 : i32
    return %c0_i32, %c0_i32_0, %c0_i32_1 : i32, i32, i32
  }
  func.func @transform_13(%arg0: i32) -> (i32, i32, i32) {
    %c0_i32 = arith.constant 0 : i32
    %c0_i32_0 = arith.constant 0 : i32
    %c0_i32_1 = arith.constant 0 : i32
    %c0_i32_2 = arith.constant 0 : i32
    return %c0_i32, %c0_i32_0, %c0_i32_1 : i32, i32, i32
  }
  func.func @transform_14(%arg0: i32) -> (i32, i32, i32) {
    %c0_i32 = arith.constant 0 : i32
    %c0_i32_0 = arith.constant 0 : i32
    %c0_i32_1 = arith.constant 0 : i32
    %c0_i32_2 = arith.constant 0 : i32
    return %c0_i32, %c0_i32_0, %c0_i32_1 : i32, i32, i32
  }
  func.func @transform_15(%arg0: i32) -> (i32, i32, i32) {
    %c0_i32 = arith.constant 0 : i32
    %c0_i32_0 = arith.constant 0 : i32
    %c0_i32_1 = arith.constant 0 : i32
    %c0_i32_2 = arith.constant 0 : i32
    return %c0_i32, %c0_i32_0, %c0_i32_1 : i32, i32, i32
  }
  func.func @transform_16(%arg0: i32) -> (i32, i32) {
    %c0_i32 = arith.constant 0 : i32
    %c0_i32_0 = arith.constant 0 : i32
    %c0_i32_1 = arith.constant 0 : i32
    return %c0_i32, %c0_i32_0 : i32, i32
  }
  func.func @transform_17(%arg0: i32) -> (i32, i32) {
    %c0_i32 = arith.constant 0 : i32
    %c0_i32_0 = arith.constant 0 : i32
    %c0_i32_1 = arith.constant 0 : i32
    return %c0_i32, %c0_i32_0 : i32, i32
  }
  func.func @transform_18(%arg0: i32) -> (i32, i32) {
    %c0_i32 = arith.constant 0 : i32
    %c0_i32_0 = arith.constant 0 : i32
    %c0_i32_1 = arith.constant 0 : i32
    return %c0_i32, %c0_i32_0 : i32, i32
  }
}

</mosaic_0001>

<llo_original>
// kernel: tpu_custom_call.1
$region0: #{tpu_custom_call.1}
  #allocation0 [shape = 'u32[]', space=smem, size = 0x4, offset = 0x4, fixed_abs, tag = 'smem constant byte address 0x4 - core index']
  #allocation1 [shape = 'u32[144,128]{1,0:T(1,128)}', space=vmem, size = 0x12000, scoped, tag = 'internal scratch']
  %s0 = inlined_call_operand.vmem [shape: f32[16,32], index: 0, kind: input, shape index: {}]
  %s1 = inlined_call_operand.vmem [shape: f32[16,16], index: 1, kind: input, shape index: {}]
  %s2 = inlined_call_operand.vmem [shape: f32[1,32], index: 2, kind: input, shape index: {}]
  %s3 = inlined_call_operand.vmem [shape: f32[1,32], index: 3, kind: input, shape index: {}]
  %s4 = inlined_call_operand.vmem [shape: f32[2,3,4,32,8], index: 4, kind: input, shape index: {}]
  %s5 = inlined_call_operand.vmem [shape: f32[2,3,4,1,8], index: 5, kind: input, shape index: {}]
  %s6 = inlined_call_operand.vmem [shape: f32[2,4,8,32], index: 6, kind: input, shape index: {}]
  %s7 = inlined_call_operand.vmem [shape: f32[2,1,32], index: 7, kind: input, shape index: {}]
  %s8 = inlined_call_operand.vmem [shape: f32[2,1,32], index: 8, kind: input, shape index: {}]
  %s9 = inlined_call_operand.vmem [shape: f32[2,1,32], index: 9, kind: input, shape index: {}]
  %s10 = inlined_call_operand.vmem [shape: f32[2,32,64], index: 10, kind: input, shape index: {}]
  %s11 = inlined_call_operand.vmem [shape: f32[2,1,64], index: 11, kind: input, shape index: {}]
  %s12 = inlined_call_operand.vmem [shape: f32[2,64,32], index: 12, kind: input, shape index: {}]
  %s13 = inlined_call_operand.vmem [shape: f32[2,1,32], index: 13, kind: input, shape index: {}]
  %s14 = inlined_call_operand.vmem [shape: f32[2,1,32], index: 14, kind: input, shape index: {}]
  %s15 = inlined_call_operand.vmem [shape: f32[2,1,32], index: 15, kind: input, shape index: {}]
  %s16 = inlined_call_operand.vmem [shape: f32[32,128], index: 16, kind: input, shape index: {}]
  %s17 = inlined_call_operand.vmem [shape: f32[1,128], index: 17, kind: input, shape index: {}]
  %s18 = inlined_call_operand.hbm [shape: f32[16,128], index: 18, kind: output, shape index: {}]
  %s19 = sld [smem:[#allocation0]]
  $region82: #{tpu_custom_call.1} parent=0
    _
  %s21 = ssub.s32 1, %s19
  %s22 = scalar_select 0, %s21, %s19
  $region1: #{tpu_custom_call.1} parent=0
    #allocation2 [shape = 'u8[8192]{0}', space=vmem, size = 0x2000, scoped, tag = 'output window, operand 0, single buffered']
    #allocation3 [shape = 's32[1]{0}', space=sflag, size = 0x4, scoped, tag = 'scoped memory for tpu_custom_call.1']
    %23 = vsyncpa [#allocation3], 0
    // Predicated region
    $region2: #{tpu_custom_call.1} parent=1 // pred_check
      _
    $region3: #{tpu_custom_call.1} parent=1 // pred_check_branch
      %25 = sbr.rel (0) target = $region5
    $region4: #{tpu_custom_call.1} parent=1 // pred_region
      _
    $region5: #{tpu_custom_call.1} parent=1 // pred_fallthru
      _
    // Predicated region
    $region6: #{tpu_custom_call.1} parent=1 // pred_check
      _
    $region7: #{tpu_custom_call.1} parent=1 // pred_check_branch
      %27 = sbr.rel (0) target = $region9
    $region8: #{tpu_custom_call.1} parent=1 // pred_region
      _
    $region9: #{tpu_custom_call.1} parent=1 // pred_fallthru
      _
    // Predicated region
    $region10: #{tpu_custom_call.1} parent=1 // pred_check
      _
    $region11: #{tpu_custom_call.1} parent=1 // pred_check_branch
      %29 = sbr.rel (0) target = $region13
    $region12: #{tpu_custom_call.1} parent=1 // pred_region
      _
    $region13: #{tpu_custom_call.1} parent=1 // pred_fallthru
      _
    // Predicated region
    $region14: #{tpu_custom_call.1} parent=1 // pred_check
      _
    $region15: #{tpu_custom_call.1} parent=1 // pred_check_branch
      %31 = sbr.rel (0) target = $region17
    $region16: #{tpu_custom_call.1} parent=1 // pred_region
      _
    $region17: #{tpu_custom_call.1} parent=1 // pred_fallthru
      _
    // Predicated region
    $region18: #{tpu_custom_call.1} parent=1 // pred_check
      _
    $region19: #{tpu_custom_call.1} parent=1 // pred_check_branch
      %33 = sbr.rel (0) target = $region21
    $region20: #{tpu_custom_call.1} parent=1 // pred_region
      _
    $region21: #{tpu_custom_call.1} parent=1 // pred_fallthru
      _
    // Predicated region
    $region22: #{tpu_custom_call.1} parent=1 // pred_check
      _
    $region23: #{tpu_custom_call.1} parent=1 // pred_check_branch
      %35 = sbr.rel (0) target = $region25
    $region24: #{tpu_custom_call.1} parent=1 // pred_region
      _
    $region25: #{tpu_custom_call.1} parent=1 // pred_fallthru
      _
    // Predicated region
    $region26: #{tpu_custom_call.1} parent=1 // pred_check
      _
    $region27: #{tpu_custom_call.1} parent=1 // pred_check_branch
      %37 = sbr.rel (0) target = $region29
    $region28: #{tpu_custom_call.1} parent=1 // pred_region
      _
    $region29: #{tpu_custom_call.1} parent=1 // pred_fallthru
      _
    // Predicated region
    $region30: #{tpu_custom_call.1} parent=1 // pred_check
      _
    $region31: #{tpu_custom_call.1} parent=1 // pred_check_branch
      %39 = sbr.rel (0) target = $region33
    $region32: #{tpu_custom_call.1} parent=1 // pred_region
      _
    $region33: #{tpu_custom_call.1} parent=1 // pred_fallthru
      _
    // Predicated region
    $region34: #{tpu_custom_call.1} parent=1 // pred_check
      _
    $region35: #{tpu_custom_call.1} parent=1 // pred_check_branch
      %41 = sbr.rel (0) target = $region37
    $region36: #{tpu_custom_call.1} parent=1 // pred_region
      _
    $region37: #{tpu_custom_call.1} parent=1 // pred_fallthru
      _
    // Predicated region
    $region38: #{tpu_custom_call.1} parent=1 // pred_check
      _
    $region39: #{tpu_custom_call.1} parent=1 // pred_check_branch
      %43 = sbr.rel (0) target = $region41
    $region40: #{tpu_custom_call.1} parent=1 // pred_region
      _
    $region41: #{tpu_custom_call.1} parent=1 // pred_fallthru
      _
    // Predicated region
    $region42: #{tpu_custom_call.1} parent=1 // pred_check
      _
    $region43: #{tpu_custom_call.1} parent=1 // pred_check_branch
      %45 = sbr.rel (0) target = $region45
    $region44: #{tpu_custom_call.1} parent=1 // pred_region
      _
    $region45: #{tpu_custom_call.1} parent=1 // pred_fallthru
      _
    // Predicated region
    $region46: #{tpu_custom_call.1} parent=1 // pred_check
      _
    $region47: #{tpu_custom_call.1} parent=1 // pred_check_branch
      %47 = sbr.rel (0) target = $region49
    $region48: #{tpu_custom_call.1} parent=1 // pred_region
      _
    $region49: #{tpu_custom_call.1} parent=1 // pred_fallthru
      _
    // Predicated region
    $region50: #{tpu_custom_call.1} parent=1 // pred_check
      _
    $region51: #{tpu_custom_call.1} parent=1 // pred_check_branch
      %49 = sbr.rel (0) target = $region53
    $region52: #{tpu_custom_call.1} parent=1 // pred_region
      _
    $region53: #{tpu_custom_call.1} parent=1 // pred_fallthru
      _
    // Predicated region
    $region54: #{tpu_custom_call.1} parent=1 // pred_check
      _
    $region55: #{tpu_custom_call.1} parent=1 // pred_check_branch
      %51 = sbr.rel (0) target = $region57
    $region56: #{tpu_custom_call.1} parent=1 // pred_region
      _
    $region57: #{tpu_custom_call.1} parent=1 // pred_fallthru
      _
    // Predicated region
    $region58: #{tpu_custom_call.1} parent=1 // pred_check
      _
    $region59: #{tpu_custom_call.1} parent=1 // pred_check_branch
      %53 = sbr.rel (0) target = $region61
    $region60: #{tpu_custom_call.1} parent=1 // pred_region
      _
    $region61: #{tpu_custom_call.1} parent=1 // pred_fallthru
      _
    // Predicated region
    $region62: #{tpu_custom_call.1} parent=1 // pred_check
      _
    $region63: #{tpu_custom_call.1} parent=1 // pred_check_branch
      %55 = sbr.rel (0) target = $region65
    $region64: #{tpu_custom_call.1} parent=1 // pred_region
      _
    $region65: #{tpu_custom_call.1} parent=1 // pred_fallthru
      _
    // Predicated region
    $region66: #{tpu_custom_call.1} parent=1 // pred_check
      _
    $region67: #{tpu_custom_call.1} parent=1 // pred_check_branch
      %57 = sbr.rel (0) target = $region69
    $region68: #{tpu_custom_call.1} parent=1 // pred_region
      _
    $region69: #{tpu_custom_call.1} parent=1 // pred_fallthru
      _
    // Predicated region
    $region70: #{tpu_custom_call.1} parent=1 // pred_check
      _
    $region71: #{tpu_custom_call.1} parent=1 // pred_check_branch
      %59 = sbr.rel (0) target = $region73
    $region72: #{tpu_custom_call.1} parent=1 // pred_region
      _
    $region73: #{tpu_custom_call.1} parent=1 // pred_fallthru
      _
    %v60 = vld [vmem:[%s0] sm:$0xff]
    %v61 = vld [vmem:[%s0 + $0x8] sm:$0xff]
    %v62 = vld [vmem:[%s2] sm:$0x1]
    %v63 = vld [vmem:[%s3] sm:$0x1]
    %vm64 = vcmask 261120
    %v65 = vsel %vm64, %v60, 0.0
    %66 = vadd.xlane.f32.xlu0 %v65
    %v67 = vpop.xlane.xlu0 %66
    %v68 = vsel %vm64, %v61, 0.0
    %69 = vadd.xlane.f32.xlu0 %v68
    %v70 = vpop.xlane.xlu0 %69
    %v71 = vrcp.pop 32.0
    %v72 = vmul.f32 %v67, %v71
    %v73 = vmul.f32 %v70, %v71
    %v74 = vsub.f32 %v60, %v72
    %v75 = vsub.f32 %v61, %v73
    %v76 = vmul.f32 %v74, %v74
    %v77 = vmul.f32 %v75, %v75
    %v78 = vsel %vm64, %v76, 0.0
    %79 = vadd.xlane.f32.xlu0 %v78
    %v80 = vpop.xlane.xlu0 %79
    %v81 = vsel %vm64, %v77, 0.0
    %82 = vadd.xlane.f32.xlu0 %v81
    %v83 = vpop.xlane.xlu0 %82
    %v84 = vmul.f32 %v80, %v71
    %v85 = vmul.f32 %v83, %v71
    %v86 = vadd.f32 %v84, 1e-12
    %v87 = vadd.f32 %v85, 1e-12
    %v88 = vrsqrt.pop %v86
    %v89 = vrsqrt.pop %v87
    %v90 = vmul.f32 %v74, %v88
    %v91 = vmul.f32 %v75, %v89
    %v93 = vlaneseq
    %v94 = vshrl.u32 %v93, 7
    %v95 = vsub.s32 0, %v94
    %v96 = vrot.slane %v62, %v95
    %v98 = vmul.f32 %v90, %v96
    %v99 = vmul.f32 %v91, %v96
    %v101 = vlaneseq
    %v102 = vshrl.u32 %v101, 7
    %v103 = vsub.s32 0, %v102
    %v104 = vrot.slane %v63, %v103
    %v106 = vadd.f32 %v98, %v104
    %v107 = vadd.f32 %v99, %v104
    %v108 = vld [vmem:[%s1] sm:$0xff]
    %v109 = vld [vmem:[%s1 + $0x8] sm:$0xff]
    %v110 = vld [vmem:[%s4] sm:$0xff]
    %v111 = vld [vmem:[%s4 + $0x8] sm:$0xff]
    %v112 = vld [vmem:[%s4 + $0x10] sm:$0xff]
    %v113 = vld [vmem:[%s4 + $0x18] sm:$0xff]
    %v114 = vld [vmem:[%s5] sm:$0x1]
    %v116 = vlaneseq
    %v117 = vshrl.u32 %v116, 7
    %v118 = vsub.s32 0, %v117
    %v119 = vrot.slane %v114, %v118
    %v122 = vsel %vm64, %v106, 0
    %v125 = vsel %vm64, %v107, 0
    %127 = vmatprep.subr.mxu0 0.0
    %128 = vmatpush1.msra.mxu0 0.0
    %129 = vmatprep.subr.mxu0 0.0
    %130 = vmatpush1.msra.mxu0 0.0
    %131 = vmatprep.subr.mxu0 0.0
    %132 = vmatpush1.msra.mxu0 0.0
    %133 = vmatprep.subr.mxu0 0.0
    %134 = vmatpush1.msra.mxu0 0.0
    %135 = vmatprep.subr.mxu0 0.0
    %136 = vmatpush1.msra.mxu0 0.0
    %137 = vmatprep.subr.mxu0 0.0
    %138 = vmatpush1.msra.mxu0 0.0
    %139 = vmatprep.subr.mxu0 0.0
    %140 = vmatpush1.msra.mxu0 0.0
    %141 = vmatprep.subr.mxu0 0.0
    %142 = vmatpush1.msra.mxu0 0.0
    %143 = vmatprep.subr.mxu0 0.0
    %144 = vmatpush1.msra.mxu0 0.0
    %145 = vmatprep.subr.mxu0 0.0
    %146 = vmatpush1.msra.mxu0 0.0
    %147 = vmatprep.subr.mxu0 0.0
    %148 = vmatpush1.msra.mxu0 0.0
    %149 = vmatprep.subr.mxu0 0.0
    %150 = vmatpush1.msra.mxu0 0.0
    %151 = vmatprep.subr.mxu0 0.0
    %152 = vmatpush1.msra.mxu0 %v113
    %153 = vmatprep.subr.mxu0 0.0
    %154 = vmatpush1.msra.mxu0 %v112
    %155 = vmatprep.subr.mxu0 0.0
    %156 = vmatpush1.msra.mxu0 %v111
    %157 = vmatprep.subr.mxu0 0.0
    %158 = vmatpush1.msra.mxu0 %v110
    %159 = vmatprep.subr.mxu0 0.0
    %160 = vmatpush2.msra.mxu0 0.0
    %161 = vmatprep.subr.mxu0 0.0
    %162 = vmatpush2.msra.mxu0 0.0
    %163 = vmatprep.subr.mxu0 0.0
    %164 = vmatpush2.msra.mxu0 0.0
    %165 = vmatprep.subr.mxu0 0.0
    %166 = vmatpush2.msra.mxu0 0.0
    %167 = vmatprep.subr.mxu0 0.0
    %168 = vmatpush2.msra.mxu0 0.0
    %169 = vmatprep.subr.mxu0 0.0
    %170 = vmatpush2.msra.mxu0 0.0
    %171 = vmatprep.subr.mxu0 0.0
    %172 = vmatpush2.msra.mxu0 0.0
    %173 = vmatprep.subr.mxu0 0.0
    %174 = vmatpush2.msra.mxu0 0.0
    %175 = vmatprep.subr.mxu0 0.0
    %176 = vmatpush2.msra.mxu0 0.0
    %177 = vmatprep.subr.mxu0 0.0
    %178 = vmatpush2.msra.mxu0 0.0
    %179 = vmatprep.subr.mxu0 0.0
    %180 = vmatpush2.msra.mxu0 0.0
    %181 = vmatprep.subr.mxu0 0.0
    %182 = vmatpush2.msra.mxu0 0.0
    %183 = vmatprep.subr.mxu0 0.0
    %184 = vmatpush2.msra.mxu0 0.0
    %185 = vmatprep.subr.mxu0 0.0
    %186 = vmatpush2.msra.mxu0 0.0
    %187 = vmatprep.subr.mxu0 0.0
    %188 = vmatpush2.msra.mxu0 0.0
    %189 = vmatprep.subr.mxu0 0.0
    %190 = vmatpush2.msra.mxu0 0.0
    %191 = vmatprep.mubr.f32.mxu0 0.0
    %192 = vmatmul.mubr.f32.gmra.mxu0 %v122
    %v193 = vpop.f32.mrf.mxu0
    %v194 = vadd.f32 %v119, %v193
    %v195 = vpop.f32.mrf.mxu0
    %196 = vmatprep.mubr.f32.mxu0 0.0
    %197 = vmatmul.mubr.f32.gmra.mxu0 %v125
    %v198 = vpop.f32.mrf.mxu0
    %v199 = vadd.f32 %v119, %v198
    %v200 = vpop.f32.mrf.mxu0
    %201 = vdwg.mxu0
    %s202 = scalar_lea.vmem %s4, 128
    %v203 = vld [vmem:[%s202] sm:$0xff]
    %v204 = vld [vmem:[%s202 + $0x8] sm:$0xff]
    %v205 = vld [vmem:[%s202 + $0x10] sm:$0xff]
    %v206 = vld [vmem:[%s202 + $0x18] sm:$0xff]
    %s207 = scalar_lea.vmem %s5, 4
    %v208 = vld [vmem:[%s207] sm:$0x1]
    %v210 = vlaneseq
    %v211 = vshrl.u32 %v210, 7
    %v212 = vsub.s32 0, %v211
    %v213 = vrot.slane %v208, %v212
    %215 = vmatprep.subr.mxu0 0.0
    %216 = vmatpush1.msra.mxu0 0.0
    %217 = vmatprep.subr.mxu0 0.0
    %218 = vmatpush1.msra.mxu0 0.0
    %219 = vmatprep.subr.mxu0 0.0
    %220 = vmatpush1.msra.mxu0 0.0
    %221 = vmatprep.subr.mxu0 0.0
    %222 = vmatpush1.msra.mxu0 0.0
    %223 = vmatprep.subr.mxu0 0.0
    %224 = vmatpush1.msra.mxu0 0.0
    %225 = vmatprep.subr.mxu0 0.0
    %226 = vmatpush1.msra.mxu0 0.0
    %227 = vmatprep.subr.mxu0 0.0
    %228 = vmatpush1.msra.mxu0 0.0
    %229 = vmatprep.subr.mxu0 0.0
    %230 = vmatpush1.msra.mxu0 0.0
    %231 = vmatprep.subr.mxu0 0.0
    %232 = vmatpush1.msra.mxu0 0.0
    %233 = vmatprep.subr.mxu0 0.0
    %234 = vmatpush1.msra.mxu0 0.0
    %235 = vmatprep.subr.mxu0 0.0
    %236 = vmatpush1.msra.mxu0 0.0
    %237 = vmatprep.subr.mxu0 0.0
    %238 = vmatpush1.msra.mxu0 0.0
    %239 = vmatprep.subr.mxu0 0.0
    %240 = vmatpush1.msra.mxu0 %v206
    %241 = vmatprep.subr.mxu0 0.0
    %242 = vmatpush1.msra.mxu0 %v205
    %243 = vmatprep.subr.mxu0 0.0
    %244 = vmatpush1.msra.mxu0 %v204
    %245 = vmatprep.subr.mxu0 0.0
    %246 = vmatpush1.msra.mxu0 %v203
    %247 = vmatprep.subr.mxu0 0.0
    %248 = vmatpush2.msra.mxu0 0.0
    %249 = vmatprep.subr.mxu0 0.0
    %250 = vmatpush2.msra.mxu0 0.0
    %251 = vmatprep.subr.mxu0 0.0
    %252 = vmatpush2.msra.mxu0 0.0
    %253 = vmatprep.subr.mxu0 0.0
    %254 = vmatpush2.msra.mxu0 0.0
    %255 = vmatprep.subr.mxu0 0.0
    %256 = vmatpush2.msra.mxu0 0.0
    %257 = vmatprep.subr.mxu0 0.0
    %258 = vmatpush2.msra.mxu0 0.0
    %259 = vmatprep.subr.mxu0 0.0
    %260 = vmatpush2.msra.mxu0 0.0
    %261 = vmatprep.subr.mxu0 0.0
    %262 = vmatpush2.msra.mxu0 0.0
    %263 = vmatprep.subr.mxu0 0.0
    %264 = vmatpush2.msra.mxu0 0.0
    %265 = vmatprep.subr.mxu0 0.0
    %266 = vmatpush2.msra.mxu0 0.0
    %267 = vmatprep.subr.mxu0 0.0
    %268 = vmatpush2.msra.mxu0 0.0
    %269 = vmatprep.subr.mxu0 0.0
    %270 = vmatpush2.msra.mxu0 0.0
    %271 = vmatprep.subr.mxu0 0.0
    %272 = vmatpush2.msra.mxu0 0.0
    %273 = vmatprep.subr.mxu0 0.0
    %274 = vmatpush2.msra.mxu0 0.0
    %275 = vmatprep.subr.mxu0 0.0
    %276 = vmatpush2.msra.mxu0 0.0
    %277 = vmatprep.subr.mxu0 0.0
    %278 = vmatpush2.msra.mxu0 0.0
    %279 = vmatprep.mubr.f32.mxu0 0.0
    %280 = vmatmul.mubr.f32.gmra.mxu0 %v122
    %v281 = vpop.f32.mrf.mxu0
    %v282 = vadd.f32 %v213, %v281
    %v283 = vpop.f32.mrf.mxu0
    %284 = vmatprep.mubr.f32.mxu0 0.0
    %285 = vmatmul.mubr.f32.gmra.mxu0 %v125
    %v286 = vpop.f32.mrf.mxu0
    %v287 = vadd.f32 %v213, %v286
    %v288 = vpop.f32.mrf.mxu0
    %289 = vdwg.mxu0
    %s290 = scalar_lea.vmem %s4, 256
    %v291 = vld [vmem:[%s290] sm:$0xff]
    %v292 = vld [vmem:[%s290 + $0x8] sm:$0xff]
    %v293 = vld [vmem:[%s290 + $0x10] sm:$0xff]
    %v294 = vld [vmem:[%s290 + $0x18] sm:$0xff]
    %s295 = scalar_lea.vmem %s5, 8
    %v296 = vld [vmem:[%s295] sm:$0x1]
    %v298 = vlaneseq
    %v299 = vshrl.u32 %v298, 7
    %v300 = vsub.s32 0, %v299
    %v301 = vrot.slane %v296, %v300
    %303 = vmatprep.subr.mxu0 0.0
    %304 = vmatpush1.msra.mxu0 0.0
    %305 = vmatprep.subr.mxu0 0.0
    %306 = vmatpush1.msra.mxu0 0.0
    %307 = vmatprep.subr.mxu0 0.0
    %308 = vmatpush1.msra.mxu0 0.0
    %309 = vmatprep.subr.mxu0 0.0
    %310 = vmatpush1.msra.mxu0 0.0
    %311 = vmatprep.subr.mxu0 0.0
    %312 = vmatpush1.msra.mxu0 0.0
    %313 = vmatprep.subr.mxu0 0.0
    %314 = vmatpush1.msra.mxu0 0.0
    %315 = vmatprep.subr.mxu0 0.0
    %316 = vmatpush1.msra.mxu0 0.0
    %317 = vmatprep.subr.mxu0 0.0
    %318 = vmatpush1.msra.mxu0 0.0
    %319 = vmatprep.subr.mxu0 0.0
    %320 = vmatpush1.msra.mxu0 0.0
    %321 = vmatprep.subr.mxu0 0.0
    %322 = vmatpush1.msra.mxu0 0.0
    %323 = vmatprep.subr.mxu0 0.0
    %324 = vmatpush1.msra.mxu0 0.0
    %325 = vmatprep.subr.mxu0 0.0
    %326 = vmatpush1.msra.mxu0 0.0
    %327 = vmatprep.subr.mxu0 0.0
    %328 = vmatpush1.msra.mxu0 %v294
    %329 = vmatprep.subr.mxu0 0.0
    %330 = vmatpush1.msra.mxu0 %v293
    %331 = vmatprep.subr.mxu0 0.0
    %332 = vmatpush1.msra.mxu0 %v292
    %333 = vmatprep.subr.mxu0 0.0
    %334 = vmatpush1.msra.mxu0 %v291
    %335 = vmatprep.subr.mxu0 0.0
    %336 = vmatpush2.msra.mxu0 0.0
    %337 = vmatprep.subr.mxu0 0.0
    %338 = vmatpush2.msra.mxu0 0.0
    %339 = vmatprep.subr.mxu0 0.0
    %340 = vmatpush2.msra.mxu0 0.0
    %341 = vmatprep.subr.mxu0 0.0
    %342 = vmatpush2.msra.mxu0 0.0
    %343 = vmatprep.subr.mxu0 0.0
    %344 = vmatpush2.msra.mxu0 0.0
    %345 = vmatprep.subr.mxu0 0.0
    %346 = vmatpush2.msra.mxu0 0.0
    %347 = vmatprep.subr.mxu0 0.0
    %348 = vmatpush2.msra.mxu0 0.0
    %349 = vmatprep.subr.mxu0 0.0
    %350 = vmatpush2.msra.mxu0 0.0
    %351 = vmatprep.subr.mxu0 0.0
    %352 = vmatpush2.msra.mxu0 0.0
    %353 = vmatprep.subr.mxu0 0.0
    %354 = vmatpush2.msra.mxu0 0.0
    %355 = vmatprep.subr.mxu0 0.0
    %356 = vmatpush2.msra.mxu0 0.0
    %357 = vmatprep.subr.mxu0 0.0
    %358 = vmatpush2.msra.mxu0 0.0
    %359 = vmatprep.subr.mxu0 0.0
    %360 = vmatpush2.msra.mxu0 0.0
    %361 = vmatprep.subr.mxu0 0.0
    %362 = vmatpush2.msra.mxu0 0.0
    %363 = vmatprep.subr.mxu0 0.0
    %364 = vmatpush2.msra.mxu0 0.0
    %365 = vmatprep.subr.mxu0 0.0
    %366 = vmatpush2.msra.mxu0 0.0
    %367 = vmatprep.mubr.f32.mxu0 0.0
    %368 = vmatmul.mubr.f32.gmra.mxu0 %v122
    %v369 = vpop.f32.mrf.mxu0
    %v370 = vadd.f32 %v301, %v369
    %v371 = vpop.f32.mrf.mxu0
    %372 = vmatprep.mubr.f32.mxu0 0.0
    %373 = vmatmul.mubr.f32.gmra.mxu0 %v125
    %v374 = vpop.f32.mrf.mxu0
    %v375 = vadd.f32 %v301, %v374
    %v376 = vpop.f32.mrf.mxu0
    %377 = vdwg.mxu0
    %vm378 = vcmask 64512
    %v380 = vsel %vm378, %v194, 0
    %v383 = vsel %vm378, %v199, 0
    %v386 = vsel %vm378, %v282, 0
    %v389 = vsel %vm378, %v287, 0
    %391 = vmatprep.subr.mxu0 0.0
    %392 = vmatpush1.xpose.msra.mxu0 0.0
    %393 = vmatprep.subr.mxu0 0.0
    %394 = vmatpush1.xpose.msra.mxu0 0.0
    %395 = vmatprep.subr.mxu0 0.0
    %396 = vmatpush1.xpose.msra.mxu0 0.0
    %397 = vmatprep.subr.mxu0 0.0
    %398 = vmatpush1.xpose.msra.mxu0 0.0
    %399 = vmatprep.subr.mxu0 0.0
    %400 = vmatpush1.xpose.msra.mxu0 0.0
    %401 = vmatprep.subr.mxu0 0.0
    %402 = vmatpush1.xpose.msra.mxu0 0.0
    %403 = vmatprep.subr.mxu0 0.0
    %404 = vmatpush1.xpose.msra.mxu0 0.0
    %405 = vmatprep.subr.mxu0 0.0
    %406 = vmatpush1.xpose.msra.mxu0 0.0
    %407 = vmatprep.subr.mxu0 0.0
    %408 = vmatpush1.xpose.msra.mxu0 0.0
    %409 = vmatprep.subr.mxu0 0.0
    %410 = vmatpush1.xpose.msra.mxu0 0.0
    %411 = vmatprep.subr.mxu0 0.0
    %412 = vmatpush1.xpose.msra.mxu0 0.0
    %413 = vmatprep.subr.mxu0 0.0
    %414 = vmatpush1.xpose.msra.mxu0 0.0
    %415 = vmatprep.subr.mxu0 0.0
    %416 = vmatpush1.xpose.msra.mxu0 0.0
    %417 = vmatprep.subr.mxu0 0.0
    %418 = vmatpush1.xpose.msra.mxu0 0.0
    %419 = vmatprep.subr.mxu0 0.0
    %420 = vmatpush1.xpose.msra.mxu0 %v389
    %421 = vmatprep.subr.mxu0 0.0
    %422 = vmatpush1.xpose.msra.mxu0 %v386
    %423 = vmatprep.subr.mxu0 0.0
    %424 = vmatpush2.xpose.msra.mxu0 0.0
    %425 = vmatprep.subr.mxu0 0.0
    %426 = vmatpush2.xpose.msra.mxu0 0.0
    %427 = vmatprep.subr.mxu0 0.0
    %428 = vmatpush2.xpose.msra.mxu0 0.0
    %429 = vmatprep.subr.mxu0 0.0
    %430 = vmatpush2.xpose.msra.mxu0 0.0
    %431 = vmatprep.subr.mxu0 0.0
    %432 = vmatpush2.xpose.msra.mxu0 0.0
    %433 = vmatprep.subr.mxu0 0.0
    %434 = vmatpush2.xpose.msra.mxu0 0.0
    %435 = vmatprep.subr.mxu0 0.0
    %436 = vmatpush2.xpose.msra.mxu0 0.0
    %437 = vmatprep.subr.mxu0 0.0
    %438 = vmatpush2.xpose.msra.mxu0 0.0
    %439 = vmatprep.subr.mxu0 0.0
    %440 = vmatpush2.xpose.msra.mxu0 0.0
    %441 = vmatprep.subr.mxu0 0.0
    %442 = vmatpush2.xpose.msra.mxu0 0.0
    %443 = vmatprep.subr.mxu0 0.0
    %444 = vmatpush2.xpose.msra.mxu0 0.0
    %445 = vmatprep.subr.mxu0 0.0
    %446 = vmatpush2.xpose.msra.mxu0 0.0
    %447 = vmatprep.subr.mxu0 0.0
    %448 = vmatpush2.xpose.msra.mxu0 0.0
    %449 = vmatprep.subr.mxu0 0.0
    %450 = vmatpush2.xpose.msra.mxu0 0.0
    %451 = vmatprep.subr.mxu0 0.0
    %452 = vmatpush2.xpose.msra.mxu0 0.0
    %453 = vmatprep.subr.mxu0 0.0
    %454 = vmatpush2.xpose.msra.mxu0 0.0
    %455 = vmatprep.mubr.f32.mxu0 0.0
    %456 = vmatmul.mubr.f32.gmra.mxu0 %v380
    %v457 = vpop.f32.mrf.mxu0
    %v458 = vadd.f32 0.0, %v457
    %v459 = vpop.f32.mrf.mxu0
    %460 = vmatprep.mubr.f32.mxu0 0.0
    %461 = vmatmul.mubr.f32.gmra.mxu0 %v383
    %v462 = vpop.f32.mrf.mxu0
    %v463 = vadd.f32 0.0, %v462
    %v464 = vpop.f32.mrf.mxu0
    %465 = vdwg.mxu0
    %v466 = vmul.f32 %v458, 0.35355338
    %v467 = vmul.f32 %v463, 0.35355338
    %v468 = vadd.f32 %v466, %v108
    %v469 = vadd.f32 %v467, %v109
    %vm470 = vcmask 130048
    %v471 = vsel %vm470, %v468, -inf
    %472 = vmax.xlane.f32.xlu0 %v471
    %v473 = vpop.xlane.xlu0 %472
    %v474 = vsel %vm470, %v469, -inf
    %475 = vmax.xlane.f32.xlu0 %v474
    %v476 = vpop.xlane.xlu0 %475
    %v477 = vsub.f32 %v468, %v473
    %v478 = vsub.f32 %v469, %v476
    %v479 = vmul.f32 %v477, 1.442695
    %v480 = vpow.pop %v479
    %v481 = vmul.f32 %v478, 1.442695
    %v482 = vpow.pop %v481
    %v483 = vsel %vm470, %v480, 0.0
    %484 = vadd.xlane.f32.xlu0 %v483
    %v485 = vpop.xlane.xlu0 %484
    %v486 = vsel %vm470, %v482, 0.0
    %487 = vadd.xlane.f32.xlu0 %v486
    %v488 = vpop.xlane.xlu0 %487
    %v489 = vrcp.pop %v485
    %v490 = vrcp.pop %v488
    %v491 = vmul.f32 %v480, %v489
    %v492 = vmul.f32 %v482, %v490
    %v494 = vsel %vm470, %v491, 0
    %v497 = vsel %vm470, %v492, 0
    %499 = vmatprep.subr.mxu0 0.0
    %500 = vmatpush1.msra.mxu0 0.0
    %501 = vmatprep.subr.mxu0 0.0
    %502 = vmatpush1.msra.mxu0 0.0
    %503 = vmatprep.subr.mxu0 0.0
    %504 = vmatpush1.msra.mxu0 0.0
    %505 = vmatprep.subr.mxu0 0.0
    %506 = vmatpush1.msra.mxu0 0.0
    %507 = vmatprep.subr.mxu0 0.0
    %508 = vmatpush1.msra.mxu0 0.0
    %509 = vmatprep.subr.mxu0 0.0
    %510 = vmatpush1.msra.mxu0 0.0
    %511 = vmatprep.subr.mxu0 0.0
    %512 = vmatpush1.msra.mxu0 0.0
    %513 = vmatprep.subr.mxu0 0.0
    %514 = vmatpush1.msra.mxu0 0.0
    %515 = vmatprep.subr.mxu0 0.0
    %516 = vmatpush1.msra.mxu0 0.0
    %517 = vmatprep.subr.mxu0 0.0
    %518 = vmatpush1.msra.mxu0 0.0
    %519 = vmatprep.subr.mxu0 0.0
    %520 = vmatpush1.msra.mxu0 0.0
    %521 = vmatprep.subr.mxu0 0.0
    %522 = vmatpush1.msra.mxu0 0.0
    %523 = vmatprep.subr.mxu0 0.0
    %524 = vmatpush1.msra.mxu0 0.0
    %525 = vmatprep.subr.mxu0 0.0
    %526 = vmatpush1.msra.mxu0 0.0
    %527 = vmatprep.subr.mxu0 0.0
    %528 = vmatpush1.msra.mxu0 %v375
    %529 = vmatprep.subr.mxu0 0.0
    %530 = vmatpush1.msra.mxu0 %v370
    %531 = vmatprep.subr.mxu0 0.0
    %532 = vmatpush2.msra.mxu0 0.0
    %533 = vmatprep.subr.mxu0 0.0
    %534 = vmatpush2.msra.mxu0 0.0
    %535 = vmatprep.subr.mxu0 0.0
    %536 = vmatpush2.msra.mxu0 0.0
    %537 = vmatprep.subr.mxu0 0.0
    %538 = vmatpush2.msra.mxu0 0.0
    %539 = vmatprep.subr.mxu0 0.0
    %540 = vmatpush2.msra.mxu0 0.0
    %541 = vmatprep.subr.mxu0 0.0
    %542 = vmatpush2.msra.mxu0 0.0
    %543 = vmatprep.subr.mxu0 0.0
    %544 = vmatpush2.msra.mxu0 0.0
    %545 = vmatprep.subr.mxu0 0.0
    %546 = vmatpush2.msra.mxu0 0.0
    %547 = vmatprep.subr.mxu0 0.0
    %548 = vmatpush2.msra.mxu0 0.0
    %549 = vmatprep.subr.mxu0 0.0
    %550 = vmatpush2.msra.mxu0 0.0
    %551 = vmatprep.subr.mxu0 0.0
    %552 = vmatpush2.msra.mxu0 0.0
    %553 = vmatprep.subr.mxu0 0.0
    %554 = vmatpush2.msra.mxu0 0.0
    %555 = vmatprep.subr.mxu0 0.0
    %556 = vmatpush2.msra.mxu0 0.0
    %557 = vmatprep.subr.mxu0 0.0
    %558 = vmatpush2.msra.mxu0 0.0
    %559 = vmatprep.subr.mxu0 0.0
    %560 = vmatpush2.msra.mxu0 0.0
    %561 = vmatprep.subr.mxu0 0.0
    %562 = vmatpush2.msra.mxu0 0.0
    %563 = vmatprep.mubr.f32.mxu0 0.0
    %564 = vmatmul.mubr.f32.gmra.mxu0 %v494
    %v565 = vpop.f32.mrf.mxu0
    %v566 = vadd.f32 0.0, %v565
    %v567 = vpop.f32.mrf.mxu0
    %568 = vmatprep.mubr.f32.mxu0 0.0
    %569 = vmatmul.mubr.f32.gmra.mxu0 %v497
    %v570 = vpop.f32.mrf.mxu0
    %v571 = vadd.f32 0.0, %v570
    %v572 = vpop.f32.mrf.mxu0
    %573 = vdwg.mxu0
    %v574 = vld [vmem:[%s6] sm:$0xff]
    %s575 = scalar_lea.vmem %s4, 32
    %v576 = vld [vmem:[%s575] sm:$0xff]
    %v577 = vld [vmem:[%s575 + $0x8] sm:$0xff]
    %v578 = vld [vmem:[%s575 + $0x10] sm:$0xff]
    %v579 = vld [vmem:[%s575 + $0x18] sm:$0xff]
    %s580 = scalar_lea.vmem %s5, 1
    %v581 = vld [vmem:[%s580] sm:$0x1]
    %v583 = vlaneseq
    %v584 = vshrl.u32 %v583, 7
    %v585 = vsub.s32 0, %v584
    %v586 = vrot.slane %v581, %v585
    %588 = vmatprep.subr.mxu0 0.0
    %589 = vmatpush1.msra.mxu0 0.0
    %590 = vmatprep.subr.mxu0 0.0
    %591 = vmatpush1.msra.mxu0 0.0
    %592 = vmatprep.subr.mxu0 0.0
    %593 = vmatpush1.msra.mxu0 0.0
    %594 = vmatprep.subr.mxu0 0.0
    %595 = vmatpush1.msra.mxu0 0.0
    %596 = vmatprep.subr.mxu0 0.0
    %597 = vmatpush1.msra.mxu0 0.0
    %598 = vmatprep.subr.mxu0 0.0
    %599 = vmatpush1.msra.mxu0 0.0
    %600 = vmatprep.subr.mxu0 0.0
    %601 = vmatpush1.msra.mxu0 0.0
    %602 = vmatprep.subr.mxu0 0.0
    %603 = vmatpush1.msra.mxu0 0.0
    %604 = vmatprep.subr.mxu0 0.0
    %605 = vmatpush1.msra.mxu0 0.0
    %606 = vmatprep.subr.mxu0 0.0
    %607 = vmatpush1.msra.mxu0 0.0
    %608 = vmatprep.subr.mxu0 0.0
    %609 = vmatpush1.msra.mxu0 0.0
    %610 = vmatprep.subr.mxu0 0.0
    %611 = vmatpush1.msra.mxu0 0.0
    %612 = vmatprep.subr.mxu0 0.0
    %613 = vmatpush1.msra.mxu0 %v579
    %614 = vmatprep.subr.mxu0 0.0
    %615 = vmatpush1.msra.mxu0 %v578
    %616 = vmatprep.subr.mxu0 0.0
    %617 = vmatpush1.msra.mxu0 %v577
    %618 = vmatprep.subr.mxu0 0.0
    %619 = vmatpush1.msra.mxu0 %v576
    %620 = vmatprep.subr.mxu0 0.0
    %621 = vmatpush2.msra.mxu0 0.0
    %622 = vmatprep.subr.mxu0 0.0
    %623 = vmatpush2.msra.mxu0 0.0
    %624 = vmatprep.subr.mxu0 0.0
    %625 = vmatpush2.msra.mxu0 0.0
    %626 = vmatprep.subr.mxu0 0.0
    %627 = vmatpush2.msra.mxu0 0.0
    %628 = vmatprep.subr.mxu0 0.0
    %629 = vmatpush2.msra.mxu0 0.0
    %630 = vmatprep.subr.mxu0 0.0
    %631 = vmatpush2.msra.mxu0 0.0
    %632 = vmatprep.subr.mxu0 0.0
    %633 = vmatpush2.msra.mxu0 0.0
    %634 = vmatprep.subr.mxu0 0.0
    %635 = vmatpush2.msra.mxu0 0.0
    %636 = vmatprep.subr.mxu0 0.0
    %637 = vmatpush2.msra.mxu0 0.0
    %638 = vmatprep.subr.mxu0 0.0
    %639 = vmatpush2.msra.mxu0 0.0
    %640 = vmatprep.subr.mxu0 0.0
    %641 = vmatpush2.msra.mxu0 0.0
    %642 = vmatprep.subr.mxu0 0.0
    %643 = vmatpush2.msra.mxu0 0.0
    %644 = vmatprep.subr.mxu0 0.0
    %645 = vmatpush2.msra.mxu0 0.0
    %646 = vmatprep.subr.mxu0 0.0
    %647 = vmatpush2.msra.mxu0 0.0
    %648 = vmatprep.subr.mxu0 0.0
    %649 = vmatpush2.msra.mxu0 0.0
    %650 = vmatprep.subr.mxu0 0.0
    %651 = vmatpush2.msra.mxu0 0.0
    %652 = vmatprep.mubr.f32.mxu0 0.0
    %653 = vmatmul.mubr.f32.gmra.mxu0 %v122
    %v654 = vpop.f32.mrf.mxu0
    %v655 = vadd.f32 %v586, %v654
    %v656 = vpop.f32.mrf.mxu0
    %657 = vmatprep.mubr.f32.mxu0 0.0
    %658 = vmatmul.mubr.f32.gmra.mxu0 %v125
    %v659 = vpop.f32.mrf.mxu0
    %v660 = vadd.f32 %v586, %v659
    %v661 = vpop.f32.mrf.mxu0
    %662 = vdwg.mxu0
    %s663 = scalar_lea.vmem %s4, 160
    %v664 = vld [vmem:[%s663] sm:$0xff]
    %v665 = vld [vmem:[%s663 + $0x8] sm:$0xff]
    %v666 = vld [vmem:[%s663 + $0x10] sm:$0xff]
    %v667 = vld [vmem:[%s663 + $0x18] sm:$0xff]
    %s668 = scalar_lea.vmem %s5, 5
    %v669 = vld [vmem:[%s668] sm:$0x1]
    %v671 = vlaneseq
    %v672 = vshrl.u32 %v671, 7
    %v673 = vsub.s32 0, %v672
    %v674 = vrot.slane %v669, %v673
    %676 = vmatprep.subr.mxu0 0.0
    %677 = vmatpush1.msra.mxu0 0.0
    %678 = vmatprep.subr.mxu0 0.0
    %679 = vmatpush1.msra.mxu0 0.0
    %680 = vmatprep.subr.mxu0 0.0
    %681 = vmatpush1.msra.mxu0 0.0
    %682 = vmatprep.subr.mxu0 0.0
    %683 = vmatpush1.msra.mxu0 0.0
    %684 = vmatprep.subr.mxu0 0.0
    %685 = vmatpush1.msra.mxu0 0.0
    %686 = vmatprep.subr.mxu0 0.0
    %687 = vmatpush1.msra.mxu0 0.0
    %688 = vmatprep.subr.mxu0 0.0
    %689 = vmatpush1.msra.mxu0 0.0
    %690 = vmatprep.subr.mxu0 0.0
    %691 = vmatpush1.msra.mxu0 0.0
    %692 = vmatprep.subr.mxu0 0.0
    %693 = vmatpush1.msra.mxu0 0.0
    %694 = vmatprep.subr.mxu0 0.0
    %695 = vmatpush1.msra.mxu0 0.0
    %696 = vmatprep.subr.mxu0 0.0
    %697 = vmatpush1.msra.mxu0 0.0
    %698 = vmatprep.subr.mxu0 0.0
    %699 = vmatpush1.msra.mxu0 0.0
    %700 = vmatprep.subr.mxu0 0.0
    %701 = vmatpush1.msra.mxu0 %v667
    %702 = vmatprep.subr.mxu0 0.0
    %703 = vmatpush1.msra.mxu0 %v666
    %704 = vmatprep.subr.mxu0 0.0
    %705 = vmatpush1.msra.mxu0 %v665
    %706 = vmatprep.subr.mxu0 0.0
    %707 = vmatpush1.msra.mxu0 %v664
    %708 = vmatprep.subr.mxu0 0.0
    %709 = vmatpush2.msra.mxu0 0.0
    %710 = vmatprep.subr.mxu0 0.0
    %711 = vmatpush2.msra.mxu0 0.0
    %712 = vmatprep.subr.mxu0 0.0
    %713 = vmatpush2.msra.mxu0 0.0
    %714 = vmatprep.subr.mxu0 0.0
    %715 = vmatpush2.msra.mxu0 0.0
    %716 = vmatprep.subr.mxu0 0.0
    %717 = vmatpush2.msra.mxu0 0.0
    %718 = vmatprep.subr.mxu0 0.0
    %719 = vmatpush2.msra.mxu0 0.0
    %720 = vmatprep.subr.mxu0 0.0
    %721 = vmatpush2.msra.mxu0 0.0
    %722 = vmatprep.subr.mxu0 0.0
    %723 = vmatpush2.msra.mxu0 0.0
    %724 = vmatprep.subr.mxu0 0.0
    %725 = vmatpush2.msra.mxu0 0.0
    %726 = vmatprep.subr.mxu0 0.0
    %727 = vmatpush2.msra.mxu0 0.0
    %728 = vmatprep.subr.mxu0 0.0
    %729 = vmatpush2.msra.mxu0 0.0
    %730 = vmatprep.subr.mxu0 0.0
    %731 = vmatpush2.msra.mxu0 0.0
    %732 = vmatprep.subr.mxu0 0.0
    %733 = vmatpush2.msra.mxu0 0.0
    %734 = vmatprep.subr.mxu0 0.0
    %735 = vmatpush2.msra.mxu0 0.0
    %736 = vmatprep.subr.mxu0 0.0
    %737 = vmatpush2.msra.mxu0 0.0
    %738 = vmatprep.subr.mxu0 0.0
    %739 = vmatpush2.msra.mxu0 0.0
    %740 = vmatprep.mubr.f32.mxu0 0.0
    %741 = vmatmul.mubr.f32.gmra.mxu0 %v122
    %v742 = vpop.f32.mrf.mxu0
    %v743 = vadd.f32 %v674, %v742
    %v744 = vpop.f32.mrf.mxu0
    %745 = vmatprep.mubr.f32.mxu0 0.0
    %746 = vmatmul.mubr.f32.gmra.mxu0 %v125
    %v747 = vpop.f32.mrf.mxu0
    %v748 = vadd.f32 %v674, %v747
    %v749 = vpop.f32.mrf.mxu0
    %750 = vdwg.mxu0
    %s751 = scalar_lea.vmem %s4, 288
    %v752 = vld [vmem:[%s751] sm:$0xff]
    %v753 = vld [vmem:[%s751 + $0x8] sm:$0xff]
    %v754 = vld [vmem:[%s751 + $0x10] sm:$0xff]
    %v755 = vld [vmem:[%s751 + $0x18] sm:$0xff]
    %s756 = scalar_lea.vmem %s5, 9
    %v757 = vld [vmem:[%s756] sm:$0x1]
    %v759 = vlaneseq
    %v760 = vshrl.u32 %v759, 7
    %v761 = vsub.s32 0, %v760
    %v762 = vrot.slane %v757, %v761
    %764 = vmatprep.subr.mxu0 0.0
    %765 = vmatpush1.msra.mxu0 0.0
    %766 = vmatprep.subr.mxu0 0.0
    %767 = vmatpush1.msra.mxu0 0.0
    %768 = vmatprep.subr.mxu0 0.0
    %769 = vmatpush1.msra.mxu0 0.0
    %770 = vmatprep.subr.mxu0 0.0
    %771 = vmatpush1.msra.mxu0 0.0
    %772 = vmatprep.subr.mxu0 0.0
    %773 = vmatpush1.msra.mxu0 0.0
    %774 = vmatprep.subr.mxu0 0.0
    %775 = vmatpush1.msra.mxu0 0.0
    %776 = vmatprep.subr.mxu0 0.0
    %777 = vmatpush1.msra.mxu0 0.0
    %778 = vmatprep.subr.mxu0 0.0
    %779 = vmatpush1.msra.mxu0 0.0
    %780 = vmatprep.subr.mxu0 0.0
    %781 = vmatpush1.msra.mxu0 0.0
    %782 = vmatprep.subr.mxu0 0.0
    %783 = vmatpush1.msra.mxu0 0.0
    %784 = vmatprep.subr.mxu0 0.0
    %785 = vmatpush1.msra.mxu0 0.0
    %786 = vmatprep.subr.mxu0 0.0
    %787 = vmatpush1.msra.mxu0 0.0
    %788 = vmatprep.subr.mxu0 0.0
    %789 = vmatpush1.msra.mxu0 %v755
    %790 = vmatprep.subr.mxu0 0.0
    %791 = vmatpush1.msra.mxu0 %v754
    %792 = vmatprep.subr.mxu0 0.0
    %793 = vmatpush1.msra.mxu0 %v753
    %794 = vmatprep.subr.mxu0 0.0
    %795 = vmatpush1.msra.mxu0 %v752
    %796 = vmatprep.subr.mxu0 0.0
    %797 = vmatpush2.msra.mxu0 0.0
    %798 = vmatprep.subr.mxu0 0.0
    %799 = vmatpush2.msra.mxu0 0.0
    %800 = vmatprep.subr.mxu0 0.0
    %801 = vmatpush2.msra.mxu0 0.0
    %802 = vmatprep.subr.mxu0 0.0
    %803 = vmatpush2.msra.mxu0 0.0
    %804 = vmatprep.subr.mxu0 0.0
    %805 = vmatpush2.msra.mxu0 0.0
    %806 = vmatprep.subr.mxu0 0.0
    %807 = vmatpush2.msra.mxu0 0.0
    %808 = vmatprep.subr.mxu0 0.0
    %809 = vmatpush2.msra.mxu0 0.0
    %810 = vmatprep.subr.mxu0 0.0
    %811 = vmatpush2.msra.mxu0 0.0
    %812 = vmatprep.subr.mxu0 0.0
    %813 = vmatpush2.msra.mxu0 0.0
    %814 = vmatprep.subr.mxu0 0.0
    %815 = vmatpush2.msra.mxu0 0.0
    %816 = vmatprep.subr.mxu0 0.0
    %817 = vmatpush2.msra.mxu0 0.0
    %818 = vmatprep.subr.mxu0 0.0
    %819 = vmatpush2.msra.mxu0 0.0
    %820 = vmatprep.subr.mxu0 0.0
    %821 = vmatpush2.msra.mxu0 0.0
    %822 = vmatprep.subr.mxu0 0.0
    %823 = vmatpush2.msra.mxu0 0.0
    %824 = vmatprep.subr.mxu0 0.0
    %825 = vmatpush2.msra.mxu0 0.0
    %826 = vmatprep.subr.mxu0 0.0
    %827 = vmatpush2.msra.mxu0 0.0
    %828 = vmatprep.mubr.f32.mxu0 0.0
    %829 = vmatmul.mubr.f32.gmra.mxu0 %v122
    %v830 = vpop.f32.mrf.mxu0
    %v831 = vadd.f32 %v762, %v830
    %v832 = vpop.f32.mrf.mxu0
    %833 = vmatprep.mubr.f32.mxu0 0.0
    %834 = vmatmul.mubr.f32.gmra.mxu0 %v125
    %v835 = vpop.f32.mrf.mxu0
    %v836 = vadd.f32 %v762, %v835
    %v837 = vpop.f32.mrf.mxu0
    %838 = vdwg.mxu0
    %v840 = vsel %vm378, %v655, 0
    %v843 = vsel %vm378, %v660, 0
    %v846 = vsel %vm378, %v743, 0
    %v849 = vsel %vm378, %v748, 0
    %851 = vmatprep.subr.mxu0 0.0
    %852 = vmatpush1.xpose.msra.mxu0 0.0
    %853 = vmatprep.subr.mxu0 0.0
    %854 = vmatpush1.xpose.msra.mxu0 0.0
    %855 = vmatprep.subr.mxu0 0.0
    %856 = vmatpush1.xpose.msra.mxu0 0.0
    %857 = vmatprep.subr.mxu0 0.0
    %858 = vmatpush1.xpose.msra.mxu0 0.0
    %859 = vmatprep.subr.mxu0 0.0
    %860 = vmatpush1.xpose.msra.mxu0 0.0
    %861 = vmatprep.subr.mxu0 0.0
    %862 = vmatpush1.xpose.msra.mxu0 0.0
    %863 = vmatprep.subr.mxu0 0.0
    %864 = vmatpush1.xpose.msra.mxu0 0.0
    %865 = vmatprep.subr.mxu0 0.0
    %866 = vmatpush1.xpose.msra.mxu0 0.0
    %867 = vmatprep.subr.mxu0 0.0
    %868 = vmatpush1.xpose.msra.mxu0 0.0
    %869 = vmatprep.subr.mxu0 0.0
    %870 = vmatpush1.xpose.msra.mxu0 0.0
    %871 = vmatprep.subr.mxu0 0.0
    %872 = vmatpush1.xpose.msra.mxu0 0.0
    %873 = vmatprep.subr.mxu0 0.0
    %874 = vmatpush1.xpose.msra.mxu0 0.0
    %875 = vmatprep.subr.mxu0 0.0
    %876 = vmatpush1.xpose.msra.mxu0 0.0
    %877 = vmatprep.subr.mxu0 0.0
    %878 = vmatpush1.xpose.msra.mxu0 0.0
    %879 = vmatprep.subr.mxu0 0.0
    %880 = vmatpush1.xpose.msra.mxu0 %v849
    %881 = vmatprep.subr.mxu0 0.0
    %882 = vmatpush1.xpose.msra.mxu0 %v846
    %883 = vmatprep.subr.mxu0 0.0
    %884 = vmatpush2.xpose.msra.mxu0 0.0
    %885 = vmatprep.subr.mxu0 0.0
    %886 = vmatpush2.xpose.msra.mxu0 0.0
    %887 = vmatprep.subr.mxu0 0.0
    %888 = vmatpush2.xpose.msra.mxu0 0.0
    %889 = vmatprep.subr.mxu0 0.0
    %890 = vmatpush2.xpose.msra.mxu0 0.0
    %891 = vmatprep.subr.mxu0 0.0
    %892 = vmatpush2.xpose.msra.mxu0 0.0
    %893 = vmatprep.subr.mxu0 0.0
    %894 = vmatpush2.xpose.msra.mxu0 0.0
    %895 = vmatprep.subr.mxu0 0.0
    %896 = vmatpush2.xpose.msra.mxu0 0.0
    %897 = vmatprep.subr.mxu0 0.0
    %898 = vmatpush2.xpose.msra.mxu0 0.0
    %899 = vmatprep.subr.mxu0 0.0
    %900 = vmatpush2.xpose.msra.mxu0 0.0
    %901 = vmatprep.subr.mxu0 0.0
    %902 = vmatpush2.xpose.msra.mxu0 0.0
    %903 = vmatprep.subr.mxu0 0.0
    %904 = vmatpush2.xpose.msra.mxu0 0.0
    %905 = vmatprep.subr.mxu0 0.0
    %906 = vmatpush2.xpose.msra.mxu0 0.0
    %907 = vmatprep.subr.mxu0 0.0
    %908 = vmatpush2.xpose.msra.mxu0 0.0
    %909 = vmatprep.subr.mxu0 0.0
    %910 = vmatpush2.xpose.msra.mxu0 0.0
    %911 = vmatprep.subr.mxu0 0.0
    %912 = vmatpush2.xpose.msra.mxu0 0.0
    %913 = vmatprep.subr.mxu0 0.0
    %914 = vmatpush2.xpose.msra.mxu0 0.0
    %915 = vmatprep.mubr.f32.mxu0 0.0
    %916 = vmatmul.mubr.f32.gmra.mxu0 %v840
    %v917 = vpop.f32.mrf.mxu0
    %v918 = vadd.f32 0.0, %v917
    %v919 = vpop.f32.mrf.mxu0
    %920 = vmatprep.mubr.f32.mxu0 0.0
    %921 = vmatmul.mubr.f32.gmra.mxu0 %v843
    %v922 = vpop.f32.mrf.mxu0
    %v923 = vadd.f32 0.0, %v922
    %v924 = vpop.f32.mrf.mxu0
    %925 = vdwg.mxu0
    %v926 = vmul.f32 %v918, 0.35355338
    %v927 = vmul.f32 %v923, 0.35355338
    %v928 = vadd.f32 %v926, %v108
    %v929 = vadd.f32 %v927, %v109
    %v930 = vsel %vm470, %v928, -inf
    %931 = vmax.xlane.f32.xlu0 %v930
    %v932 = vpop.xlane.xlu0 %931
    %v933 = vsel %vm470, %v929, -inf
    %934 = vmax.xlane.f32.xlu0 %v933
    %v935 = vpop.xlane.xlu0 %934
    %v936 = vsub.f32 %v928, %v932
    %v937 = vsub.f32 %v929, %v935
    %v938 = vmul.f32 %v936, 1.442695
    %v939 = vpow.pop %v938
    %v940 = vmul.f32 %v937, 1.442695
    %v941 = vpow.pop %v940
    %v942 = vsel %vm470, %v939, 0.0
    %943 = vadd.xlane.f32.xlu0 %v942
    %v944 = vpop.xlane.xlu0 %943
    %v945 = vsel %vm470, %v941, 0.0
    %946 = vadd.xlane.f32.xlu0 %v945
    %v947 = vpop.xlane.xlu0 %946
    %v948 = vrcp.pop %v944
    %v949 = vrcp.pop %v947
    %v950 = vmul.f32 %v939, %v948
    %v951 = vmul.f32 %v941, %v949
    %v953 = vsel %vm470, %v950, 0
    %v956 = vsel %vm470, %v951, 0
    %958 = vmatprep.subr.mxu0 0.0
    %959 = vmatpush1.msra.mxu0 0.0
    %960 = vmatprep.subr.mxu0 0.0
    %961 = vmatpush1.msra.mxu0 0.0
    %962 = vmatprep.subr.mxu0 0.0
    %963 = vmatpush1.msra.mxu0 0.0
    %964 = vmatprep.subr.mxu0 0.0
    %965 = vmatpush1.msra.mxu0 0.0
    %966 = vmatprep.subr.mxu0 0.0
    %967 = vmatpush1.msra.mxu0 0.0
    %968 = vmatprep.subr.mxu0 0.0
    %969 = vmatpush1.msra.mxu0 0.0
    %970 = vmatprep.subr.mxu0 0.0
    %971 = vmatpush1.msra.mxu0 0.0
    %972 = vmatprep.subr.mxu0 0.0
    %973 = vmatpush1.msra.mxu0 0.0
    %974 = vmatprep.subr.mxu0 0.0
    %975 = vmatpush1.msra.mxu0 0.0
    %976 = vmatprep.subr.mxu0 0.0
    %977 = vmatpush1.msra.mxu0 0.0
    %978 = vmatprep.subr.mxu0 0.0
    %979 = vmatpush1.msra.mxu0 0.0
    %980 = vmatprep.subr.mxu0 0.0
    %981 = vmatpush1.msra.mxu0 0.0
    %982 = vmatprep.subr.mxu0 0.0
    %983 = vmatpush1.msra.mxu0 0.0
    %984 = vmatprep.subr.mxu0 0.0
    %985 = vmatpush1.msra.mxu0 0.0
    %986 = vmatprep.subr.mxu0 0.0
    %987 = vmatpush1.msra.mxu0 %v836
    %988 = vmatprep.subr.mxu0 0.0
    %989 = vmatpush1.msra.mxu0 %v831
    %990 = vmatprep.subr.mxu0 0.0
    %991 = vmatpush2.msra.mxu0 0.0
    %992 = vmatprep.subr.mxu0 0.0
    %993 = vmatpush2.msra.mxu0 0.0
    %994 = vmatprep.subr.mxu0 0.0
    %995 = vmatpush2.msra.mxu0 0.0
    %996 = vmatprep.subr.mxu0 0.0
    %997 = vmatpush2.msra.mxu0 0.0
    %998 = vmatprep.subr.mxu0 0.0
    %999 = vmatpush2.msra.mxu0 0.0
    %1000 = vmatprep.subr.mxu0 0.0
    %1001 = vmatpush2.msra.mxu0 0.0
    %1002 = vmatprep.subr.mxu0 0.0
    %1003 = vmatpush2.msra.mxu0 0.0
    %1004 = vmatprep.subr.mxu0 0.0
    %1005 = vmatpush2.msra.mxu0 0.0
    %1006 = vmatprep.subr.mxu0 0.0
    %1007 = vmatpush2.msra.mxu0 0.0
    %1008 = vmatprep.subr.mxu0 0.0
    %1009 = vmatpush2.msra.mxu0 0.0
    %1010 = vmatprep.subr.mxu0 0.0
    %1011 = vmatpush2.msra.mxu0 0.0
    %1012 = vmatprep.subr.mxu0 0.0
    %1013 = vmatpush2.msra.mxu0 0.0
    %1014 = vmatprep.subr.mxu0 0.0
    %1015 = vmatpush2.msra.mxu0 0.0
    %1016 = vmatprep.subr.mxu0 0.0
    %1017 = vmatpush2.msra.mxu0 0.0
    %1018 = vmatprep.subr.mxu0 0.0
    %1019 = vmatpush2.msra.mxu0 0.0
    %1020 = vmatprep.subr.mxu0 0.0
    %1021 = vmatpush2.msra.mxu0 0.0
    %1022 = vmatprep.mubr.f32.mxu0 0.0
    %1023 = vmatmul.mubr.f32.gmra.mxu0 %v953
    %v1024 = vpop.f32.mrf.mxu0
    %v1025 = vadd.f32 0.0, %v1024
    %v1026 = vpop.f32.mrf.mxu0
    %1027 = vmatprep.mubr.f32.mxu0 0.0
    %1028 = vmatmul.mubr.f32.gmra.mxu0 %v956
    %v1029 = vpop.f32.mrf.mxu0
    %v1030 = vadd.f32 0.0, %v1029
    %v1031 = vpop.f32.mrf.mxu0
    %1032 = vdwg.mxu0
    %s1033 = scalar_lea.vmem %s6, 8
    %v1034 = vld [vmem:[%s1033] sm:$0xff]
    %v1036 = vsel %vm378, %v1025, 0
    %v1039 = vsel %vm378, %v1030, 0
    %1041 = vmatprep.subr.mxu0 0.0
    %1042 = vmatpush1.msra.mxu0 0.0
    %1043 = vmatprep.subr.mxu0 0.0
    %1044 = vmatpush1.msra.mxu0 0.0
    %1045 = vmatprep.subr.mxu0 0.0
    %1046 = vmatpush1.msra.mxu0 0.0
    %1047 = vmatprep.subr.mxu0 0.0
    %1048 = vmatpush1.msra.mxu0 0.0
    %1049 = vmatprep.subr.mxu0 0.0
    %1050 = vmatpush1.msra.mxu0 0.0
    %1051 = vmatprep.subr.mxu0 0.0
    %1052 = vmatpush1.msra.mxu0 0.0
    %1053 = vmatprep.subr.mxu0 0.0
    %1054 = vmatpush1.msra.mxu0 0.0
    %1055 = vmatprep.subr.mxu0 0.0
    %1056 = vmatpush1.msra.mxu0 0.0
    %1057 = vmatprep.subr.mxu0 0.0
    %1058 = vmatpush1.msra.mxu0 0.0
    %1059 = vmatprep.subr.mxu0 0.0
    %1060 = vmatpush1.msra.mxu0 0.0
    %1061 = vmatprep.subr.mxu0 0.0
    %1062 = vmatpush1.msra.mxu0 0.0
    %1063 = vmatprep.subr.mxu0 0.0
    %1064 = vmatpush1.msra.mxu0 0.0
    %1065 = vmatprep.subr.mxu0 0.0
    %1066 = vmatpush1.msra.mxu0 0.0
    %1067 = vmatprep.subr.mxu0 0.0
    %1068 = vmatpush1.msra.mxu0 0.0
    %1069 = vmatprep.subr.mxu0 0.0
    %1070 = vmatpush1.msra.mxu0 0.0
    %1071 = vmatprep.subr.mxu0 0.0
    %1072 = vmatpush1.msra.mxu0 %v1034
    %1073 = vmatprep.subr.mxu0 0.0
    %1074 = vmatpush2.msra.mxu0 0.0
    %1075 = vmatprep.subr.mxu0 0.0
    %1076 = vmatpush2.msra.mxu0 0.0
    %1077 = vmatprep.subr.mxu0 0.0
    %1078 = vmatpush2.msra.mxu0 0.0
    %1079 = vmatprep.subr.mxu0 0.0
    %1080 = vmatpush2.msra.mxu0 0.0
    %1081 = vmatprep.subr.mxu0 0.0
    %1082 = vmatpush2.msra.mxu0 0.0
    %1083 = vmatprep.subr.mxu0 0.0
    %1084 = vmatpush2.msra.mxu0 0.0
    %1085 = vmatprep.subr.mxu0 0.0
    %1086 = vmatpush2.msra.mxu0 0.0
    %1087 = vmatprep.subr.mxu0 0.0
    %1088 = vmatpush2.msra.mxu0 0.0
    %1089 = vmatprep.subr.mxu0 0.0
    %1090 = vmatpush2.msra.mxu0 0.0
    %1091 = vmatprep.subr.mxu0 0.0
    %1092 = vmatpush2.msra.mxu0 0.0
    %1093 = vmatprep.subr.mxu0 0.0
    %1094 = vmatpush2.msra.mxu0 0.0
    %1095 = vmatprep.subr.mxu0 0.0
    %1096 = vmatpush2.msra.mxu0 0.0
    %1097 = vmatprep.subr.mxu0 0.0
    %1098 = vmatpush2.msra.mxu0 0.0
    %1099 = vmatprep.subr.mxu0 0.0
    %1100 = vmatpush2.msra.mxu0 0.0
    %1101 = vmatprep.subr.mxu0 0.0
    %1102 = vmatpush2.msra.mxu0 0.0
    %1103 = vmatprep.subr.mxu0 0.0
    %1104 = vmatpush2.msra.mxu0 0.0
    %1105 = vmatprep.mubr.f32.mxu0 0.0
    %1106 = vmatmul.mubr.f32.gmra.mxu0 %v1036
    %v1107 = vpop.f32.mrf.mxu0
    %v1108 = vadd.f32 0.0, %v1107
    %v1109 = vpop.f32.mrf.mxu0
    %1110 = vmatprep.mubr.f32.mxu0 0.0
    %1111 = vmatmul.mubr.f32.gmra.mxu0 %v1039
    %v1112 = vpop.f32.mrf.mxu0
    %v1113 = vadd.f32 0.0, %v1112
    %v1114 = vpop.f32.mrf.mxu0
    %1115 = vdwg.mxu0
    %v1117 = vsel %vm378, %v566, 0
    %v1120 = vsel %vm378, %v571, 0
    %1122 = vmatprep.subr.mxu0 0.0
    %1123 = vmatpush1.msra.mxu0 0.0
    %1124 = vmatprep.subr.mxu0 0.0
    %1125 = vmatpush1.msra.mxu0 0.0
    %1126 = vmatprep.subr.mxu0 0.0
    %1127 = vmatpush1.msra.mxu0 0.0
    %1128 = vmatprep.subr.mxu0 0.0
    %1129 = vmatpush1.msra.mxu0 0.0
    %1130 = vmatprep.subr.mxu0 0.0
    %1131 = vmatpush1.msra.mxu0 0.0
    %1132 = vmatprep.subr.mxu0 0.0
    %1133 = vmatpush1.msra.mxu0 0.0
    %1134 = vmatprep.subr.mxu0 0.0
    %1135 = vmatpush1.msra.mxu0 0.0
    %1136 = vmatprep.subr.mxu0 0.0
    %1137 = vmatpush1.msra.mxu0 0.0
    %1138 = vmatprep.subr.mxu0 0.0
    %1139 = vmatpush1.msra.mxu0 0.0
    %1140 = vmatprep.subr.mxu0 0.0
    %1141 = vmatpush1.msra.mxu0 0.0
    %1142 = vmatprep.subr.mxu0 0.0
    %1143 = vmatpush1.msra.mxu0 0.0
    %1144 = vmatprep.subr.mxu0 0.0
    %1145 = vmatpush1.msra.mxu0 0.0
    %1146 = vmatprep.subr.mxu0 0.0
    %1147 = vmatpush1.msra.mxu0 0.0
    %1148 = vmatprep.subr.mxu0 0.0
    %1149 = vmatpush1.msra.mxu0 0.0
    %1150 = vmatprep.subr.mxu0 0.0
    %1151 = vmatpush1.msra.mxu0 0.0
    %1152 = vmatprep.subr.mxu0 0.0
    %1153 = vmatpush1.msra.mxu0 %v574
    %1154 = vmatprep.subr.mxu0 0.0
    %1155 = vmatpush2.msra.mxu0 0.0
    %1156 = vmatprep.subr.mxu0 0.0
    %1157 = vmatpush2.msra.mxu0 0.0
    %1158 = vmatprep.subr.mxu0 0.0
    %1159 = vmatpush2.msra.mxu0 0.0
    %1160 = vmatprep.subr.mxu0 0.0
    %1161 = vmatpush2.msra.mxu0 0.0
    %1162 = vmatprep.subr.mxu0 0.0
    %1163 = vmatpush2.msra.mxu0 0.0
    %1164 = vmatprep.subr.mxu0 0.0
    %1165 = vmatpush2.msra.mxu0 0.0
    %1166 = vmatprep.subr.mxu0 0.0
    %1167 = vmatpush2.msra.mxu0 0.0
    %1168 = vmatprep.subr.mxu0 0.0
    %1169 = vmatpush2.msra.mxu0 0.0
    %1170 = vmatprep.subr.mxu0 0.0
    %1171 = vmatpush2.msra.mxu0 0.0
    %1172 = vmatprep.subr.mxu0 0.0
    %1173 = vmatpush2.msra.mxu0 0.0
    %1174 = vmatprep.subr.mxu0 0.0
    %1175 = vmatpush2.msra.mxu0 0.0
    %1176 = vmatprep.subr.mxu0 0.0
    %1177 = vmatpush2.msra.mxu0 0.0
    %1178 = vmatprep.subr.mxu0 0.0
    %1179 = vmatpush2.msra.mxu0 0.0
    %1180 = vmatprep.subr.mxu0 0.0
    %1181 = vmatpush2.msra.mxu0 0.0
    %1182 = vmatprep.subr.mxu0 0.0
    %1183 = vmatpush2.msra.mxu0 0.0
    %1184 = vmatprep.subr.mxu0 0.0
    %1185 = vmatpush2.msra.mxu0 0.0
    %1186 = vmatprep.mubr.f32.mxu0 0.0
    %1187 = vmatmul.mubr.f32.gmra.mxu0 %v1117
    %v1188 = vpop.f32.mrf.mxu0
    %v1189 = vadd.f32 %v1108, %v1188
    %v1190 = vpop.f32.mrf.mxu0
    %1191 = vmatprep.mubr.f32.mxu0 0.0
    %1192 = vmatmul.mubr.f32.gmra.mxu0 %v1120
    %v1193 = vpop.f32.mrf.mxu0
    %v1194 = vadd.f32 %v1113, %v1193
    %v1195 = vpop.f32.mrf.mxu0
    %1196 = vdwg.mxu0
    %s1197 = scalar_lea.vmem %s4, 64
    %v1198 = vld [vmem:[%s1197] sm:$0xff]
    %v1199 = vld [vmem:[%s1197 + $0x8] sm:$0xff]
    %v1200 = vld [vmem:[%s1197 + $0x10] sm:$0xff]
    %v1201 = vld [vmem:[%s1197 + $0x18] sm:$0xff]
    %s1202 = scalar_lea.vmem %s5, 2
    %v1203 = vld [vmem:[%s1202] sm:$0x1]
    %v1205 = vlaneseq
    %v1206 = vshrl.u32 %v1205, 7
    %v1207 = vsub.s32 0, %v1206
    %v1208 = vrot.slane %v1203, %v1207
    %1210 = vmatprep.subr.mxu0 0.0
    %1211 = vmatpush1.msra.mxu0 0.0
    %1212 = vmatprep.subr.mxu0 0.0
    %1213 = vmatpush1.msra.mxu0 0.0
    %1214 = vmatprep.subr.mxu0 0.0
    %1215 = vmatpush1.msra.mxu0 0.0
    %1216 = vmatprep.subr.mxu0 0.0
    %1217 = vmatpush1.msra.mxu0 0.0
    %1218 = vmatprep.subr.mxu0 0.0
    %1219 = vmatpush1.msra.mxu0 0.0
    %1220 = vmatprep.subr.mxu0 0.0
    %1221 = vmatpush1.msra.mxu0 0.0
    %1222 = vmatprep.subr.mxu0 0.0
    %1223 = vmatpush1.msra.mxu0 0.0
    %1224 = vmatprep.subr.mxu0 0.0
    %1225 = vmatpush1.msra.mxu0 0.0
    %1226 = vmatprep.subr.mxu0 0.0
    %1227 = vmatpush1.msra.mxu0 0.0
    %1228 = vmatprep.subr.mxu0 0.0
    %1229 = vmatpush1.msra.mxu0 0.0
    %1230 = vmatprep.subr.mxu0 0.0
    %1231 = vmatpush1.msra.mxu0 0.0
    %1232 = vmatprep.subr.mxu0 0.0
    %1233 = vmatpush1.msra.mxu0 0.0
    %1234 = vmatprep.subr.mxu0 0.0
    %1235 = vmatpush1.msra.mxu0 %v1201
    %1236 = vmatprep.subr.mxu0 0.0
    %1237 = vmatpush1.msra.mxu0 %v1200
    %1238 = vmatprep.subr.mxu0 0.0
    %1239 = vmatpush1.msra.mxu0 %v1199
    %1240 = vmatprep.subr.mxu0 0.0
    %1241 = vmatpush1.msra.mxu0 %v1198
    %1242 = vmatprep.subr.mxu0 0.0
    %1243 = vmatpush2.msra.mxu0 0.0
    %1244 = vmatprep.subr.mxu0 0.0
    %1245 = vmatpush2.msra.mxu0 0.0
    %1246 = vmatprep.subr.mxu0 0.0
    %1247 = vmatpush2.msra.mxu0 0.0
    %1248 = vmatprep.subr.mxu0 0.0
    %1249 = vmatpush2.msra.mxu0 0.0
    %1250 = vmatprep.subr.mxu0 0.0
    %1251 = vmatpush2.msra.mxu0 0.0
    %1252 = vmatprep.subr.mxu0 0.0
    %1253 = vmatpush2.msra.mxu0 0.0
    %1254 = vmatprep.subr.mxu0 0.0
    %1255 = vmatpush2.msra.mxu0 0.0
    %1256 = vmatprep.subr.mxu0 0.0
    %1257 = vmatpush2.msra.mxu0 0.0
    %1258 = vmatprep.subr.mxu0 0.0
    %1259 = vmatpush2.msra.mxu0 0.0
    %1260 = vmatprep.subr.mxu0 0.0
    %1261 = vmatpush2.msra.mxu0 0.0
    %1262 = vmatprep.subr.mxu0 0.0
    %1263 = vmatpush2.msra.mxu0 0.0
    %1264 = vmatprep.subr.mxu0 0.0
    %1265 = vmatpush2.msra.mxu0 0.0
    %1266 = vmatprep.subr.mxu0 0.0
    %1267 = vmatpush2.msra.mxu0 0.0
    %1268 = vmatprep.subr.mxu0 0.0
    %1269 = vmatpush2.msra.mxu0 0.0
    %1270 = vmatprep.subr.mxu0 0.0
    %1271 = vmatpush2.msra.mxu0 0.0
    %1272 = vmatprep.subr.mxu0 0.0
    %1273 = vmatpush2.msra.mxu0 0.0
    %1274 = vmatprep.mubr.f32.mxu0 0.0
    %1275 = vmatmul.mubr.f32.gmra.mxu0 %v122
    %v1276 = vpop.f32.mrf.mxu0
    %v1277 = vadd.f32 %v1208, %v1276
    %v1278 = vpop.f32.mrf.mxu0
    %1279 = vmatprep.mubr.f32.mxu0 0.0
    %1280 = vmatmul.mubr.f32.gmra.mxu0 %v125
    %v1281 = vpop.f32.mrf.mxu0
    %v1282 = vadd.f32 %v1208, %v1281
    %v1283 = vpop.f32.mrf.mxu0
    %1284 = vdwg.mxu0
    %s1285 = scalar_lea.vmem %s4, 192
    %v1286 = vld [vmem:[%s1285] sm:$0xff]
    %v1287 = vld [vmem:[%s1285 + $0x8] sm:$0xff]
    %v1288 = vld [vmem:[%s1285 + $0x10] sm:$0xff]
    %v1289 = vld [vmem:[%s1285 + $0x18] sm:$0xff]
    %s1290 = scalar_lea.vmem %s5, 6
    %v1291 = vld [vmem:[%s1290] sm:$0x1]
    %v1293 = vlaneseq
    %v1294 = vshrl.u32 %v1293, 7
    %v1295 = vsub.s32 0, %v1294
    %v1296 = vrot.slane %v1291, %v1295
    %1298 = vmatprep.subr.mxu0 0.0
    %1299 = vmatpush1.msra.mxu0 0.0
    %1300 = vmatprep.subr.mxu0 0.0
    %1301 = vmatpush1.msra.mxu0 0.0
    %1302 = vmatprep.subr.mxu0 0.0
    %1303 = vmatpush1.msra.mxu0 0.0
    %1304 = vmatprep.subr.mxu0 0.0
    %1305 = vmatpush1.msra.mxu0 0.0
    %1306 = vmatprep.subr.mxu0 0.0
    %1307 = vmatpush1.msra.mxu0 0.0
    %1308 = vmatprep.subr.mxu0 0.0
    %1309 = vmatpush1.msra.mxu0 0.0
    %1310 = vmatprep.subr.mxu0 0.0
    %1311 = vmatpush1.msra.mxu0 0.0
    %1312 = vmatprep.subr.mxu0 0.0
    %1313 = vmatpush1.msra.mxu0 0.0
    %1314 = vmatprep.subr.mxu0 0.0
    %1315 = vmatpush1.msra.mxu0 0.0
    %1316 = vmatprep.subr.mxu0 0.0
    %1317 = vmatpush1.msra.mxu0 0.0
    %1318 = vmatprep.subr.mxu0 0.0
    %1319 = vmatpush1.msra.mxu0 0.0
    %1320 = vmatprep.subr.mxu0 0.0
    %1321 = vmatpush1.msra.mxu0 0.0
    %1322 = vmatprep.subr.mxu0 0.0
    %1323 = vmatpush1.msra.mxu0 %v1289
    %1324 = vmatprep.subr.mxu0 0.0
    %1325 = vmatpush1.msra.mxu0 %v1288
    %1326 = vmatprep.subr.mxu0 0.0
    %1327 = vmatpush1.msra.mxu0 %v1287
    %1328 = vmatprep.subr.mxu0 0.0
    %1329 = vmatpush1.msra.mxu0 %v1286
    %1330 = vmatprep.subr.mxu0 0.0
    %1331 = vmatpush2.msra.mxu0 0.0
    %1332 = vmatprep.subr.mxu0 0.0
    %1333 = vmatpush2.msra.mxu0 0.0
    %1334 = vmatprep.subr.mxu0 0.0
    %1335 = vmatpush2.msra.mxu0 0.0
    %1336 = vmatprep.subr.mxu0 0.0
    %1337 = vmatpush2.msra.mxu0 0.0
    %1338 = vmatprep.subr.mxu0 0.0
    %1339 = vmatpush2.msra.mxu0 0.0
    %1340 = vmatprep.subr.mxu0 0.0
    %1341 = vmatpush2.msra.mxu0 0.0
    %1342 = vmatprep.subr.mxu0 0.0
    %1343 = vmatpush2.msra.mxu0 0.0
    %1344 = vmatprep.subr.mxu0 0.0
    %1345 = vmatpush2.msra.mxu0 0.0
    %1346 = vmatprep.subr.mxu0 0.0
    %1347 = vmatpush2.msra.mxu0 0.0
    %1348 = vmatprep.subr.mxu0 0.0
    %1349 = vmatpush2.msra.mxu0 0.0
    %1350 = vmatprep.subr.mxu0 0.0
    %1351 = vmatpush2.msra.mxu0 0.0
    %1352 = vmatprep.subr.mxu0 0.0
    %1353 = vmatpush2.msra.mxu0 0.0
    %1354 = vmatprep.subr.mxu0 0.0
    %1355 = vmatpush2.msra.mxu0 0.0
    %1356 = vmatprep.subr.mxu0 0.0
    %1357 = vmatpush2.msra.mxu0 0.0
    %1358 = vmatprep.subr.mxu0 0.0
    %1359 = vmatpush2.msra.mxu0 0.0
    %1360 = vmatprep.subr.mxu0 0.0
    %1361 = vmatpush2.msra.mxu0 0.0
    %1362 = vmatprep.mubr.f32.mxu0 0.0
    %1363 = vmatmul.mubr.f32.gmra.mxu0 %v122
    %v1364 = vpop.f32.mrf.mxu0
    %v1365 = vadd.f32 %v1296, %v1364
    %v1366 = vpop.f32.mrf.mxu0
    %1367 = vmatprep.mubr.f32.mxu0 0.0
    %1368 = vmatmul.mubr.f32.gmra.mxu0 %v125
    %v1369 = vpop.f32.mrf.mxu0
    %v1370 = vadd.f32 %v1296, %v1369
    %v1371 = vpop.f32.mrf.mxu0
    %1372 = vdwg.mxu0
    %s1373 = scalar_lea.vmem %s4, 320
    %v1374 = vld [vmem:[%s1373] sm:$0xff]
    %v1375 = vld [vmem:[%s1373 + $0x8] sm:$0xff]
    %v1376 = vld [vmem:[%s1373 + $0x10] sm:$0xff]
    %v1377 = vld [vmem:[%s1373 + $0x18] sm:$0xff]
    %s1378 = scalar_lea.vmem %s5, 10
    %v1379 = vld [vmem:[%s1378] sm:$0x1]
    %v1381 = vlaneseq
    %v1382 = vshrl.u32 %v1381, 7
    %v1383 = vsub.s32 0, %v1382
    %v1384 = vrot.slane %v1379, %v1383
    %1386 = vmatprep.subr.mxu0 0.0
    %1387 = vmatpush1.msra.mxu0 0.0
    %1388 = vmatprep.subr.mxu0 0.0
    %1389 = vmatpush1.msra.mxu0 0.0
    %1390 = vmatprep.subr.mxu0 0.0
    %1391 = vmatpush1.msra.mxu0 0.0
    %1392 = vmatprep.subr.mxu0 0.0
    %1393 = vmatpush1.msra.mxu0 0.0
    %1394 = vmatprep.subr.mxu0 0.0
    %1395 = vmatpush1.msra.mxu0 0.0
    %1396 = vmatprep.subr.mxu0 0.0
    %1397 = vmatpush1.msra.mxu0 0.0
    %1398 = vmatprep.subr.mxu0 0.0
    %1399 = vmatpush1.msra.mxu0 0.0
    %1400 = vmatprep.subr.mxu0 0.0
    %1401 = vmatpush1.msra.mxu0 0.0
    %1402 = vmatprep.subr.mxu0 0.0
    %1403 = vmatpush1.msra.mxu0 0.0
    %1404 = vmatprep.subr.mxu0 0.0
    %1405 = vmatpush1.msra.mxu0 0.0
    %1406 = vmatprep.subr.mxu0 0.0
    %1407 = vmatpush1.msra.mxu0 0.0
    %1408 = vmatprep.subr.mxu0 0.0
    %1409 = vmatpush1.msra.mxu0 0.0
    %1410 = vmatprep.subr.mxu0 0.0
    %1411 = vmatpush1.msra.mxu0 %v1377
    %1412 = vmatprep.subr.mxu0 0.0
    %1413 = vmatpush1.msra.mxu0 %v1376
    %1414 = vmatprep.subr.mxu0 0.0
    %1415 = vmatpush1.msra.mxu0 %v1375
    %1416 = vmatprep.subr.mxu0 0.0
    %1417 = vmatpush1.msra.mxu0 %v1374
    %1418 = vmatprep.subr.mxu0 0.0
    %1419 = vmatpush2.msra.mxu0 0.0
    %1420 = vmatprep.subr.mxu0 0.0
    %1421 = vmatpush2.msra.mxu0 0.0
    %1422 = vmatprep.subr.mxu0 0.0
    %1423 = vmatpush2.msra.mxu0 0.0
    %1424 = vmatprep.subr.mxu0 0.0
    %1425 = vmatpush2.msra.mxu0 0.0
    %1426 = vmatprep.subr.mxu0 0.0
    %1427 = vmatpush2.msra.mxu0 0.0
    %1428 = vmatprep.subr.mxu0 0.0
    %1429 = vmatpush2.msra.mxu0 0.0
    %1430 = vmatprep.subr.mxu0 0.0
    %1431 = vmatpush2.msra.mxu0 0.0
    %1432 = vmatprep.subr.mxu0 0.0
    %1433 = vmatpush2.msra.mxu0 0.0
    %1434 = vmatprep.subr.mxu0 0.0
    %1435 = vmatpush2.msra.mxu0 0.0
    %1436 = vmatprep.subr.mxu0 0.0
    %1437 = vmatpush2.msra.mxu0 0.0
    %1438 = vmatprep.subr.mxu0 0.0
    %1439 = vmatpush2.msra.mxu0 0.0
    %1440 = vmatprep.subr.mxu0 0.0
    %1441 = vmatpush2.msra.mxu0 0.0
    %1442 = vmatprep.subr.mxu0 0.0
    %1443 = vmatpush2.msra.mxu0 0.0
    %1444 = vmatprep.subr.mxu0 0.0
    %1445 = vmatpush2.msra.mxu0 0.0
    %1446 = vmatprep.subr.mxu0 0.0
    %1447 = vmatpush2.msra.mxu0 0.0
    %1448 = vmatprep.subr.mxu0 0.0
    %1449 = vmatpush2.msra.mxu0 0.0
    %1450 = vmatprep.mubr.f32.mxu0 0.0
    %1451 = vmatmul.mubr.f32.gmra.mxu0 %v122
    %v1452 = vpop.f32.mrf.mxu0
    %v1453 = vadd.f32 %v1384, %v1452
    %v1454 = vpop.f32.mrf.mxu0
    %1455 = vmatprep.mubr.f32.mxu0 0.0
    %1456 = vmatmul.mubr.f32.gmra.mxu0 %v125
    %v1457 = vpop.f32.mrf.mxu0
    %v1458 = vadd.f32 %v1384, %v1457
    %v1459 = vpop.f32.mrf.mxu0
    %1460 = vdwg.mxu0
    %v1462 = vsel %vm378, %v1277, 0
    %v1465 = vsel %vm378, %v1282, 0
    %v1468 = vsel %vm378, %v1365, 0
    %v1471 = vsel %vm378, %v1370, 0
    %1473 = vmatprep.subr.mxu0 0.0
    %1474 = vmatpush1.xpose.msra.mxu0 0.0
    %1475 = vmatprep.subr.mxu0 0.0
    %1476 = vmatpush1.xpose.msra.mxu0 0.0
    %1477 = vmatprep.subr.mxu0 0.0
    %1478 = vmatpush1.xpose.msra.mxu0 0.0
    %1479 = vmatprep.subr.mxu0 0.0
    %1480 = vmatpush1.xpose.msra.mxu0 0.0
    %1481 = vmatprep.subr.mxu0 0.0
    %1482 = vmatpush1.xpose.msra.mxu0 0.0
    %1483 = vmatprep.subr.mxu0 0.0
    %1484 = vmatpush1.xpose.msra.mxu0 0.0
    %1485 = vmatprep.subr.mxu0 0.0
    %1486 = vmatpush1.xpose.msra.mxu0 0.0
    %1487 = vmatprep.subr.mxu0 0.0
    %1488 = vmatpush1.xpose.msra.mxu0 0.0
    %1489 = vmatprep.subr.mxu0 0.0
    %1490 = vmatpush1.xpose.msra.mxu0 0.0
    %1491 = vmatprep.subr.mxu0 0.0
    %1492 = vmatpush1.xpose.msra.mxu0 0.0
    %1493 = vmatprep.subr.mxu0 0.0
    %1494 = vmatpush1.xpose.msra.mxu0 0.0
    %1495 = vmatprep.subr.mxu0 0.0
    %1496 = vmatpush1.xpose.msra.mxu0 0.0
    %1497 = vmatprep.subr.mxu0 0.0
    %1498 = vmatpush1.xpose.msra.mxu0 0.0
    %1499 = vmatprep.subr.mxu0 0.0
    %1500 = vmatpush1.xpose.msra.mxu0 0.0
    %1501 = vmatprep.subr.mxu0 0.0
    %1502 = vmatpush1.xpose.msra.mxu0 %v1471
    %1503 = vmatprep.subr.mxu0 0.0
    %1504 = vmatpush1.xpose.msra.mxu0 %v1468
    %1505 = vmatprep.subr.mxu0 0.0
    %1506 = vmatpush2.xpose.msra.mxu0 0.0
    %1507 = vmatprep.subr.mxu0 0.0
    %1508 = vmatpush2.xpose.msra.mxu0 0.0
    %1509 = vmatprep.subr.mxu0 0.0
    %1510 = vmatpush2.xpose.msra.mxu0 0.0
    %1511 = vmatprep.subr.mxu0 0.0
    %1512 = vmatpush2.xpose.msra.mxu0 0.0
    %1513 = vmatprep.subr.mxu0 0.0
    %1514 = vmatpush2.xpose.msra.mxu0 0.0
    %1515 = vmatprep.subr.mxu0 0.0
    %1516 = vmatpush2.xpose.msra.mxu0 0.0
    %1517 = vmatprep.subr.mxu0 0.0
    %1518 = vmatpush2.xpose.msra.mxu0 0.0
    %1519 = vmatprep.subr.mxu0 0.0
    %1520 = vmatpush2.xpose.msra.mxu0 0.0
    %1521 = vmatprep.subr.mxu0 0.0
    %1522 = vmatpush2.xpose.msra.mxu0 0.0
    %1523 = vmatprep.subr.mxu0 0.0
    %1524 = vmatpush2.xpose.msra.mxu0 0.0
    %1525 = vmatprep.subr.mxu0 0.0
    %1526 = vmatpush2.xpose.msra.mxu0 0.0
    %1527 = vmatprep.subr.mxu0 0.0
    %1528 = vmatpush2.xpose.msra.mxu0 0.0
    %1529 = vmatprep.subr.mxu0 0.0
    %1530 = vmatpush2.xpose.msra.mxu0 0.0
    %1531 = vmatprep.subr.mxu0 0.0
    %1532 = vmatpush2.xpose.msra.mxu0 0.0
    %1533 = vmatprep.subr.mxu0 0.0
    %1534 = vmatpush2.xpose.msra.mxu0 0.0
    %1535 = vmatprep.subr.mxu0 0.0
    %1536 = vmatpush2.xpose.msra.mxu0 0.0
    %1537 = vmatprep.mubr.f32.mxu0 0.0
    %1538 = vmatmul.mubr.f32.gmra.mxu0 %v1462
    %v1539 = vpop.f32.mrf.mxu0
    %v1540 = vadd.f32 0.0, %v1539
    %v1541 = vpop.f32.mrf.mxu0
    %1542 = vmatprep.mubr.f32.mxu0 0.0
    %1543 = vmatmul.mubr.f32.gmra.mxu0 %v1465
    %v1544 = vpop.f32.mrf.mxu0
    %v1545 = vadd.f32 0.0, %v1544
    %v1546 = vpop.f32.mrf.mxu0
    %1547 = vdwg.mxu0
    %v1548 = vmul.f32 %v1540, 0.35355338
    %v1549 = vmul.f32 %v1545, 0.35355338
    %v1550 = vadd.f32 %v1548, %v108
    %v1551 = vadd.f32 %v1549, %v109
    %v1552 = vsel %vm470, %v1550, -inf
    %1553 = vmax.xlane.f32.xlu0 %v1552
    %v1554 = vpop.xlane.xlu0 %1553
    %v1555 = vsel %vm470, %v1551, -inf
    %1556 = vmax.xlane.f32.xlu0 %v1555
    %v1557 = vpop.xlane.xlu0 %1556
    %v1558 = vsub.f32 %v1550, %v1554
    %v1559 = vsub.f32 %v1551, %v1557
    %v1560 = vmul.f32 %v1558, 1.442695
    %v1561 = vpow.pop %v1560
    %v1562 = vmul.f32 %v1559, 1.442695
    %v1563 = vpow.pop %v1562
    %v1564 = vsel %vm470, %v1561, 0.0
    %1565 = vadd.xlane.f32.xlu0 %v1564
    %v1566 = vpop.xlane.xlu0 %1565
    %v1567 = vsel %vm470, %v1563, 0.0
    %1568 = vadd.xlane.f32.xlu0 %v1567
    %v1569 = vpop.xlane.xlu0 %1568
    %v1570 = vrcp.pop %v1566
    %v1571 = vrcp.pop %v1569
    %v1572 = vmul.f32 %v1561, %v1570
    %v1573 = vmul.f32 %v1563, %v1571
    %v1575 = vsel %vm470, %v1572, 0
    %v1578 = vsel %vm470, %v1573, 0
    %1580 = vmatprep.subr.mxu0 0.0
    %1581 = vmatpush1.msra.mxu0 0.0
    %1582 = vmatprep.subr.mxu0 0.0
    %1583 = vmatpush1.msra.mxu0 0.0
    %1584 = vmatprep.subr.mxu0 0.0
    %1585 = vmatpush1.msra.mxu0 0.0
    %1586 = vmatprep.subr.mxu0 0.0
    %1587 = vmatpush1.msra.mxu0 0.0
    %1588 = vmatprep.subr.mxu0 0.0
    %1589 = vmatpush1.msra.mxu0 0.0
    %1590 = vmatprep.subr.mxu0 0.0
    %1591 = vmatpush1.msra.mxu0 0.0
    %1592 = vmatprep.subr.mxu0 0.0
    %1593 = vmatpush1.msra.mxu0 0.0
    %1594 = vmatprep.subr.mxu0 0.0
    %1595 = vmatpush1.msra.mxu0 0.0
    %1596 = vmatprep.subr.mxu0 0.0
    %1597 = vmatpush1.msra.mxu0 0.0
    %1598 = vmatprep.subr.mxu0 0.0
    %1599 = vmatpush1.msra.mxu0 0.0
    %1600 = vmatprep.subr.mxu0 0.0
    %1601 = vmatpush1.msra.mxu0 0.0
    %1602 = vmatprep.subr.mxu0 0.0
    %1603 = vmatpush1.msra.mxu0 0.0
    %1604 = vmatprep.subr.mxu0 0.0
    %1605 = vmatpush1.msra.mxu0 0.0
    %1606 = vmatprep.subr.mxu0 0.0
    %1607 = vmatpush1.msra.mxu0 0.0
    %1608 = vmatprep.subr.mxu0 0.0
    %1609 = vmatpush1.msra.mxu0 %v1458
    %1610 = vmatprep.subr.mxu0 0.0
    %1611 = vmatpush1.msra.mxu0 %v1453
    %1612 = vmatprep.subr.mxu0 0.0
    %1613 = vmatpush2.msra.mxu0 0.0
    %1614 = vmatprep.subr.mxu0 0.0
    %1615 = vmatpush2.msra.mxu0 0.0
    %1616 = vmatprep.subr.mxu0 0.0
    %1617 = vmatpush2.msra.mxu0 0.0
    %1618 = vmatprep.subr.mxu0 0.0
    %1619 = vmatpush2.msra.mxu0 0.0
    %1620 = vmatprep.subr.mxu0 0.0
    %1621 = vmatpush2.msra.mxu0 0.0
    %1622 = vmatprep.subr.mxu0 0.0
    %1623 = vmatpush2.msra.mxu0 0.0
    %1624 = vmatprep.subr.mxu0 0.0
    %1625 = vmatpush2.msra.mxu0 0.0
    %1626 = vmatprep.subr.mxu0 0.0
    %1627 = vmatpush2.msra.mxu0 0.0
    %1628 = vmatprep.subr.mxu0 0.0
    %1629 = vmatpush2.msra.mxu0 0.0
    %1630 = vmatprep.subr.mxu0 0.0
    %1631 = vmatpush2.msra.mxu0 0.0
    %1632 = vmatprep.subr.mxu0 0.0
    %1633 = vmatpush2.msra.mxu0 0.0
    %1634 = vmatprep.subr.mxu0 0.0
    %1635 = vmatpush2.msra.mxu0 0.0
    %1636 = vmatprep.subr.mxu0 0.0
    %1637 = vmatpush2.msra.mxu0 0.0
    %1638 = vmatprep.subr.mxu0 0.0
    %1639 = vmatpush2.msra.mxu0 0.0
    %1640 = vmatprep.subr.mxu0 0.0
    %1641 = vmatpush2.msra.mxu0 0.0
    %1642 = vmatprep.subr.mxu0 0.0
    %1643 = vmatpush2.msra.mxu0 0.0
    %1644 = vmatprep.mubr.f32.mxu0 0.0
    %1645 = vmatmul.mubr.f32.gmra.mxu0 %v1575
    %v1646 = vpop.f32.mrf.mxu0
    %v1647 = vadd.f32 0.0, %v1646
    %v1648 = vpop.f32.mrf.mxu0
    %1649 = vmatprep.mubr.f32.mxu0 0.0
    %1650 = vmatmul.mubr.f32.gmra.mxu0 %v1578
    %v1651 = vpop.f32.mrf.mxu0
    %v1652 = vadd.f32 0.0, %v1651
    %v1653 = vpop.f32.mrf.mxu0
    %1654 = vdwg.mxu0
    %s1655 = scalar_lea.vmem %s6, 16
    %v1656 = vld [vmem:[%s1655] sm:$0xff]
    %v1658 = vsel %vm378, %v1647, 0
    %v1661 = vsel %vm378, %v1652, 0
    %1663 = vmatprep.subr.mxu0 0.0
    %1664 = vmatpush1.msra.mxu0 0.0
    %1665 = vmatprep.subr.mxu0 0.0
    %1666 = vmatpush1.msra.mxu0 0.0
    %1667 = vmatprep.subr.mxu0 0.0
    %1668 = vmatpush1.msra.mxu0 0.0
    %1669 = vmatprep.subr.mxu0 0.0
    %1670 = vmatpush1.msra.mxu0 0.0
    %1671 = vmatprep.subr.mxu0 0.0
    %1672 = vmatpush1.msra.mxu0 0.0
    %1673 = vmatprep.subr.mxu0 0.0
    %1674 = vmatpush1.msra.mxu0 0.0
    %1675 = vmatprep.subr.mxu0 0.0
    %1676 = vmatpush1.msra.mxu0 0.0
    %1677 = vmatprep.subr.mxu0 0.0
    %1678 = vmatpush1.msra.mxu0 0.0
    %1679 = vmatprep.subr.mxu0 0.0
    %1680 = vmatpush1.msra.mxu0 0.0
    %1681 = vmatprep.subr.mxu0 0.0
    %1682 = vmatpush1.msra.mxu0 0.0
    %1683 = vmatprep.subr.mxu0 0.0
    %1684 = vmatpush1.msra.mxu0 0.0
    %1685 = vmatprep.subr.mxu0 0.0
    %1686 = vmatpush1.msra.mxu0 0.0
    %1687 = vmatprep.subr.mxu0 0.0
    %1688 = vmatpush1.msra.mxu0 0.0
    %1689 = vmatprep.subr.mxu0 0.0
    %1690 = vmatpush1.msra.mxu0 0.0
    %1691 = vmatprep.subr.mxu0 0.0
    %1692 = vmatpush1.msra.mxu0 0.0
    %1693 = vmatprep.subr.mxu0 0.0
    %1694 = vmatpush1.msra.mxu0 %v1656
    %1695 = vmatprep.subr.mxu0 0.0
    %1696 = vmatpush2.msra.mxu0 0.0
    %1697 = vmatprep.subr.mxu0 0.0
    %1698 = vmatpush2.msra.mxu0 0.0
    %1699 = vmatprep.subr.mxu0 0.0
    %1700 = vmatpush2.msra.mxu0 0.0
    %1701 = vmatprep.subr.mxu0 0.0
    %1702 = vmatpush2.msra.mxu0 0.0
    %1703 = vmatprep.subr.mxu0 0.0
    %1704 = vmatpush2.msra.mxu0 0.0
    %1705 = vmatprep.subr.mxu0 0.0
    %1706 = vmatpush2.msra.mxu0 0.0
    %1707 = vmatprep.subr.mxu0 0.0
    %1708 = vmatpush2.msra.mxu0 0.0
    %1709 = vmatprep.subr.mxu0 0.0
    %1710 = vmatpush2.msra.mxu0 0.0
    %1711 = vmatprep.subr.mxu0 0.0
    %1712 = vmatpush2.msra.mxu0 0.0
    %1713 = vmatprep.subr.mxu0 0.0
    %1714 = vmatpush2.msra.mxu0 0.0
    %1715 = vmatprep.subr.mxu0 0.0
    %1716 = vmatpush2.msra.mxu0 0.0
    %1717 = vmatprep.subr.mxu0 0.0
    %1718 = vmatpush2.msra.mxu0 0.0
    %1719 = vmatprep.subr.mxu0 0.0
    %1720 = vmatpush2.msra.mxu0 0.0
    %1721 = vmatprep.subr.mxu0 0.0
    %1722 = vmatpush2.msra.mxu0 0.0
    %1723 = vmatprep.subr.mxu0 0.0
    %1724 = vmatpush2.msra.mxu0 0.0
    %1725 = vmatprep.subr.mxu0 0.0
    %1726 = vmatpush2.msra.mxu0 0.0
    %1727 = vmatprep.mubr.f32.mxu0 0.0
    %1728 = vmatmul.mubr.f32.gmra.mxu0 %v1658
    %v1729 = vpop.f32.mrf.mxu0
    %v1730 = vadd.f32 0.0, %v1729
    %v1731 = vpop.f32.mrf.mxu0
    %1732 = vmatprep.mubr.f32.mxu0 0.0
    %1733 = vmatmul.mubr.f32.gmra.mxu0 %v1661
    %v1734 = vpop.f32.mrf.mxu0
    %v1735 = vadd.f32 0.0, %v1734
    %v1736 = vpop.f32.mrf.mxu0
    %1737 = vdwg.mxu0
    %v1738 = vadd.f32 %v1189, %v1730
    %v1739 = vadd.f32 %v1194, %v1735
    %s1740 = scalar_lea.vmem %s4, 96
    %v1741 = vld [vmem:[%s1740] sm:$0xff]
    %v1742 = vld [vmem:[%s1740 + $0x8] sm:$0xff]
    %v1743 = vld [vmem:[%s1740 + $0x10] sm:$0xff]
    %v1744 = vld [vmem:[%s1740 + $0x18] sm:$0xff]
    %s1745 = scalar_lea.vmem %s5, 3
    %v1746 = vld [vmem:[%s1745] sm:$0x1]
    %v1748 = vlaneseq
    %v1749 = vshrl.u32 %v1748, 7
    %v1750 = vsub.s32 0, %v1749
    %v1751 = vrot.slane %v1746, %v1750
    %1753 = vmatprep.subr.mxu0 0.0
    %1754 = vmatpush1.msra.mxu0 0.0
    %1755 = vmatprep.subr.mxu0 0.0
    %1756 = vmatpush1.msra.mxu0 0.0
    %1757 = vmatprep.subr.mxu0 0.0
    %1758 = vmatpush1.msra.mxu0 0.0
    %1759 = vmatprep.subr.mxu0 0.0
    %1760 = vmatpush1.msra.mxu0 0.0
    %1761 = vmatprep.subr.mxu0 0.0
    %1762 = vmatpush1.msra.mxu0 0.0
    %1763 = vmatprep.subr.mxu0 0.0
    %1764 = vmatpush1.msra.mxu0 0.0
    %1765 = vmatprep.subr.mxu0 0.0
    %1766 = vmatpush1.msra.mxu0 0.0
    %1767 = vmatprep.subr.mxu0 0.0
    %1768 = vmatpush1.msra.mxu0 0.0
    %1769 = vmatprep.subr.mxu0 0.0
    %1770 = vmatpush1.msra.mxu0 0.0
    %1771 = vmatprep.subr.mxu0 0.0
    %1772 = vmatpush1.msra.mxu0 0.0
    %1773 = vmatprep.subr.mxu0 0.0
    %1774 = vmatpush1.msra.mxu0 0.0
    %1775 = vmatprep.subr.mxu0 0.0
    %1776 = vmatpush1.msra.mxu0 0.0
    %1777 = vmatprep.subr.mxu0 0.0
    %1778 = vmatpush1.msra.mxu0 %v1744
    %1779 = vmatprep.subr.mxu0 0.0
    %1780 = vmatpush1.msra.mxu0 %v1743
    %1781 = vmatprep.subr.mxu0 0.0
    %1782 = vmatpush1.msra.mxu0 %v1742
    %1783 = vmatprep.subr.mxu0 0.0
    %1784 = vmatpush1.msra.mxu0 %v1741
    %1785 = vmatprep.subr.mxu0 0.0
    %1786 = vmatpush2.msra.mxu0 0.0
    %1787 = vmatprep.subr.mxu0 0.0
    %1788 = vmatpush2.msra.mxu0 0.0
    %1789 = vmatprep.subr.mxu0 0.0
    %1790 = vmatpush2.msra.mxu0 0.0
    %1791 = vmatprep.subr.mxu0 0.0
    %1792 = vmatpush2.msra.mxu0 0.0
    %1793 = vmatprep.subr.mxu0 0.0
    %1794 = vmatpush2.msra.mxu0 0.0
    %1795 = vmatprep.subr.mxu0 0.0
    %1796 = vmatpush2.msra.mxu0 0.0
    %1797 = vmatprep.subr.mxu0 0.0
    %1798 = vmatpush2.msra.mxu0 0.0
    %1799 = vmatprep.subr.mxu0 0.0
    %1800 = vmatpush2.msra.mxu0 0.0
    %1801 = vmatprep.subr.mxu0 0.0
    %1802 = vmatpush2.msra.mxu0 0.0
    %1803 = vmatprep.subr.mxu0 0.0
    %1804 = vmatpush2.msra.mxu0 0.0
    %1805 = vmatprep.subr.mxu0 0.0
    %1806 = vmatpush2.msra.mxu0 0.0
    %1807 = vmatprep.subr.mxu0 0.0
    %1808 = vmatpush2.msra.mxu0 0.0
    %1809 = vmatprep.subr.mxu0 0.0
    %1810 = vmatpush2.msra.mxu0 0.0
    %1811 = vmatprep.subr.mxu0 0.0
    %1812 = vmatpush2.msra.mxu0 0.0
    %1813 = vmatprep.subr.mxu0 0.0
    %1814 = vmatpush2.msra.mxu0 0.0
    %1815 = vmatprep.subr.mxu0 0.0
    %1816 = vmatpush2.msra.mxu0 0.0
    %1817 = vmatprep.mubr.f32.mxu0 0.0
    %1818 = vmatmul.mubr.f32.gmra.mxu0 %v122
    %v1819 = vpop.f32.mrf.mxu0
    %v1820 = vadd.f32 %v1751, %v1819
    %v1821 = vpop.f32.mrf.mxu0
    %1822 = vmatprep.mubr.f32.mxu0 0.0
    %1823 = vmatmul.mubr.f32.gmra.mxu0 %v125
    %v1824 = vpop.f32.mrf.mxu0
    %v1825 = vadd.f32 %v1751, %v1824
    %v1826 = vpop.f32.mrf.mxu0
    %1827 = vdwg.mxu0
    %s1828 = scalar_lea.vmem %s4, 224
    %v1829 = vld [vmem:[%s1828] sm:$0xff]
    %v1830 = vld [vmem:[%s1828 + $0x8] sm:$0xff]
    %v1831 = vld [vmem:[%s1828 + $0x10] sm:$0xff]
    %v1832 = vld [vmem:[%s1828 + $0x18] sm:$0xff]
    %s1833 = scalar_lea.vmem %s5, 7
    %v1834 = vld [vmem:[%s1833] sm:$0x1]
    %v1836 = vlaneseq
    %v1837 = vshrl.u32 %v1836, 7
    %v1838 = vsub.s32 0, %v1837
    %v1839 = vrot.slane %v1834, %v1838
    %1841 = vmatprep.subr.mxu0 0.0
    %1842 = vmatpush1.msra.mxu0 0.0
    %1843 = vmatprep.subr.mxu0 0.0
    %1844 = vmatpush1.msra.mxu0 0.0
    %1845 = vmatprep.subr.mxu0 0.0
    %1846 = vmatpush1.msra.mxu0 0.0
    %1847 = vmatprep.subr.mxu0 0.0
    %1848 = vmatpush1.msra.mxu0 0.0
    %1849 = vmatprep.subr.mxu0 0.0
    %1850 = vmatpush1.msra.mxu0 0.0
    %1851 = vmatprep.subr.mxu0 0.0
    %1852 = vmatpush1.msra.mxu0 0.0
    %1853 = vmatprep.subr.mxu0 0.0
    %1854 = vmatpush1.msra.mxu0 0.0
    %1855 = vmatprep.subr.mxu0 0.0
    %1856 = vmatpush1.msra.mxu0 0.0
    %1857 = vmatprep.subr.mxu0 0.0
    %1858 = vmatpush1.msra.mxu0 0.0
    %1859 = vmatprep.subr.mxu0 0.0
    %1860 = vmatpush1.msra.mxu0 0.0
    %1861 = vmatprep.subr.mxu0 0.0
    %1862 = vmatpush1.msra.mxu0 0.0
    %1863 = vmatprep.subr.mxu0 0.0
    %1864 = vmatpush1.msra.mxu0 0.0
    %1865 = vmatprep.subr.mxu0 0.0
    %1866 = vmatpush1.msra.mxu0 %v1832
    %1867 = vmatprep.subr.mxu0 0.0
    %1868 = vmatpush1.msra.mxu0 %v1831
    %1869 = vmatprep.subr.mxu0 0.0
    %1870 = vmatpush1.msra.mxu0 %v1830
    %1871 = vmatprep.subr.mxu0 0.0
    %1872 = vmatpush1.msra.mxu0 %v1829
    %1873 = vmatprep.subr.mxu0 0.0
    %1874 = vmatpush2.msra.mxu0 0.0
    %1875 = vmatprep.subr.mxu0 0.0
    %1876 = vmatpush2.msra.mxu0 0.0
    %1877 = vmatprep.subr.mxu0 0.0
    %1878 = vmatpush2.msra.mxu0 0.0
    %1879 = vmatprep.subr.mxu0 0.0
    %1880 = vmatpush2.msra.mxu0 0.0
    %1881 = vmatprep.subr.mxu0 0.0
    %1882 = vmatpush2.msra.mxu0 0.0
    %1883 = vmatprep.subr.mxu0 0.0
    %1884 = vmatpush2.msra.mxu0 0.0
    %1885 = vmatprep.subr.mxu0 0.0
    %1886 = vmatpush2.msra.mxu0 0.0
    %1887 = vmatprep.subr.mxu0 0.0
    %1888 = vmatpush2.msra.mxu0 0.0
    %1889 = vmatprep.subr.mxu0 0.0
    %1890 = vmatpush2.msra.mxu0 0.0
    %1891 = vmatprep.subr.mxu0 0.0
    %1892 = vmatpush2.msra.mxu0 0.0
    %1893 = vmatprep.subr.mxu0 0.0
    %1894 = vmatpush2.msra.mxu0 0.0
    %1895 = vmatprep.subr.mxu0 0.0
    %1896 = vmatpush2.msra.mxu0 0.0
    %1897 = vmatprep.subr.mxu0 0.0
    %1898 = vmatpush2.msra.mxu0 0.0
    %1899 = vmatprep.subr.mxu0 0.0
    %1900 = vmatpush2.msra.mxu0 0.0
    %1901 = vmatprep.subr.mxu0 0.0
    %1902 = vmatpush2.msra.mxu0 0.0
    %1903 = vmatprep.subr.mxu0 0.0
    %1904 = vmatpush2.msra.mxu0 0.0
    %1905 = vmatprep.mubr.f32.mxu0 0.0
    %1906 = vmatmul.mubr.f32.gmra.mxu0 %v122
    %v1907 = vpop.f32.mrf.mxu0
    %v1908 = vadd.f32 %v1839, %v1907
    %v1909 = vpop.f32.mrf.mxu0
    %1910 = vmatprep.mubr.f32.mxu0 0.0
    %1911 = vmatmul.mubr.f32.gmra.mxu0 %v125
    %v1912 = vpop.f32.mrf.mxu0
    %v1913 = vadd.f32 %v1839, %v1912
    %v1914 = vpop.f32.mrf.mxu0
    %1915 = vdwg.mxu0
    %s1916 = scalar_lea.vmem %s4, 352
    %v1917 = vld [vmem:[%s1916] sm:$0xff]
    %v1918 = vld [vmem:[%s1916 + $0x8] sm:$0xff]
    %v1919 = vld [vmem:[%s1916 + $0x10] sm:$0xff]
    %v1920 = vld [vmem:[%s1916 + $0x18] sm:$0xff]
    %s1921 = scalar_lea.vmem %s5, 11
    %v1922 = vld [vmem:[%s1921] sm:$0x1]
    %v1924 = vlaneseq
    %v1925 = vshrl.u32 %v1924, 7
    %v1926 = vsub.s32 0, %v1925
    %v1927 = vrot.slane %v1922, %v1926
    %1929 = vmatprep.subr.mxu0 0.0
    %1930 = vmatpush1.msra.mxu0 0.0
    %1931 = vmatprep.subr.mxu0 0.0
    %1932 = vmatpush1.msra.mxu0 0.0
    %1933 = vmatprep.subr.mxu0 0.0
    %1934 = vmatpush1.msra.mxu0 0.0
    %1935 = vmatprep.subr.mxu0 0.0
    %1936 = vmatpush1.msra.mxu0 0.0
    %1937 = vmatprep.subr.mxu0 0.0
    %1938 = vmatpush1.msra.mxu0 0.0
    %1939 = vmatprep.subr.mxu0 0.0
    %1940 = vmatpush1.msra.mxu0 0.0
    %1941 = vmatprep.subr.mxu0 0.0
    %1942 = vmatpush1.msra.mxu0 0.0
    %1943 = vmatprep.subr.mxu0 0.0
    %1944 = vmatpush1.msra.mxu0 0.0
    %1945 = vmatprep.subr.mxu0 0.0
    %1946 = vmatpush1.msra.mxu0 0.0
    %1947 = vmatprep.subr.mxu0 0.0
    %1948 = vmatpush1.msra.mxu0 0.0
    %1949 = vmatprep.subr.mxu0 0.0
    %1950 = vmatpush1.msra.mxu0 0.0
    %1951 = vmatprep.subr.mxu0 0.0
    %1952 = vmatpush1.msra.mxu0 0.0
    %1953 = vmatprep.subr.mxu0 0.0
    %1954 = vmatpush1.msra.mxu0 %v1920
    %1955 = vmatprep.subr.mxu0 0.0
    %1956 = vmatpush1.msra.mxu0 %v1919
    %1957 = vmatprep.subr.mxu0 0.0
    %1958 = vmatpush1.msra.mxu0 %v1918
    %1959 = vmatprep.subr.mxu0 0.0
    %1960 = vmatpush1.msra.mxu0 %v1917
    %1961 = vmatprep.subr.mxu0 0.0
    %1962 = vmatpush2.msra.mxu0 0.0
    %1963 = vmatprep.subr.mxu0 0.0
    %1964 = vmatpush2.msra.mxu0 0.0
    %1965 = vmatprep.subr.mxu0 0.0
    %1966 = vmatpush2.msra.mxu0 0.0
    %1967 = vmatprep.subr.mxu0 0.0
    %1968 = vmatpush2.msra.mxu0 0.0
    %1969 = vmatprep.subr.mxu0 0.0
    %1970 = vmatpush2.msra.mxu0 0.0
    %1971 = vmatprep.subr.mxu0 0.0
    %1972 = vmatpush2.msra.mxu0 0.0
    %1973 = vmatprep.subr.mxu0 0.0
    %1974 = vmatpush2.msra.mxu0 0.0
    %1975 = vmatprep.subr.mxu0 0.0
    %1976 = vmatpush2.msra.mxu0 0.0
    %1977 = vmatprep.subr.mxu0 0.0
    %1978 = vmatpush2.msra.mxu0 0.0
    %1979 = vmatprep.subr.mxu0 0.0
    %1980 = vmatpush2.msra.mxu0 0.0
    %1981 = vmatprep.subr.mxu0 0.0
    %1982 = vmatpush2.msra.mxu0 0.0
    %1983 = vmatprep.subr.mxu0 0.0
    %1984 = vmatpush2.msra.mxu0 0.0
    %1985 = vmatprep.subr.mxu0 0.0
    %1986 = vmatpush2.msra.mxu0 0.0
    %1987 = vmatprep.subr.mxu0 0.0
    %1988 = vmatpush2.msra.mxu0 0.0
    %1989 = vmatprep.subr.mxu0 0.0
    %1990 = vmatpush2.msra.mxu0 0.0
    %1991 = vmatprep.subr.mxu0 0.0
    %1992 = vmatpush2.msra.mxu0 0.0
    %1993 = vmatprep.mubr.f32.mxu0 0.0
    %1994 = vmatmul.mubr.f32.gmra.mxu0 %v122
    %v1995 = vpop.f32.mrf.mxu0
    %v1996 = vadd.f32 %v1927, %v1995
    %v1997 = vpop.f32.mrf.mxu0
    %1998 = vmatprep.mubr.f32.mxu0 0.0
    %1999 = vmatmul.mubr.f32.gmra.mxu0 %v125
    %v2000 = vpop.f32.mrf.mxu0
    %v2001 = vadd.f32 %v1927, %v2000
    %v2002 = vpop.f32.mrf.mxu0
    %2003 = vdwg.mxu0
    %v2005 = vsel %vm378, %v1820, 0
    %v2008 = vsel %vm378, %v1825, 0
    %v2011 = vsel %vm378, %v1908, 0
    %v2014 = vsel %vm378, %v1913, 0
    %2016 = vmatprep.subr.mxu0 0.0
    %2017 = vmatpush1.xpose.msra.mxu0 0.0
    %2018 = vmatprep.subr.mxu0 0.0
    %2019 = vmatpush1.xpose.msra.mxu0 0.0
    %2020 = vmatprep.subr.mxu0 0.0
    %2021 = vmatpush1.xpose.msra.mxu0 0.0
    %2022 = vmatprep.subr.mxu0 0.0
    %2023 = vmatpush1.xpose.msra.mxu0 0.0
    %2024 = vmatprep.subr.mxu0 0.0
    %2025 = vmatpush1.xpose.msra.mxu0 0.0
    %2026 = vmatprep.subr.mxu0 0.0
    %2027 = vmatpush1.xpose.msra.mxu0 0.0
    %2028 = vmatprep.subr.mxu0 0.0
    %2029 = vmatpush1.xpose.msra.mxu0 0.0
    %2030 = vmatprep.subr.mxu0 0.0
    %2031 = vmatpush1.xpose.msra.mxu0 0.0
    %2032 = vmatprep.subr.mxu0 0.0
    %2033 = vmatpush1.xpose.msra.mxu0 0.0
    %2034 = vmatprep.subr.mxu0 0.0
    %2035 = vmatpush1.xpose.msra.mxu0 0.0
    %2036 = vmatprep.subr.mxu0 0.0
    %2037 = vmatpush1.xpose.msra.mxu0 0.0
    %2038 = vmatprep.subr.mxu0 0.0
    %2039 = vmatpush1.xpose.msra.mxu0 0.0
    %2040 = vmatprep.subr.mxu0 0.0
    %2041 = vmatpush1.xpose.msra.mxu0 0.0
    %2042 = vmatprep.subr.mxu0 0.0
    %2043 = vmatpush1.xpose.msra.mxu0 0.0
    %2044 = vmatprep.subr.mxu0 0.0
    %2045 = vmatpush1.xpose.msra.mxu0 %v2014
    %2046 = vmatprep.subr.mxu0 0.0
    %2047 = vmatpush1.xpose.msra.mxu0 %v2011
    %2048 = vmatprep.subr.mxu0 0.0
    %2049 = vmatpush2.xpose.msra.mxu0 0.0
    %2050 = vmatprep.subr.mxu0 0.0
    %2051 = vmatpush2.xpose.msra.mxu0 0.0
    %2052 = vmatprep.subr.mxu0 0.0
    %2053 = vmatpush2.xpose.msra.mxu0 0.0
    %2054 = vmatprep.subr.mxu0 0.0
    %2055 = vmatpush2.xpose.msra.mxu0 0.0
    %2056 = vmatprep.subr.mxu0 0.0
    %2057 = vmatpush2.xpose.msra.mxu0 0.0
    %2058 = vmatprep.subr.mxu0 0.0
    %2059 = vmatpush2.xpose.msra.mxu0 0.0
    %2060 = vmatprep.subr.mxu0 0.0
    %2061 = vmatpush2.xpose.msra.mxu0 0.0
    %2062 = vmatprep.subr.mxu0 0.0
    %2063 = vmatpush2.xpose.msra.mxu0 0.0
    %2064 = vmatprep.subr.mxu0 0.0
    %2065 = vmatpush2.xpose.msra.mxu0 0.0
    %2066 = vmatprep.subr.mxu0 0.0
    %2067 = vmatpush2.xpose.msra.mxu0 0.0
    %2068 = vmatprep.subr.mxu0 0.0
    %2069 = vmatpush2.xpose.msra.mxu0 0.0
    %2070 = vmatprep.subr.mxu0 0.0
    %2071 = vmatpush2.xpose.msra.mxu0 0.0
    %2072 = vmatprep.subr.mxu0 0.0
    %2073 = vmatpush2.xpose.msra.mxu0 0.0
    %2074 = vmatprep.subr.mxu0 0.0
    %2075 = vmatpush2.xpose.msra.mxu0 0.0
    %2076 = vmatprep.subr.mxu0 0.0
    %2077 = vmatpush2.xpose.msra.mxu0 0.0
    %2078 = vmatprep.subr.mxu0 0.0
    %2079 = vmatpush2.xpose.msra.mxu0 0.0
    %2080 = vmatprep.mubr.f32.mxu0 0.0
    %2081 = vmatmul.mubr.f32.gmra.mxu0 %v2005
    %v2082 = vpop.f32.mrf.mxu0
    %v2083 = vadd.f32 0.0, %v2082
    %v2084 = vpop.f32.mrf.mxu0
    %2085 = vmatprep.mubr.f32.mxu0 0.0
    %2086 = vmatmul.mubr.f32.gmra.mxu0 %v2008
    %v2087 = vpop.f32.mrf.mxu0
    %v2088 = vadd.f32 0.0, %v2087
    %v2089 = vpop.f32.mrf.mxu0
    %2090 = vdwg.mxu0
    %v2091 = vmul.f32 %v2083, 0.35355338
    %v2092 = vmul.f32 %v2088, 0.35355338
    %v2093 = vadd.f32 %v2091, %v108
    %v2094 = vadd.f32 %v2092, %v109
    %v2095 = vsel %vm470, %v2093, -inf
    %2096 = vmax.xlane.f32.xlu0 %v2095
    %v2097 = vpop.xlane.xlu0 %2096
    %v2098 = vsel %vm470, %v2094, -inf
    %2099 = vmax.xlane.f32.xlu0 %v2098
    %v2100 = vpop.xlane.xlu0 %2099
    %v2101 = vsub.f32 %v2093, %v2097
    %v2102 = vsub.f32 %v2094, %v2100
    %v2103 = vmul.f32 %v2101, 1.442695
    %v2104 = vpow.pop %v2103
    %v2105 = vmul.f32 %v2102, 1.442695
    %v2106 = vpow.pop %v2105
    %v2107 = vsel %vm470, %v2104, 0.0
    %2108 = vadd.xlane.f32.xlu0 %v2107
    %v2109 = vpop.xlane.xlu0 %2108
    %v2110 = vsel %vm470, %v2106, 0.0
    %2111 = vadd.xlane.f32.xlu0 %v2110
    %v2112 = vpop.xlane.xlu0 %2111
    %v2113 = vrcp.pop %v2109
    %v2114 = vrcp.pop %v2112
    %v2115 = vmul.f32 %v2104, %v2113
    %v2116 = vmul.f32 %v2106, %v2114
    %v2118 = vsel %vm470, %v2115, 0
    %v2121 = vsel %vm470, %v2116, 0
    %2123 = vmatprep.subr.mxu0 0.0
    %2124 = vmatpush1.msra.mxu0 0.0
    %2125 = vmatprep.subr.mxu0 0.0
    %2126 = vmatpush1.msra.mxu0 0.0
    %2127 = vmatprep.subr.mxu0 0.0
    %2128 = vmatpush1.msra.mxu0 0.0
    %2129 = vmatprep.subr.mxu0 0.0
    %2130 = vmatpush1.msra.mxu0 0.0
    %2131 = vmatprep.subr.mxu0 0.0
    %2132 = vmatpush1.msra.mxu0 0.0
    %2133 = vmatprep.subr.mxu0 0.0
    %2134 = vmatpush1.msra.mxu0 0.0
    %2135 = vmatprep.subr.mxu0 0.0
    %2136 = vmatpush1.msra.mxu0 0.0
    %2137 = vmatprep.subr.mxu0 0.0
    %2138 = vmatpush1.msra.mxu0 0.0
    %2139 = vmatprep.subr.mxu0 0.0
    %2140 = vmatpush1.msra.mxu0 0.0
    %2141 = vmatprep.subr.mxu0 0.0
    %2142 = vmatpush1.msra.mxu0 0.0
    %2143 = vmatprep.subr.mxu0 0.0
    %2144 = vmatpush1.msra.mxu0 0.0
    %2145 = vmatprep.subr.mxu0 0.0
    %2146 = vmatpush1.msra.mxu0 0.0
    %2147 = vmatprep.subr.mxu0 0.0
    %2148 = vmatpush1.msra.mxu0 0.0
    %2149 = vmatprep.subr.mxu0 0.0
    %2150 = vmatpush1.msra.mxu0 0.0
    %2151 = vmatprep.subr.mxu0 0.0
    %2152 = vmatpush1.msra.mxu0 %v2001
    %2153 = vmatprep.subr.mxu0 0.0
    %2154 = vmatpush1.msra.mxu0 %v1996
    %2155 = vmatprep.subr.mxu0 0.0
    %2156 = vmatpush2.msra.mxu0 0.0
    %2157 = vmatprep.subr.mxu0 0.0
    %2158 = vmatpush2.msra.mxu0 0.0
    %2159 = vmatprep.subr.mxu0 0.0
    %2160 = vmatpush2.msra.mxu0 0.0
    %2161 = vmatprep.subr.mxu0 0.0
    %2162 = vmatpush2.msra.mxu0 0.0
    %2163 = vmatprep.subr.mxu0 0.0
    %2164 = vmatpush2.msra.mxu0 0.0
    %2165 = vmatprep.subr.mxu0 0.0
    %2166 = vmatpush2.msra.mxu0 0.0
    %2167 = vmatprep.subr.mxu0 0.0
    %2168 = vmatpush2.msra.mxu0 0.0
    %2169 = vmatprep.subr.mxu0 0.0
    %2170 = vmatpush2.msra.mxu0 0.0
    %2171 = vmatprep.subr.mxu0 0.0
    %2172 = vmatpush2.msra.mxu0 0.0
    %2173 = vmatprep.subr.mxu0 0.0
    %2174 = vmatpush2.msra.mxu0 0.0
    %2175 = vmatprep.subr.mxu0 0.0
    %2176 = vmatpush2.msra.mxu0 0.0
    %2177 = vmatprep.subr.mxu0 0.0
    %2178 = vmatpush2.msra.mxu0 0.0
    %2179 = vmatprep.subr.mxu0 0.0
    %2180 = vmatpush2.msra.mxu0 0.0
    %2181 = vmatprep.subr.mxu0 0.0
    %2182 = vmatpush2.msra.mxu0 0.0
    %2183 = vmatprep.subr.mxu0 0.0
    %2184 = vmatpush2.msra.mxu0 0.0
    %2185 = vmatprep.subr.mxu0 0.0
    %2186 = vmatpush2.msra.mxu0 0.0
    %2187 = vmatprep.mubr.f32.mxu0 0.0
    %2188 = vmatmul.mubr.f32.gmra.mxu0 %v2118
    %v2189 = vpop.f32.mrf.mxu0
    %v2190 = vadd.f32 0.0, %v2189
    %v2191 = vpop.f32.mrf.mxu0
    %2192 = vmatprep.mubr.f32.mxu0 0.0
    %2193 = vmatmul.mubr.f32.gmra.mxu0 %v2121
    %v2194 = vpop.f32.mrf.mxu0
    %v2195 = vadd.f32 0.0, %v2194
    %v2196 = vpop.f32.mrf.mxu0
    %2197 = vdwg.mxu0
    %s2198 = scalar_lea.vmem %s6, 24
    %v2199 = vld [vmem:[%s2198] sm:$0xff]
    %v2201 = vsel %vm378, %v2190, 0
    %v2204 = vsel %vm378, %v2195, 0
    %2206 = vmatprep.subr.mxu0 0.0
    %2207 = vmatpush1.msra.mxu0 0.0
    %2208 = vmatprep.subr.mxu0 0.0
    %2209 = vmatpush1.msra.mxu0 0.0
    %2210 = vmatprep.subr.mxu0 0.0
    %2211 = vmatpush1.msra.mxu0 0.0
    %2212 = vmatprep.subr.mxu0 0.0
    %2213 = vmatpush1.msra.mxu0 0.0
    %2214 = vmatprep.subr.mxu0 0.0
    %2215 = vmatpush1.msra.mxu0 0.0
    %2216 = vmatprep.subr.mxu0 0.0
    %2217 = vmatpush1.msra.mxu0 0.0
    %2218 = vmatprep.subr.mxu0 0.0
    %2219 = vmatpush1.msra.mxu0 0.0
    %2220 = vmatprep.subr.mxu0 0.0
    %2221 = vmatpush1.msra.mxu0 0.0
    %2222 = vmatprep.subr.mxu0 0.0
    %2223 = vmatpush1.msra.mxu0 0.0
    %2224 = vmatprep.subr.mxu0 0.0
    %2225 = vmatpush1.msra.mxu0 0.0
    %2226 = vmatprep.subr.mxu0 0.0
    %2227 = vmatpush1.msra.mxu0 0.0
    %2228 = vmatprep.subr.mxu0 0.0
    %2229 = vmatpush1.msra.mxu0 0.0
    %2230 = vmatprep.subr.mxu0 0.0
    %2231 = vmatpush1.msra.mxu0 0.0
    %2232 = vmatprep.subr.mxu0 0.0
    %2233 = vmatpush1.msra.mxu0 0.0
    %2234 = vmatprep.subr.mxu0 0.0
    %2235 = vmatpush1.msra.mxu0 0.0
    %2236 = vmatprep.subr.mxu0 0.0
    %2237 = vmatpush1.msra.mxu0 %v2199
    %2238 = vmatprep.subr.mxu0 0.0
    %2239 = vmatpush2.msra.mxu0 0.0
    %2240 = vmatprep.subr.mxu0 0.0
    %2241 = vmatpush2.msra.mxu0 0.0
    %2242 = vmatprep.subr.mxu0 0.0
    %2243 = vmatpush2.msra.mxu0 0.0
    %2244 = vmatprep.subr.mxu0 0.0
    %2245 = vmatpush2.msra.mxu0 0.0
    %2246 = vmatprep.subr.mxu0 0.0
    %2247 = vmatpush2.msra.mxu0 0.0
    %2248 = vmatprep.subr.mxu0 0.0
    %2249 = vmatpush2.msra.mxu0 0.0
    %2250 = vmatprep.subr.mxu0 0.0
    %2251 = vmatpush2.msra.mxu0 0.0
    %2252 = vmatprep.subr.mxu0 0.0
    %2253 = vmatpush2.msra.mxu0 0.0
    %2254 = vmatprep.subr.mxu0 0.0
    %2255 = vmatpush2.msra.mxu0 0.0
    %2256 = vmatprep.subr.mxu0 0.0
    %2257 = vmatpush2.msra.mxu0 0.0
    %2258 = vmatprep.subr.mxu0 0.0
    %2259 = vmatpush2.msra.mxu0 0.0
    %2260 = vmatprep.subr.mxu0 0.0
    %2261 = vmatpush2.msra.mxu0 0.0
    %2262 = vmatprep.subr.mxu0 0.0
    %2263 = vmatpush2.msra.mxu0 0.0
    %2264 = vmatprep.subr.mxu0 0.0
    %2265 = vmatpush2.msra.mxu0 0.0
    %2266 = vmatprep.subr.mxu0 0.0
    %2267 = vmatpush2.msra.mxu0 0.0
    %2268 = vmatprep.subr.mxu0 0.0
    %2269 = vmatpush2.msra.mxu0 0.0
    %2270 = vmatprep.mubr.f32.mxu0 0.0
    %2271 = vmatmul.mubr.f32.gmra.mxu0 %v2201
    %v2272 = vpop.f32.mrf.mxu0
    %v2273 = vadd.f32 0.0, %v2272
    %v2274 = vpop.f32.mrf.mxu0
    %2275 = vmatprep.mubr.f32.mxu0 0.0
    %2276 = vmatmul.mubr.f32.gmra.mxu0 %v2204
    %v2277 = vpop.f32.mrf.mxu0
    %v2278 = vadd.f32 0.0, %v2277
    %v2279 = vpop.f32.mrf.mxu0
    %2280 = vdwg.mxu0
    %v2281 = vadd.f32 %v1738, %v2273
    %v2282 = vadd.f32 %v1739, %v2278
    %v2283 = vld [vmem:[%s7] sm:$0x1]
    %v2285 = vlaneseq
    %v2286 = vshrl.u32 %v2285, 7
    %v2287 = vsub.s32 0, %v2286
    %v2288 = vrot.slane %v2283, %v2287
    %v2290 = vadd.f32 %v2281, %v2288
    %v2291 = vadd.f32 %v2282, %v2288
    %v2292 = vadd.f32 %v2290, %v106
    %v2293 = vadd.f32 %v2291, %v107
    %v2294 = vld [vmem:[%s8] sm:$0x1]
    %v2295 = vld [vmem:[%s9] sm:$0x1]
    %v2296 = vsel %vm64, %v2292, 0.0
    %2297 = vadd.xlane.f32.xlu0 %v2296
    %v2298 = vpop.xlane.xlu0 %2297
    %v2299 = vsel %vm64, %v2293, 0.0
    %2300 = vadd.xlane.f32.xlu0 %v2299
    %v2301 = vpop.xlane.xlu0 %2300
    %v2302 = vmul.f32 %v2298, %v71
    %v2303 = vmul.f32 %v2301, %v71
    %v2304 = vsub.f32 %v2292, %v2302
    %v2305 = vsub.f32 %v2293, %v2303
    %v2306 = vmul.f32 %v2304, %v2304
    %v2307 = vmul.f32 %v2305, %v2305
    %v2308 = vsel %vm64, %v2306, 0.0
    %2309 = vadd.xlane.f32.xlu0 %v2308
    %v2310 = vpop.xlane.xlu0 %2309
    %v2311 = vsel %vm64, %v2307, 0.0
    %2312 = vadd.xlane.f32.xlu0 %v2311
    %v2313 = vpop.xlane.xlu0 %2312
    %v2314 = vmul.f32 %v2310, %v71
    %v2315 = vmul.f32 %v2313, %v71
    %v2316 = vadd.f32 %v2314, 1e-12
    %v2317 = vadd.f32 %v2315, 1e-12
    %v2318 = vrsqrt.pop %v2316
    %v2319 = vrsqrt.pop %v2317
    %v2320 = vmul.f32 %v2304, %v2318
    %v2321 = vmul.f32 %v2305, %v2319
    %v2323 = vlaneseq
    %v2324 = vshrl.u32 %v2323, 7
    %v2325 = vsub.s32 0, %v2324
    %v2326 = vrot.slane %v2294, %v2325
    %v2328 = vmul.f32 %v2320, %v2326
    %v2329 = vmul.f32 %v2321, %v2326
    %v2331 = vlaneseq
    %v2332 = vshrl.u32 %v2331, 7
    %v2333 = vsub.s32 0, %v2332
    %v2334 = vrot.slane %v2295, %v2333
    %v2336 = vadd.f32 %v2328, %v2334
    %v2337 = vadd.f32 %v2329, %v2334
    %v2338 = vld [vmem:[%s10] sm:$0xff]
    %v2339 = vld [vmem:[%s10 + $0x8] sm:$0xff]
    %v2340 = vld [vmem:[%s10 + $0x10] sm:$0xff]
    %v2341 = vld [vmem:[%s10 + $0x18] sm:$0xff]
    %v2342 = vld [vmem:[%s11] sm:$0x1]
    %v2344 = vlaneseq
    %v2345 = vshrl.u32 %v2344, 7
    %v2346 = vsub.s32 0, %v2345
    %v2347 = vrot.slane %v2342, %v2346
    %v2350 = vsel %vm64, %v2336, 0
    %v2353 = vsel %vm64, %v2337, 0
    %2355 = vmatprep.subr.mxu0 0.0
    %2356 = vmatpush1.msra.mxu0 0.0
    %2357 = vmatprep.subr.mxu0 0.0
    %2358 = vmatpush1.msra.mxu0 0.0
    %2359 = vmatprep.subr.mxu0 0.0
    %2360 = vmatpush1.msra.mxu0 0.0
    %2361 = vmatprep.subr.mxu0 0.0
    %2362 = vmatpush1.msra.mxu0 0.0
    %2363 = vmatprep.subr.mxu0 0.0
    %2364 = vmatpush1.msra.mxu0 0.0
    %2365 = vmatprep.subr.mxu0 0.0
    %2366 = vmatpush1.msra.mxu0 0.0
    %2367 = vmatprep.subr.mxu0 0.0
    %2368 = vmatpush1.msra.mxu0 0.0
    %2369 = vmatprep.subr.mxu0 0.0
    %2370 = vmatpush1.msra.mxu0 0.0
    %2371 = vmatprep.subr.mxu0 0.0
    %2372 = vmatpush1.msra.mxu0 0.0
    %2373 = vmatprep.subr.mxu0 0.0
    %2374 = vmatpush1.msra.mxu0 0.0
    %2375 = vmatprep.subr.mxu0 0.0
    %2376 = vmatpush1.msra.mxu0 0.0
    %2377 = vmatprep.subr.mxu0 0.0
    %2378 = vmatpush1.msra.mxu0 0.0
    %2379 = vmatprep.subr.mxu0 0.0
    %2380 = vmatpush1.msra.mxu0 %v2341
    %2381 = vmatprep.subr.mxu0 0.0
    %2382 = vmatpush1.msra.mxu0 %v2340
    %2383 = vmatprep.subr.mxu0 0.0
    %2384 = vmatpush1.msra.mxu0 %v2339
    %2385 = vmatprep.subr.mxu0 0.0
    %2386 = vmatpush1.msra.mxu0 %v2338
    %2387 = vmatprep.subr.mxu0 0.0
    %2388 = vmatpush2.msra.mxu0 0.0
    %2389 = vmatprep.subr.mxu0 0.0
    %2390 = vmatpush2.msra.mxu0 0.0
    %2391 = vmatprep.subr.mxu0 0.0
    %2392 = vmatpush2.msra.mxu0 0.0
    %2393 = vmatprep.subr.mxu0 0.0
    %2394 = vmatpush2.msra.mxu0 0.0
    %2395 = vmatprep.subr.mxu0 0.0
    %2396 = vmatpush2.msra.mxu0 0.0
    %2397 = vmatprep.subr.mxu0 0.0
    %2398 = vmatpush2.msra.mxu0 0.0
    %2399 = vmatprep.subr.mxu0 0.0
    %2400 = vmatpush2.msra.mxu0 0.0
    %2401 = vmatprep.subr.mxu0 0.0
    %2402 = vmatpush2.msra.mxu0 0.0
    %2403 = vmatprep.subr.mxu0 0.0
    %2404 = vmatpush2.msra.mxu0 0.0
    %2405 = vmatprep.subr.mxu0 0.0
    %2406 = vmatpush2.msra.mxu0 0.0
    %2407 = vmatprep.subr.mxu0 0.0
    %2408 = vmatpush2.msra.mxu0 0.0
    %2409 = vmatprep.subr.mxu0 0.0
    %2410 = vmatpush2.msra.mxu0 0.0
    %2411 = vmatprep.subr.mxu0 0.0
    %2412 = vmatpush2.msra.mxu0 0.0
    %2413 = vmatprep.subr.mxu0 0.0
    %2414 = vmatpush2.msra.mxu0 0.0
    %2415 = vmatprep.subr.mxu0 0.0
    %2416 = vmatpush2.msra.mxu0 0.0
    %2417 = vmatprep.subr.mxu0 0.0
    %2418 = vmatpush2.msra.mxu0 0.0
    %2419 = vmatprep.mubr.f32.mxu0 0.0
    %2420 = vmatmul.mubr.f32.gmra.mxu0 %v2350
    %v2421 = vpop.f32.mrf.mxu0
    %v2422 = vadd.f32 %v2347, %v2421
    %v2423 = vpop.f32.mrf.mxu0
    %2424 = vmatprep.mubr.f32.mxu0 0.0
    %2425 = vmatmul.mubr.f32.gmra.mxu0 %v2353
    %v2426 = vpop.f32.mrf.mxu0
    %v2427 = vadd.f32 %v2347, %v2426
    %v2428 = vpop.f32.mrf.mxu0
    %2429 = vdwg.mxu0
    %v2430 = vmul.f32 %v2422, 0.5
    %v2431 = vmul.f32 %v2427, 0.5
    %v2432 = vmul.f32 %v2422, 0.044715
    %v2433 = vmul.f32 %v2427, 0.044715
    %v2434 = vmul.f32 %v2432, %v2422
    %v2435 = vmul.f32 %v2433, %v2427
    %v2436 = vmul.f32 %v2434, %v2422
    %v2437 = vmul.f32 %v2435, %v2427
    %v2438 = vadd.f32 %v2422, %v2436
    %v2439 = vadd.f32 %v2427, %v2437
    %v2440 = vmul.f32 %v2438, 0.7978846
    %v2441 = vmul.f32 %v2439, 0.7978846
    %v2442 = vtanh.pop %v2440
    %v2443 = vtanh.pop %v2441
    %v2444 = vadd.f32 %v2442, 1.0
    %v2445 = vadd.f32 %v2443, 1.0
    %v2446 = vmul.f32 %v2430, %v2444
    %v2447 = vmul.f32 %v2431, %v2445
    %v2448 = vld [vmem:[%s12] sm:$0xff]
    %v2449 = vld [vmem:[%s12 + $0x8] sm:$0xff]
    %v2450 = vld [vmem:[%s12 + $0x10] sm:$0xff]
    %v2451 = vld [vmem:[%s12 + $0x18] sm:$0xff]
    %v2452 = vld [vmem:[%s12 + $0x20] sm:$0xff]
    %v2453 = vld [vmem:[%s12 + $0x28] sm:$0xff]
    %v2454 = vld [vmem:[%s12 + $0x30] sm:$0xff]
    %v2455 = vld [vmem:[%s12 + $0x38] sm:$0xff]
    %v2456 = vld [vmem:[%s13] sm:$0x1]
    %v2458 = vlaneseq
    %v2459 = vshrl.u32 %v2458, 7
    %v2460 = vsub.s32 0, %v2459
    %v2461 = vrot.slane %v2456, %v2460
    %vm2463 = vcmask 523264
    %v2465 = vsel %vm2463, %v2446, 0
    %v2468 = vsel %vm2463, %v2447, 0
    %2470 = vmatprep.subr.mxu0 0.0
    %2471 = vmatpush1.msra.mxu0 0.0
    %2472 = vmatprep.subr.mxu0 0.0
    %2473 = vmatpush1.msra.mxu0 0.0
    %2474 = vmatprep.subr.mxu0 0.0
    %2475 = vmatpush1.msra.mxu0 0.0
    %2476 = vmatprep.subr.mxu0 0.0
    %2477 = vmatpush1.msra.mxu0 0.0
    %2478 = vmatprep.subr.mxu0 0.0
    %2479 = vmatpush1.msra.mxu0 0.0
    %2480 = vmatprep.subr.mxu0 0.0
    %2481 = vmatpush1.msra.mxu0 0.0
    %2482 = vmatprep.subr.mxu0 0.0
    %2483 = vmatpush1.msra.mxu0 0.0
    %2484 = vmatprep.subr.mxu0 0.0
    %2485 = vmatpush1.msra.mxu0 0.0
    %2486 = vmatprep.subr.mxu0 0.0
    %2487 = vmatpush1.msra.mxu0 %v2455
    %2488 = vmatprep.subr.mxu0 0.0
    %2489 = vmatpush1.msra.mxu0 %v2454
    %2490 = vmatprep.subr.mxu0 0.0
    %2491 = vmatpush1.msra.mxu0 %v2453
    %2492 = vmatprep.subr.mxu0 0.0
    %2493 = vmatpush1.msra.mxu0 %v2452
    %2494 = vmatprep.subr.mxu0 0.0
    %2495 = vmatpush1.msra.mxu0 %v2451
    %2496 = vmatprep.subr.mxu0 0.0
    %2497 = vmatpush1.msra.mxu0 %v2450
    %2498 = vmatprep.subr.mxu0 0.0
    %2499 = vmatpush1.msra.mxu0 %v2449
    %2500 = vmatprep.subr.mxu0 0.0
    %2501 = vmatpush1.msra.mxu0 %v2448
    %2502 = vmatprep.subr.mxu0 0.0
    %2503 = vmatpush2.msra.mxu0 0.0
    %2504 = vmatprep.subr.mxu0 0.0
    %2505 = vmatpush2.msra.mxu0 0.0
    %2506 = vmatprep.subr.mxu0 0.0
    %2507 = vmatpush2.msra.mxu0 0.0
    %2508 = vmatprep.subr.mxu0 0.0
    %2509 = vmatpush2.msra.mxu0 0.0
    %2510 = vmatprep.subr.mxu0 0.0
    %2511 = vmatpush2.msra.mxu0 0.0
    %2512 = vmatprep.subr.mxu0 0.0
    %2513 = vmatpush2.msra.mxu0 0.0
    %2514 = vmatprep.subr.mxu0 0.0
    %2515 = vmatpush2.msra.mxu0 0.0
    %2516 = vmatprep.subr.mxu0 0.0
    %2517 = vmatpush2.msra.mxu0 0.0
    %2518 = vmatprep.subr.mxu0 0.0
    %2519 = vmatpush2.msra.mxu0 0.0
    %2520 = vmatprep.subr.mxu0 0.0
    %2521 = vmatpush2.msra.mxu0 0.0
    %2522 = vmatprep.subr.mxu0 0.0
    %2523 = vmatpush2.msra.mxu0 0.0
    %2524 = vmatprep.subr.mxu0 0.0
    %2525 = vmatpush2.msra.mxu0 0.0
    %2526 = vmatprep.subr.mxu0 0.0
    %2527 = vmatpush2.msra.mxu0 0.0
    %2528 = vmatprep.subr.mxu0 0.0
    %2529 = vmatpush2.msra.mxu0 0.0
    %2530 = vmatprep.subr.mxu0 0.0
    %2531 = vmatpush2.msra.mxu0 0.0
    %2532 = vmatprep.subr.mxu0 0.0
    %2533 = vmatpush2.msra.mxu0 0.0
    %2534 = vmatprep.mubr.f32.mxu0 0.0
    %2535 = vmatmul.mubr.f32.gmra.mxu0 %v2465
    %v2536 = vpop.f32.mrf.mxu0
    %v2537 = vadd.f32 %v2461, %v2536
    %v2538 = vpop.f32.mrf.mxu0
    %2539 = vmatprep.mubr.f32.mxu0 0.0
    %2540 = vmatmul.mubr.f32.gmra.mxu0 %v2468
    %v2541 = vpop.f32.mrf.mxu0
    %v2542 = vadd.f32 %v2461, %v2541
    %v2543 = vpop.f32.mrf.mxu0
    %2544 = vdwg.mxu0
    %v2545 = vadd.f32 %v2537, %v2336
    %v2546 = vadd.f32 %v2542, %v2337
    %v2547 = vld [vmem:[%s14] sm:$0x1]
    %v2548 = vld [vmem:[%s15] sm:$0x1]
    %v2549 = vsel %vm64, %v2545, 0.0
    %2550 = vadd.xlane.f32.xlu0 %v2549
    %v2551 = vpop.xlane.xlu0 %2550
    %v2552 = vsel %vm64, %v2546, 0.0
    %2553 = vadd.xlane.f32.xlu0 %v2552
    %v2554 = vpop.xlane.xlu0 %2553
    %v2555 = vmul.f32 %v2551, %v71
    %v2556 = vmul.f32 %v2554, %v71
    %v2557 = vsub.f32 %v2545, %v2555
    %v2558 = vsub.f32 %v2546, %v2556
    %v2559 = vmul.f32 %v2557, %v2557
    %v2560 = vmul.f32 %v2558, %v2558
    %v2561 = vsel %vm64, %v2559, 0.0
    %2562 = vadd.xlane.f32.xlu0 %v2561
    %v2563 = vpop.xlane.xlu0 %2562
    %v2564 = vsel %vm64, %v2560, 0.0
    %2565 = vadd.xlane.f32.xlu0 %v2564
    %v2566 = vpop.xlane.xlu0 %2565
    %v2567 = vmul.f32 %v2563, %v71
    %v2568 = vmul.f32 %v2566, %v71
    %v2569 = vadd.f32 %v2567, 1e-12
    %v2570 = vadd.f32 %v2568, 1e-12
    %v2571 = vrsqrt.pop %v2569
    %v2572 = vrsqrt.pop %v2570
    %v2573 = vmul.f32 %v2557, %v2571
    %v2574 = vmul.f32 %v2558, %v2572
    %v2576 = vlaneseq
    %v2577 = vshrl.u32 %v2576, 7
    %v2578 = vsub.s32 0, %v2577
    %v2579 = vrot.slane %v2547, %v2578
    %v2581 = vmul.f32 %v2573, %v2579
    %v2582 = vmul.f32 %v2574, %v2579
    %v2584 = vlaneseq
    %v2585 = vshrl.u32 %v2584, 7
    %v2586 = vsub.s32 0, %v2585
    %v2587 = vrot.slane %v2548, %v2586
    %v2589 = vadd.f32 %v2581, %v2587
    %v2590 = vadd.f32 %v2582, %v2587
    %s2591 = scalar_lea.vmem %s4, 384
    %v2592 = vld [vmem:[%s2591] sm:$0xff]
    %v2593 = vld [vmem:[%s2591 + $0x8] sm:$0xff]
    %v2594 = vld [vmem:[%s2591 + $0x10] sm:$0xff]
    %v2595 = vld [vmem:[%s2591 + $0x18] sm:$0xff]
    %s2596 = scalar_lea.vmem %s5, 12
    %v2597 = vld [vmem:[%s2596] sm:$0x1]
    %v2599 = vlaneseq
    %v2600 = vshrl.u32 %v2599, 7
    %v2601 = vsub.s32 0, %v2600
    %v2602 = vrot.slane %v2597, %v2601
    %v2605 = vsel %vm64, %v2589, 0
    %v2608 = vsel %vm64, %v2590, 0
    %2610 = vmatprep.subr.mxu0 0.0
    %2611 = vmatpush1.msra.mxu0 0.0
    %2612 = vmatprep.subr.mxu0 0.0
    %2613 = vmatpush1.msra.mxu0 0.0
    %2614 = vmatprep.subr.mxu0 0.0
    %2615 = vmatpush1.msra.mxu0 0.0
    %2616 = vmatprep.subr.mxu0 0.0
    %2617 = vmatpush1.msra.mxu0 0.0
    %2618 = vmatprep.subr.mxu0 0.0
    %2619 = vmatpush1.msra.mxu0 0.0
    %2620 = vmatprep.subr.mxu0 0.0
    %2621 = vmatpush1.msra.mxu0 0.0
    %2622 = vmatprep.subr.mxu0 0.0
    %2623 = vmatpush1.msra.mxu0 0.0
    %2624 = vmatprep.subr.mxu0 0.0
    %2625 = vmatpush1.msra.mxu0 0.0
    %2626 = vmatprep.subr.mxu0 0.0
    %2627 = vmatpush1.msra.mxu0 0.0
    %2628 = vmatprep.subr.mxu0 0.0
    %2629 = vmatpush1.msra.mxu0 0.0
    %2630 = vmatprep.subr.mxu0 0.0
    %2631 = vmatpush1.msra.mxu0 0.0
    %2632 = vmatprep.subr.mxu0 0.0
    %2633 = vmatpush1.msra.mxu0 0.0
    %2634 = vmatprep.subr.mxu0 0.0
    %2635 = vmatpush1.msra.mxu0 %v2595
    %2636 = vmatprep.subr.mxu0 0.0
    %2637 = vmatpush1.msra.mxu0 %v2594
    %2638 = vmatprep.subr.mxu0 0.0
    %2639 = vmatpush1.msra.mxu0 %v2593
    %2640 = vmatprep.subr.mxu0 0.0
    %2641 = vmatpush1.msra.mxu0 %v2592
    %2642 = vmatprep.subr.mxu0 0.0
    %2643 = vmatpush2.msra.mxu0 0.0
    %2644 = vmatprep.subr.mxu0 0.0
    %2645 = vmatpush2.msra.mxu0 0.0
    %2646 = vmatprep.subr.mxu0 0.0
    %2647 = vmatpush2.msra.mxu0 0.0
    %2648 = vmatprep.subr.mxu0 0.0
    %2649 = vmatpush2.msra.mxu0 0.0
    %2650 = vmatprep.subr.mxu0 0.0
    %2651 = vmatpush2.msra.mxu0 0.0
    %2652 = vmatprep.subr.mxu0 0.0
    %2653 = vmatpush2.msra.mxu0 0.0
    %2654 = vmatprep.subr.mxu0 0.0
    %2655 = vmatpush2.msra.mxu0 0.0
    %2656 = vmatprep.subr.mxu0 0.0
    %2657 = vmatpush2.msra.mxu0 0.0
    %2658 = vmatprep.subr.mxu0 0.0
    %2659 = vmatpush2.msra.mxu0 0.0
    %2660 = vmatprep.subr.mxu0 0.0
    %2661 = vmatpush2.msra.mxu0 0.0
    %2662 = vmatprep.subr.mxu0 0.0
    %2663 = vmatpush2.msra.mxu0 0.0
    %2664 = vmatprep.subr.mxu0 0.0
    %2665 = vmatpush2.msra.mxu0 0.0
    %2666 = vmatprep.subr.mxu0 0.0
    %2667 = vmatpush2.msra.mxu0 0.0
    %2668 = vmatprep.subr.mxu0 0.0
    %2669 = vmatpush2.msra.mxu0 0.0
    %2670 = vmatprep.subr.mxu0 0.0
    %2671 = vmatpush2.msra.mxu0 0.0
    %2672 = vmatprep.subr.mxu0 0.0
    %2673 = vmatpush2.msra.mxu0 0.0
    %2674 = vmatprep.mubr.f32.mxu0 0.0
    %2675 = vmatmul.mubr.f32.gmra.mxu0 %v2605
    %v2676 = vpop.f32.mrf.mxu0
    %v2677 = vadd.f32 %v2602, %v2676
    %v2678 = vpop.f32.mrf.mxu0
    %2679 = vmatprep.mubr.f32.mxu0 0.0
    %2680 = vmatmul.mubr.f32.gmra.mxu0 %v2608
    %v2681 = vpop.f32.mrf.mxu0
    %v2682 = vadd.f32 %v2602, %v2681
    %v2683 = vpop.f32.mrf.mxu0
    %2684 = vdwg.mxu0
    %s2685 = scalar_lea.vmem %s4, 512
    %v2686 = vld [vmem:[%s2685] sm:$0xff]
    %v2687 = vld [vmem:[%s2685 + $0x8] sm:$0xff]
    %v2688 = vld [vmem:[%s2685 + $0x10] sm:$0xff]
    %v2689 = vld [vmem:[%s2685 + $0x18] sm:$0xff]
    %s2690 = scalar_lea.vmem %s5, 16
    %v2691 = vld [vmem:[%s2690] sm:$0x1]
    %v2693 = vlaneseq
    %v2694 = vshrl.u32 %v2693, 7
    %v2695 = vsub.s32 0, %v2694
    %v2696 = vrot.slane %v2691, %v2695
    %2698 = vmatprep.subr.mxu0 0.0
    %2699 = vmatpush1.msra.mxu0 0.0
    %2700 = vmatprep.subr.mxu0 0.0
    %2701 = vmatpush1.msra.mxu0 0.0
    %2702 = vmatprep.subr.mxu0 0.0
    %2703 = vmatpush1.msra.mxu0 0.0
    %2704 = vmatprep.subr.mxu0 0.0
    %2705 = vmatpush1.msra.mxu0 0.0
    %2706 = vmatprep.subr.mxu0 0.0
    %2707 = vmatpush1.msra.mxu0 0.0
    %2708 = vmatprep.subr.mxu0 0.0
    %2709 = vmatpush1.msra.mxu0 0.0
    %2710 = vmatprep.subr.mxu0 0.0
    %2711 = vmatpush1.msra.mxu0 0.0
    %2712 = vmatprep.subr.mxu0 0.0
    %2713 = vmatpush1.msra.mxu0 0.0
    %2714 = vmatprep.subr.mxu0 0.0
    %2715 = vmatpush1.msra.mxu0 0.0
    %2716 = vmatprep.subr.mxu0 0.0
    %2717 = vmatpush1.msra.mxu0 0.0
    %2718 = vmatprep.subr.mxu0 0.0
    %2719 = vmatpush1.msra.mxu0 0.0
    %2720 = vmatprep.subr.mxu0 0.0
    %2721 = vmatpush1.msra.mxu0 0.0
    %2722 = vmatprep.subr.mxu0 0.0
    %2723 = vmatpush1.msra.mxu0 %v2689
    %2724 = vmatprep.subr.mxu0 0.0
    %2725 = vmatpush1.msra.mxu0 %v2688
    %2726 = vmatprep.subr.mxu0 0.0
    %2727 = vmatpush1.msra.mxu0 %v2687
    %2728 = vmatprep.subr.mxu0 0.0
    %2729 = vmatpush1.msra.mxu0 %v2686
    %2730 = vmatprep.subr.mxu0 0.0
    %2731 = vmatpush2.msra.mxu0 0.0
    %2732 = vmatprep.subr.mxu0 0.0
    %2733 = vmatpush2.msra.mxu0 0.0
    %2734 = vmatprep.subr.mxu0 0.0
    %2735 = vmatpush2.msra.mxu0 0.0
    %2736 = vmatprep.subr.mxu0 0.0
    %2737 = vmatpush2.msra.mxu0 0.0
    %2738 = vmatprep.subr.mxu0 0.0
    %2739 = vmatpush2.msra.mxu0 0.0
    %2740 = vmatprep.subr.mxu0 0.0
    %2741 = vmatpush2.msra.mxu0 0.0
    %2742 = vmatprep.subr.mxu0 0.0
    %2743 = vmatpush2.msra.mxu0 0.0
    %2744 = vmatprep.subr.mxu0 0.0
    %2745 = vmatpush2.msra.mxu0 0.0
    %2746 = vmatprep.subr.mxu0 0.0
    %2747 = vmatpush2.msra.mxu0 0.0
    %2748 = vmatprep.subr.mxu0 0.0
    %2749 = vmatpush2.msra.mxu0 0.0
    %2750 = vmatprep.subr.mxu0 0.0
    %2751 = vmatpush2.msra.mxu0 0.0
    %2752 = vmatprep.subr.mxu0 0.0
    %2753 = vmatpush2.msra.mxu0 0.0
    %2754 = vmatprep.subr.mxu0 0.0
    %2755 = vmatpush2.msra.mxu0 0.0
    %2756 = vmatprep.subr.mxu0 0.0
    %2757 = vmatpush2.msra.mxu0 0.0
    %2758 = vmatprep.subr.mxu0 0.0
    %2759 = vmatpush2.msra.mxu0 0.0
    %2760 = vmatprep.subr.mxu0 0.0
    %2761 = vmatpush2.msra.mxu0 0.0
    %2762 = vmatprep.mubr.f32.mxu0 0.0
    %2763 = vmatmul.mubr.f32.gmra.mxu0 %v2605
    %v2764 = vpop.f32.mrf.mxu0
    %v2765 = vadd.f32 %v2696, %v2764
    %v2766 = vpop.f32.mrf.mxu0
    %2767 = vmatprep.mubr.f32.mxu0 0.0
    %2768 = vmatmul.mubr.f32.gmra.mxu0 %v2608
    %v2769 = vpop.f32.mrf.mxu0
    %v2770 = vadd.f32 %v2696, %v2769
    %v2771 = vpop.f32.mrf.mxu0
    %2772 = vdwg.mxu0
    %s2773 = scalar_lea.vmem %s4, 640
    %v2774 = vld [vmem:[%s2773] sm:$0xff]
    %v2775 = vld [vmem:[%s2773 + $0x8] sm:$0xff]
    %v2776 = vld [vmem:[%s2773 + $0x10] sm:$0xff]
    %v2777 = vld [vmem:[%s2773 + $0x18] sm:$0xff]
    %s2778 = scalar_lea.vmem %s5, 20
    %v2779 = vld [vmem:[%s2778] sm:$0x1]
    %v2781 = vlaneseq
    %v2782 = vshrl.u32 %v2781, 7
    %v2783 = vsub.s32 0, %v2782
    %v2784 = vrot.slane %v2779, %v2783
    %2786 = vmatprep.subr.mxu0 0.0
    %2787 = vmatpush1.msra.mxu0 0.0
    %2788 = vmatprep.subr.mxu0 0.0
    %2789 = vmatpush1.msra.mxu0 0.0
    %2790 = vmatprep.subr.mxu0 0.0
    %2791 = vmatpush1.msra.mxu0 0.0
    %2792 = vmatprep.subr.mxu0 0.0
    %2793 = vmatpush1.msra.mxu0 0.0
    %2794 = vmatprep.subr.mxu0 0.0
    %2795 = vmatpush1.msra.mxu0 0.0
    %2796 = vmatprep.subr.mxu0 0.0
    %2797 = vmatpush1.msra.mxu0 0.0
    %2798 = vmatprep.subr.mxu0 0.0
    %2799 = vmatpush1.msra.mxu0 0.0
    %2800 = vmatprep.subr.mxu0 0.0
    %2801 = vmatpush1.msra.mxu0 0.0
    %2802 = vmatprep.subr.mxu0 0.0
    %2803 = vmatpush1.msra.mxu0 0.0
    %2804 = vmatprep.subr.mxu0 0.0
    %2805 = vmatpush1.msra.mxu0 0.0
    %2806 = vmatprep.subr.mxu0 0.0
    %2807 = vmatpush1.msra.mxu0 0.0
    %2808 = vmatprep.subr.mxu0 0.0
    %2809 = vmatpush1.msra.mxu0 0.0
    %2810 = vmatprep.subr.mxu0 0.0
    %2811 = vmatpush1.msra.mxu0 %v2777
    %2812 = vmatprep.subr.mxu0 0.0
    %2813 = vmatpush1.msra.mxu0 %v2776
    %2814 = vmatprep.subr.mxu0 0.0
    %2815 = vmatpush1.msra.mxu0 %v2775
    %2816 = vmatprep.subr.mxu0 0.0
    %2817 = vmatpush1.msra.mxu0 %v2774
    %2818 = vmatprep.subr.mxu0 0.0
    %2819 = vmatpush2.msra.mxu0 0.0
    %2820 = vmatprep.subr.mxu0 0.0
    %2821 = vmatpush2.msra.mxu0 0.0
    %2822 = vmatprep.subr.mxu0 0.0
    %2823 = vmatpush2.msra.mxu0 0.0
    %2824 = vmatprep.subr.mxu0 0.0
    %2825 = vmatpush2.msra.mxu0 0.0
    %2826 = vmatprep.subr.mxu0 0.0
    %2827 = vmatpush2.msra.mxu0 0.0
    %2828 = vmatprep.subr.mxu0 0.0
    %2829 = vmatpush2.msra.mxu0 0.0
    %2830 = vmatprep.subr.mxu0 0.0
    %2831 = vmatpush2.msra.mxu0 0.0
    %2832 = vmatprep.subr.mxu0 0.0
    %2833 = vmatpush2.msra.mxu0 0.0
    %2834 = vmatprep.subr.mxu0 0.0
    %2835 = vmatpush2.msra.mxu0 0.0
    %2836 = vmatprep.subr.mxu0 0.0
    %2837 = vmatpush2.msra.mxu0 0.0
    %2838 = vmatprep.subr.mxu0 0.0
    %2839 = vmatpush2.msra.mxu0 0.0
    %2840 = vmatprep.subr.mxu0 0.0
    %2841 = vmatpush2.msra.mxu0 0.0
    %2842 = vmatprep.subr.mxu0 0.0
    %2843 = vmatpush2.msra.mxu0 0.0
    %2844 = vmatprep.subr.mxu0 0.0
    %2845 = vmatpush2.msra.mxu0 0.0
    %2846 = vmatprep.subr.mxu0 0.0
    %2847 = vmatpush2.msra.mxu0 0.0
    %2848 = vmatprep.subr.mxu0 0.0
    %2849 = vmatpush2.msra.mxu0 0.0
    %2850 = vmatprep.mubr.f32.mxu0 0.0
    %2851 = vmatmul.mubr.f32.gmra.mxu0 %v2605
    %v2852 = vpop.f32.mrf.mxu0
    %v2853 = vadd.f32 %v2784, %v2852
    %v2854 = vpop.f32.mrf.mxu0
    %2855 = vmatprep.mubr.f32.mxu0 0.0
    %2856 = vmatmul.mubr.f32.gmra.mxu0 %v2608
    %v2857 = vpop.f32.mrf.mxu0
    %v2858 = vadd.f32 %v2784, %v2857
    %v2859 = vpop.f32.mrf.mxu0
    %2860 = vdwg.mxu0
    %v2862 = vsel %vm378, %v2677, 0
    %v2865 = vsel %vm378, %v2682, 0
    %v2868 = vsel %vm378, %v2765, 0
    %v2871 = vsel %vm378, %v2770, 0
    %2873 = vmatprep.subr.mxu0 0.0
    %2874 = vmatpush1.xpose.msra.mxu0 0.0
    %2875 = vmatprep.subr.mxu0 0.0
    %2876 = vmatpush1.xpose.msra.mxu0 0.0
    %2877 = vmatprep.subr.mxu0 0.0
    %2878 = vmatpush1.xpose.msra.mxu0 0.0
    %2879 = vmatprep.subr.mxu0 0.0
    %2880 = vmatpush1.xpose.msra.mxu0 0.0
    %2881 = vmatprep.subr.mxu0 0.0
    %2882 = vmatpush1.xpose.msra.mxu0 0.0
    %2883 = vmatprep.subr.mxu0 0.0
    %2884 = vmatpush1.xpose.msra.mxu0 0.0
    %2885 = vmatprep.subr.mxu0 0.0
    %2886 = vmatpush1.xpose.msra.mxu0 0.0
    %2887 = vmatprep.subr.mxu0 0.0
    %2888 = vmatpush1.xpose.msra.mxu0 0.0
    %2889 = vmatprep.subr.mxu0 0.0
    %2890 = vmatpush1.xpose.msra.mxu0 0.0
    %2891 = vmatprep.subr.mxu0 0.0
    %2892 = vmatpush1.xpose.msra.mxu0 0.0
    %2893 = vmatprep.subr.mxu0 0.0
    %2894 = vmatpush1.xpose.msra.mxu0 0.0
    %2895 = vmatprep.subr.mxu0 0.0
    %2896 = vmatpush1.xpose.msra.mxu0 0.0
    %2897 = vmatprep.subr.mxu0 0.0
    %2898 = vmatpush1.xpose.msra.mxu0 0.0
    %2899 = vmatprep.subr.mxu0 0.0
    %2900 = vmatpush1.xpose.msra.mxu0 0.0
    %2901 = vmatprep.subr.mxu0 0.0
    %2902 = vmatpush1.xpose.msra.mxu0 %v2871
    %2903 = vmatprep.subr.mxu0 0.0
    %2904 = vmatpush1.xpose.msra.mxu0 %v2868
    %2905 = vmatprep.subr.mxu0 0.0
    %2906 = vmatpush2.xpose.msra.mxu0 0.0
    %2907 = vmatprep.subr.mxu0 0.0
    %2908 = vmatpush2.xpose.msra.mxu0 0.0
    %2909 = vmatprep.subr.mxu0 0.0
    %2910 = vmatpush2.xpose.msra.mxu0 0.0
    %2911 = vmatprep.subr.mxu0 0.0
    %2912 = vmatpush2.xpose.msra.mxu0 0.0
    %2913 = vmatprep.subr.mxu0 0.0
    %2914 = vmatpush2.xpose.msra.mxu0 0.0
    %2915 = vmatprep.subr.mxu0 0.0
    %2916 = vmatpush2.xpose.msra.mxu0 0.0
    %2917 = vmatprep.subr.mxu0 0.0
    %2918 = vmatpush2.xpose.msra.mxu0 0.0
    %2919 = vmatprep.subr.mxu0 0.0
    %2920 = vmatpush2.xpose.msra.mxu0 0.0
    %2921 = vmatprep.subr.mxu0 0.0
    %2922 = vmatpush2.xpose.msra.mxu0 0.0
    %2923 = vmatprep.subr.mxu0 0.0
    %2924 = vmatpush2.xpose.msra.mxu0 0.0
    %2925 = vmatprep.subr.mxu0 0.0
    %2926 = vmatpush2.xpose.msra.mxu0 0.0
    %2927 = vmatprep.subr.mxu0 0.0
    %2928 = vmatpush2.xpose.msra.mxu0 0.0
    %2929 = vmatprep.subr.mxu0 0.0
    %2930 = vmatpush2.xpose.msra.mxu0 0.0
    %2931 = vmatprep.subr.mxu0 0.0
    %2932 = vmatpush2.xpose.msra.mxu0 0.0
    %2933 = vmatprep.subr.mxu0 0.0
    %2934 = vmatpush2.xpose.msra.mxu0 0.0
    %2935 = vmatprep.subr.mxu0 0.0
    %2936 = vmatpush2.xpose.msra.mxu0 0.0
    %2937 = vmatprep.mubr.f32.mxu0 0.0
    %2938 = vmatmul.mubr.f32.gmra.mxu0 %v2862
    %v2939 = vpop.f32.mrf.mxu0
    %v2940 = vadd.f32 0.0, %v2939
    %v2941 = vpop.f32.mrf.mxu0
    %2942 = vmatprep.mubr.f32.mxu0 0.0
    %2943 = vmatmul.mubr.f32.gmra.mxu0 %v2865
    %v2944 = vpop.f32.mrf.mxu0
    %v2945 = vadd.f32 0.0, %v2944
    %v2946 = vpop.f32.mrf.mxu0
    %2947 = vdwg.mxu0
    %v2948 = vmul.f32 %v2940, 0.35355338
    %v2949 = vmul.f32 %v2945, 0.35355338
    %v2950 = vadd.f32 %v2948, %v108
    %v2951 = vadd.f32 %v2949, %v109
    %v2952 = vsel %vm470, %v2950, -inf
    %2953 = vmax.xlane.f32.xlu0 %v2952
    %v2954 = vpop.xlane.xlu0 %2953
    %v2955 = vsel %vm470, %v2951, -inf
    %2956 = vmax.xlane.f32.xlu0 %v2955
    %v2957 = vpop.xlane.xlu0 %2956
    %v2958 = vsub.f32 %v2950, %v2954
    %v2959 = vsub.f32 %v2951, %v2957
    %v2960 = vmul.f32 %v2958, 1.442695
    %v2961 = vpow.pop %v2960
    %v2962 = vmul.f32 %v2959, 1.442695
    %v2963 = vpow.pop %v2962
    %v2964 = vsel %vm470, %v2961, 0.0
    %2965 = vadd.xlane.f32.xlu0 %v2964
    %v2966 = vpop.xlane.xlu0 %2965
    %v2967 = vsel %vm470, %v2963, 0.0
    %2968 = vadd.xlane.f32.xlu0 %v2967
    %v2969 = vpop.xlane.xlu0 %2968
    %v2970 = vrcp.pop %v2966
    %v2971 = vrcp.pop %v2969
    %v2972 = vmul.f32 %v2961, %v2970
    %v2973 = vmul.f32 %v2963, %v2971
    %v2975 = vsel %vm470, %v2972, 0
    %v2978 = vsel %vm470, %v2973, 0
    %2980 = vmatprep.subr.mxu0 0.0
    %2981 = vmatpush1.msra.mxu0 0.0
    %2982 = vmatprep.subr.mxu0 0.0
    %2983 = vmatpush1.msra.mxu0 0.0
    %2984 = vmatprep.subr.mxu0 0.0
    %2985 = vmatpush1.msra.mxu0 0.0
    %2986 = vmatprep.subr.mxu0 0.0
    %2987 = vmatpush1.msra.mxu0 0.0
    %2988 = vmatprep.subr.mxu0 0.0
    %2989 = vmatpush1.msra.mxu0 0.0
    %2990 = vmatprep.subr.mxu0 0.0
    %2991 = vmatpush1.msra.mxu0 0.0
    %2992 = vmatprep.subr.mxu0 0.0
    %2993 = vmatpush1.msra.mxu0 0.0
    %2994 = vmatprep.subr.mxu0 0.0
    %2995 = vmatpush1.msra.mxu0 0.0
    %2996 = vmatprep.subr.mxu0 0.0
    %2997 = vmatpush1.msra.mxu0 0.0
    %2998 = vmatprep.subr.mxu0 0.0
    %2999 = vmatpush1.msra.mxu0 0.0
    %3000 = vmatprep.subr.mxu0 0.0
    %3001 = vmatpush1.msra.mxu0 0.0
    %3002 = vmatprep.subr.mxu0 0.0
    %3003 = vmatpush1.msra.mxu0 0.0
    %3004 = vmatprep.subr.mxu0 0.0
    %3005 = vmatpush1.msra.mxu0 0.0
    %3006 = vmatprep.subr.mxu0 0.0
    %3007 = vmatpush1.msra.mxu0 0.0
    %3008 = vmatprep.subr.mxu0 0.0
    %3009 = vmatpush1.msra.mxu0 %v2858
    %3010 = vmatprep.subr.mxu0 0.0
    %3011 = vmatpush1.msra.mxu0 %v2853
    %3012 = vmatprep.subr.mxu0 0.0
    %3013 = vmatpush2.msra.mxu0 0.0
    %3014 = vmatprep.subr.mxu0 0.0
    %3015 = vmatpush2.msra.mxu0 0.0
    %3016 = vmatprep.subr.mxu0 0.0
    %3017 = vmatpush2.msra.mxu0 0.0
    %3018 = vmatprep.subr.mxu0 0.0
    %3019 = vmatpush2.msra.mxu0 0.0
    %3020 = vmatprep.subr.mxu0 0.0
    %3021 = vmatpush2.msra.mxu0 0.0
    %3022 = vmatprep.subr.mxu0 0.0
    %3023 = vmatpush2.msra.mxu0 0.0
    %3024 = vmatprep.subr.mxu0 0.0
    %3025 = vmatpush2.msra.mxu0 0.0
    %3026 = vmatprep.subr.mxu0 0.0
    %3027 = vmatpush2.msra.mxu0 0.0
    %3028 = vmatprep.subr.mxu0 0.0
    %3029 = vmatpush2.msra.mxu0 0.0
    %3030 = vmatprep.subr.mxu0 0.0
    %3031 = vmatpush2.msra.mxu0 0.0
    %3032 = vmatprep.subr.mxu0 0.0
    %3033 = vmatpush2.msra.mxu0 0.0
    %3034 = vmatprep.subr.mxu0 0.0
    %3035 = vmatpush2.msra.mxu0 0.0
    %3036 = vmatprep.subr.mxu0 0.0
    %3037 = vmatpush2.msra.mxu0 0.0
    %3038 = vmatprep.subr.mxu0 0.0
    %3039 = vmatpush2.msra.mxu0 0.0
    %3040 = vmatprep.subr.mxu0 0.0
    %3041 = vmatpush2.msra.mxu0 0.0
    %3042 = vmatprep.subr.mxu0 0.0
    %3043 = vmatpush2.msra.mxu0 0.0
    %3044 = vmatprep.mubr.f32.mxu0 0.0
    %3045 = vmatmul.mubr.f32.gmra.mxu0 %v2975
    %v3046 = vpop.f32.mrf.mxu0
    %v3047 = vadd.f32 0.0, %v3046
    %v3048 = vpop.f32.mrf.mxu0
    %3049 = vmatprep.mubr.f32.mxu0 0.0
    %3050 = vmatmul.mubr.f32.gmra.mxu0 %v2978
    %v3051 = vpop.f32.mrf.mxu0
    %v3052 = vadd.f32 0.0, %v3051
    %v3053 = vpop.f32.mrf.mxu0
    %3054 = vdwg.mxu0
    %s3055 = scalar_lea.vmem %s6, 32
    %v3056 = vld [vmem:[%s3055] sm:$0xff]
    %s3057 = scalar_lea.vmem %s4, 416
    %v3058 = vld [vmem:[%s3057] sm:$0xff]
    %v3059 = vld [vmem:[%s3057 + $0x8] sm:$0xff]
    %v3060 = vld [vmem:[%s3057 + $0x10] sm:$0xff]
    %v3061 = vld [vmem:[%s3057 + $0x18] sm:$0xff]
    %s3062 = scalar_lea.vmem %s5, 13
    %v3063 = vld [vmem:[%s3062] sm:$0x1]
    %v3065 = vlaneseq
    %v3066 = vshrl.u32 %v3065, 7
    %v3067 = vsub.s32 0, %v3066
    %v3068 = vrot.slane %v3063, %v3067
    %3070 = vmatprep.subr.mxu0 0.0
    %3071 = vmatpush1.msra.mxu0 0.0
    %3072 = vmatprep.subr.mxu0 0.0
    %3073 = vmatpush1.msra.mxu0 0.0
    %3074 = vmatprep.subr.mxu0 0.0
    %3075 = vmatpush1.msra.mxu0 0.0
    %3076 = vmatprep.subr.mxu0 0.0
    %3077 = vmatpush1.msra.mxu0 0.0
    %3078 = vmatprep.subr.mxu0 0.0
    %3079 = vmatpush1.msra.mxu0 0.0
    %3080 = vmatprep.subr.mxu0 0.0
    %3081 = vmatpush1.msra.mxu0 0.0
    %3082 = vmatprep.subr.mxu0 0.0
    %3083 = vmatpush1.msra.mxu0 0.0
    %3084 = vmatprep.subr.mxu0 0.0
    %3085 = vmatpush1.msra.mxu0 0.0
    %3086 = vmatprep.subr.mxu0 0.0
    %3087 = vmatpush1.msra.mxu0 0.0
    %3088 = vmatprep.subr.mxu0 0.0
    %3089 = vmatpush1.msra.mxu0 0.0
    %3090 = vmatprep.subr.mxu0 0.0
    %3091 = vmatpush1.msra.mxu0 0.0
    %3092 = vmatprep.subr.mxu0 0.0
    %3093 = vmatpush1.msra.mxu0 0.0
    %3094 = vmatprep.subr.mxu0 0.0
    %3095 = vmatpush1.msra.mxu0 %v3061
    %3096 = vmatprep.subr.mxu0 0.0
    %3097 = vmatpush1.msra.mxu0 %v3060
    %3098 = vmatprep.subr.mxu0 0.0
    %3099 = vmatpush1.msra.mxu0 %v3059
    %3100 = vmatprep.subr.mxu0 0.0
    %3101 = vmatpush1.msra.mxu0 %v3058
    %3102 = vmatprep.subr.mxu0 0.0
    %3103 = vmatpush2.msra.mxu0 0.0
    %3104 = vmatprep.subr.mxu0 0.0
    %3105 = vmatpush2.msra.mxu0 0.0
    %3106 = vmatprep.subr.mxu0 0.0
    %3107 = vmatpush2.msra.mxu0 0.0
    %3108 = vmatprep.subr.mxu0 0.0
    %3109 = vmatpush2.msra.mxu0 0.0
    %3110 = vmatprep.subr.mxu0 0.0
    %3111 = vmatpush2.msra.mxu0 0.0
    %3112 = vmatprep.subr.mxu0 0.0
    %3113 = vmatpush2.msra.mxu0 0.0
    %3114 = vmatprep.subr.mxu0 0.0
    %3115 = vmatpush2.msra.mxu0 0.0
    %3116 = vmatprep.subr.mxu0 0.0
    %3117 = vmatpush2.msra.mxu0 0.0
    %3118 = vmatprep.subr.mxu0 0.0
    %3119 = vmatpush2.msra.mxu0 0.0
    %3120 = vmatprep.subr.mxu0 0.0
    %3121 = vmatpush2.msra.mxu0 0.0
    %3122 = vmatprep.subr.mxu0 0.0
    %3123 = vmatpush2.msra.mxu0 0.0
    %3124 = vmatprep.subr.mxu0 0.0
    %3125 = vmatpush2.msra.mxu0 0.0
    %3126 = vmatprep.subr.mxu0 0.0
    %3127 = vmatpush2.msra.mxu0 0.0
    %3128 = vmatprep.subr.mxu0 0.0
    %3129 = vmatpush2.msra.mxu0 0.0
    %3130 = vmatprep.subr.mxu0 0.0
    %3131 = vmatpush2.msra.mxu0 0.0
    %3132 = vmatprep.subr.mxu0 0.0
    %3133 = vmatpush2.msra.mxu0 0.0
    %3134 = vmatprep.mubr.f32.mxu0 0.0
    %3135 = vmatmul.mubr.f32.gmra.mxu0 %v2605
    %v3136 = vpop.f32.mrf.mxu0
    %v3137 = vadd.f32 %v3068, %v3136
    %v3138 = vpop.f32.mrf.mxu0
    %3139 = vmatprep.mubr.f32.mxu0 0.0
    %3140 = vmatmul.mubr.f32.gmra.mxu0 %v2608
    %v3141 = vpop.f32.mrf.mxu0
    %v3142 = vadd.f32 %v3068, %v3141
    %v3143 = vpop.f32.mrf.mxu0
    %3144 = vdwg.mxu0
    %s3145 = scalar_lea.vmem %s4, 544
    %v3146 = vld [vmem:[%s3145] sm:$0xff]
    %v3147 = vld [vmem:[%s3145 + $0x8] sm:$0xff]
    %v3148 = vld [vmem:[%s3145 + $0x10] sm:$0xff]
    %v3149 = vld [vmem:[%s3145 + $0x18] sm:$0xff]
    %s3150 = scalar_lea.vmem %s5, 17
    %v3151 = vld [vmem:[%s3150] sm:$0x1]
    %v3153 = vlaneseq
    %v3154 = vshrl.u32 %v3153, 7
    %v3155 = vsub.s32 0, %v3154
    %v3156 = vrot.slane %v3151, %v3155
    %3158 = vmatprep.subr.mxu0 0.0
    %3159 = vmatpush1.msra.mxu0 0.0
    %3160 = vmatprep.subr.mxu0 0.0
    %3161 = vmatpush1.msra.mxu0 0.0
    %3162 = vmatprep.subr.mxu0 0.0
    %3163 = vmatpush1.msra.mxu0 0.0
    %3164 = vmatprep.subr.mxu0 0.0
    %3165 = vmatpush1.msra.mxu0 0.0
    %3166 = vmatprep.subr.mxu0 0.0
    %3167 = vmatpush1.msra.mxu0 0.0
    %3168 = vmatprep.subr.mxu0 0.0
    %3169 = vmatpush1.msra.mxu0 0.0
    %3170 = vmatprep.subr.mxu0 0.0
    %3171 = vmatpush1.msra.mxu0 0.0
    %3172 = vmatprep.subr.mxu0 0.0
    %3173 = vmatpush1.msra.mxu0 0.0
    %3174 = vmatprep.subr.mxu0 0.0
    %3175 = vmatpush1.msra.mxu0 0.0
    %3176 = vmatprep.subr.mxu0 0.0
    %3177 = vmatpush1.msra.mxu0 0.0
    %3178 = vmatprep.subr.mxu0 0.0
    %3179 = vmatpush1.msra.mxu0 0.0
    %3180 = vmatprep.subr.mxu0 0.0
    %3181 = vmatpush1.msra.mxu0 0.0
    %3182 = vmatprep.subr.mxu0 0.0
    %3183 = vmatpush1.msra.mxu0 %v3149
    %3184 = vmatprep.subr.mxu0 0.0
    %3185 = vmatpush1.msra.mxu0 %v3148
    %3186 = vmatprep.subr.mxu0 0.0
    %3187 = vmatpush1.msra.mxu0 %v3147
    %3188 = vmatprep.subr.mxu0 0.0
    %3189 = vmatpush1.msra.mxu0 %v3146
    %3190 = vmatprep.subr.mxu0 0.0
    %3191 = vmatpush2.msra.mxu0 0.0
    %3192 = vmatprep.subr.mxu0 0.0
    %3193 = vmatpush2.msra.mxu0 0.0
    %3194 = vmatprep.subr.mxu0 0.0
    %3195 = vmatpush2.msra.mxu0 0.0
    %3196 = vmatprep.subr.mxu0 0.0
    %3197 = vmatpush2.msra.mxu0 0.0
    %3198 = vmatprep.subr.mxu0 0.0
    %3199 = vmatpush2.msra.mxu0 0.0
    %3200 = vmatprep.subr.mxu0 0.0
    %3201 = vmatpush2.msra.mxu0 0.0
    %3202 = vmatprep.subr.mxu0 0.0
    %3203 = vmatpush2.msra.mxu0 0.0
    %3204 = vmatprep.subr.mxu0 0.0
    %3205 = vmatpush2.msra.mxu0 0.0
    %3206 = vmatprep.subr.mxu0 0.0
    %3207 = vmatpush2.msra.mxu0 0.0
    %3208 = vmatprep.subr.mxu0 0.0
    %3209 = vmatpush2.msra.mxu0 0.0
    %3210 = vmatprep.subr.mxu0 0.0
    %3211 = vmatpush2.msra.mxu0 0.0
    %3212 = vmatprep.subr.mxu0 0.0
    %3213 = vmatpush2.msra.mxu0 0.0
    %3214 = vmatprep.subr.mxu0 0.0
    %3215 = vmatpush2.msra.mxu0 0.0
    %3216 = vmatprep.subr.mxu0 0.0
    %3217 = vmatpush2.msra.mxu0 0.0
    %3218 = vmatprep.subr.mxu0 0.0
    %3219 = vmatpush2.msra.mxu0 0.0
    %3220 = vmatprep.subr.mxu0 0.0
    %3221 = vmatpush2.msra.mxu0 0.0
    %3222 = vmatprep.mubr.f32.mxu0 0.0
    %3223 = vmatmul.mubr.f32.gmra.mxu0 %v2605
    %v3224 = vpop.f32.mrf.mxu0
    %v3225 = vadd.f32 %v3156, %v3224
    %v3226 = vpop.f32.mrf.mxu0
    %3227 = vmatprep.mubr.f32.mxu0 0.0
    %3228 = vmatmul.mubr.f32.gmra.mxu0 %v2608
    %v3229 = vpop.f32.mrf.mxu0
    %v3230 = vadd.f32 %v3156, %v3229
    %v3231 = vpop.f32.mrf.mxu0
    %3232 = vdwg.mxu0
    %s3233 = scalar_lea.vmem %s4, 672
    %v3234 = vld [vmem:[%s3233] sm:$0xff]
    %v3235 = vld [vmem:[%s3233 + $0x8] sm:$0xff]
    %v3236 = vld [vmem:[%s3233 + $0x10] sm:$0xff]
    %v3237 = vld [vmem:[%s3233 + $0x18] sm:$0xff]
    %s3238 = scalar_lea.vmem %s5, 21
    %v3239 = vld [vmem:[%s3238] sm:$0x1]
    %v3241 = vlaneseq
    %v3242 = vshrl.u32 %v3241, 7
    %v3243 = vsub.s32 0, %v3242
    %v3244 = vrot.slane %v3239, %v3243
    %3246 = vmatprep.subr.mxu0 0.0
    %3247 = vmatpush1.msra.mxu0 0.0
    %3248 = vmatprep.subr.mxu0 0.0
    %3249 = vmatpush1.msra.mxu0 0.0
    %3250 = vmatprep.subr.mxu0 0.0
    %3251 = vmatpush1.msra.mxu0 0.0
    %3252 = vmatprep.subr.mxu0 0.0
    %3253 = vmatpush1.msra.mxu0 0.0
    %3254 = vmatprep.subr.mxu0 0.0
    %3255 = vmatpush1.msra.mxu0 0.0
    %3256 = vmatprep.subr.mxu0 0.0
    %3257 = vmatpush1.msra.mxu0 0.0
    %3258 = vmatprep.subr.mxu0 0.0
    %3259 = vmatpush1.msra.mxu0 0.0
    %3260 = vmatprep.subr.mxu0 0.0
    %3261 = vmatpush1.msra.mxu0 0.0
    %3262 = vmatprep.subr.mxu0 0.0
    %3263 = vmatpush1.msra.mxu0 0.0
    %3264 = vmatprep.subr.mxu0 0.0
    %3265 = vmatpush1.msra.mxu0 0.0
    %3266 = vmatprep.subr.mxu0 0.0
    %3267 = vmatpush1.msra.mxu0 0.0
    %3268 = vmatprep.subr.mxu0 0.0
    %3269 = vmatpush1.msra.mxu0 0.0
    %3270 = vmatprep.subr.mxu0 0.0
    %3271 = vmatpush1.msra.mxu0 %v3237
    %3272 = vmatprep.subr.mxu0 0.0
    %3273 = vmatpush1.msra.mxu0 %v3236
    %3274 = vmatprep.subr.mxu0 0.0
    %3275 = vmatpush1.msra.mxu0 %v3235
    %3276 = vmatprep.subr.mxu0 0.0
    %3277 = vmatpush1.msra.mxu0 %v3234
    %3278 = vmatprep.subr.mxu0 0.0
    %3279 = vmatpush2.msra.mxu0 0.0
    %3280 = vmatprep.subr.mxu0 0.0
    %3281 = vmatpush2.msra.mxu0 0.0
    %3282 = vmatprep.subr.mxu0 0.0
    %3283 = vmatpush2.msra.mxu0 0.0
    %3284 = vmatprep.subr.mxu0 0.0
    %3285 = vmatpush2.msra.mxu0 0.0
    %3286 = vmatprep.subr.mxu0 0.0
    %3287 = vmatpush2.msra.mxu0 0.0
    %3288 = vmatprep.subr.mxu0 0.0
    %3289 = vmatpush2.msra.mxu0 0.0
    %3290 = vmatprep.subr.mxu0 0.0
    %3291 = vmatpush2.msra.mxu0 0.0
    %3292 = vmatprep.subr.mxu0 0.0
    %3293 = vmatpush2.msra.mxu0 0.0
    %3294 = vmatprep.subr.mxu0 0.0
    %3295 = vmatpush2.msra.mxu0 0.0
    %3296 = vmatprep.subr.mxu0 0.0
    %3297 = vmatpush2.msra.mxu0 0.0
    %3298 = vmatprep.subr.mxu0 0.0
    %3299 = vmatpush2.msra.mxu0 0.0
    %3300 = vmatprep.subr.mxu0 0.0
    %3301 = vmatpush2.msra.mxu0 0.0
    %3302 = vmatprep.subr.mxu0 0.0
    %3303 = vmatpush2.msra.mxu0 0.0
    %3304 = vmatprep.subr.mxu0 0.0
    %3305 = vmatpush2.msra.mxu0 0.0
    %3306 = vmatprep.subr.mxu0 0.0
    %3307 = vmatpush2.msra.mxu0 0.0
    %3308 = vmatprep.subr.mxu0 0.0
    %3309 = vmatpush2.msra.mxu0 0.0
    %3310 = vmatprep.mubr.f32.mxu0 0.0
    %3311 = vmatmul.mubr.f32.gmra.mxu0 %v2605
    %v3312 = vpop.f32.mrf.mxu0
    %v3313 = vadd.f32 %v3244, %v3312
    %v3314 = vpop.f32.mrf.mxu0
    %3315 = vmatprep.mubr.f32.mxu0 0.0
    %3316 = vmatmul.mubr.f32.gmra.mxu0 %v2608
    %v3317 = vpop.f32.mrf.mxu0
    %v3318 = vadd.f32 %v3244, %v3317
    %v3319 = vpop.f32.mrf.mxu0
    %3320 = vdwg.mxu0
    %v3322 = vsel %vm378, %v3137, 0
    %v3325 = vsel %vm378, %v3142, 0
    %v3328 = vsel %vm378, %v3225, 0
    %v3331 = vsel %vm378, %v3230, 0
    %3333 = vmatprep.subr.mxu0 0.0
    %3334 = vmatpush1.xpose.msra.mxu0 0.0
    %3335 = vmatprep.subr.mxu0 0.0
    %3336 = vmatpush1.xpose.msra.mxu0 0.0
    %3337 = vmatprep.subr.mxu0 0.0
    %3338 = vmatpush1.xpose.msra.mxu0 0.0
    %3339 = vmatprep.subr.mxu0 0.0
    %3340 = vmatpush1.xpose.msra.mxu0 0.0
    %3341 = vmatprep.subr.mxu0 0.0
    %3342 = vmatpush1.xpose.msra.mxu0 0.0
    %3343 = vmatprep.subr.mxu0 0.0
    %3344 = vmatpush1.xpose.msra.mxu0 0.0
    %3345 = vmatprep.subr.mxu0 0.0
    %3346 = vmatpush1.xpose.msra.mxu0 0.0
    %3347 = vmatprep.subr.mxu0 0.0
    %3348 = vmatpush1.xpose.msra.mxu0 0.0
    %3349 = vmatprep.subr.mxu0 0.0
    %3350 = vmatpush1.xpose.msra.mxu0 0.0
    %3351 = vmatprep.subr.mxu0 0.0
    %3352 = vmatpush1.xpose.msra.mxu0 0.0
    %3353 = vmatprep.subr.mxu0 0.0
    %3354 = vmatpush1.xpose.msra.mxu0 0.0
    %3355 = vmatprep.subr.mxu0 0.0
    %3356 = vmatpush1.xpose.msra.mxu0 0.0
    %3357 = vmatprep.subr.mxu0 0.0
    %3358 = vmatpush1.xpose.msra.mxu0 0.0
    %3359 = vmatprep.subr.mxu0 0.0
    %3360 = vmatpush1.xpose.msra.mxu0 0.0
    %3361 = vmatprep.subr.mxu0 0.0
    %3362 = vmatpush1.xpose.msra.mxu0 %v3331
    %3363 = vmatprep.subr.mxu0 0.0
    %3364 = vmatpush1.xpose.msra.mxu0 %v3328
    %3365 = vmatprep.subr.mxu0 0.0
    %3366 = vmatpush2.xpose.msra.mxu0 0.0
    %3367 = vmatprep.subr.mxu0 0.0
    %3368 = vmatpush2.xpose.msra.mxu0 0.0
    %3369 = vmatprep.subr.mxu0 0.0
    %3370 = vmatpush2.xpose.msra.mxu0 0.0
    %3371 = vmatprep.subr.mxu0 0.0
    %3372 = vmatpush2.xpose.msra.mxu0 0.0
    %3373 = vmatprep.subr.mxu0 0.0
    %3374 = vmatpush2.xpose.msra.mxu0 0.0
    %3375 = vmatprep.subr.mxu0 0.0
    %3376 = vmatpush2.xpose.msra.mxu0 0.0
    %3377 = vmatprep.subr.mxu0 0.0
    %3378 = vmatpush2.xpose.msra.mxu0 0.0
    %3379 = vmatprep.subr.mxu0 0.0
    %3380 = vmatpush2.xpose.msra.mxu0 0.0
    %3381 = vmatprep.subr.mxu0 0.0
    %3382 = vmatpush2.xpose.msra.mxu0 0.0
    %3383 = vmatprep.subr.mxu0 0.0
    %3384 = vmatpush2.xpose.msra.mxu0 0.0
    %3385 = vmatprep.subr.mxu0 0.0
    %3386 = vmatpush2.xpose.msra.mxu0 0.0
    %3387 = vmatprep.subr.mxu0 0.0
    %3388 = vmatpush2.xpose.msra.mxu0 0.0
    %3389 = vmatprep.subr.mxu0 0.0
    %3390 = vmatpush2.xpose.msra.mxu0 0.0
    %3391 = vmatprep.subr.mxu0 0.0
    %3392 = vmatpush2.xpose.msra.mxu0 0.0
    %3393 = vmatprep.subr.mxu0 0.0
    %3394 = vmatpush2.xpose.msra.mxu0 0.0
    %3395 = vmatprep.subr.mxu0 0.0
    %3396 = vmatpush2.xpose.msra.mxu0 0.0
    %3397 = vmatprep.mubr.f32.mxu0 0.0
    %3398 = vmatmul.mubr.f32.gmra.mxu0 %v3322
    %v3399 = vpop.f32.mrf.mxu0
    %v3400 = vadd.f32 0.0, %v3399
    %v3401 = vpop.f32.mrf.mxu0
    %3402 = vmatprep.mubr.f32.mxu0 0.0
    %3403 = vmatmul.mubr.f32.gmra.mxu0 %v3325
    %v3404 = vpop.f32.mrf.mxu0
    %v3405 = vadd.f32 0.0, %v3404
    %v3406 = vpop.f32.mrf.mxu0
    %3407 = vdwg.mxu0
    %v3408 = vmul.f32 %v3400, 0.35355338
    %v3409 = vmul.f32 %v3405, 0.35355338
    %v3410 = vadd.f32 %v3408, %v108
    %v3411 = vadd.f32 %v3409, %v109
    %v3412 = vsel %vm470, %v3410, -inf
    %3413 = vmax.xlane.f32.xlu0 %v3412
    %v3414 = vpop.xlane.xlu0 %3413
    %v3415 = vsel %vm470, %v3411, -inf
    %3416 = vmax.xlane.f32.xlu0 %v3415
    %v3417 = vpop.xlane.xlu0 %3416
    %v3418 = vsub.f32 %v3410, %v3414
    %v3419 = vsub.f32 %v3411, %v3417
    %v3420 = vmul.f32 %v3418, 1.442695
    %v3421 = vpow.pop %v3420
    %v3422 = vmul.f32 %v3419, 1.442695
    %v3423 = vpow.pop %v3422
    %v3424 = vsel %vm470, %v3421, 0.0
    %3425 = vadd.xlane.f32.xlu0 %v3424
    %v3426 = vpop.xlane.xlu0 %3425
    %v3427 = vsel %vm470, %v3423, 0.0
    %3428 = vadd.xlane.f32.xlu0 %v3427
    %v3429 = vpop.xlane.xlu0 %3428
    %v3430 = vrcp.pop %v3426
    %v3431 = vrcp.pop %v3429
    %v3432 = vmul.f32 %v3421, %v3430
    %v3433 = vmul.f32 %v3423, %v3431
    %v3435 = vsel %vm470, %v3432, 0
    %v3438 = vsel %vm470, %v3433, 0
    %3440 = vmatprep.subr.mxu0 0.0
    %3441 = vmatpush1.msra.mxu0 0.0
    %3442 = vmatprep.subr.mxu0 0.0
    %3443 = vmatpush1.msra.mxu0 0.0
    %3444 = vmatprep.subr.mxu0 0.0
    %3445 = vmatpush1.msra.mxu0 0.0
    %3446 = vmatprep.subr.mxu0 0.0
    %3447 = vmatpush1.msra.mxu0 0.0
    %3448 = vmatprep.subr.mxu0 0.0
    %3449 = vmatpush1.msra.mxu0 0.0
    %3450 = vmatprep.subr.mxu0 0.0
    %3451 = vmatpush1.msra.mxu0 0.0
    %3452 = vmatprep.subr.mxu0 0.0
    %3453 = vmatpush1.msra.mxu0 0.0
    %3454 = vmatprep.subr.mxu0 0.0
    %3455 = vmatpush1.msra.mxu0 0.0
    %3456 = vmatprep.subr.mxu0 0.0
    %3457 = vmatpush1.msra.mxu0 0.0
    %3458 = vmatprep.subr.mxu0 0.0
    %3459 = vmatpush1.msra.mxu0 0.0
    %3460 = vmatprep.subr.mxu0 0.0
    %3461 = vmatpush1.msra.mxu0 0.0
    %3462 = vmatprep.subr.mxu0 0.0
    %3463 = vmatpush1.msra.mxu0 0.0
    %3464 = vmatprep.subr.mxu0 0.0
    %3465 = vmatpush1.msra.mxu0 0.0
    %3466 = vmatprep.subr.mxu0 0.0
    %3467 = vmatpush1.msra.mxu0 0.0
    %3468 = vmatprep.subr.mxu0 0.0
    %3469 = vmatpush1.msra.mxu0 %v3318
    %3470 = vmatprep.subr.mxu0 0.0
    %3471 = vmatpush1.msra.mxu0 %v3313
    %3472 = vmatprep.subr.mxu0 0.0
    %3473 = vmatpush2.msra.mxu0 0.0
    %3474 = vmatprep.subr.mxu0 0.0
    %3475 = vmatpush2.msra.mxu0 0.0
    %3476 = vmatprep.subr.mxu0 0.0
    %3477 = vmatpush2.msra.mxu0 0.0
    %3478 = vmatprep.subr.mxu0 0.0
    %3479 = vmatpush2.msra.mxu0 0.0
    %3480 = vmatprep.subr.mxu0 0.0
    %3481 = vmatpush2.msra.mxu0 0.0
    %3482 = vmatprep.subr.mxu0 0.0
    %3483 = vmatpush2.msra.mxu0 0.0
    %3484 = vmatprep.subr.mxu0 0.0
    %3485 = vmatpush2.msra.mxu0 0.0
    %3486 = vmatprep.subr.mxu0 0.0
    %3487 = vmatpush2.msra.mxu0 0.0
    %3488 = vmatprep.subr.mxu0 0.0
    %3489 = vmatpush2.msra.mxu0 0.0
    %3490 = vmatprep.subr.mxu0 0.0
    %3491 = vmatpush2.msra.mxu0 0.0
    %3492 = vmatprep.subr.mxu0 0.0
    %3493 = vmatpush2.msra.mxu0 0.0
    %3494 = vmatprep.subr.mxu0 0.0
    %3495 = vmatpush2.msra.mxu0 0.0
    %3496 = vmatprep.subr.mxu0 0.0
    %3497 = vmatpush2.msra.mxu0 0.0
    %3498 = vmatprep.subr.mxu0 0.0
    %3499 = vmatpush2.msra.mxu0 0.0
    %3500 = vmatprep.subr.mxu0 0.0
    %3501 = vmatpush2.msra.mxu0 0.0
    %3502 = vmatprep.subr.mxu0 0.0
    %3503 = vmatpush2.msra.mxu0 0.0
    %3504 = vmatprep.mubr.f32.mxu0 0.0
    %3505 = vmatmul.mubr.f32.gmra.mxu0 %v3435
    %v3506 = vpop.f32.mrf.mxu0
    %v3507 = vadd.f32 0.0, %v3506
    %v3508 = vpop.f32.mrf.mxu0
    %3509 = vmatprep.mubr.f32.mxu0 0.0
    %3510 = vmatmul.mubr.f32.gmra.mxu0 %v3438
    %v3511 = vpop.f32.mrf.mxu0
    %v3512 = vadd.f32 0.0, %v3511
    %v3513 = vpop.f32.mrf.mxu0
    %3514 = vdwg.mxu0
    %s3515 = scalar_lea.vmem %s6, 40
    %v3516 = vld [vmem:[%s3515] sm:$0xff]
    %v3518 = vsel %vm378, %v3507, 0
    %v3521 = vsel %vm378, %v3512, 0
    %3523 = vmatprep.subr.mxu0 0.0
    %3524 = vmatpush1.msra.mxu0 0.0
    %3525 = vmatprep.subr.mxu0 0.0
    %3526 = vmatpush1.msra.mxu0 0.0
    %3527 = vmatprep.subr.mxu0 0.0
    %3528 = vmatpush1.msra.mxu0 0.0
    %3529 = vmatprep.subr.mxu0 0.0
    %3530 = vmatpush1.msra.mxu0 0.0
    %3531 = vmatprep.subr.mxu0 0.0
    %3532 = vmatpush1.msra.mxu0 0.0
    %3533 = vmatprep.subr.mxu0 0.0
    %3534 = vmatpush1.msra.mxu0 0.0
    %3535 = vmatprep.subr.mxu0 0.0
    %3536 = vmatpush1.msra.mxu0 0.0
    %3537 = vmatprep.subr.mxu0 0.0
    %3538 = vmatpush1.msra.mxu0 0.0
    %3539 = vmatprep.subr.mxu0 0.0
    %3540 = vmatpush1.msra.mxu0 0.0
    %3541 = vmatprep.subr.mxu0 0.0
    %3542 = vmatpush1.msra.mxu0 0.0
    %3543 = vmatprep.subr.mxu0 0.0
    %3544 = vmatpush1.msra.mxu0 0.0
    %3545 = vmatprep.subr.mxu0 0.0
    %3546 = vmatpush1.msra.mxu0 0.0
    %3547 = vmatprep.subr.mxu0 0.0
    %3548 = vmatpush1.msra.mxu0 0.0
    %3549 = vmatprep.subr.mxu0 0.0
    %3550 = vmatpush1.msra.mxu0 0.0
    %3551 = vmatprep.subr.mxu0 0.0
    %3552 = vmatpush1.msra.mxu0 0.0
    %3553 = vmatprep.subr.mxu0 0.0
    %3554 = vmatpush1.msra.mxu0 %v3516
    %3555 = vmatprep.subr.mxu0 0.0
    %3556 = vmatpush2.msra.mxu0 0.0
    %3557 = vmatprep.subr.mxu0 0.0
    %3558 = vmatpush2.msra.mxu0 0.0
    %3559 = vmatprep.subr.mxu0 0.0
    %3560 = vmatpush2.msra.mxu0 0.0
    %3561 = vmatprep.subr.mxu0 0.0
    %3562 = vmatpush2.msra.mxu0 0.0
    %3563 = vmatprep.subr.mxu0 0.0
    %3564 = vmatpush2.msra.mxu0 0.0
    %3565 = vmatprep.subr.mxu0 0.0
    %3566 = vmatpush2.msra.mxu0 0.0
    %3567 = vmatprep.subr.mxu0 0.0
    %3568 = vmatpush2.msra.mxu0 0.0
    %3569 = vmatprep.subr.mxu0 0.0
    %3570 = vmatpush2.msra.mxu0 0.0
    %3571 = vmatprep.subr.mxu0 0.0
    %3572 = vmatpush2.msra.mxu0 0.0
    %3573 = vmatprep.subr.mxu0 0.0
    %3574 = vmatpush2.msra.mxu0 0.0
    %3575 = vmatprep.subr.mxu0 0.0
    %3576 = vmatpush2.msra.mxu0 0.0
    %3577 = vmatprep.subr.mxu0 0.0
    %3578 = vmatpush2.msra.mxu0 0.0
    %3579 = vmatprep.subr.mxu0 0.0
    %3580 = vmatpush2.msra.mxu0 0.0
    %3581 = vmatprep.subr.mxu0 0.0
    %3582 = vmatpush2.msra.mxu0 0.0
    %3583 = vmatprep.subr.mxu0 0.0
    %3584 = vmatpush2.msra.mxu0 0.0
    %3585 = vmatprep.subr.mxu0 0.0
    %3586 = vmatpush2.msra.mxu0 0.0
    %3587 = vmatprep.mubr.f32.mxu0 0.0
    %3588 = vmatmul.mubr.f32.gmra.mxu0 %v3518
    %v3589 = vpop.f32.mrf.mxu0
    %v3590 = vadd.f32 0.0, %v3589
    %v3591 = vpop.f32.mrf.mxu0
    %3592 = vmatprep.mubr.f32.mxu0 0.0
    %3593 = vmatmul.mubr.f32.gmra.mxu0 %v3521
    %v3594 = vpop.f32.mrf.mxu0
    %v3595 = vadd.f32 0.0, %v3594
    %v3596 = vpop.f32.mrf.mxu0
    %3597 = vdwg.mxu0
    %v3599 = vsel %vm378, %v3047, 0
    %v3602 = vsel %vm378, %v3052, 0
    %3604 = vmatprep.subr.mxu0 0.0
    %3605 = vmatpush1.msra.mxu0 0.0
    %3606 = vmatprep.subr.mxu0 0.0
    %3607 = vmatpush1.msra.mxu0 0.0
    %3608 = vmatprep.subr.mxu0 0.0
    %3609 = vmatpush1.msra.mxu0 0.0
    %3610 = vmatprep.subr.mxu0 0.0
    %3611 = vmatpush1.msra.mxu0 0.0
    %3612 = vmatprep.subr.mxu0 0.0
    %3613 = vmatpush1.msra.mxu0 0.0
    %3614 = vmatprep.subr.mxu0 0.0
    %3615 = vmatpush1.msra.mxu0 0.0
    %3616 = vmatprep.subr.mxu0 0.0
    %3617 = vmatpush1.msra.mxu0 0.0
    %3618 = vmatprep.subr.mxu0 0.0
    %3619 = vmatpush1.msra.mxu0 0.0
    %3620 = vmatprep.subr.mxu0 0.0
    %3621 = vmatpush1.msra.mxu0 0.0
    %3622 = vmatprep.subr.mxu0 0.0
    %3623 = vmatpush1.msra.mxu0 0.0
    %3624 = vmatprep.subr.mxu0 0.0
    %3625 = vmatpush1.msra.mxu0 0.0
    %3626 = vmatprep.subr.mxu0 0.0
    %3627 = vmatpush1.msra.mxu0 0.0
    %3628 = vmatprep.subr.mxu0 0.0
    %3629 = vmatpush1.msra.mxu0 0.0
    %3630 = vmatprep.subr.mxu0 0.0
    %3631 = vmatpush1.msra.mxu0 0.0
    %3632 = vmatprep.subr.mxu0 0.0
    %3633 = vmatpush1.msra.mxu0 0.0
    %3634 = vmatprep.subr.mxu0 0.0
    %3635 = vmatpush1.msra.mxu0 %v3056
    %3636 = vmatprep.subr.mxu0 0.0
    %3637 = vmatpush2.msra.mxu0 0.0
    %3638 = vmatprep.subr.mxu0 0.0
    %3639 = vmatpush2.msra.mxu0 0.0
    %3640 = vmatprep.subr.mxu0 0.0
    %3641 = vmatpush2.msra.mxu0 0.0
    %3642 = vmatprep.subr.mxu0 0.0
    %3643 = vmatpush2.msra.mxu0 0.0
    %3644 = vmatprep.subr.mxu0 0.0
    %3645 = vmatpush2.msra.mxu0 0.0
    %3646 = vmatprep.subr.mxu0 0.0
    %3647 = vmatpush2.msra.mxu0 0.0
    %3648 = vmatprep.subr.mxu0 0.0
    %3649 = vmatpush2.msra.mxu0 0.0
    %3650 = vmatprep.subr.mxu0 0.0
    %3651 = vmatpush2.msra.mxu0 0.0
    %3652 = vmatprep.subr.mxu0 0.0
    %3653 = vmatpush2.msra.mxu0 0.0
    %3654 = vmatprep.subr.mxu0 0.0
    %3655 = vmatpush2.msra.mxu0 0.0
    %3656 = vmatprep.subr.mxu0 0.0
    %3657 = vmatpush2.msra.mxu0 0.0
    %3658 = vmatprep.subr.mxu0 0.0
    %3659 = vmatpush2.msra.mxu0 0.0
    %3660 = vmatprep.subr.mxu0 0.0
    %3661 = vmatpush2.msra.mxu0 0.0
    %3662 = vmatprep.subr.mxu0 0.0
    %3663 = vmatpush2.msra.mxu0 0.0
    %3664 = vmatprep.subr.mxu0 0.0
    %3665 = vmatpush2.msra.mxu0 0.0
    %3666 = vmatprep.subr.mxu0 0.0
    %3667 = vmatpush2.msra.mxu0 0.0
    %3668 = vmatprep.mubr.f32.mxu0 0.0
    %3669 = vmatmul.mubr.f32.gmra.mxu0 %v3599
    %v3670 = vpop.f32.mrf.mxu0
    %v3671 = vadd.f32 %v3590, %v3670
    %v3672 = vpop.f32.mrf.mxu0
    %3673 = vmatprep.mubr.f32.mxu0 0.0
    %3674 = vmatmul.mubr.f32.gmra.mxu0 %v3602
    %v3675 = vpop.f32.mrf.mxu0
    %v3676 = vadd.f32 %v3595, %v3675
    %v3677 = vpop.f32.mrf.mxu0
    %3678 = vdwg.mxu0
    %s3679 = scalar_lea.vmem %s4, 448
    %v3680 = vld [vmem:[%s3679] sm:$0xff]
    %v3681 = vld [vmem:[%s3679 + $0x8] sm:$0xff]
    %v3682 = vld [vmem:[%s3679 + $0x10] sm:$0xff]
    %v3683 = vld [vmem:[%s3679 + $0x18] sm:$0xff]
    %s3684 = scalar_lea.vmem %s5, 14
    %v3685 = vld [vmem:[%s3684] sm:$0x1]
    %v3687 = vlaneseq
    %v3688 = vshrl.u32 %v3687, 7
    %v3689 = vsub.s32 0, %v3688
    %v3690 = vrot.slane %v3685, %v3689
    %3692 = vmatprep.subr.mxu0 0.0
    %3693 = vmatpush1.msra.mxu0 0.0
    %3694 = vmatprep.subr.mxu0 0.0
    %3695 = vmatpush1.msra.mxu0 0.0
    %3696 = vmatprep.subr.mxu0 0.0
    %3697 = vmatpush1.msra.mxu0 0.0
    %3698 = vmatprep.subr.mxu0 0.0
    %3699 = vmatpush1.msra.mxu0 0.0
    %3700 = vmatprep.subr.mxu0 0.0
    %3701 = vmatpush1.msra.mxu0 0.0
    %3702 = vmatprep.subr.mxu0 0.0
    %3703 = vmatpush1.msra.mxu0 0.0
    %3704 = vmatprep.subr.mxu0 0.0
    %3705 = vmatpush1.msra.mxu0 0.0
    %3706 = vmatprep.subr.mxu0 0.0
    %3707 = vmatpush1.msra.mxu0 0.0
    %3708 = vmatprep.subr.mxu0 0.0
    %3709 = vmatpush1.msra.mxu0 0.0
    %3710 = vmatprep.subr.mxu0 0.0
    %3711 = vmatpush1.msra.mxu0 0.0
    %3712 = vmatprep.subr.mxu0 0.0
    %3713 = vmatpush1.msra.mxu0 0.0
    %3714 = vmatprep.subr.mxu0 0.0
    %3715 = vmatpush1.msra.mxu0 0.0
    %3716 = vmatprep.subr.mxu0 0.0
    %3717 = vmatpush1.msra.mxu0 %v3683
    %3718 = vmatprep.subr.mxu0 0.0
    %3719 = vmatpush1.msra.mxu0 %v3682
    %3720 = vmatprep.subr.mxu0 0.0
    %3721 = vmatpush1.msra.mxu0 %v3681
    %3722 = vmatprep.subr.mxu0 0.0
    %3723 = vmatpush1.msra.mxu0 %v3680
    %3724 = vmatprep.subr.mxu0 0.0
    %3725 = vmatpush2.msra.mxu0 0.0
    %3726 = vmatprep.subr.mxu0 0.0
    %3727 = vmatpush2.msra.mxu0 0.0
    %3728 = vmatprep.subr.mxu0 0.0
    %3729 = vmatpush2.msra.mxu0 0.0
    %3730 = vmatprep.subr.mxu0 0.0
    %3731 = vmatpush2.msra.mxu0 0.0
    %3732 = vmatprep.subr.mxu0 0.0
    %3733 = vmatpush2.msra.mxu0 0.0
    %3734 = vmatprep.subr.mxu0 0.0
    %3735 = vmatpush2.msra.mxu0 0.0
    %3736 = vmatprep.subr.mxu0 0.0
    %3737 = vmatpush2.msra.mxu0 0.0
    %3738 = vmatprep.subr.mxu0 0.0
    %3739 = vmatpush2.msra.mxu0 0.0
    %3740 = vmatprep.subr.mxu0 0.0
    %3741 = vmatpush2.msra.mxu0 0.0
    %3742 = vmatprep.subr.mxu0 0.0
    %3743 = vmatpush2.msra.mxu0 0.0
    %3744 = vmatprep.subr.mxu0 0.0
    %3745 = vmatpush2.msra.mxu0 0.0
    %3746 = vmatprep.subr.mxu0 0.0
    %3747 = vmatpush2.msra.mxu0 0.0
    %3748 = vmatprep.subr.mxu0 0.0
    %3749 = vmatpush2.msra.mxu0 0.0
    %3750 = vmatprep.subr.mxu0 0.0
    %3751 = vmatpush2.msra.mxu0 0.0
    %3752 = vmatprep.subr.mxu0 0.0
    %3753 = vmatpush2.msra.mxu0 0.0
    %3754 = vmatprep.subr.mxu0 0.0
    %3755 = vmatpush2.msra.mxu0 0.0
    %3756 = vmatprep.mubr.f32.mxu0 0.0
    %3757 = vmatmul.mubr.f32.gmra.mxu0 %v2605
    %v3758 = vpop.f32.mrf.mxu0
    %v3759 = vadd.f32 %v3690, %v3758
    %v3760 = vpop.f32.mrf.mxu0
    %3761 = vmatprep.mubr.f32.mxu0 0.0
    %3762 = vmatmul.mubr.f32.gmra.mxu0 %v2608
    %v3763 = vpop.f32.mrf.mxu0
    %v3764 = vadd.f32 %v3690, %v3763
    %v3765 = vpop.f32.mrf.mxu0
    %3766 = vdwg.mxu0
    %s3767 = scalar_lea.vmem %s4, 576
    %v3768 = vld [vmem:[%s3767] sm:$0xff]
    %v3769 = vld [vmem:[%s3767 + $0x8] sm:$0xff]
    %v3770 = vld [vmem:[%s3767 + $0x10] sm:$0xff]
    %v3771 = vld [vmem:[%s3767 + $0x18] sm:$0xff]
    %s3772 = scalar_lea.vmem %s5, 18
    %v3773 = vld [vmem:[%s3772] sm:$0x1]
    %v3775 = vlaneseq
    %v3776 = vshrl.u32 %v3775, 7
    %v3777 = vsub.s32 0, %v3776
    %v3778 = vrot.slane %v3773, %v3777
    %3780 = vmatprep.subr.mxu0 0.0
    %3781 = vmatpush1.msra.mxu0 0.0
    %3782 = vmatprep.subr.mxu0 0.0
    %3783 = vmatpush1.msra.mxu0 0.0
    %3784 = vmatprep.subr.mxu0 0.0
    %3785 = vmatpush1.msra.mxu0 0.0
    %3786 = vmatprep.subr.mxu0 0.0
    %3787 = vmatpush1.msra.mxu0 0.0
    %3788 = vmatprep.subr.mxu0 0.0
    %3789 = vmatpush1.msra.mxu0 0.0
    %3790 = vmatprep.subr.mxu0 0.0
    %3791 = vmatpush1.msra.mxu0 0.0
    %3792 = vmatprep.subr.mxu0 0.0
    %3793 = vmatpush1.msra.mxu0 0.0
    %3794 = vmatprep.subr.mxu0 0.0
    %3795 = vmatpush1.msra.mxu0 0.0
    %3796 = vmatprep.subr.mxu0 0.0
    %3797 = vmatpush1.msra.mxu0 0.0
    %3798 = vmatprep.subr.mxu0 0.0
    %3799 = vmatpush1.msra.mxu0 0.0
    %3800 = vmatprep.subr.mxu0 0.0
    %3801 = vmatpush1.msra.mxu0 0.0
    %3802 = vmatprep.subr.mxu0 0.0
    %3803 = vmatpush1.msra.mxu0 0.0
    %3804 = vmatprep.subr.mxu0 0.0
    %3805 = vmatpush1.msra.mxu0 %v3771
    %3806 = vmatprep.subr.mxu0 0.0
    %3807 = vmatpush1.msra.mxu0 %v3770
    %3808 = vmatprep.subr.mxu0 0.0
    %3809 = vmatpush1.msra.mxu0 %v3769
    %3810 = vmatprep.subr.mxu0 0.0
    %3811 = vmatpush1.msra.mxu0 %v3768
    %3812 = vmatprep.subr.mxu0 0.0
    %3813 = vmatpush2.msra.mxu0 0.0
    %3814 = vmatprep.subr.mxu0 0.0
    %3815 = vmatpush2.msra.mxu0 0.0
    %3816 = vmatprep.subr.mxu0 0.0
    %3817 = vmatpush2.msra.mxu0 0.0
    %3818 = vmatprep.subr.mxu0 0.0
    %3819 = vmatpush2.msra.mxu0 0.0
    %3820 = vmatprep.subr.mxu0 0.0
    %3821 = vmatpush2.msra.mxu0 0.0
    %3822 = vmatprep.subr.mxu0 0.0
    %3823 = vmatpush2.msra.mxu0 0.0
    %3824 = vmatprep.subr.mxu0 0.0
    %3825 = vmatpush2.msra.mxu0 0.0
    %3826 = vmatprep.subr.mxu0 0.0
    %3827 = vmatpush2.msra.mxu0 0.0
    %3828 = vmatprep.subr.mxu0 0.0
    %3829 = vmatpush2.msra.mxu0 0.0
    %3830 = vmatprep.subr.mxu0 0.0
    %3831 = vmatpush2.msra.mxu0 0.0
    %3832 = vmatprep.subr.mxu0 0.0
    %3833 = vmatpush2.msra.mxu0 0.0
    %3834 = vmatprep.subr.mxu0 0.0
    %3835 = vmatpush2.msra.mxu0 0.0
    %3836 = vmatprep.subr.mxu0 0.0
    %3837 = vmatpush2.msra.mxu0 0.0
    %3838 = vmatprep.subr.mxu0 0.0
    %3839 = vmatpush2.msra.mxu0 0.0
    %3840 = vmatprep.subr.mxu0 0.0
    %3841 = vmatpush2.msra.mxu0 0.0
    %3842 = vmatprep.subr.mxu0 0.0
    %3843 = vmatpush2.msra.mxu0 0.0
    %3844 = vmatprep.mubr.f32.mxu0 0.0
    %3845 = vmatmul.mubr.f32.gmra.mxu0 %v2605
    %v3846 = vpop.f32.mrf.mxu0
    %v3847 = vadd.f32 %v3778, %v3846
    %v3848 = vpop.f32.mrf.mxu0
    %3849 = vmatprep.mubr.f32.mxu0 0.0
    %3850 = vmatmul.mubr.f32.gmra.mxu0 %v2608
    %v3851 = vpop.f32.mrf.mxu0
    %v3852 = vadd.f32 %v3778, %v3851
    %v3853 = vpop.f32.mrf.mxu0
    %3854 = vdwg.mxu0
    %s3855 = scalar_lea.vmem %s4, 704
    %v3856 = vld [vmem:[%s3855] sm:$0xff]
    %v3857 = vld [vmem:[%s3855 + $0x8] sm:$0xff]
    %v3858 = vld [vmem:[%s3855 + $0x10] sm:$0xff]
    %v3859 = vld [vmem:[%s3855 + $0x18] sm:$0xff]
    %s3860 = scalar_lea.vmem %s5, 22
    %v3861 = vld [vmem:[%s3860] sm:$0x1]
    %v3863 = vlaneseq
    %v3864 = vshrl.u32 %v3863, 7
    %v3865 = vsub.s32 0, %v3864
    %v3866 = vrot.slane %v3861, %v3865
    %3868 = vmatprep.subr.mxu0 0.0
    %3869 = vmatpush1.msra.mxu0 0.0
    %3870 = vmatprep.subr.mxu0 0.0
    %3871 = vmatpush1.msra.mxu0 0.0
    %3872 = vmatprep.subr.mxu0 0.0
    %3873 = vmatpush1.msra.mxu0 0.0
    %3874 = vmatprep.subr.mxu0 0.0
    %3875 = vmatpush1.msra.mxu0 0.0
    %3876 = vmatprep.subr.mxu0 0.0
    %3877 = vmatpush1.msra.mxu0 0.0
    %3878 = vmatprep.subr.mxu0 0.0
    %3879 = vmatpush1.msra.mxu0 0.0
    %3880 = vmatprep.subr.mxu0 0.0
    %3881 = vmatpush1.msra.mxu0 0.0
    %3882 = vmatprep.subr.mxu0 0.0
    %3883 = vmatpush1.msra.mxu0 0.0
    %3884 = vmatprep.subr.mxu0 0.0
    %3885 = vmatpush1.msra.mxu0 0.0
    %3886 = vmatprep.subr.mxu0 0.0
    %3887 = vmatpush1.msra.mxu0 0.0
    %3888 = vmatprep.subr.mxu0 0.0
    %3889 = vmatpush1.msra.mxu0 0.0
    %3890 = vmatprep.subr.mxu0 0.0
    %3891 = vmatpush1.msra.mxu0 0.0
    %3892 = vmatprep.subr.mxu0 0.0
    %3893 = vmatpush1.msra.mxu0 %v3859
    %3894 = vmatprep.subr.mxu0 0.0
    %3895 = vmatpush1.msra.mxu0 %v3858
    %3896 = vmatprep.subr.mxu0 0.0
    %3897 = vmatpush1.msra.mxu0 %v3857
    %3898 = vmatprep.subr.mxu0 0.0
    %3899 = vmatpush1.msra.mxu0 %v3856
    %3900 = vmatprep.subr.mxu0 0.0
    %3901 = vmatpush2.msra.mxu0 0.0
    %3902 = vmatprep.subr.mxu0 0.0
    %3903 = vmatpush2.msra.mxu0 0.0
    %3904 = vmatprep.subr.mxu0 0.0
    %3905 = vmatpush2.msra.mxu0 0.0
    %3906 = vmatprep.subr.mxu0 0.0
    %3907 = vmatpush2.msra.mxu0 0.0
    %3908 = vmatprep.subr.mxu0 0.0
    %3909 = vmatpush2.msra.mxu0 0.0
    %3910 = vmatprep.subr.mxu0 0.0
    %3911 = vmatpush2.msra.mxu0 0.0
    %3912 = vmatprep.subr.mxu0 0.0
    %3913 = vmatpush2.msra.mxu0 0.0
    %3914 = vmatprep.subr.mxu0 0.0
    %3915 = vmatpush2.msra.mxu0 0.0
    %3916 = vmatprep.subr.mxu0 0.0
    %3917 = vmatpush2.msra.mxu0 0.0
    %3918 = vmatprep.subr.mxu0 0.0
    %3919 = vmatpush2.msra.mxu0 0.0
    %3920 = vmatprep.subr.mxu0 0.0
    %3921 = vmatpush2.msra.mxu0 0.0
    %3922 = vmatprep.subr.mxu0 0.0
    %3923 = vmatpush2.msra.mxu0 0.0
    %3924 = vmatprep.subr.mxu0 0.0
    %3925 = vmatpush2.msra.mxu0 0.0
    %3926 = vmatprep.subr.mxu0 0.0
    %3927 = vmatpush2.msra.mxu0 0.0
    %3928 = vmatprep.subr.mxu0 0.0
    %3929 = vmatpush2.msra.mxu0 0.0
    %3930 = vmatprep.subr.mxu0 0.0
    %3931 = vmatpush2.msra.mxu0 0.0
    %3932 = vmatprep.mubr.f32.mxu0 0.0
    %3933 = vmatmul.mubr.f32.gmra.mxu0 %v2605
    %v3934 = vpop.f32.mrf.mxu0
    %v3935 = vadd.f32 %v3866, %v3934
    %v3936 = vpop.f32.mrf.mxu0
    %3937 = vmatprep.mubr.f32.mxu0 0.0
    %3938 = vmatmul.mubr.f32.gmra.mxu0 %v2608
    %v3939 = vpop.f32.mrf.mxu0
    %v3940 = vadd.f32 %v3866, %v3939
    %v3941 = vpop.f32.mrf.mxu0
    %3942 = vdwg.mxu0
    %v3944 = vsel %vm378, %v3759, 0
    %v3947 = vsel %vm378, %v3764, 0
    %v3950 = vsel %vm378, %v3847, 0
    %v3953 = vsel %vm378, %v3852, 0
    %3955 = vmatprep.subr.mxu0 0.0
    %3956 = vmatpush1.xpose.msra.mxu0 0.0
    %3957 = vmatprep.subr.mxu0 0.0
    %3958 = vmatpush1.xpose.msra.mxu0 0.0
    %3959 = vmatprep.subr.mxu0 0.0
    %3960 = vmatpush1.xpose.msra.mxu0 0.0
    %3961 = vmatprep.subr.mxu0 0.0
    %3962 = vmatpush1.xpose.msra.mxu0 0.0
    %3963 = vmatprep.subr.mxu0 0.0
    %3964 = vmatpush1.xpose.msra.mxu0 0.0
    %3965 = vmatprep.subr.mxu0 0.0
    %3966 = vmatpush1.xpose.msra.mxu0 0.0
    %3967 = vmatprep.subr.mxu0 0.0
    %3968 = vmatpush1.xpose.msra.mxu0 0.0
    %3969 = vmatprep.subr.mxu0 0.0
    %3970 = vmatpush1.xpose.msra.mxu0 0.0
    %3971 = vmatprep.subr.mxu0 0.0
    %3972 = vmatpush1.xpose.msra.mxu0 0.0
    %3973 = vmatprep.subr.mxu0 0.0
    %3974 = vmatpush1.xpose.msra.mxu0 0.0
    %3975 = vmatprep.subr.mxu0 0.0
    %3976 = vmatpush1.xpose.msra.mxu0 0.0
    %3977 = vmatprep.subr.mxu0 0.0
    %3978 = vmatpush1.xpose.msra.mxu0 0.0
    %3979 = vmatprep.subr.mxu0 0.0
    %3980 = vmatpush1.xpose.msra.mxu0 0.0
    %3981 = vmatprep.subr.mxu0 0.0
    %3982 = vmatpush1.xpose.msra.mxu0 0.0
    %3983 = vmatprep.subr.mxu0 0.0
    %3984 = vmatpush1.xpose.msra.mxu0 %v3953
    %3985 = vmatprep.subr.mxu0 0.0
    %3986 = vmatpush1.xpose.msra.mxu0 %v3950
    %3987 = vmatprep.subr.mxu0 0.0
    %3988 = vmatpush2.xpose.msra.mxu0 0.0
    %3989 = vmatprep.subr.mxu0 0.0
    %3990 = vmatpush2.xpose.msra.mxu0 0.0
    %3991 = vmatprep.subr.mxu0 0.0
    %3992 = vmatpush2.xpose.msra.mxu0 0.0
    %3993 = vmatprep.subr.mxu0 0.0
    %3994 = vmatpush2.xpose.msra.mxu0 0.0
    %3995 = vmatprep.subr.mxu0 0.0
    %3996 = vmatpush2.xpose.msra.mxu0 0.0
    %3997 = vmatprep.subr.mxu0 0.0
    %3998 = vmatpush2.xpose.msra.mxu0 0.0
    %3999 = vmatprep.subr.mxu0 0.0
    %4000 = vmatpush2.xpose.msra.mxu0 0.0
    %4001 = vmatprep.subr.mxu0 0.0
    %4002 = vmatpush2.xpose.msra.mxu0 0.0
    %4003 = vmatprep.subr.mxu0 0.0
    %4004 = vmatpush2.xpose.msra.mxu0 0.0
    %4005 = vmatprep.subr.mxu0 0.0
    %4006 = vmatpush2.xpose.msra.mxu0 0.0
    %4007 = vmatprep.subr.mxu0 0.0
    %4008 = vmatpush2.xpose.msra.mxu0 0.0
    %4009 = vmatprep.subr.mxu0 0.0
    %4010 = vmatpush2.xpose.msra.mxu0 0.0
    %4011 = vmatprep.subr.mxu0 0.0
    %4012 = vmatpush2.xpose.msra.mxu0 0.0
    %4013 = vmatprep.subr.mxu0 0.0
    %4014 = vmatpush2.xpose.msra.mxu0 0.0
    %4015 = vmatprep.subr.mxu0 0.0
    %4016 = vmatpush2.xpose.msra.mxu0 0.0
    %4017 = vmatprep.subr.mxu0 0.0
    %4018 = vmatpush2.xpose.msra.mxu0 0.0
    %4019 = vmatprep.mubr.f32.mxu0 0.0
    %4020 = vmatmul.mubr.f32.gmra.mxu0 %v3944
    %v4021 = vpop.f32.mrf.mxu0
    %v4022 = vadd.f32 0.0, %v4021
    %v4023 = vpop.f32.mrf.mxu0
    %4024 = vmatprep.mubr.f32.mxu0 0.0
    %4025 = vmatmul.mubr.f32.gmra.mxu0 %v3947
    %v4026 = vpop.f32.mrf.mxu0
    %v4027 = vadd.f32 0.0, %v4026
    %v4028 = vpop.f32.mrf.mxu0
    %4029 = vdwg.mxu0
    %v4030 = vmul.f32 %v4022, 0.35355338
    %v4031 = vmul.f32 %v4027, 0.35355338
    %v4032 = vadd.f32 %v4030, %v108
    %v4033 = vadd.f32 %v4031, %v109
    %v4034 = vsel %vm470, %v4032, -inf
    %4035 = vmax.xlane.f32.xlu0 %v4034
    %v4036 = vpop.xlane.xlu0 %4035
    %v4037 = vsel %vm470, %v4033, -inf
    %4038 = vmax.xlane.f32.xlu0 %v4037
    %v4039 = vpop.xlane.xlu0 %4038
    %v4040 = vsub.f32 %v4032, %v4036
    %v4041 = vsub.f32 %v4033, %v4039
    %v4042 = vmul.f32 %v4040, 1.442695
    %v4043 = vpow.pop %v4042
    %v4044 = vmul.f32 %v4041, 1.442695
    %v4045 = vpow.pop %v4044
    %v4046 = vsel %vm470, %v4043, 0.0
    %4047 = vadd.xlane.f32.xlu0 %v4046
    %v4048 = vpop.xlane.xlu0 %4047
    %v4049 = vsel %vm470, %v4045, 0.0
    %4050 = vadd.xlane.f32.xlu0 %v4049
    %v4051 = vpop.xlane.xlu0 %4050
    %v4052 = vrcp.pop %v4048
    %v4053 = vrcp.pop %v4051
    %v4054 = vmul.f32 %v4043, %v4052
    %v4055 = vmul.f32 %v4045, %v4053
    %v4057 = vsel %vm470, %v4054, 0
    %v4060 = vsel %vm470, %v4055, 0
    %4062 = vmatprep.subr.mxu0 0.0
    %4063 = vmatpush1.msra.mxu0 0.0
    %4064 = vmatprep.subr.mxu0 0.0
    %4065 = vmatpush1.msra.mxu0 0.0
    %4066 = vmatprep.subr.mxu0 0.0
    %4067 = vmatpush1.msra.mxu0 0.0
    %4068 = vmatprep.subr.mxu0 0.0
    %4069 = vmatpush1.msra.mxu0 0.0
    %4070 = vmatprep.subr.mxu0 0.0
    %4071 = vmatpush1.msra.mxu0 0.0
    %4072 = vmatprep.subr.mxu0 0.0
    %4073 = vmatpush1.msra.mxu0 0.0
    %4074 = vmatprep.subr.mxu0 0.0
    %4075 = vmatpush1.msra.mxu0 0.0
    %4076 = vmatprep.subr.mxu0 0.0
    %4077 = vmatpush1.msra.mxu0 0.0
    %4078 = vmatprep.subr.mxu0 0.0
    %4079 = vmatpush1.msra.mxu0 0.0
    %4080 = vmatprep.subr.mxu0 0.0
    %4081 = vmatpush1.msra.mxu0 0.0
    %4082 = vmatprep.subr.mxu0 0.0
    %4083 = vmatpush1.msra.mxu0 0.0
    %4084 = vmatprep.subr.mxu0 0.0
    %4085 = vmatpush1.msra.mxu0 0.0
    %4086 = vmatprep.subr.mxu0 0.0
    %4087 = vmatpush1.msra.mxu0 0.0
    %4088 = vmatprep.subr.mxu0 0.0
    %4089 = vmatpush1.msra.mxu0 0.0
    %4090 = vmatprep.subr.mxu0 0.0
    %4091 = vmatpush1.msra.mxu0 %v3940
    %4092 = vmatprep.subr.mxu0 0.0
    %4093 = vmatpush1.msra.mxu0 %v3935
    %4094 = vmatprep.subr.mxu0 0.0
    %4095 = vmatpush2.msra.mxu0 0.0
    %4096 = vmatprep.subr.mxu0 0.0
    %4097 = vmatpush2.msra.mxu0 0.0
    %4098 = vmatprep.subr.mxu0 0.0
    %4099 = vmatpush2.msra.mxu0 0.0
    %4100 = vmatprep.subr.mxu0 0.0
    %4101 = vmatpush2.msra.mxu0 0.0
    %4102 = vmatprep.subr.mxu0 0.0
    %4103 = vmatpush2.msra.mxu0 0.0
    %4104 = vmatprep.subr.mxu0 0.0
    %4105 = vmatpush2.msra.mxu0 0.0
    %4106 = vmatprep.subr.mxu0 0.0
    %4107 = vmatpush2.msra.mxu0 0.0
    %4108 = vmatprep.subr.mxu0 0.0
    %4109 = vmatpush2.msra.mxu0 0.0
    %4110 = vmatprep.subr.mxu0 0.0
    %4111 = vmatpush2.msra.mxu0 0.0
    %4112 = vmatprep.subr.mxu0 0.0
    %4113 = vmatpush2.msra.mxu0 0.0
    %4114 = vmatprep.subr.mxu0 0.0
    %4115 = vmatpush2.msra.mxu0 0.0
    %4116 = vmatprep.subr.mxu0 0.0
    %4117 = vmatpush2.msra.mxu0 0.0
    %4118 = vmatprep.subr.mxu0 0.0
    %4119 = vmatpush2.msra.mxu0 0.0
    %4120 = vmatprep.subr.mxu0 0.0
    %4121 = vmatpush2.msra.mxu0 0.0
    %4122 = vmatprep.subr.mxu0 0.0
    %4123 = vmatpush2.msra.mxu0 0.0
    %4124 = vmatprep.subr.mxu0 0.0
    %4125 = vmatpush2.msra.mxu0 0.0
    %4126 = vmatprep.mubr.f32.mxu0 0.0
    %4127 = vmatmul.mubr.f32.gmra.mxu0 %v4057
    %v4128 = vpop.f32.mrf.mxu0
    %v4129 = vadd.f32 0.0, %v4128
    %v4130 = vpop.f32.mrf.mxu0
    %4131 = vmatprep.mubr.f32.mxu0 0.0
    %4132 = vmatmul.mubr.f32.gmra.mxu0 %v4060
    %v4133 = vpop.f32.mrf.mxu0
    %v4134 = vadd.f32 0.0, %v4133
    %v4135 = vpop.f32.mrf.mxu0
    %4136 = vdwg.mxu0
    %s4137 = scalar_lea.vmem %s6, 48
    %v4138 = vld [vmem:[%s4137] sm:$0xff]
    %v4140 = vsel %vm378, %v4129, 0
    %v4143 = vsel %vm378, %v4134, 0
    %4145 = vmatprep.subr.mxu0 0.0
    %4146 = vmatpush1.msra.mxu0 0.0
    %4147 = vmatprep.subr.mxu0 0.0
    %4148 = vmatpush1.msra.mxu0 0.0
    %4149 = vmatprep.subr.mxu0 0.0
    %4150 = vmatpush1.msra.mxu0 0.0
    %4151 = vmatprep.subr.mxu0 0.0
    %4152 = vmatpush1.msra.mxu0 0.0
    %4153 = vmatprep.subr.mxu0 0.0
    %4154 = vmatpush1.msra.mxu0 0.0
    %4155 = vmatprep.subr.mxu0 0.0
    %4156 = vmatpush1.msra.mxu0 0.0
    %4157 = vmatprep.subr.mxu0 0.0
    %4158 = vmatpush1.msra.mxu0 0.0
    %4159 = vmatprep.subr.mxu0 0.0
    %4160 = vmatpush1.msra.mxu0 0.0
    %4161 = vmatprep.subr.mxu0 0.0
    %4162 = vmatpush1.msra.mxu0 0.0
    %4163 = vmatprep.subr.mxu0 0.0
    %4164 = vmatpush1.msra.mxu0 0.0
    %4165 = vmatprep.subr.mxu0 0.0
    %4166 = vmatpush1.msra.mxu0 0.0
    %4167 = vmatprep.subr.mxu0 0.0
    %4168 = vmatpush1.msra.mxu0 0.0
    %4169 = vmatprep.subr.mxu0 0.0
    %4170 = vmatpush1.msra.mxu0 0.0
    %4171 = vmatprep.subr.mxu0 0.0
    %4172 = vmatpush1.msra.mxu0 0.0
    %4173 = vmatprep.subr.mxu0 0.0
    %4174 = vmatpush1.msra.mxu0 0.0
    %4175 = vmatprep.subr.mxu0 0.0
    %4176 = vmatpush1.msra.mxu0 %v4138
    %4177 = vmatprep.subr.mxu0 0.0
    %4178 = vmatpush2.msra.mxu0 0.0
    %4179 = vmatprep.subr.mxu0 0.0
    %4180 = vmatpush2.msra.mxu0 0.0
    %4181 = vmatprep.subr.mxu0 0.0
    %4182 = vmatpush2.msra.mxu0 0.0
    %4183 = vmatprep.subr.mxu0 0.0
    %4184 = vmatpush2.msra.mxu0 0.0
    %4185 = vmatprep.subr.mxu0 0.0
    %4186 = vmatpush2.msra.mxu0 0.0
    %4187 = vmatprep.subr.mxu0 0.0
    %4188 = vmatpush2.msra.mxu0 0.0
    %4189 = vmatprep.subr.mxu0 0.0
    %4190 = vmatpush2.msra.mxu0 0.0
    %4191 = vmatprep.subr.mxu0 0.0
    %4192 = vmatpush2.msra.mxu0 0.0
    %4193 = vmatprep.subr.mxu0 0.0
    %4194 = vmatpush2.msra.mxu0 0.0
    %4195 = vmatprep.subr.mxu0 0.0
    %4196 = vmatpush2.msra.mxu0 0.0
    %4197 = vmatprep.subr.mxu0 0.0
    %4198 = vmatpush2.msra.mxu0 0.0
    %4199 = vmatprep.subr.mxu0 0.0
    %4200 = vmatpush2.msra.mxu0 0.0
    %4201 = vmatprep.subr.mxu0 0.0
    %4202 = vmatpush2.msra.mxu0 0.0
    %4203 = vmatprep.subr.mxu0 0.0
    %4204 = vmatpush2.msra.mxu0 0.0
    %4205 = vmatprep.subr.mxu0 0.0
    %4206 = vmatpush2.msra.mxu0 0.0
    %4207 = vmatprep.subr.mxu0 0.0
    %4208 = vmatpush2.msra.mxu0 0.0
    %4209 = vmatprep.mubr.f32.mxu0 0.0
    %4210 = vmatmul.mubr.f32.gmra.mxu0 %v4140
    %v4211 = vpop.f32.mrf.mxu0
    %v4212 = vadd.f32 0.0, %v4211
    %v4213 = vpop.f32.mrf.mxu0
    %4214 = vmatprep.mubr.f32.mxu0 0.0
    %4215 = vmatmul.mubr.f32.gmra.mxu0 %v4143
    %v4216 = vpop.f32.mrf.mxu0
    %v4217 = vadd.f32 0.0, %v4216
    %v4218 = vpop.f32.mrf.mxu0
    %4219 = vdwg.mxu0
    %v4220 = vadd.f32 %v3671, %v4212
    %v4221 = vadd.f32 %v3676, %v4217
    %s4222 = scalar_lea.vmem %s4, 480
    %v4223 = vld [vmem:[%s4222] sm:$0xff]
    %v4224 = vld [vmem:[%s4222 + $0x8] sm:$0xff]
    %v4225 = vld [vmem:[%s4222 + $0x10] sm:$0xff]
    %v4226 = vld [vmem:[%s4222 + $0x18] sm:$0xff]
    %s4227 = scalar_lea.vmem %s5, 15
    %v4228 = vld [vmem:[%s4227] sm:$0x1]
    %v4230 = vlaneseq
    %v4231 = vshrl.u32 %v4230, 7
    %v4232 = vsub.s32 0, %v4231
    %v4233 = vrot.slane %v4228, %v4232
    %4235 = vmatprep.subr.mxu0 0.0
    %4236 = vmatpush1.msra.mxu0 0.0
    %4237 = vmatprep.subr.mxu0 0.0
    %4238 = vmatpush1.msra.mxu0 0.0
    %4239 = vmatprep.subr.mxu0 0.0
    %4240 = vmatpush1.msra.mxu0 0.0
    %4241 = vmatprep.subr.mxu0 0.0
    %4242 = vmatpush1.msra.mxu0 0.0
    %4243 = vmatprep.subr.mxu0 0.0
    %4244 = vmatpush1.msra.mxu0 0.0
    %4245 = vmatprep.subr.mxu0 0.0
    %4246 = vmatpush1.msra.mxu0 0.0
    %4247 = vmatprep.subr.mxu0 0.0
    %4248 = vmatpush1.msra.mxu0 0.0
    %4249 = vmatprep.subr.mxu0 0.0
    %4250 = vmatpush1.msra.mxu0 0.0
    %4251 = vmatprep.subr.mxu0 0.0
    %4252 = vmatpush1.msra.mxu0 0.0
    %4253 = vmatprep.subr.mxu0 0.0
    %4254 = vmatpush1.msra.mxu0 0.0
    %4255 = vmatprep.subr.mxu0 0.0
    %4256 = vmatpush1.msra.mxu0 0.0
    %4257 = vmatprep.subr.mxu0 0.0
    %4258 = vmatpush1.msra.mxu0 0.0
    %4259 = vmatprep.subr.mxu0 0.0
    %4260 = vmatpush1.msra.mxu0 %v4226
    %4261 = vmatprep.subr.mxu0 0.0
    %4262 = vmatpush1.msra.mxu0 %v4225
    %4263 = vmatprep.subr.mxu0 0.0
    %4264 = vmatpush1.msra.mxu0 %v4224
    %4265 = vmatprep.subr.mxu0 0.0
    %4266 = vmatpush1.msra.mxu0 %v4223
    %4267 = vmatprep.subr.mxu0 0.0
    %4268 = vmatpush2.msra.mxu0 0.0
    %4269 = vmatprep.subr.mxu0 0.0
    %4270 = vmatpush2.msra.mxu0 0.0
    %4271 = vmatprep.subr.mxu0 0.0
    %4272 = vmatpush2.msra.mxu0 0.0
    %4273 = vmatprep.subr.mxu0 0.0
    %4274 = vmatpush2.msra.mxu0 0.0
    %4275 = vmatprep.subr.mxu0 0.0
    %4276 = vmatpush2.msra.mxu0 0.0
    %4277 = vmatprep.subr.mxu0 0.0
    %4278 = vmatpush2.msra.mxu0 0.0
    %4279 = vmatprep.subr.mxu0 0.0
    %4280 = vmatpush2.msra.mxu0 0.0
    %4281 = vmatprep.subr.mxu0 0.0
    %4282 = vmatpush2.msra.mxu0 0.0
    %4283 = vmatprep.subr.mxu0 0.0
    %4284 = vmatpush2.msra.mxu0 0.0
    %4285 = vmatprep.subr.mxu0 0.0
    %4286 = vmatpush2.msra.mxu0 0.0
    %4287 = vmatprep.subr.mxu0 0.0
    %4288 = vmatpush2.msra.mxu0 0.0
    %4289 = vmatprep.subr.mxu0 0.0
    %4290 = vmatpush2.msra.mxu0 0.0
    %4291 = vmatprep.subr.mxu0 0.0
    %4292 = vmatpush2.msra.mxu0 0.0
    %4293 = vmatprep.subr.mxu0 0.0
    %4294 = vmatpush2.msra.mxu0 0.0
    %4295 = vmatprep.subr.mxu0 0.0
    %4296 = vmatpush2.msra.mxu0 0.0
    %4297 = vmatprep.subr.mxu0 0.0
    %4298 = vmatpush2.msra.mxu0 0.0
    %4299 = vmatprep.mubr.f32.mxu0 0.0
    %4300 = vmatmul.mubr.f32.gmra.mxu0 %v2605
    %v4301 = vpop.f32.mrf.mxu0
    %v4302 = vadd.f32 %v4233, %v4301
    %v4303 = vpop.f32.mrf.mxu0
    %4304 = vmatprep.mubr.f32.mxu0 0.0
    %4305 = vmatmul.mubr.f32.gmra.mxu0 %v2608
    %v4306 = vpop.f32.mrf.mxu0
    %v4307 = vadd.f32 %v4233, %v4306
    %v4308 = vpop.f32.mrf.mxu0
    %4309 = vdwg.mxu0
    %s4310 = scalar_lea.vmem %s4, 608
    %v4311 = vld [vmem:[%s4310] sm:$0xff]
    %v4312 = vld [vmem:[%s4310 + $0x8] sm:$0xff]
    %v4313 = vld [vmem:[%s4310 + $0x10] sm:$0xff]
    %v4314 = vld [vmem:[%s4310 + $0x18] sm:$0xff]
    %s4315 = scalar_lea.vmem %s5, 19
    %v4316 = vld [vmem:[%s4315] sm:$0x1]
    %v4318 = vlaneseq
    %v4319 = vshrl.u32 %v4318, 7
    %v4320 = vsub.s32 0, %v4319
    %v4321 = vrot.slane %v4316, %v4320
    %4323 = vmatprep.subr.mxu0 0.0
    %4324 = vmatpush1.msra.mxu0 0.0
    %4325 = vmatprep.subr.mxu0 0.0
    %4326 = vmatpush1.msra.mxu0 0.0
    %4327 = vmatprep.subr.mxu0 0.0
    %4328 = vmatpush1.msra.mxu0 0.0
    %4329 = vmatprep.subr.mxu0 0.0
    %4330 = vmatpush1.msra.mxu0 0.0
    %4331 = vmatprep.subr.mxu0 0.0
    %4332 = vmatpush1.msra.mxu0 0.0
    %4333 = vmatprep.subr.mxu0 0.0
    %4334 = vmatpush1.msra.mxu0 0.0
    %4335 = vmatprep.subr.mxu0 0.0
    %4336 = vmatpush1.msra.mxu0 0.0
    %4337 = vmatprep.subr.mxu0 0.0
    %4338 = vmatpush1.msra.mxu0 0.0
    %4339 = vmatprep.subr.mxu0 0.0
    %4340 = vmatpush1.msra.mxu0 0.0
    %4341 = vmatprep.subr.mxu0 0.0
    %4342 = vmatpush1.msra.mxu0 0.0
    %4343 = vmatprep.subr.mxu0 0.0
    %4344 = vmatpush1.msra.mxu0 0.0
    %4345 = vmatprep.subr.mxu0 0.0
    %4346 = vmatpush1.msra.mxu0 0.0
    %4347 = vmatprep.subr.mxu0 0.0
    %4348 = vmatpush1.msra.mxu0 %v4314
    %4349 = vmatprep.subr.mxu0 0.0
    %4350 = vmatpush1.msra.mxu0 %v4313
    %4351 = vmatprep.subr.mxu0 0.0
    %4352 = vmatpush1.msra.mxu0 %v4312
    %4353 = vmatprep.subr.mxu0 0.0
    %4354 = vmatpush1.msra.mxu0 %v4311
    %4355 = vmatprep.subr.mxu0 0.0
    %4356 = vmatpush2.msra.mxu0 0.0
    %4357 = vmatprep.subr.mxu0 0.0
    %4358 = vmatpush2.msra.mxu0 0.0
    %4359 = vmatprep.subr.mxu0 0.0
    %4360 = vmatpush2.msra.mxu0 0.0
    %4361 = vmatprep.subr.mxu0 0.0
    %4362 = vmatpush2.msra.mxu0 0.0
    %4363 = vmatprep.subr.mxu0 0.0
    %4364 = vmatpush2.msra.mxu0 0.0
    %4365 = vmatprep.subr.mxu0 0.0
    %4366 = vmatpush2.msra.mxu0 0.0
    %4367 = vmatprep.subr.mxu0 0.0
    %4368 = vmatpush2.msra.mxu0 0.0
    %4369 = vmatprep.subr.mxu0 0.0
    %4370 = vmatpush2.msra.mxu0 0.0
    %4371 = vmatprep.subr.mxu0 0.0
    %4372 = vmatpush2.msra.mxu0 0.0
    %4373 = vmatprep.subr.mxu0 0.0
    %4374 = vmatpush2.msra.mxu0 0.0
    %4375 = vmatprep.subr.mxu0 0.0
    %4376 = vmatpush2.msra.mxu0 0.0
    %4377 = vmatprep.subr.mxu0 0.0
    %4378 = vmatpush2.msra.mxu0 0.0
    %4379 = vmatprep.subr.mxu0 0.0
    %4380 = vmatpush2.msra.mxu0 0.0
    %4381 = vmatprep.subr.mxu0 0.0
    %4382 = vmatpush2.msra.mxu0 0.0
    %4383 = vmatprep.subr.mxu0 0.0
    %4384 = vmatpush2.msra.mxu0 0.0
    %4385 = vmatprep.subr.mxu0 0.0
    %4386 = vmatpush2.msra.mxu0 0.0
    %4387 = vmatprep.mubr.f32.mxu0 0.0
    %4388 = vmatmul.mubr.f32.gmra.mxu0 %v2605
    %v4389 = vpop.f32.mrf.mxu0
    %v4390 = vadd.f32 %v4321, %v4389
    %v4391 = vpop.f32.mrf.mxu0
    %4392 = vmatprep.mubr.f32.mxu0 0.0
    %4393 = vmatmul.mubr.f32.gmra.mxu0 %v2608
    %v4394 = vpop.f32.mrf.mxu0
    %v4395 = vadd.f32 %v4321, %v4394
    %v4396 = vpop.f32.mrf.mxu0
    %4397 = vdwg.mxu0
    %s4398 = scalar_lea.vmem %s4, 736
    %v4399 = vld [vmem:[%s4398] sm:$0xff]
    %v4400 = vld [vmem:[%s4398 + $0x8] sm:$0xff]
    %v4401 = vld [vmem:[%s4398 + $0x10] sm:$0xff]
    %v4402 = vld [vmem:[%s4398 + $0x18] sm:$0xff]
    %s4403 = scalar_lea.vmem %s5, 23
    %v4404 = vld [vmem:[%s4403] sm:$0x1]
    %v4406 = vlaneseq
    %v4407 = vshrl.u32 %v4406, 7
    %v4408 = vsub.s32 0, %v4407
    %v4409 = vrot.slane %v4404, %v4408
    %4411 = vmatprep.subr.mxu0 0.0
    %4412 = vmatpush1.msra.mxu0 0.0
    %4413 = vmatprep.subr.mxu0 0.0
    %4414 = vmatpush1.msra.mxu0 0.0
    %4415 = vmatprep.subr.mxu0 0.0
    %4416 = vmatpush1.msra.mxu0 0.0
    %4417 = vmatprep.subr.mxu0 0.0
    %4418 = vmatpush1.msra.mxu0 0.0
    %4419 = vmatprep.subr.mxu0 0.0
    %4420 = vmatpush1.msra.mxu0 0.0
    %4421 = vmatprep.subr.mxu0 0.0
    %4422 = vmatpush1.msra.mxu0 0.0
    %4423 = vmatprep.subr.mxu0 0.0
    %4424 = vmatpush1.msra.mxu0 0.0
    %4425 = vmatprep.subr.mxu0 0.0
    %4426 = vmatpush1.msra.mxu0 0.0
    %4427 = vmatprep.subr.mxu0 0.0
    %4428 = vmatpush1.msra.mxu0 0.0
    %4429 = vmatprep.subr.mxu0 0.0
    %4430 = vmatpush1.msra.mxu0 0.0
    %4431 = vmatprep.subr.mxu0 0.0
    %4432 = vmatpush1.msra.mxu0 0.0
    %4433 = vmatprep.subr.mxu0 0.0
    %4434 = vmatpush1.msra.mxu0 0.0
    %4435 = vmatprep.subr.mxu0 0.0
    %4436 = vmatpush1.msra.mxu0 %v4402
    %4437 = vmatprep.subr.mxu0 0.0
    %4438 = vmatpush1.msra.mxu0 %v4401
    %4439 = vmatprep.subr.mxu0 0.0
    %4440 = vmatpush1.msra.mxu0 %v4400
    %4441 = vmatprep.subr.mxu0 0.0
    %4442 = vmatpush1.msra.mxu0 %v4399
    %4443 = vmatprep.subr.mxu0 0.0
    %4444 = vmatpush2.msra.mxu0 0.0
    %4445 = vmatprep.subr.mxu0 0.0
    %4446 = vmatpush2.msra.mxu0 0.0
    %4447 = vmatprep.subr.mxu0 0.0
    %4448 = vmatpush2.msra.mxu0 0.0
    %4449 = vmatprep.subr.mxu0 0.0
    %4450 = vmatpush2.msra.mxu0 0.0
    %4451 = vmatprep.subr.mxu0 0.0
    %4452 = vmatpush2.msra.mxu0 0.0
    %4453 = vmatprep.subr.mxu0 0.0
    %4454 = vmatpush2.msra.mxu0 0.0
    %4455 = vmatprep.subr.mxu0 0.0
    %4456 = vmatpush2.msra.mxu0 0.0
    %4457 = vmatprep.subr.mxu0 0.0
    %4458 = vmatpush2.msra.mxu0 0.0
    %4459 = vmatprep.subr.mxu0 0.0
    %4460 = vmatpush2.msra.mxu0 0.0
    %4461 = vmatprep.subr.mxu0 0.0
    %4462 = vmatpush2.msra.mxu0 0.0
    %4463 = vmatprep.subr.mxu0 0.0
    %4464 = vmatpush2.msra.mxu0 0.0
    %4465 = vmatprep.subr.mxu0 0.0
    %4466 = vmatpush2.msra.mxu0 0.0
    %4467 = vmatprep.subr.mxu0 0.0
    %4468 = vmatpush2.msra.mxu0 0.0
    %4469 = vmatprep.subr.mxu0 0.0
    %4470 = vmatpush2.msra.mxu0 0.0
    %4471 = vmatprep.subr.mxu0 0.0
    %4472 = vmatpush2.msra.mxu0 0.0
    %4473 = vmatprep.subr.mxu0 0.0
    %4474 = vmatpush2.msra.mxu0 0.0
    %4475 = vmatprep.mubr.f32.mxu0 0.0
    %4476 = vmatmul.mubr.f32.gmra.mxu0 %v2605
    %v4477 = vpop.f32.mrf.mxu0
    %v4478 = vadd.f32 %v4409, %v4477
    %v4479 = vpop.f32.mrf.mxu0
    %4480 = vmatprep.mubr.f32.mxu0 0.0
    %4481 = vmatmul.mubr.f32.gmra.mxu0 %v2608
    %v4482 = vpop.f32.mrf.mxu0
    %v4483 = vadd.f32 %v4409, %v4482
    %v4484 = vpop.f32.mrf.mxu0
    %4485 = vdwg.mxu0
    %v4487 = vsel %vm378, %v4302, 0
    %v4490 = vsel %vm378, %v4307, 0
    %v4493 = vsel %vm378, %v4390, 0
    %v4496 = vsel %vm378, %v4395, 0
    %4498 = vmatprep.subr.mxu0 0.0
    %4499 = vmatpush1.xpose.msra.mxu0 0.0
    %4500 = vmatprep.subr.mxu0 0.0
    %4501 = vmatpush1.xpose.msra.mxu0 0.0
    %4502 = vmatprep.subr.mxu0 0.0
    %4503 = vmatpush1.xpose.msra.mxu0 0.0
    %4504 = vmatprep.subr.mxu0 0.0
    %4505 = vmatpush1.xpose.msra.mxu0 0.0
    %4506 = vmatprep.subr.mxu0 0.0
    %4507 = vmatpush1.xpose.msra.mxu0 0.0
    %4508 = vmatprep.subr.mxu0 0.0
    %4509 = vmatpush1.xpose.msra.mxu0 0.0
    %4510 = vmatprep.subr.mxu0 0.0
    %4511 = vmatpush1.xpose.msra.mxu0 0.0
    %4512 = vmatprep.subr.mxu0 0.0
    %4513 = vmatpush1.xpose.msra.mxu0 0.0
    %4514 = vmatprep.subr.mxu0 0.0
    %4515 = vmatpush1.xpose.msra.mxu0 0.0
    %4516 = vmatprep.subr.mxu0 0.0
    %4517 = vmatpush1.xpose.msra.mxu0 0.0
    %4518 = vmatprep.subr.mxu0 0.0
    %4519 = vmatpush1.xpose.msra.mxu0 0.0
    %4520 = vmatprep.subr.mxu0 0.0
    %4521 = vmatpush1.xpose.msra.mxu0 0.0
    %4522 = vmatprep.subr.mxu0 0.0
    %4523 = vmatpush1.xpose.msra.mxu0 0.0
    %4524 = vmatprep.subr.mxu0 0.0
    %4525 = vmatpush1.xpose.msra.mxu0 0.0
    %4526 = vmatprep.subr.mxu0 0.0
    %4527 = vmatpush1.xpose.msra.mxu0 %v4496
    %4528 = vmatprep.subr.mxu0 0.0
    %4529 = vmatpush1.xpose.msra.mxu0 %v4493
    %4530 = vmatprep.subr.mxu0 0.0
    %4531 = vmatpush2.xpose.msra.mxu0 0.0
    %4532 = vmatprep.subr.mxu0 0.0
    %4533 = vmatpush2.xpose.msra.mxu0 0.0
    %4534 = vmatprep.subr.mxu0 0.0
    %4535 = vmatpush2.xpose.msra.mxu0 0.0
    %4536 = vmatprep.subr.mxu0 0.0
    %4537 = vmatpush2.xpose.msra.mxu0 0.0
    %4538 = vmatprep.subr.mxu0 0.0
    %4539 = vmatpush2.xpose.msra.mxu0 0.0
    %4540 = vmatprep.subr.mxu0 0.0
    %4541 = vmatpush2.xpose.msra.mxu0 0.0
    %4542 = vmatprep.subr.mxu0 0.0
    %4543 = vmatpush2.xpose.msra.mxu0 0.0
    %4544 = vmatprep.subr.mxu0 0.0
    %4545 = vmatpush2.xpose.msra.mxu0 0.0
    %4546 = vmatprep.subr.mxu0 0.0
    %4547 = vmatpush2.xpose.msra.mxu0 0.0
    %4548 = vmatprep.subr.mxu0 0.0
    %4549 = vmatpush2.xpose.msra.mxu0 0.0
    %4550 = vmatprep.subr.mxu0 0.0
    %4551 = vmatpush2.xpose.msra.mxu0 0.0
    %4552 = vmatprep.subr.mxu0 0.0
    %4553 = vmatpush2.xpose.msra.mxu0 0.0
    %4554 = vmatprep.subr.mxu0 0.0
    %4555 = vmatpush2.xpose.msra.mxu0 0.0
    %4556 = vmatprep.subr.mxu0 0.0
    %4557 = vmatpush2.xpose.msra.mxu0 0.0
    %4558 = vmatprep.subr.mxu0 0.0
    %4559 = vmatpush2.xpose.msra.mxu0 0.0
    %4560 = vmatprep.subr.mxu0 0.0
    %4561 = vmatpush2.xpose.msra.mxu0 0.0
    %4562 = vmatprep.mubr.f32.mxu0 0.0
    %4563 = vmatmul.mubr.f32.gmra.mxu0 %v4487
    %v4564 = vpop.f32.mrf.mxu0
    %v4565 = vadd.f32 0.0, %v4564
    %v4566 = vpop.f32.mrf.mxu0
    %4567 = vmatprep.mubr.f32.mxu0 0.0
    %4568 = vmatmul.mubr.f32.gmra.mxu0 %v4490
    %v4569 = vpop.f32.mrf.mxu0
    %v4570 = vadd.f32 0.0, %v4569
    %v4571 = vpop.f32.mrf.mxu0
    %4572 = vdwg.mxu0
    %v4573 = vmul.f32 %v4565, 0.35355338
    %v4574 = vmul.f32 %v4570, 0.35355338
    %v4575 = vadd.f32 %v4573, %v108
    %v4576 = vadd.f32 %v4574, %v109
    %v4577 = vsel %vm470, %v4575, -inf
    %4578 = vmax.xlane.f32.xlu0 %v4577
    %v4579 = vpop.xlane.xlu0 %4578
    %v4580 = vsel %vm470, %v4576, -inf
    %4581 = vmax.xlane.f32.xlu0 %v4580
    %v4582 = vpop.xlane.xlu0 %4581
    %v4583 = vsub.f32 %v4575, %v4579
    %v4584 = vsub.f32 %v4576, %v4582
    %v4585 = vmul.f32 %v4583, 1.442695
    %v4586 = vpow.pop %v4585
    %v4587 = vmul.f32 %v4584, 1.442695
    %v4588 = vpow.pop %v4587
    %v4589 = vsel %vm470, %v4586, 0.0
    %4590 = vadd.xlane.f32.xlu0 %v4589
    %v4591 = vpop.xlane.xlu0 %4590
    %v4592 = vsel %vm470, %v4588, 0.0
    %4593 = vadd.xlane.f32.xlu0 %v4592
    %v4594 = vpop.xlane.xlu0 %4593
    %v4595 = vrcp.pop %v4591
    %v4596 = vrcp.pop %v4594
    %v4597 = vmul.f32 %v4586, %v4595
    %v4598 = vmul.f32 %v4588, %v4596
    %v4600 = vsel %vm470, %v4597, 0
    %v4603 = vsel %vm470, %v4598, 0
    %4605 = vmatprep.subr.mxu0 0.0
    %4606 = vmatpush1.msra.mxu0 0.0
    %4607 = vmatprep.subr.mxu0 0.0
    %4608 = vmatpush1.msra.mxu0 0.0
    %4609 = vmatprep.subr.mxu0 0.0
    %4610 = vmatpush1.msra.mxu0 0.0
    %4611 = vmatprep.subr.mxu0 0.0
    %4612 = vmatpush1.msra.mxu0 0.0
    %4613 = vmatprep.subr.mxu0 0.0
    %4614 = vmatpush1.msra.mxu0 0.0
    %4615 = vmatprep.subr.mxu0 0.0
    %4616 = vmatpush1.msra.mxu0 0.0
    %4617 = vmatprep.subr.mxu0 0.0
    %4618 = vmatpush1.msra.mxu0 0.0
    %4619 = vmatprep.subr.mxu0 0.0
    %4620 = vmatpush1.msra.mxu0 0.0
    %4621 = vmatprep.subr.mxu0 0.0
    %4622 = vmatpush1.msra.mxu0 0.0
    %4623 = vmatprep.subr.mxu0 0.0
    %4624 = vmatpush1.msra.mxu0 0.0
    %4625 = vmatprep.subr.mxu0 0.0
    %4626 = vmatpush1.msra.mxu0 0.0
    %4627 = vmatprep.subr.mxu0 0.0
    %4628 = vmatpush1.msra.mxu0 0.0
    %4629 = vmatprep.subr.mxu0 0.0
    %4630 = vmatpush1.msra.mxu0 0.0
    %4631 = vmatprep.subr.mxu0 0.0
    %4632 = vmatpush1.msra.mxu0 0.0
    %4633 = vmatprep.subr.mxu0 0.0
    %4634 = vmatpush1.msra.mxu0 %v4483
    %4635 = vmatprep.subr.mxu0 0.0
    %4636 = vmatpush1.msra.mxu0 %v4478
    %4637 = vmatprep.subr.mxu0 0.0
    %4638 = vmatpush2.msra.mxu0 0.0
    %4639 = vmatprep.subr.mxu0 0.0
    %4640 = vmatpush2.msra.mxu0 0.0
    %4641 = vmatprep.subr.mxu0 0.0
    %4642 = vmatpush2.msra.mxu0 0.0
    %4643 = vmatprep.subr.mxu0 0.0
    %4644 = vmatpush2.msra.mxu0 0.0
    %4645 = vmatprep.subr.mxu0 0.0
    %4646 = vmatpush2.msra.mxu0 0.0
    %4647 = vmatprep.subr.mxu0 0.0
    %4648 = vmatpush2.msra.mxu0 0.0
    %4649 = vmatprep.subr.mxu0 0.0
    %4650 = vmatpush2.msra.mxu0 0.0
    %4651 = vmatprep.subr.mxu0 0.0
    %4652 = vmatpush2.msra.mxu0 0.0
    %4653 = vmatprep.subr.mxu0 0.0
    %4654 = vmatpush2.msra.mxu0 0.0
    %4655 = vmatprep.subr.mxu0 0.0
    %4656 = vmatpush2.msra.mxu0 0.0
    %4657 = vmatprep.subr.mxu0 0.0
    %4658 = vmatpush2.msra.mxu0 0.0
    %4659 = vmatprep.subr.mxu0 0.0
    %4660 = vmatpush2.msra.mxu0 0.0
    %4661 = vmatprep.subr.mxu0 0.0
    %4662 = vmatpush2.msra.mxu0 0.0
    %4663 = vmatprep.subr.mxu0 0.0
    %4664 = vmatpush2.msra.mxu0 0.0
    %4665 = vmatprep.subr.mxu0 0.0
    %4666 = vmatpush2.msra.mxu0 0.0
    %4667 = vmatprep.subr.mxu0 0.0
    %4668 = vmatpush2.msra.mxu0 0.0
    %4669 = vmatprep.mubr.f32.mxu0 0.0
    %4670 = vmatmul.mubr.f32.gmra.mxu0 %v4600
    %v4671 = vpop.f32.mrf.mxu0
    %v4672 = vadd.f32 0.0, %v4671
    %v4673 = vpop.f32.mrf.mxu0
    %4674 = vmatprep.mubr.f32.mxu0 0.0
    %4675 = vmatmul.mubr.f32.gmra.mxu0 %v4603
    %v4676 = vpop.f32.mrf.mxu0
    %v4677 = vadd.f32 0.0, %v4676
    %v4678 = vpop.f32.mrf.mxu0
    %4679 = vdwg.mxu0
    %s4680 = scalar_lea.vmem %s6, 56
    %v4681 = vld [vmem:[%s4680] sm:$0xff]
    %v4683 = vsel %vm378, %v4672, 0
    %v4686 = vsel %vm378, %v4677, 0
    %4688 = vmatprep.subr.mxu0 0.0
    %4689 = vmatpush1.msra.mxu0 0.0
    %4690 = vmatprep.subr.mxu0 0.0
    %4691 = vmatpush1.msra.mxu0 0.0
    %4692 = vmatprep.subr.mxu0 0.0
    %4693 = vmatpush1.msra.mxu0 0.0
    %4694 = vmatprep.subr.mxu0 0.0
    %4695 = vmatpush1.msra.mxu0 0.0
    %4696 = vmatprep.subr.mxu0 0.0
    %4697 = vmatpush1.msra.mxu0 0.0
    %4698 = vmatprep.subr.mxu0 0.0
    %4699 = vmatpush1.msra.mxu0 0.0
    %4700 = vmatprep.subr.mxu0 0.0
    %4701 = vmatpush1.msra.mxu0 0.0
    %4702 = vmatprep.subr.mxu0 0.0
    %4703 = vmatpush1.msra.mxu0 0.0
    %4704 = vmatprep.subr.mxu0 0.0
    %4705 = vmatpush1.msra.mxu0 0.0
    %4706 = vmatprep.subr.mxu0 0.0
    %4707 = vmatpush1.msra.mxu0 0.0
    %4708 = vmatprep.subr.mxu0 0.0
    %4709 = vmatpush1.msra.mxu0 0.0
    %4710 = vmatprep.subr.mxu0 0.0
    %4711 = vmatpush1.msra.mxu0 0.0
    %4712 = vmatprep.subr.mxu0 0.0
    %4713 = vmatpush1.msra.mxu0 0.0
    %4714 = vmatprep.subr.mxu0 0.0
    %4715 = vmatpush1.msra.mxu0 0.0
    %4716 = vmatprep.subr.mxu0 0.0
    %4717 = vmatpush1.msra.mxu0 0.0
    %4718 = vmatprep.subr.mxu0 0.0
    %4719 = vmatpush1.msra.mxu0 %v4681
    %4720 = vmatprep.subr.mxu0 0.0
    %4721 = vmatpush2.msra.mxu0 0.0
    %4722 = vmatprep.subr.mxu0 0.0
    %4723 = vmatpush2.msra.mxu0 0.0
    %4724 = vmatprep.subr.mxu0 0.0
    %4725 = vmatpush2.msra.mxu0 0.0
    %4726 = vmatprep.subr.mxu0 0.0
    %4727 = vmatpush2.msra.mxu0 0.0
    %4728 = vmatprep.subr.mxu0 0.0
    %4729 = vmatpush2.msra.mxu0 0.0
    %4730 = vmatprep.subr.mxu0 0.0
    %4731 = vmatpush2.msra.mxu0 0.0
    %4732 = vmatprep.subr.mxu0 0.0
    %4733 = vmatpush2.msra.mxu0 0.0
    %4734 = vmatprep.subr.mxu0 0.0
    %4735 = vmatpush2.msra.mxu0 0.0
    %4736 = vmatprep.subr.mxu0 0.0
    %4737 = vmatpush2.msra.mxu0 0.0
    %4738 = vmatprep.subr.mxu0 0.0
    %4739 = vmatpush2.msra.mxu0 0.0
    %4740 = vmatprep.subr.mxu0 0.0
    %4741 = vmatpush2.msra.mxu0 0.0
    %4742 = vmatprep.subr.mxu0 0.0
    %4743 = vmatpush2.msra.mxu0 0.0
    %4744 = vmatprep.subr.mxu0 0.0
    %4745 = vmatpush2.msra.mxu0 0.0
    %4746 = vmatprep.subr.mxu0 0.0
    %4747 = vmatpush2.msra.mxu0 0.0
    %4748 = vmatprep.subr.mxu0 0.0
    %4749 = vmatpush2.msra.mxu0 0.0
    %4750 = vmatprep.subr.mxu0 0.0
    %4751 = vmatpush2.msra.mxu0 0.0
    %4752 = vmatprep.mubr.f32.mxu0 0.0
    %4753 = vmatmul.mubr.f32.gmra.mxu0 %v4683
    %v4754 = vpop.f32.mrf.mxu0
    %v4755 = vadd.f32 0.0, %v4754
    %v4756 = vpop.f32.mrf.mxu0
    %4757 = vmatprep.mubr.f32.mxu0 0.0
    %4758 = vmatmul.mubr.f32.gmra.mxu0 %v4686
    %v4759 = vpop.f32.mrf.mxu0
    %v4760 = vadd.f32 0.0, %v4759
    %v4761 = vpop.f32.mrf.mxu0
    %4762 = vdwg.mxu0
    %v4763 = vadd.f32 %v4220, %v4755
    %v4764 = vadd.f32 %v4221, %v4760
    %s4765 = scalar_lea.vmem %s7, 1
    %v4766 = vld [vmem:[%s4765] sm:$0x1]
    %v4768 = vlaneseq
    %v4769 = vshrl.u32 %v4768, 7
    %v4770 = vsub.s32 0, %v4769
    %v4771 = vrot.slane %v4766, %v4770
    %v4773 = vadd.f32 %v4763, %v4771
    %v4774 = vadd.f32 %v4764, %v4771
    %v4775 = vadd.f32 %v4773, %v2589
    %v4776 = vadd.f32 %v4774, %v2590
    %s4777 = scalar_lea.vmem %s8, 1
    %v4778 = vld [vmem:[%s4777] sm:$0x1]
    %s4779 = scalar_lea.vmem %s9, 1
    %v4780 = vld [vmem:[%s4779] sm:$0x1]
    %v4781 = vsel %vm64, %v4775, 0.0
    %4782 = vadd.xlane.f32.xlu0 %v4781
    %v4783 = vpop.xlane.xlu0 %4782
    %v4784 = vsel %vm64, %v4776, 0.0
    %4785 = vadd.xlane.f32.xlu0 %v4784
    %v4786 = vpop.xlane.xlu0 %4785
    %v4787 = vmul.f32 %v4783, %v71
    %v4788 = vmul.f32 %v4786, %v71
    %v4789 = vsub.f32 %v4775, %v4787
    %v4790 = vsub.f32 %v4776, %v4788
    %v4791 = vmul.f32 %v4789, %v4789
    %v4792 = vmul.f32 %v4790, %v4790
    %v4793 = vsel %vm64, %v4791, 0.0
    %4794 = vadd.xlane.f32.xlu0 %v4793
    %v4795 = vpop.xlane.xlu0 %4794
    %v4796 = vsel %vm64, %v4792, 0.0
    %4797 = vadd.xlane.f32.xlu0 %v4796
    %v4798 = vpop.xlane.xlu0 %4797
    %v4799 = vmul.f32 %v4795, %v71
    %v4800 = vmul.f32 %v4798, %v71
    %v4801 = vadd.f32 %v4799, 1e-12
    %v4802 = vadd.f32 %v4800, 1e-12
    %v4803 = vrsqrt.pop %v4801
    %v4804 = vrsqrt.pop %v4802
    %v4805 = vmul.f32 %v4789, %v4803
    %v4806 = vmul.f32 %v4790, %v4804
    %v4808 = vlaneseq
    %v4809 = vshrl.u32 %v4808, 7
    %v4810 = vsub.s32 0, %v4809
    %v4811 = vrot.slane %v4778, %v4810
    %v4813 = vmul.f32 %v4805, %v4811
    %v4814 = vmul.f32 %v4806, %v4811
    %v4816 = vlaneseq
    %v4817 = vshrl.u32 %v4816, 7
    %v4818 = vsub.s32 0, %v4817
    %v4819 = vrot.slane %v4780, %v4818
    %v4821 = vadd.f32 %v4813, %v4819
    %v4822 = vadd.f32 %v4814, %v4819
    %s4823 = scalar_lea.vmem %s10, 32
    %v4824 = vld [vmem:[%s4823] sm:$0xff]
    %v4825 = vld [vmem:[%s4823 + $0x8] sm:$0xff]
    %v4826 = vld [vmem:[%s4823 + $0x10] sm:$0xff]
    %v4827 = vld [vmem:[%s4823 + $0x18] sm:$0xff]
    %s4828 = scalar_lea.vmem %s11, 1
    %v4829 = vld [vmem:[%s4828] sm:$0x1]
    %v4831 = vlaneseq
    %v4832 = vshrl.u32 %v4831, 7
    %v4833 = vsub.s32 0, %v4832
    %v4834 = vrot.slane %v4829, %v4833
    %v4837 = vsel %vm64, %v4821, 0
    %v4840 = vsel %vm64, %v4822, 0
    %4842 = vmatprep.subr.mxu0 0.0
    %4843 = vmatpush1.msra.mxu0 0.0
    %4844 = vmatprep.subr.mxu0 0.0
    %4845 = vmatpush1.msra.mxu0 0.0
    %4846 = vmatprep.subr.mxu0 0.0
    %4847 = vmatpush1.msra.mxu0 0.0
    %4848 = vmatprep.subr.mxu0 0.0
    %4849 = vmatpush1.msra.mxu0 0.0
    %4850 = vmatprep.subr.mxu0 0.0
    %4851 = vmatpush1.msra.mxu0 0.0
    %4852 = vmatprep.subr.mxu0 0.0
    %4853 = vmatpush1.msra.mxu0 0.0
    %4854 = vmatprep.subr.mxu0 0.0
    %4855 = vmatpush1.msra.mxu0 0.0
    %4856 = vmatprep.subr.mxu0 0.0
    %4857 = vmatpush1.msra.mxu0 0.0
    %4858 = vmatprep.subr.mxu0 0.0
    %4859 = vmatpush1.msra.mxu0 0.0
    %4860 = vmatprep.subr.mxu0 0.0
    %4861 = vmatpush1.msra.mxu0 0.0
    %4862 = vmatprep.subr.mxu0 0.0
    %4863 = vmatpush1.msra.mxu0 0.0
    %4864 = vmatprep.subr.mxu0 0.0
    %4865 = vmatpush1.msra.mxu0 0.0
    %4866 = vmatprep.subr.mxu0 0.0
    %4867 = vmatpush1.msra.mxu0 %v4827
    %4868 = vmatprep.subr.mxu0 0.0
    %4869 = vmatpush1.msra.mxu0 %v4826
    %4870 = vmatprep.subr.mxu0 0.0
    %4871 = vmatpush1.msra.mxu0 %v4825
    %4872 = vmatprep.subr.mxu0 0.0
    %4873 = vmatpush1.msra.mxu0 %v4824
    %4874 = vmatprep.subr.mxu0 0.0
    %4875 = vmatpush2.msra.mxu0 0.0
    %4876 = vmatprep.subr.mxu0 0.0
    %4877 = vmatpush2.msra.mxu0 0.0
    %4878 = vmatprep.subr.mxu0 0.0
    %4879 = vmatpush2.msra.mxu0 0.0
    %4880 = vmatprep.subr.mxu0 0.0
    %4881 = vmatpush2.msra.mxu0 0.0
    %4882 = vmatprep.subr.mxu0 0.0
    %4883 = vmatpush2.msra.mxu0 0.0
    %4884 = vmatprep.subr.mxu0 0.0
    %4885 = vmatpush2.msra.mxu0 0.0
    %4886 = vmatprep.subr.mxu0 0.0
    %4887 = vmatpush2.msra.mxu0 0.0
    %4888 = vmatprep.subr.mxu0 0.0
    %4889 = vmatpush2.msra.mxu0 0.0
    %4890 = vmatprep.subr.mxu0 0.0
    %4891 = vmatpush2.msra.mxu0 0.0
    %4892 = vmatprep.subr.mxu0 0.0
    %4893 = vmatpush2.msra.mxu0 0.0
    %4894 = vmatprep.subr.mxu0 0.0
    %4895 = vmatpush2.msra.mxu0 0.0
    %4896 = vmatprep.subr.mxu0 0.0
    %4897 = vmatpush2.msra.mxu0 0.0
    %4898 = vmatprep.subr.mxu0 0.0
    %4899 = vmatpush2.msra.mxu0 0.0
    %4900 = vmatprep.subr.mxu0 0.0
    %4901 = vmatpush2.msra.mxu0 0.0
    %4902 = vmatprep.subr.mxu0 0.0
    %4903 = vmatpush2.msra.mxu0 0.0
    %4904 = vmatprep.subr.mxu0 0.0
    %4905 = vmatpush2.msra.mxu0 0.0
    %4906 = vmatprep.mubr.f32.mxu0 0.0
    %4907 = vmatmul.mubr.f32.gmra.mxu0 %v4837
    %v4908 = vpop.f32.mrf.mxu0
    %v4909 = vadd.f32 %v4834, %v4908
    %v4910 = vpop.f32.mrf.mxu0
    %4911 = vmatprep.mubr.f32.mxu0 0.0
    %4912 = vmatmul.mubr.f32.gmra.mxu0 %v4840
    %v4913 = vpop.f32.mrf.mxu0
    %v4914 = vadd.f32 %v4834, %v4913
    %v4915 = vpop.f32.mrf.mxu0
    %4916 = vdwg.mxu0
    %v4917 = vmul.f32 %v4909, 0.5
    %v4918 = vmul.f32 %v4914, 0.5
    %v4919 = vmul.f32 %v4909, 0.044715
    %v4920 = vmul.f32 %v4914, 0.044715
    %v4921 = vmul.f32 %v4919, %v4909
    %v4922 = vmul.f32 %v4920, %v4914
    %v4923 = vmul.f32 %v4921, %v4909
    %v4924 = vmul.f32 %v4922, %v4914
    %v4925 = vadd.f32 %v4909, %v4923
    %v4926 = vadd.f32 %v4914, %v4924
    %v4927 = vmul.f32 %v4925, 0.7978846
    %v4928 = vmul.f32 %v4926, 0.7978846
    %v4929 = vtanh.pop %v4927
    %v4930 = vtanh.pop %v4928
    %v4931 = vadd.f32 %v4929, 1.0
    %v4932 = vadd.f32 %v4930, 1.0
    %v4933 = vmul.f32 %v4917, %v4931
    %v4934 = vmul.f32 %v4918, %v4932
    %s4935 = scalar_lea.vmem %s12, 64
    %v4936 = vld [vmem:[%s4935] sm:$0xff]
    %v4937 = vld [vmem:[%s4935 + $0x8] sm:$0xff]
    %v4938 = vld [vmem:[%s4935 + $0x10] sm:$0xff]
    %v4939 = vld [vmem:[%s4935 + $0x18] sm:$0xff]
    %v4940 = vld [vmem:[%s4935 + $0x20] sm:$0xff]
    %v4941 = vld [vmem:[%s4935 + $0x28] sm:$0xff]
    %v4942 = vld [vmem:[%s4935 + $0x30] sm:$0xff]
    %v4943 = vld [vmem:[%s4935 + $0x38] sm:$0xff]
    %s4944 = scalar_lea.vmem %s13, 1
    %v4945 = vld [vmem:[%s4944] sm:$0x1]
    %v4947 = vlaneseq
    %v4948 = vshrl.u32 %v4947, 7
    %v4949 = vsub.s32 0, %v4948
    %v4950 = vrot.slane %v4945, %v4949
    %v4953 = vsel %vm2463, %v4933, 0
    %v4956 = vsel %vm2463, %v4934, 0
    %4958 = vmatprep.subr.mxu0 0.0
    %4959 = vmatpush1.msra.mxu0 0.0
    %4960 = vmatprep.subr.mxu0 0.0
    %4961 = vmatpush1.msra.mxu0 0.0
    %4962 = vmatprep.subr.mxu0 0.0
    %4963 = vmatpush1.msra.mxu0 0.0
    %4964 = vmatprep.subr.mxu0 0.0
    %4965 = vmatpush1.msra.mxu0 0.0
    %4966 = vmatprep.subr.mxu0 0.0
    %4967 = vmatpush1.msra.mxu0 0.0
    %4968 = vmatprep.subr.mxu0 0.0
    %4969 = vmatpush1.msra.mxu0 0.0
    %4970 = vmatprep.subr.mxu0 0.0
    %4971 = vmatpush1.msra.mxu0 0.0
    %4972 = vmatprep.subr.mxu0 0.0
    %4973 = vmatpush1.msra.mxu0 0.0
    %4974 = vmatprep.subr.mxu0 0.0
    %4975 = vmatpush1.msra.mxu0 %v4943
    %4976 = vmatprep.subr.mxu0 0.0
    %4977 = vmatpush1.msra.mxu0 %v4942
    %4978 = vmatprep.subr.mxu0 0.0
    %4979 = vmatpush1.msra.mxu0 %v4941
    %4980 = vmatprep.subr.mxu0 0.0
    %4981 = vmatpush1.msra.mxu0 %v4940
    %4982 = vmatprep.subr.mxu0 0.0
    %4983 = vmatpush1.msra.mxu0 %v4939
    %4984 = vmatprep.subr.mxu0 0.0
    %4985 = vmatpush1.msra.mxu0 %v4938
    %4986 = vmatprep.subr.mxu0 0.0
    %4987 = vmatpush1.msra.mxu0 %v4937
    %4988 = vmatprep.subr.mxu0 0.0
    %4989 = vmatpush1.msra.mxu0 %v4936
    %4990 = vmatprep.subr.mxu0 0.0
    %4991 = vmatpush2.msra.mxu0 0.0
    %4992 = vmatprep.subr.mxu0 0.0
    %4993 = vmatpush2.msra.mxu0 0.0
    %4994 = vmatprep.subr.mxu0 0.0
    %4995 = vmatpush2.msra.mxu0 0.0
    %4996 = vmatprep.subr.mxu0 0.0
    %4997 = vmatpush2.msra.mxu0 0.0
    %4998 = vmatprep.subr.mxu0 0.0
    %4999 = vmatpush2.msra.mxu0 0.0
    %5000 = vmatprep.subr.mxu0 0.0
    %5001 = vmatpush2.msra.mxu0 0.0
    %5002 = vmatprep.subr.mxu0 0.0
    %5003 = vmatpush2.msra.mxu0 0.0
    %5004 = vmatprep.subr.mxu0 0.0
    %5005 = vmatpush2.msra.mxu0 0.0
    %5006 = vmatprep.subr.mxu0 0.0
    %5007 = vmatpush2.msra.mxu0 0.0
    %5008 = vmatprep.subr.mxu0 0.0
    %5009 = vmatpush2.msra.mxu0 0.0
    %5010 = vmatprep.subr.mxu0 0.0
    %5011 = vmatpush2.msra.mxu0 0.0
    %5012 = vmatprep.subr.mxu0 0.0
    %5013 = vmatpush2.msra.mxu0 0.0
    %5014 = vmatprep.subr.mxu0 0.0
    %5015 = vmatpush2.msra.mxu0 0.0
    %5016 = vmatprep.subr.mxu0 0.0
    %5017 = vmatpush2.msra.mxu0 0.0
    %5018 = vmatprep.subr.mxu0 0.0
    %5019 = vmatpush2.msra.mxu0 0.0
    %5020 = vmatprep.subr.mxu0 0.0
    %5021 = vmatpush2.msra.mxu0 0.0
    %5022 = vmatprep.mubr.f32.mxu0 0.0
    %5023 = vmatmul.mubr.f32.gmra.mxu0 %v4953
    %v5024 = vpop.f32.mrf.mxu0
    %v5025 = vadd.f32 %v4950, %v5024
    %v5026 = vpop.f32.mrf.mxu0
    %5027 = vmatprep.mubr.f32.mxu0 0.0
    %5028 = vmatmul.mubr.f32.gmra.mxu0 %v4956
    %v5029 = vpop.f32.mrf.mxu0
    %v5030 = vadd.f32 %v4950, %v5029
    %v5031 = vpop.f32.mrf.mxu0
    %5032 = vdwg.mxu0
    %v5033 = vadd.f32 %v5025, %v4821
    %v5034 = vadd.f32 %v5030, %v4822
    %s5035 = scalar_lea.vmem %s14, 1
    %v5036 = vld [vmem:[%s5035] sm:$0x1]
    %s5037 = scalar_lea.vmem %s15, 1
    %v5038 = vld [vmem:[%s5037] sm:$0x1]
    %v5039 = vsel %vm64, %v5033, 0.0
    %5040 = vadd.xlane.f32.xlu0 %v5039
    %v5041 = vpop.xlane.xlu0 %5040
    %v5042 = vsel %vm64, %v5034, 0.0
    %5043 = vadd.xlane.f32.xlu0 %v5042
    %v5044 = vpop.xlane.xlu0 %5043
    %v5045 = vmul.f32 %v5041, %v71
    %v5046 = vmul.f32 %v5044, %v71
    %v5047 = vsub.f32 %v5033, %v5045
    %v5048 = vsub.f32 %v5034, %v5046
    %v5049 = vmul.f32 %v5047, %v5047
    %v5050 = vmul.f32 %v5048, %v5048
    %v5051 = vsel %vm64, %v5049, 0.0
    %5052 = vadd.xlane.f32.xlu0 %v5051
    %v5053 = vpop.xlane.xlu0 %5052
    %v5054 = vsel %vm64, %v5050, 0.0
    %5055 = vadd.xlane.f32.xlu0 %v5054
    %v5056 = vpop.xlane.xlu0 %5055
    %v5057 = vmul.f32 %v5053, %v71
    %v5058 = vmul.f32 %v5056, %v71
    %v5059 = vadd.f32 %v5057, 1e-12
    %v5060 = vadd.f32 %v5058, 1e-12
    %v5061 = vrsqrt.pop %v5059
    %v5062 = vrsqrt.pop %v5060
    %v5063 = vmul.f32 %v5047, %v5061
    %v5064 = vmul.f32 %v5048, %v5062
    %v5066 = vlaneseq
    %v5067 = vshrl.u32 %v5066, 7
    %v5068 = vsub.s32 0, %v5067
    %v5069 = vrot.slane %v5036, %v5068
    %v5071 = vmul.f32 %v5063, %v5069
    %v5072 = vmul.f32 %v5064, %v5069
    %v5074 = vlaneseq
    %v5075 = vshrl.u32 %v5074, 7
    %v5076 = vsub.s32 0, %v5075
    %v5077 = vrot.slane %v5038, %v5076
    %v5079 = vadd.f32 %v5071, %v5077
    %v5080 = vadd.f32 %v5072, %v5077
    %v5081 = vld [vmem:[%s16] sm:$0xff]
    %v5082 = vld [vmem:[%s16 + $0x8] sm:$0xff]
    %v5083 = vld [vmem:[%s16 + $0x10] sm:$0xff]
    %v5084 = vld [vmem:[%s16 + $0x18] sm:$0xff]
    %v5085 = vld [vmem:[%s17] sm:$0x1]
    %v5087 = vlaneseq
    %v5088 = vshrl.u32 %v5087, 7
    %v5089 = vsub.s32 0, %v5088
    %v5090 = vrot.slane %v5085, %v5089
    %v5093 = vsel %vm64, %v5079, 0
    %v5096 = vsel %vm64, %v5080, 0
    %5098 = vmatprep.subr.mxu0 0.0
    %5099 = vmatpush1.msra.mxu0 0.0
    %5100 = vmatprep.subr.mxu0 0.0
    %5101 = vmatpush1.msra.mxu0 0.0
    %5102 = vmatprep.subr.mxu0 0.0
    %5103 = vmatpush1.msra.mxu0 0.0
    %5104 = vmatprep.subr.mxu0 0.0
    %5105 = vmatpush1.msra.mxu0 0.0
    %5106 = vmatprep.subr.mxu0 0.0
    %5107 = vmatpush1.msra.mxu0 0.0
    %5108 = vmatprep.subr.mxu0 0.0
    %5109 = vmatpush1.msra.mxu0 0.0
    %5110 = vmatprep.subr.mxu0 0.0
    %5111 = vmatpush1.msra.mxu0 0.0
    %5112 = vmatprep.subr.mxu0 0.0
    %5113 = vmatpush1.msra.mxu0 0.0
    %5114 = vmatprep.subr.mxu0 0.0
    %5115 = vmatpush1.msra.mxu0 0.0
    %5116 = vmatprep.subr.mxu0 0.0
    %5117 = vmatpush1.msra.mxu0 0.0
    %5118 = vmatprep.subr.mxu0 0.0
    %5119 = vmatpush1.msra.mxu0 0.0
    %5120 = vmatprep.subr.mxu0 0.0
    %5121 = vmatpush1.msra.mxu0 0.0
    %5122 = vmatprep.subr.mxu0 0.0
    %5123 = vmatpush1.msra.mxu0 %v5084
    %5124 = vmatprep.subr.mxu0 0.0
    %5125 = vmatpush1.msra.mxu0 %v5083
    %5126 = vmatprep.subr.mxu0 0.0
    %5127 = vmatpush1.msra.mxu0 %v5082
    %5128 = vmatprep.subr.mxu0 0.0
    %5129 = vmatpush1.msra.mxu0 %v5081
    %5130 = vmatprep.subr.mxu0 0.0
    %5131 = vmatpush2.msra.mxu0 0.0
    %5132 = vmatprep.subr.mxu0 0.0
    %5133 = vmatpush2.msra.mxu0 0.0
    %5134 = vmatprep.subr.mxu0 0.0
    %5135 = vmatpush2.msra.mxu0 0.0
    %5136 = vmatprep.subr.mxu0 0.0
    %5137 = vmatpush2.msra.mxu0 0.0
    %5138 = vmatprep.subr.mxu0 0.0
    %5139 = vmatpush2.msra.mxu0 0.0
    %5140 = vmatprep.subr.mxu0 0.0
    %5141 = vmatpush2.msra.mxu0 0.0
    %5142 = vmatprep.subr.mxu0 0.0
    %5143 = vmatpush2.msra.mxu0 0.0
    %5144 = vmatprep.subr.mxu0 0.0
    %5145 = vmatpush2.msra.mxu0 0.0
    %5146 = vmatprep.subr.mxu0 0.0
    %5147 = vmatpush2.msra.mxu0 0.0
    %5148 = vmatprep.subr.mxu0 0.0
    %5149 = vmatpush2.msra.mxu0 0.0
    %5150 = vmatprep.subr.mxu0 0.0
    %5151 = vmatpush2.msra.mxu0 0.0
    %5152 = vmatprep.subr.mxu0 0.0
    %5153 = vmatpush2.msra.mxu0 0.0
    %5154 = vmatprep.subr.mxu0 0.0
    %5155 = vmatpush2.msra.mxu0 0.0
    %5156 = vmatprep.subr.mxu0 0.0
    %5157 = vmatpush2.msra.mxu0 0.0
    %5158 = vmatprep.subr.mxu0 0.0
    %5159 = vmatpush2.msra.mxu0 0.0
    %5160 = vmatprep.subr.mxu0 0.0
    %5161 = vmatpush2.msra.mxu0 0.0
    %5162 = vmatprep.mubr.f32.mxu0 0.0
    %5163 = vmatmul.mubr.f32.gmra.mxu0 %v5093
    %v5164 = vpop.f32.mrf.mxu0
    %v5165 = vadd.f32 %v5090, %v5164
    %v5166 = vpop.f32.mrf.mxu0
    %5167 = vmatprep.mubr.f32.mxu0 0.0
    %5168 = vmatmul.mubr.f32.gmra.mxu0 %v5096
    %v5169 = vpop.f32.mrf.mxu0
    %v5170 = vadd.f32 %v5090, %v5169
    %v5171 = vpop.f32.mrf.mxu0
    %5172 = vdwg.mxu0
    %5173 = vst [vmem:[#allocation2] sm:$0xff] %v5165
    %5174 = vst [vmem:[#allocation2 + $0x8] sm:$0xff] %v5170
    // Predicated region
    $region74: #{tpu_custom_call.1} parent=1 // pred_check
      _
    $region75: #{tpu_custom_call.1} parent=1 // pred_check_branch
      %5176 = sbr.rel (0) target = $region77
    $region76: #{tpu_custom_call.1} parent=1 // pred_region
      %s5178 = ssub.s32 256, 256
      %5179 = vsyncadd [#allocation3], %s5178
      %s5180 = sshll.u32 [#allocation2], 4
      %s5181 = int_to_ptr.vmem [resolvable:$true] %s5180
      %5186 = dma.vmem_to_hbm [thread:$0]  %s5181, 256, %s18, [#allocation3], 128, 128, 8
    $region77: #{tpu_custom_call.1} parent=1 // pred_fallthru
      _
    // Predicated region
    $region78: #{tpu_custom_call.1} parent=1 // pred_check
      _
    $region79: #{tpu_custom_call.1} parent=1 // pred_check_branch
      %5188 = sbr.rel (0) target = $region81
    $region80: #{tpu_custom_call.1} parent=1 // pred_region
      %5189 = dma.done [#allocation3], 256
    $region81: #{tpu_custom_call.1} parent=1 // pred_fallthru
      _
    %5190 = vsyncpa [#allocation3], 1

</llo_original>
